<compile_context>
chip_gen: v5e
topology: v5e:2x2
jax: 0.10.0
libtpu: 0.0.40
codegen_flags: <defaults>
</compile_context>

<pallas_src>
import jax
import jax.numpy as jnp
from jax import lax
from jax.experimental import pallas as pl
from jax.experimental.pallas import tpu as pltpu


def _round_up(x, m):
    return ((x + m - 1) // m) * m


# ------------------------------ fused LeNet kernel -----------------------------------

def _fused_kernel(x_ref, w1_ref, b1_ref, w2_ref, b2_ref,
                  fw1_ref, fb1_ref, fw2_ref, fb2_ref, fw3_ref, fb3_ref,
                  out_ref, p1_scr, f_scr):
    """One grid step = one block of B images, batch on the lane dimension.

    x_ref  : (4, 16, 16, B) VMEM  pooling-phase-split input, [hp*2+wp, H//2, W//2, b]
    w1_ref : (54,)  SMEM  conv1 weights [c*9 + ky*3 + kx]
    b1_ref : (6,)   SMEM  conv1 bias
    w2_ref : (864,) SMEM  conv2 weights [((ky*3+kx)*6 + ci)*16 + co]
    b2_ref : (16,)  SMEM  conv2 bias
    fw*/fb*: fc weights (bf16, (out,in) layout) and biases (f32, (out,1))
    out_ref: (10, B) VMEM logits, batch on lanes
    p1_scr : (6, 15, 15, B) VMEM  pooled conv1 activations
    f_scr  : (576, B) VMEM  pooled conv2 features, row = co*36 + oh*6 + ow (torch order)
    """

    # ---- conv1 (1->6, 3x3) + bias + ReLU + 2x2/2 max-pool (pool folded as 4 phases) ---
    @pl.loop(0, 6)
    def _(c):
        # hoisted: 9 weight scalars read once per channel, reused by all 4 pool phases
        wc = [w1_ref[c * 9 + t] for t in range(9)]
        pooled = None
        for dy in range(2):
            for dx in range(2):
                acc = None
                for ky in range(3):
                    for kx in range(3):
                        sy, sx = dy + ky, dx + kx
                        # slab[oh, ow, b] == X[b, 2*oh + sy, 2*ow + sx]
                        t = x_ref[(sy % 2) * 2 + (sx % 2),
                                  sy // 2: sy // 2 + 15,
                                  sx // 2: sx // 2 + 15, :] * wc[ky * 3 + kx]
                        acc = t if acc is None else acc + t
                pooled = acc if pooled is None else jnp.maximum(pooled, acc)
        p1_scr[c] = jnp.maximum(pooled + b1_ref[c], 0.0)          # (15, 15, B)

    # ---- conv2 (6->16, 3x3) + bias + ReLU on the 12x12 region + 2x2/2 max-pool -------
    @pl.loop(0, 16)
    def _(co):
        acc = None
        for ky in range(3):
            for kx in range(3):
                for ci in range(6):
                    w = w2_ref[((ky * 3 + kx) * 6 + ci) * 16 + co]
                    t = p1_scr[ci, ky:ky + 12, kx:kx + 12, :] * w   # (12, 12, B)
                    acc = t if acc is None else acc + t
        c2 = jnp.maximum(acc + b2_ref[co], 0.0)                      # (12, 12, B)

        # 2x2/2 max-pool -> 36 rows of (1, B), assembled into one dense (36, B) store.
        pieces = []
        for oh in range(6):
            rm = jnp.maximum(c2[2 * oh], c2[2 * oh + 1])             # (12, B)
            for ow in range(6):
                pieces.append(jnp.maximum(rm[2 * ow: 2 * ow + 1, :],
                                          rm[2 * ow + 1: 2 * ow + 2, :]))
        f_scr[pl.ds(co * 36, 36), :] = jnp.concatenate(pieces, axis=0)

    # ---- fc1 -> fc2 -> fc3 on the MXU, batch stays on lanes, bf16 in / f32 accum -----
    f = f_scr[...].astype(jnp.bfloat16)                              # (576, B)
    h = jnp.dot(fw1_ref[...], f, preferred_element_type=jnp.float32) + fb1_ref[...]
    h = jnp.maximum(h, 0.0).astype(jnp.bfloat16)                     # (120, B)
    h = jnp.dot(fw2_ref[...], h, preferred_element_type=jnp.float32) + fb2_ref[...]
    h = jnp.maximum(h, 0.0).astype(jnp.bfloat16)                     # (84, B)
    y = jnp.dot(fw3_ref[...], h, preferred_element_type=jnp.float32) + fb3_ref[...]
    out_ref[...] = y.astype(out_ref.dtype)                           # (10, B) lane-dense


def _lenet_fused(x_ph, w1, b1, w2, b2, fw1, fb1, fw2, fb2, fw3, fb3, *, bb):
    n_pad = x_ph.shape[-1]
    smem = pl.BlockSpec(memory_space=pltpu.MemorySpace.SMEM)

    def full(a):
        nd = a.ndim
        return pl.BlockSpec(a.shape, lambda i, _nd=nd: (0,) * _nd)

    return pl.pallas_call(
        _fused_kernel,
        out_shape=jax.ShapeDtypeStruct((10, n_pad), jnp.float32),
        grid=(n_pad // bb,),
        in_specs=[
            pl.BlockSpec((4, 16, 16, bb), lambda i: (0, 0, 0, i)),   # phased input block
            smem, smem, smem, smem,                                  # conv weights/biases
            full(fw1), full(fb1), full(fw2), full(fb2), full(fw3), full(fb3),
        ],
        out_specs=pl.BlockSpec((10, bb), lambda i: (0, i)),
        scratch_shapes=[
            pltpu.VMEM((6, 15, 15, bb), jnp.float32),                # pooled conv1 acts
            pltpu.VMEM((576, bb), jnp.float32),                      # pooled conv2 feats
        ],
        compiler_params=pltpu.CompilerParams(
            dimension_semantics=("parallel",),
            vmem_limit_bytes=32 * 1024 * 1024,
        ),
    )(x_ph, w1, b1, w2, b2, fw1, fb1, fw2, fb2, fw3, fb3)


# ----------------------------------- forward pass ------------------------------------

@jax.jit
def net_forward(x_nchw, params):
    n, cin, h, w = x_nchw.shape
    assert (cin, h, w) == (1, 32, 32), "Net's fc1 (16*6*6) implies 1x32x32 inputs"
    f32 = jnp.float32

    # Batch (lane) blocking: pad to a multiple of 8 (small n) or 128 (large n, B=128).
    if n <= 128:
        n_pad = _round_up(n, 8)
        bb = n_pad
    else:
        n_pad = _round_up(n, 128)
        bb = 128

    # NCHW -> pooling-phase-split with batch on lanes: (4, 16, 16, n_pad),
    # x_ph[p, r, c, b] == X[b, 2r + p//2, 2c + p%2]  (tiny one-off relayout).
    x = x_nchw.astype(f32).reshape(n, 32, 32)
    x = x.reshape(n, 16, 2, 16, 2).transpose(2, 4, 1, 3, 0)          # (hp, wp, 16, 16, n)
    x = x.reshape(4, 16, 16, n)
    x = jnp.pad(x, ((0, 0), (0, 0), (0, 0), (0, n_pad - n)))

    # Kernel-friendly weight layouts (tiny, trace-time only).
    w1_flat = params["conv1_w"].astype(f32).reshape(54)              # [c*9 + ky*3 + kx]
    b1 = params["conv1_b"].astype(f32)
    w2_flat = params["conv2_w"].astype(f32).transpose(2, 3, 1, 0).reshape(864)
    b2 = params["conv2_b"].astype(f32)

    bf16 = jnp.bfloat16
    fw1 = params["fc1_w"].astype(bf16)                               # (120, 576), torch order
    fb1 = params["fc1_b"].astype(f32).reshape(120, 1)
    fw2 = params["fc2_w"].astype(bf16)                               # (84, 120)
    fb2 = params["fc2_b"].astype(f32).reshape(84, 1)
    fw3 = params["fc3_w"].astype(bf16)                               # (10, 84)
    fb3 = params["fc3_b"].astype(f32).reshape(10, 1)

    y = _lenet_fused(x, w1_flat, b1, w2_flat, b2,
                     fw1, fb1, fw2, fb2, fw3, fb3, bb=bb)            # (10, n_pad)
    return y[:, :n].T                                                # (n, 10)


# ----------------------------- params / pure-JAX reference ---------------------------

def init_params(key):
    ks = jax.random.split(key, 10)

    def w(k, shape, fan_in):
        return jax.random.normal(k, shape, jnp.float32) / jnp.sqrt(jnp.float32(fan_in))

    return {
        "conv1_w": w(ks[0], (6, 1, 3, 3), 9),
        "conv1_b": w(ks[1], (6,), 9),
        "conv2_w": w(ks[2], (16, 6, 3, 3), 54),
        "conv2_b": w(ks[3], (16,), 54),
        # fc weights in PyTorch (out_features, in_features) convention.
        "fc1_w": w(ks[4], (120, 576), 576),
        "fc1_b": w(ks[5], (120,), 576),
        "fc2_w": w(ks[6], (84, 120), 120),
        "fc2_b": w(ks[7], (84,), 120),
        "fc3_w": w(ks[8], (10, 84), 84),
        "fc3_b": w(ks[9], (10,), 84),
    }


def net_reference(x_nchw, p):
    """Pure-JAX reference with PyTorch semantics (sanity check only)."""
    dn = ("NCHW", "OIHW", "NCHW")
    y = lax.conv_general_dilated(x_nchw, p["conv1_w"], (1, 1), "VALID", dimension_numbers=dn)
    y = jax.nn.relu(y + p["conv1_b"].reshape(1, -1, 1, 1))
    y = lax.reduce_window(y, -jnp.inf, lax.max, (1, 1, 2, 2), (1, 1, 2, 2), "VALID")
    y = lax.conv_general_dilated(y, p["conv2_w"], (1, 1), "VALID", dimension_numbers=dn)
    y = jax.nn.relu(y + p["conv2_b"].reshape(1, -1, 1, 1))
    y = lax.reduce_window(y, -jnp.inf, lax.max, (1, 1, 2, 2), (1, 1, 2, 2), "VALID")
    y = y.reshape(y.shape[0], -1)                                    # NCHW flatten, like PyTorch
    y = jax.nn.relu(y @ p["fc1_w"].T + p["fc1_b"])
    y = jax.nn.relu(y @ p["fc2_w"].T + p["fc2_b"])
    return y @ p["fc3_w"].T + p["fc3_b"]


if __name__ == "__main__":
    key = jax.random.PRNGKey(0)
    kx, kp = jax.random.split(key)
    # Net's fc1 (16*6*6) implies 32x32 single-channel inputs; batch = 2.
    x = jax.random.normal(kx, (2, 1, 32, 32), jnp.float32)
    params = init_params(kp)

    out = jax.block_until_ready(net_forward(x, params))
    assert out.shape == (2, 10)

    ref = jax.block_until_ready(net_reference(x, params))
    max_err = float(jnp.max(jnp.abs(out - ref)))
    # conv path is f32-exact; the fc stack uses bf16 MXU operands (f32 accumulation).
    assert max_err < 3e-2, f"mismatch vs reference: {max_err}"

    print("KERNEL_OK")
</pallas_src>

<mosaic_0001>
module attributes {stable_mosaic.version = 11 : i64} {
  func.func @_fused_kernel(%arg0: i32, %arg1: memref<4x16x16x8xf32, #tpu.memory_space<vmem>>, %arg2: memref<54xf32, #tpu.memory_space<smem>>, %arg3: memref<6xf32, #tpu.memory_space<smem>>, %arg4: memref<864xf32, #tpu.memory_space<smem>>, %arg5: memref<16xf32, #tpu.memory_space<smem>>, %arg6: memref<120x576xbf16, #tpu.memory_space<vmem>>, %arg7: memref<120x1xf32, #tpu.memory_space<vmem>>, %arg8: memref<84x120xbf16, #tpu.memory_space<vmem>>, %arg9: memref<84x1xf32, #tpu.memory_space<vmem>>, %arg10: memref<10x84xbf16, #tpu.memory_space<vmem>>, %arg11: memref<10x1xf32, #tpu.memory_space<vmem>>, %arg12: memref<10x8xf32, #tpu.memory_space<vmem>>, %arg13: memref<6x15x15x8xf32, #tpu.memory_space<vmem>>, %arg14: memref<576x8xf32, #tpu.memory_space<vmem>>) attributes {dimension_semantics = [#tpu.dimension_semantics<parallel>], iteration_bounds = array<i64: 1>, scalar_prefetch = 0 : i64, scratch_operands = 2 : i64, tpu.core_type = #tpu.core_type<tc>, window_params = [{transform_indices = @transform_0, window_bounds = array<i64: 4, 16, 16, 8>}, {transform_indices = @transform_1, window_bounds = array<i64: 54>}, {transform_indices = @transform_2, window_bounds = array<i64: 6>}, {transform_indices = @transform_3, window_bounds = array<i64: 864>}, {transform_indices = @transform_4, window_bounds = array<i64: 16>}, {pipeline_mode = #tpu.pipeline_mode<synchronous>, transform_indices = @transform_5, window_bounds = array<i64: 120, 576>}, {pipeline_mode = #tpu.pipeline_mode<synchronous>, transform_indices = @transform_6, window_bounds = array<i64: 120, 1>}, {pipeline_mode = #tpu.pipeline_mode<synchronous>, transform_indices = @transform_7, window_bounds = array<i64: 84, 120>}, {pipeline_mode = #tpu.pipeline_mode<synchronous>, transform_indices = @transform_8, window_bounds = array<i64: 84, 1>}, {pipeline_mode = #tpu.pipeline_mode<synchronous>, transform_indices = @transform_9, window_bounds = array<i64: 10, 84>}, {pipeline_mode = #tpu.pipeline_mode<synchronous>, transform_indices = @transform_10, window_bounds = array<i64: 10, 1>}, {transform_indices = @transform_11, window_bounds = array<i64: 10, 8>}]} {
    %c0_i32 = arith.constant 0 : i32
    %c6_i32 = arith.constant 6 : i32
    %0 = arith.addi %c0_i32, %c6_i32 : i32
    %c1_i32 = arith.constant 1 : i32
    scf.for %arg15 = %c0_i32 to %0 step %c1_i32  : i32 {
      %c1_i32_23 = arith.constant 1 : i32
      %26 = arith.muli %arg15, %c1_i32_23 : i32
      %c0_i32_24 = arith.constant 0 : i32
      %27 = arith.addi %c0_i32_24, %26 : i32
      %c9_i32 = arith.constant 9 : i32
      %28 = arith.muli %27, %c9_i32 : i32
      %c0_i32_25 = arith.constant 0 : i32
      %29 = arith.addi %28, %c0_i32_25 : i32
      %30 = arith.index_cast %29 : i32 to index
      %31 = memref.load %arg2[%30] : memref<54xf32, #tpu.memory_space<smem>>
      %c9_i32_26 = arith.constant 9 : i32
      %32 = arith.muli %27, %c9_i32_26 : i32
      %c1_i32_27 = arith.constant 1 : i32
      %33 = arith.addi %32, %c1_i32_27 : i32
      %34 = arith.index_cast %33 : i32 to index
      %35 = memref.load %arg2[%34] : memref<54xf32, #tpu.memory_space<smem>>
      %c9_i32_28 = arith.constant 9 : i32
      %36 = arith.muli %27, %c9_i32_28 : i32
      %c2_i32 = arith.constant 2 : i32
      %37 = arith.addi %36, %c2_i32 : i32
      %38 = arith.index_cast %37 : i32 to index
      %39 = memref.load %arg2[%38] : memref<54xf32, #tpu.memory_space<smem>>
      %c9_i32_29 = arith.constant 9 : i32
      %40 = arith.muli %27, %c9_i32_29 : i32
      %c3_i32 = arith.constant 3 : i32
      %41 = arith.addi %40, %c3_i32 : i32
      %42 = arith.index_cast %41 : i32 to index
      %43 = memref.load %arg2[%42] : memref<54xf32, #tpu.memory_space<smem>>
      %c9_i32_30 = arith.constant 9 : i32
      %44 = arith.muli %27, %c9_i32_30 : i32
      %c4_i32 = arith.constant 4 : i32
      %45 = arith.addi %44, %c4_i32 : i32
      %46 = arith.index_cast %45 : i32 to index
      %47 = memref.load %arg2[%46] : memref<54xf32, #tpu.memory_space<smem>>
      %c9_i32_31 = arith.constant 9 : i32
      %48 = arith.muli %27, %c9_i32_31 : i32
      %c5_i32 = arith.constant 5 : i32
      %49 = arith.addi %48, %c5_i32 : i32
      %50 = arith.index_cast %49 : i32 to index
      %51 = memref.load %arg2[%50] : memref<54xf32, #tpu.memory_space<smem>>
      %c9_i32_32 = arith.constant 9 : i32
      %52 = arith.muli %27, %c9_i32_32 : i32
      %c6_i32_33 = arith.constant 6 : i32
      %53 = arith.addi %52, %c6_i32_33 : i32
      %54 = arith.index_cast %53 : i32 to index
      %55 = memref.load %arg2[%54] : memref<54xf32, #tpu.memory_space<smem>>
      %c9_i32_34 = arith.constant 9 : i32
      %56 = arith.muli %27, %c9_i32_34 : i32
      %c7_i32 = arith.constant 7 : i32
      %57 = arith.addi %56, %c7_i32 : i32
      %58 = arith.index_cast %57 : i32 to index
      %59 = memref.load %arg2[%58] : memref<54xf32, #tpu.memory_space<smem>>
      %c9_i32_35 = arith.constant 9 : i32
      %60 = arith.muli %27, %c9_i32_35 : i32
      %c8_i32 = arith.constant 8 : i32
      %61 = arith.addi %60, %c8_i32 : i32
      %62 = arith.index_cast %61 : i32 to index
      %63 = memref.load %arg2[%62] : memref<54xf32, #tpu.memory_space<smem>>
      %c0_36 = arith.constant 0 : index
      %c0_37 = arith.constant 0 : index
      %c0_38 = arith.constant 0 : index
      %c0_39 = arith.constant 0 : index
      %64 = vector.load %arg1[%c0_36, %c0_37, %c0_38, %c0_39] : memref<4x16x16x8xf32, #tpu.memory_space<vmem>>, vector<1x15x15x8xf32>
      %65 = vector.shape_cast %64 : vector<1x15x15x8xf32> to vector<15x15x8xf32>
      %66 = vector.broadcast %31 : f32 to vector<15x15x8xf32>
      %67 = arith.mulf %65, %66 : vector<15x15x8xf32>
      %c1 = arith.constant 1 : index
      %c0_40 = arith.constant 0 : index
      %c0_41 = arith.constant 0 : index
      %c0_42 = arith.constant 0 : index
      %68 = vector.load %arg1[%c1, %c0_40, %c0_41, %c0_42] : memref<4x16x16x8xf32, #tpu.memory_space<vmem>>, vector<1x15x15x8xf32>
      %69 = vector.shape_cast %68 : vector<1x15x15x8xf32> to vector<15x15x8xf32>
      %70 = vector.broadcast %35 : f32 to vector<15x15x8xf32>
      %71 = arith.mulf %69, %70 : vector<15x15x8xf32>
      %72 = arith.addf %67, %71 : vector<15x15x8xf32>
      %c0_43 = arith.constant 0 : index
      %c0_44 = arith.constant 0 : index
      %c1_45 = arith.constant 1 : index
      %c0_46 = arith.constant 0 : index
      %73 = vector.load %arg1[%c0_43, %c0_44, %c1_45, %c0_46] : memref<4x16x16x8xf32, #tpu.memory_space<vmem>>, vector<1x15x15x8xf32>
      %74 = vector.shape_cast %73 : vector<1x15x15x8xf32> to vector<15x15x8xf32>
      %75 = vector.broadcast %39 : f32 to vector<15x15x8xf32>
      %76 = arith.mulf %74, %75 : vector<15x15x8xf32>
      %77 = arith.addf %72, %76 : vector<15x15x8xf32>
      %c2 = arith.constant 2 : index
      %c0_47 = arith.constant 0 : index
      %c0_48 = arith.constant 0 : index
      %c0_49 = arith.constant 0 : index
      %78 = vector.load %arg1[%c2, %c0_47, %c0_48, %c0_49] : memref<4x16x16x8xf32, #tpu.memory_space<vmem>>, vector<1x15x15x8xf32>
      %79 = vector.shape_cast %78 : vector<1x15x15x8xf32> to vector<15x15x8xf32>
      %80 = vector.broadcast %43 : f32 to vector<15x15x8xf32>
      %81 = arith.mulf %79, %80 : vector<15x15x8xf32>
      %82 = arith.addf %77, %81 : vector<15x15x8xf32>
      %c3 = arith.constant 3 : index
      %c0_50 = arith.constant 0 : index
      %c0_51 = arith.constant 0 : index
      %c0_52 = arith.constant 0 : index
      %83 = vector.load %arg1[%c3, %c0_50, %c0_51, %c0_52] : memref<4x16x16x8xf32, #tpu.memory_space<vmem>>, vector<1x15x15x8xf32>
      %84 = vector.shape_cast %83 : vector<1x15x15x8xf32> to vector<15x15x8xf32>
      %85 = vector.broadcast %47 : f32 to vector<15x15x8xf32>
      %86 = arith.mulf %84, %85 : vector<15x15x8xf32>
      %87 = arith.addf %82, %86 : vector<15x15x8xf32>
      %c2_53 = arith.constant 2 : index
      %c0_54 = arith.constant 0 : index
      %c1_55 = arith.constant 1 : index
      %c0_56 = arith.constant 0 : index
      %88 = vector.load %arg1[%c2_53, %c0_54, %c1_55, %c0_56] : memref<4x16x16x8xf32, #tpu.memory_space<vmem>>, vector<1x15x15x8xf32>
      %89 = vector.shape_cast %88 : vector<1x15x15x8xf32> to vector<15x15x8xf32>
      %90 = vector.broadcast %51 : f32 to vector<15x15x8xf32>
      %91 = arith.mulf %89, %90 : vector<15x15x8xf32>
      %92 = arith.addf %87, %91 : vector<15x15x8xf32>
      %c0_57 = arith.constant 0 : index
      %c1_58 = arith.constant 1 : index
      %c0_59 = arith.constant 0 : index
      %c0_60 = arith.constant 0 : index
      %93 = vector.load %arg1[%c0_57, %c1_58, %c0_59, %c0_60] : memref<4x16x16x8xf32, #tpu.memory_space<vmem>>, vector<1x15x15x8xf32>
      %94 = vector.shape_cast %93 : vector<1x15x15x8xf32> to vector<15x15x8xf32>
      %95 = vector.broadcast %55 : f32 to vector<15x15x8xf32>
      %96 = arith.mulf %94, %95 : vector<15x15x8xf32>
      %97 = arith.addf %92, %96 : vector<15x15x8xf32>
      %c1_61 = arith.constant 1 : index
      %c1_62 = arith.constant 1 : index
      %c0_63 = arith.constant 0 : index
      %c0_64 = arith.constant 0 : index
      %98 = vector.load %arg1[%c1_61, %c1_62, %c0_63, %c0_64] : memref<4x16x16x8xf32, #tpu.memory_space<vmem>>, vector<1x15x15x8xf32>
      %99 = vector.shape_cast %98 : vector<1x15x15x8xf32> to vector<15x15x8xf32>
      %100 = vector.broadcast %59 : f32 to vector<15x15x8xf32>
      %101 = arith.mulf %99, %100 : vector<15x15x8xf32>
      %102 = arith.addf %97, %101 : vector<15x15x8xf32>
      %c0_65 = arith.constant 0 : index
      %c1_66 = arith.constant 1 : index
      %c1_67 = arith.constant 1 : index
      %c0_68 = arith.constant 0 : index
      %103 = vector.load %arg1[%c0_65, %c1_66, %c1_67, %c0_68] : memref<4x16x16x8xf32, #tpu.memory_space<vmem>>, vector<1x15x15x8xf32>
      %104 = vector.shape_cast %103 : vector<1x15x15x8xf32> to vector<15x15x8xf32>
      %105 = vector.broadcast %63 : f32 to vector<15x15x8xf32>
      %106 = arith.mulf %104, %105 : vector<15x15x8xf32>
      %107 = arith.addf %102, %106 : vector<15x15x8xf32>
      %c1_69 = arith.constant 1 : index
      %c0_70 = arith.constant 0 : index
      %c0_71 = arith.constant 0 : index
      %c0_72 = arith.constant 0 : index
      %108 = vector.load %arg1[%c1_69, %c0_70, %c0_71, %c0_72] : memref<4x16x16x8xf32, #tpu.memory_space<vmem>>, vector<1x15x15x8xf32>
      %109 = vector.shape_cast %108 : vector<1x15x15x8xf32> to vector<15x15x8xf32>
      %110 = vector.broadcast %31 : f32 to vector<15x15x8xf32>
      %111 = arith.mulf %109, %110 : vector<15x15x8xf32>
      %c0_73 = arith.constant 0 : index
      %c0_74 = arith.constant 0 : index
      %c1_75 = arith.constant 1 : index
      %c0_76 = arith.constant 0 : index
      %112 = vector.load %arg1[%c0_73, %c0_74, %c1_75, %c0_76] : memref<4x16x16x8xf32, #tpu.memory_space<vmem>>, vector<1x15x15x8xf32>
      %113 = vector.shape_cast %112 : vector<1x15x15x8xf32> to vector<15x15x8xf32>
      %114 = vector.broadcast %35 : f32 to vector<15x15x8xf32>
      %115 = arith.mulf %113, %114 : vector<15x15x8xf32>
      %116 = arith.addf %111, %115 : vector<15x15x8xf32>
      %c1_77 = arith.constant 1 : index
      %c0_78 = arith.constant 0 : index
      %c1_79 = arith.constant 1 : index
      %c0_80 = arith.constant 0 : index
      %117 = vector.load %arg1[%c1_77, %c0_78, %c1_79, %c0_80] : memref<4x16x16x8xf32, #tpu.memory_space<vmem>>, vector<1x15x15x8xf32>
      %118 = vector.shape_cast %117 : vector<1x15x15x8xf32> to vector<15x15x8xf32>
      %119 = vector.broadcast %39 : f32 to vector<15x15x8xf32>
      %120 = arith.mulf %118, %119 : vector<15x15x8xf32>
      %121 = arith.addf %116, %120 : vector<15x15x8xf32>
      %c3_81 = arith.constant 3 : index
      %c0_82 = arith.constant 0 : index
      %c0_83 = arith.constant 0 : index
      %c0_84 = arith.constant 0 : index
      %122 = vector.load %arg1[%c3_81, %c0_82, %c0_83, %c0_84] : memref<4x16x16x8xf32, #tpu.memory_space<vmem>>, vector<1x15x15x8xf32>
      %123 = vector.shape_cast %122 : vector<1x15x15x8xf32> to vector<15x15x8xf32>
      %124 = vector.broadcast %43 : f32 to vector<15x15x8xf32>
      %125 = arith.mulf %123, %124 : vector<15x15x8xf32>
      %126 = arith.addf %121, %125 : vector<15x15x8xf32>
      %c2_85 = arith.constant 2 : index
      %c0_86 = arith.constant 0 : index
      %c1_87 = arith.constant 1 : index
      %c0_88 = arith.constant 0 : index
      %127 = vector.load %arg1[%c2_85, %c0_86, %c1_87, %c0_88] : memref<4x16x16x8xf32, #tpu.memory_space<vmem>>, vector<1x15x15x8xf32>
      %128 = vector.shape_cast %127 : vector<1x15x15x8xf32> to vector<15x15x8xf32>
      %129 = vector.broadcast %47 : f32 to vector<15x15x8xf32>
      %130 = arith.mulf %128, %129 : vector<15x15x8xf32>
      %131 = arith.addf %126, %130 : vector<15x15x8xf32>
      %c3_89 = arith.constant 3 : index
      %c0_90 = arith.constant 0 : index
      %c1_91 = arith.constant 1 : index
      %c0_92 = arith.constant 0 : index
      %132 = vector.load %arg1[%c3_89, %c0_90, %c1_91, %c0_92] : memref<4x16x16x8xf32, #tpu.memory_space<vmem>>, vector<1x15x15x8xf32>
      %133 = vector.shape_cast %132 : vector<1x15x15x8xf32> to vector<15x15x8xf32>
      %134 = vector.broadcast %51 : f32 to vector<15x15x8xf32>
      %135 = arith.mulf %133, %134 : vector<15x15x8xf32>
      %136 = arith.addf %131, %135 : vector<15x15x8xf32>
      %c1_93 = arith.constant 1 : index
      %c1_94 = arith.constant 1 : index
      %c0_95 = arith.constant 0 : index
      %c0_96 = arith.constant 0 : index
      %137 = vector.load %arg1[%c1_93, %c1_94, %c0_95, %c0_96] : memref<4x16x16x8xf32, #tpu.memory_space<vmem>>, vector<1x15x15x8xf32>
      %138 = vector.shape_cast %137 : vector<1x15x15x8xf32> to vector<15x15x8xf32>
      %139 = vector.broadcast %55 : f32 to vector<15x15x8xf32>
      %140 = arith.mulf %138, %139 : vector<15x15x8xf32>
      %141 = arith.addf %136, %140 : vector<15x15x8xf32>
      %c0_97 = arith.constant 0 : index
      %c1_98 = arith.constant 1 : index
      %c1_99 = arith.constant 1 : index
      %c0_100 = arith.constant 0 : index
      %142 = vector.load %arg1[%c0_97, %c1_98, %c1_99, %c0_100] : memref<4x16x16x8xf32, #tpu.memory_space<vmem>>, vector<1x15x15x8xf32>
      %143 = vector.shape_cast %142 : vector<1x15x15x8xf32> to vector<15x15x8xf32>
      %144 = vector.broadcast %59 : f32 to vector<15x15x8xf32>
      %145 = arith.mulf %143, %144 : vector<15x15x8xf32>
      %146 = arith.addf %141, %145 : vector<15x15x8xf32>
      %c1_101 = arith.constant 1 : index
      %c1_102 = arith.constant 1 : index
      %c1_103 = arith.constant 1 : index
      %c0_104 = arith.constant 0 : index
      %147 = vector.load %arg1[%c1_101, %c1_102, %c1_103, %c0_104] : memref<4x16x16x8xf32, #tpu.memory_space<vmem>>, vector<1x15x15x8xf32>
      %148 = vector.shape_cast %147 : vector<1x15x15x8xf32> to vector<15x15x8xf32>
      %149 = vector.broadcast %63 : f32 to vector<15x15x8xf32>
      %150 = arith.mulf %148, %149 : vector<15x15x8xf32>
      %151 = arith.addf %146, %150 : vector<15x15x8xf32>
      %152 = arith.maximumf %107, %151 : vector<15x15x8xf32>
      %c2_105 = arith.constant 2 : index
      %c0_106 = arith.constant 0 : index
      %c0_107 = arith.constant 0 : index
      %c0_108 = arith.constant 0 : index
      %153 = vector.load %arg1[%c2_105, %c0_106, %c0_107, %c0_108] : memref<4x16x16x8xf32, #tpu.memory_space<vmem>>, vector<1x15x15x8xf32>
      %154 = vector.shape_cast %153 : vector<1x15x15x8xf32> to vector<15x15x8xf32>
      %155 = vector.broadcast %31 : f32 to vector<15x15x8xf32>
      %156 = arith.mulf %154, %155 : vector<15x15x8xf32>
      %c3_109 = arith.constant 3 : index
      %c0_110 = arith.constant 0 : index
      %c0_111 = arith.constant 0 : index
      %c0_112 = arith.constant 0 : index
      %157 = vector.load %arg1[%c3_109, %c0_110, %c0_111, %c0_112] : memref<4x16x16x8xf32, #tpu.memory_space<vmem>>, vector<1x15x15x8xf32>
      %158 = vector.shape_cast %157 : vector<1x15x15x8xf32> to vector<15x15x8xf32>
      %159 = vector.broadcast %35 : f32 to vector<15x15x8xf32>
      %160 = arith.mulf %158, %159 : vector<15x15x8xf32>
      %161 = arith.addf %156, %160 : vector<15x15x8xf32>
      %c2_113 = arith.constant 2 : index
      %c0_114 = arith.constant 0 : index
      %c1_115 = arith.constant 1 : index
      %c0_116 = arith.constant 0 : index
      %162 = vector.load %arg1[%c2_113, %c0_114, %c1_115, %c0_116] : memref<4x16x16x8xf32, #tpu.memory_space<vmem>>, vector<1x15x15x8xf32>
      %163 = vector.shape_cast %162 : vector<1x15x15x8xf32> to vector<15x15x8xf32>
      %164 = vector.broadcast %39 : f32 to vector<15x15x8xf32>
      %165 = arith.mulf %163, %164 : vector<15x15x8xf32>
      %166 = arith.addf %161, %165 : vector<15x15x8xf32>
      %c0_117 = arith.constant 0 : index
      %c1_118 = arith.constant 1 : index
      %c0_119 = arith.constant 0 : index
      %c0_120 = arith.constant 0 : index
      %167 = vector.load %arg1[%c0_117, %c1_118, %c0_119, %c0_120] : memref<4x16x16x8xf32, #tpu.memory_space<vmem>>, vector<1x15x15x8xf32>
      %168 = vector.shape_cast %167 : vector<1x15x15x8xf32> to vector<15x15x8xf32>
      %169 = vector.broadcast %43 : f32 to vector<15x15x8xf32>
      %170 = arith.mulf %168, %169 : vector<15x15x8xf32>
      %171 = arith.addf %166, %170 : vector<15x15x8xf32>
      %c1_121 = arith.constant 1 : index
      %c1_122 = arith.constant 1 : index
      %c0_123 = arith.constant 0 : index
      %c0_124 = arith.constant 0 : index
      %172 = vector.load %arg1[%c1_121, %c1_122, %c0_123, %c0_124] : memref<4x16x16x8xf32, #tpu.memory_space<vmem>>, vector<1x15x15x8xf32>
      %173 = vector.shape_cast %172 : vector<1x15x15x8xf32> to vector<15x15x8xf32>
      %174 = vector.broadcast %47 : f32 to vector<15x15x8xf32>
      %175 = arith.mulf %173, %174 : vector<15x15x8xf32>
      %176 = arith.addf %171, %175 : vector<15x15x8xf32>
      %c0_125 = arith.constant 0 : index
      %c1_126 = arith.constant 1 : index
      %c1_127 = arith.constant 1 : index
      %c0_128 = arith.constant 0 : index
      %177 = vector.load %arg1[%c0_125, %c1_126, %c1_127, %c0_128] : memref<4x16x16x8xf32, #tpu.memory_space<vmem>>, vector<1x15x15x8xf32>
      %178 = vector.shape_cast %177 : vector<1x15x15x8xf32> to vector<15x15x8xf32>
      %179 = vector.broadcast %51 : f32 to vector<15x15x8xf32>
      %180 = arith.mulf %178, %179 : vector<15x15x8xf32>
      %181 = arith.addf %176, %180 : vector<15x15x8xf32>
      %c2_129 = arith.constant 2 : index
      %c1_130 = arith.constant 1 : index
      %c0_131 = arith.constant 0 : index
      %c0_132 = arith.constant 0 : index
      %182 = vector.load %arg1[%c2_129, %c1_130, %c0_131, %c0_132] : memref<4x16x16x8xf32, #tpu.memory_space<vmem>>, vector<1x15x15x8xf32>
      %183 = vector.shape_cast %182 : vector<1x15x15x8xf32> to vector<15x15x8xf32>
      %184 = vector.broadcast %55 : f32 to vector<15x15x8xf32>
      %185 = arith.mulf %183, %184 : vector<15x15x8xf32>
      %186 = arith.addf %181, %185 : vector<15x15x8xf32>
      %c3_133 = arith.constant 3 : index
      %c1_134 = arith.constant 1 : index
      %c0_135 = arith.constant 0 : index
      %c0_136 = arith.constant 0 : index
      %187 = vector.load %arg1[%c3_133, %c1_134, %c0_135, %c0_136] : memref<4x16x16x8xf32, #tpu.memory_space<vmem>>, vector<1x15x15x8xf32>
      %188 = vector.shape_cast %187 : vector<1x15x15x8xf32> to vector<15x15x8xf32>
      %189 = vector.broadcast %59 : f32 to vector<15x15x8xf32>
      %190 = arith.mulf %188, %189 : vector<15x15x8xf32>
      %191 = arith.addf %186, %190 : vector<15x15x8xf32>
      %c2_137 = arith.constant 2 : index
      %c1_138 = arith.constant 1 : index
      %c1_139 = arith.constant 1 : index
      %c0_140 = arith.constant 0 : index
      %192 = vector.load %arg1[%c2_137, %c1_138, %c1_139, %c0_140] : memref<4x16x16x8xf32, #tpu.memory_space<vmem>>, vector<1x15x15x8xf32>
      %193 = vector.shape_cast %192 : vector<1x15x15x8xf32> to vector<15x15x8xf32>
      %194 = vector.broadcast %63 : f32 to vector<15x15x8xf32>
      %195 = arith.mulf %193, %194 : vector<15x15x8xf32>
      %196 = arith.addf %191, %195 : vector<15x15x8xf32>
      %197 = arith.maximumf %152, %196 : vector<15x15x8xf32>
      %c3_141 = arith.constant 3 : index
      %c0_142 = arith.constant 0 : index
      %c0_143 = arith.constant 0 : index
      %c0_144 = arith.constant 0 : index
      %198 = vector.load %arg1[%c3_141, %c0_142, %c0_143, %c0_144] : memref<4x16x16x8xf32, #tpu.memory_space<vmem>>, vector<1x15x15x8xf32>
      %199 = vector.shape_cast %198 : vector<1x15x15x8xf32> to vector<15x15x8xf32>
      %200 = vector.broadcast %31 : f32 to vector<15x15x8xf32>
      %201 = arith.mulf %199, %200 : vector<15x15x8xf32>
      %c2_145 = arith.constant 2 : index
      %c0_146 = arith.constant 0 : index
      %c1_147 = arith.constant 1 : index
      %c0_148 = arith.constant 0 : index
      %202 = vector.load %arg1[%c2_145, %c0_146, %c1_147, %c0_148] : memref<4x16x16x8xf32, #tpu.memory_space<vmem>>, vector<1x15x15x8xf32>
      %203 = vector.shape_cast %202 : vector<1x15x15x8xf32> to vector<15x15x8xf32>
      %204 = vector.broadcast %35 : f32 to vector<15x15x8xf32>
      %205 = arith.mulf %203, %204 : vector<15x15x8xf32>
      %206 = arith.addf %201, %205 : vector<15x15x8xf32>
      %c3_149 = arith.constant 3 : index
      %c0_150 = arith.constant 0 : index
      %c1_151 = arith.constant 1 : index
      %c0_152 = arith.constant 0 : index
      %207 = vector.load %arg1[%c3_149, %c0_150, %c1_151, %c0_152] : memref<4x16x16x8xf32, #tpu.memory_space<vmem>>, vector<1x15x15x8xf32>
      %208 = vector.shape_cast %207 : vector<1x15x15x8xf32> to vector<15x15x8xf32>
      %209 = vector.broadcast %39 : f32 to vector<15x15x8xf32>
      %210 = arith.mulf %208, %209 : vector<15x15x8xf32>
      %211 = arith.addf %206, %210 : vector<15x15x8xf32>
      %c1_153 = arith.constant 1 : index
      %c1_154 = arith.constant 1 : index
      %c0_155 = arith.constant 0 : index
      %c0_156 = arith.constant 0 : index
      %212 = vector.load %arg1[%c1_153, %c1_154, %c0_155, %c0_156] : memref<4x16x16x8xf32, #tpu.memory_space<vmem>>, vector<1x15x15x8xf32>
      %213 = vector.shape_cast %212 : vector<1x15x15x8xf32> to vector<15x15x8xf32>
      %214 = vector.broadcast %43 : f32 to vector<15x15x8xf32>
      %215 = arith.mulf %213, %214 : vector<15x15x8xf32>
      %216 = arith.addf %211, %215 : vector<15x15x8xf32>
      %c0_157 = arith.constant 0 : index
      %c1_158 = arith.constant 1 : index
      %c1_159 = arith.constant 1 : index
      %c0_160 = arith.constant 0 : index
      %217 = vector.load %arg1[%c0_157, %c1_158, %c1_159, %c0_160] : memref<4x16x16x8xf32, #tpu.memory_space<vmem>>, vector<1x15x15x8xf32>
      %218 = vector.shape_cast %217 : vector<1x15x15x8xf32> to vector<15x15x8xf32>
      %219 = vector.broadcast %47 : f32 to vector<15x15x8xf32>
      %220 = arith.mulf %218, %219 : vector<15x15x8xf32>
      %221 = arith.addf %216, %220 : vector<15x15x8xf32>
      %c1_161 = arith.constant 1 : index
      %c1_162 = arith.constant 1 : index
      %c1_163 = arith.constant 1 : index
      %c0_164 = arith.constant 0 : index
      %222 = vector.load %arg1[%c1_161, %c1_162, %c1_163, %c0_164] : memref<4x16x16x8xf32, #tpu.memory_space<vmem>>, vector<1x15x15x8xf32>
      %223 = vector.shape_cast %222 : vector<1x15x15x8xf32> to vector<15x15x8xf32>
      %224 = vector.broadcast %51 : f32 to vector<15x15x8xf32>
      %225 = arith.mulf %223, %224 : vector<15x15x8xf32>
      %226 = arith.addf %221, %225 : vector<15x15x8xf32>
      %c3_165 = arith.constant 3 : index
      %c1_166 = arith.constant 1 : index
      %c0_167 = arith.constant 0 : index
      %c0_168 = arith.constant 0 : index
      %227 = vector.load %arg1[%c3_165, %c1_166, %c0_167, %c0_168] : memref<4x16x16x8xf32, #tpu.memory_space<vmem>>, vector<1x15x15x8xf32>
      %228 = vector.shape_cast %227 : vector<1x15x15x8xf32> to vector<15x15x8xf32>
      %229 = vector.broadcast %55 : f32 to vector<15x15x8xf32>
      %230 = arith.mulf %228, %229 : vector<15x15x8xf32>
      %231 = arith.addf %226, %230 : vector<15x15x8xf32>
      %c2_169 = arith.constant 2 : index
      %c1_170 = arith.constant 1 : index
      %c1_171 = arith.constant 1 : index
      %c0_172 = arith.constant 0 : index
      %232 = vector.load %arg1[%c2_169, %c1_170, %c1_171, %c0_172] : memref<4x16x16x8xf32, #tpu.memory_space<vmem>>, vector<1x15x15x8xf32>
      %233 = vector.shape_cast %232 : vector<1x15x15x8xf32> to vector<15x15x8xf32>
      %234 = vector.broadcast %59 : f32 to vector<15x15x8xf32>
      %235 = arith.mulf %233, %234 : vector<15x15x8xf32>
      %236 = arith.addf %231, %235 : vector<15x15x8xf32>
      %c3_173 = arith.constant 3 : index
      %c1_174 = arith.constant 1 : index
      %c1_175 = arith.constant 1 : index
      %c0_176 = arith.constant 0 : index
      %237 = vector.load %arg1[%c3_173, %c1_174, %c1_175, %c0_176] : memref<4x16x16x8xf32, #tpu.memory_space<vmem>>, vector<1x15x15x8xf32>
      %238 = vector.shape_cast %237 : vector<1x15x15x8xf32> to vector<15x15x8xf32>
      %239 = vector.broadcast %63 : f32 to vector<15x15x8xf32>
      %240 = arith.mulf %238, %239 : vector<15x15x8xf32>
      %241 = arith.addf %236, %240 : vector<15x15x8xf32>
      %242 = arith.maximumf %197, %241 : vector<15x15x8xf32>
      %243 = arith.index_cast %27 : i32 to index
      %244 = memref.load %arg3[%243] : memref<6xf32, #tpu.memory_space<smem>>
      %245 = vector.broadcast %244 : f32 to vector<15x15x8xf32>
      %246 = arith.addf %242, %245 : vector<15x15x8xf32>
      %cst_177 = arith.constant 0.000000e+00 : f32
      %247 = vector.broadcast %cst_177 : f32 to vector<15x15x8xf32>
      %248 = arith.maximumf %246, %247 : vector<15x15x8xf32>
      %249 = arith.index_cast %27 : i32 to index
      %c0_178 = arith.constant 0 : index
      %c0_179 = arith.constant 0 : index
      %c0_180 = arith.constant 0 : index
      %250 = vector.load %arg13[%249, %c0_178, %c0_179, %c0_180] : memref<6x15x15x8xf32, #tpu.memory_space<vmem>>, vector<1x15x15x8xf32>
      %251 = vector.shape_cast %250 : vector<1x15x15x8xf32> to vector<15x15x8xf32>
      %252 = vector.shape_cast %248 : vector<15x15x8xf32> to vector<1x15x15x8xf32>
      tpu.vector_store %arg13[%249, %c0_178, %c0_179, %c0_180], %252 {strides = array<i32>} : memref<6x15x15x8xf32, #tpu.memory_space<vmem>>, vector<1x15x15x8xf32>,
    }
    %c6_i32_0 = arith.constant 6 : i32
    %c0_i32_1 = arith.constant 0 : i32
    %c16_i32 = arith.constant 16 : i32
    %1 = arith.addi %c0_i32_1, %c16_i32 : i32
    %c1_i32_2 = arith.constant 1 : i32
    scf.for %arg15 = %c0_i32_1 to %1 step %c1_i32_2  : i32 {
      %c1_i32_23 = arith.constant 1 : i32
      %26 = arith.muli %arg15, %c1_i32_23 : i32
      %c0_i32_24 = arith.constant 0 : i32
      %27 = arith.addi %c0_i32_24, %26 : i32
      %c0_i32_25 = arith.constant 0 : i32
      %28 = arith.addi %c0_i32_25, %27 : i32
      %29 = arith.index_cast %28 : i32 to index
      %30 = memref.load %arg4[%29] : memref<864xf32, #tpu.memory_space<smem>>
      %c0_26 = arith.constant 0 : index
      %c0_27 = arith.constant 0 : index
      %c0_28 = arith.constant 0 : index
      %c0_29 = arith.constant 0 : index
      %31 = vector.load %arg13[%c0_26, %c0_27, %c0_28, %c0_29] : memref<6x15x15x8xf32, #tpu.memory_space<vmem>>, vector<1x12x12x8xf32>
      %32 = vector.shape_cast %31 : vector<1x12x12x8xf32> to vector<12x12x8xf32>
      %33 = vector.broadcast %30 : f32 to vector<12x12x8xf32>
      %34 = arith.mulf %32, %33 : vector<12x12x8xf32>
      %c16_i32_30 = arith.constant 16 : i32
      %35 = arith.addi %c16_i32_30, %27 : i32
      %36 = arith.index_cast %35 : i32 to index
      %37 = memref.load %arg4[%36] : memref<864xf32, #tpu.memory_space<smem>>
      %c1 = arith.constant 1 : index
      %c0_31 = arith.constant 0 : index
      %c0_32 = arith.constant 0 : index
      %c0_33 = arith.constant 0 : index
      %38 = vector.load %arg13[%c1, %c0_31, %c0_32, %c0_33] : memref<6x15x15x8xf32, #tpu.memory_space<vmem>>, vector<1x12x12x8xf32>
      %39 = vector.shape_cast %38 : vector<1x12x12x8xf32> to vector<12x12x8xf32>
      %40 = vector.broadcast %37 : f32 to vector<12x12x8xf32>
      %41 = arith.mulf %39, %40 : vector<12x12x8xf32>
      %42 = arith.addf %34, %41 : vector<12x12x8xf32>
      %c32_i32 = arith.constant 32 : i32
      %43 = arith.addi %c32_i32, %27 : i32
      %44 = arith.index_cast %43 : i32 to index
      %45 = memref.load %arg4[%44] : memref<864xf32, #tpu.memory_space<smem>>
      %c2 = arith.constant 2 : index
      %c0_34 = arith.constant 0 : index
      %c0_35 = arith.constant 0 : index
      %c0_36 = arith.constant 0 : index
      %46 = vector.load %arg13[%c2, %c0_34, %c0_35, %c0_36] : memref<6x15x15x8xf32, #tpu.memory_space<vmem>>, vector<1x12x12x8xf32>
      %47 = vector.shape_cast %46 : vector<1x12x12x8xf32> to vector<12x12x8xf32>
      %48 = vector.broadcast %45 : f32 to vector<12x12x8xf32>
      %49 = arith.mulf %47, %48 : vector<12x12x8xf32>
      %50 = arith.addf %42, %49 : vector<12x12x8xf32>
      %c48_i32 = arith.constant 48 : i32
      %51 = arith.addi %c48_i32, %27 : i32
      %52 = arith.index_cast %51 : i32 to index
      %53 = memref.load %arg4[%52] : memref<864xf32, #tpu.memory_space<smem>>
      %c3 = arith.constant 3 : index
      %c0_37 = arith.constant 0 : index
      %c0_38 = arith.constant 0 : index
      %c0_39 = arith.constant 0 : index
      %54 = vector.load %arg13[%c3, %c0_37, %c0_38, %c0_39] : memref<6x15x15x8xf32, #tpu.memory_space<vmem>>, vector<1x12x12x8xf32>
      %55 = vector.shape_cast %54 : vector<1x12x12x8xf32> to vector<12x12x8xf32>
      %56 = vector.broadcast %53 : f32 to vector<12x12x8xf32>
      %57 = arith.mulf %55, %56 : vector<12x12x8xf32>
      %58 = arith.addf %50, %57 : vector<12x12x8xf32>
      %c64_i32 = arith.constant 64 : i32
      %59 = arith.addi %c64_i32, %27 : i32
      %60 = arith.index_cast %59 : i32 to index
      %61 = memref.load %arg4[%60] : memref<864xf32, #tpu.memory_space<smem>>
      %c4 = arith.constant 4 : index
      %c0_40 = arith.constant 0 : index
      %c0_41 = arith.constant 0 : index
      %c0_42 = arith.constant 0 : index
      %62 = vector.load %arg13[%c4, %c0_40, %c0_41, %c0_42] : memref<6x15x15x8xf32, #tpu.memory_space<vmem>>, vector<1x12x12x8xf32>
      %63 = vector.shape_cast %62 : vector<1x12x12x8xf32> to vector<12x12x8xf32>
      %64 = vector.broadcast %61 : f32 to vector<12x12x8xf32>
      %65 = arith.mulf %63, %64 : vector<12x12x8xf32>
      %66 = arith.addf %58, %65 : vector<12x12x8xf32>
      %c80_i32 = arith.constant 80 : i32
      %67 = arith.addi %c80_i32, %27 : i32
      %68 = arith.index_cast %67 : i32 to index
      %69 = memref.load %arg4[%68] : memref<864xf32, #tpu.memory_space<smem>>
      %c5 = arith.constant 5 : index
      %c0_43 = arith.constant 0 : index
      %c0_44 = arith.constant 0 : index
      %c0_45 = arith.constant 0 : index
      %70 = vector.load %arg13[%c5, %c0_43, %c0_44, %c0_45] : memref<6x15x15x8xf32, #tpu.memory_space<vmem>>, vector<1x12x12x8xf32>
      %71 = vector.shape_cast %70 : vector<1x12x12x8xf32> to vector<12x12x8xf32>
      %72 = vector.broadcast %69 : f32 to vector<12x12x8xf32>
      %73 = arith.mulf %71, %72 : vector<12x12x8xf32>
      %74 = arith.addf %66, %73 : vector<12x12x8xf32>
      %c96_i32 = arith.constant 96 : i32
      %75 = arith.addi %c96_i32, %27 : i32
      %76 = arith.index_cast %75 : i32 to index
      %77 = memref.load %arg4[%76] : memref<864xf32, #tpu.memory_space<smem>>
      %c0_46 = arith.constant 0 : index
      %c0_47 = arith.constant 0 : index
      %c1_48 = arith.constant 1 : index
      %c0_49 = arith.constant 0 : index
      %78 = vector.load %arg13[%c0_46, %c0_47, %c1_48, %c0_49] : memref<6x15x15x8xf32, #tpu.memory_space<vmem>>, vector<1x12x12x8xf32>
      %79 = vector.shape_cast %78 : vector<1x12x12x8xf32> to vector<12x12x8xf32>
      %80 = vector.broadcast %77 : f32 to vector<12x12x8xf32>
      %81 = arith.mulf %79, %80 : vector<12x12x8xf32>
      %82 = arith.addf %74, %81 : vector<12x12x8xf32>
      %c112_i32 = arith.constant 112 : i32
      %83 = arith.addi %c112_i32, %27 : i32
      %84 = arith.index_cast %83 : i32 to index
      %85 = memref.load %arg4[%84] : memref<864xf32, #tpu.memory_space<smem>>
      %c1_50 = arith.constant 1 : index
      %c0_51 = arith.constant 0 : index
      %c1_52 = arith.constant 1 : index
      %c0_53 = arith.constant 0 : index
      %86 = vector.load %arg13[%c1_50, %c0_51, %c1_52, %c0_53] : memref<6x15x15x8xf32, #tpu.memory_space<vmem>>, vector<1x12x12x8xf32>
      %87 = vector.shape_cast %86 : vector<1x12x12x8xf32> to vector<12x12x8xf32>
      %88 = vector.broadcast %85 : f32 to vector<12x12x8xf32>
      %89 = arith.mulf %87, %88 : vector<12x12x8xf32>
      %90 = arith.addf %82, %89 : vector<12x12x8xf32>
      %c128_i32 = arith.constant 128 : i32
      %91 = arith.addi %c128_i32, %27 : i32
      %92 = arith.index_cast %91 : i32 to index
      %93 = memref.load %arg4[%92] : memref<864xf32, #tpu.memory_space<smem>>
      %c2_54 = arith.constant 2 : index
      %c0_55 = arith.constant 0 : index
      %c1_56 = arith.constant 1 : index
      %c0_57 = arith.constant 0 : index
      %94 = vector.load %arg13[%c2_54, %c0_55, %c1_56, %c0_57] : memref<6x15x15x8xf32, #tpu.memory_space<vmem>>, vector<1x12x12x8xf32>
      %95 = vector.shape_cast %94 : vector<1x12x12x8xf32> to vector<12x12x8xf32>
      %96 = vector.broadcast %93 : f32 to vector<12x12x8xf32>
      %97 = arith.mulf %95, %96 : vector<12x12x8xf32>
      %98 = arith.addf %90, %97 : vector<12x12x8xf32>
      %c144_i32 = arith.constant 144 : i32
      %99 = arith.addi %c144_i32, %27 : i32
      %100 = arith.index_cast %99 : i32 to index
      %101 = memref.load %arg4[%100] : memref<864xf32, #tpu.memory_space<smem>>
      %c3_58 = arith.constant 3 : index
      %c0_59 = arith.constant 0 : index
      %c1_60 = arith.constant 1 : index
      %c0_61 = arith.constant 0 : index
      %102 = vector.load %arg13[%c3_58, %c0_59, %c1_60, %c0_61] : memref<6x15x15x8xf32, #tpu.memory_space<vmem>>, vector<1x12x12x8xf32>
      %103 = vector.shape_cast %102 : vector<1x12x12x8xf32> to vector<12x12x8xf32>
      %104 = vector.broadcast %101 : f32 to vector<12x12x8xf32>
      %105 = arith.mulf %103, %104 : vector<12x12x8xf32>
      %106 = arith.addf %98, %105 : vector<12x12x8xf32>
      %c160_i32 = arith.constant 160 : i32
      %107 = arith.addi %c160_i32, %27 : i32
      %108 = arith.index_cast %107 : i32 to index
      %109 = memref.load %arg4[%108] : memref<864xf32, #tpu.memory_space<smem>>
      %c4_62 = arith.constant 4 : index
      %c0_63 = arith.constant 0 : index
      %c1_64 = arith.constant 1 : index
      %c0_65 = arith.constant 0 : index
      %110 = vector.load %arg13[%c4_62, %c0_63, %c1_64, %c0_65] : memref<6x15x15x8xf32, #tpu.memory_space<vmem>>, vector<1x12x12x8xf32>
      %111 = vector.shape_cast %110 : vector<1x12x12x8xf32> to vector<12x12x8xf32>
      %112 = vector.broadcast %109 : f32 to vector<12x12x8xf32>
      %113 = arith.mulf %111, %112 : vector<12x12x8xf32>
      %114 = arith.addf %106, %113 : vector<12x12x8xf32>
      %c176_i32 = arith.constant 176 : i32
      %115 = arith.addi %c176_i32, %27 : i32
      %116 = arith.index_cast %115 : i32 to index
      %117 = memref.load %arg4[%116] : memref<864xf32, #tpu.memory_space<smem>>
      %c5_66 = arith.constant 5 : index
      %c0_67 = arith.constant 0 : index
      %c1_68 = arith.constant 1 : index
      %c0_69 = arith.constant 0 : index
      %118 = vector.load %arg13[%c5_66, %c0_67, %c1_68, %c0_69] : memref<6x15x15x8xf32, #tpu.memory_space<vmem>>, vector<1x12x12x8xf32>
      %119 = vector.shape_cast %118 : vector<1x12x12x8xf32> to vector<12x12x8xf32>
      %120 = vector.broadcast %117 : f32 to vector<12x12x8xf32>
      %121 = arith.mulf %119, %120 : vector<12x12x8xf32>
      %122 = arith.addf %114, %121 : vector<12x12x8xf32>
      %c192_i32 = arith.constant 192 : i32
      %123 = arith.addi %c192_i32, %27 : i32
      %124 = arith.index_cast %123 : i32 to index
      %125 = memref.load %arg4[%124] : memref<864xf32, #tpu.memory_space<smem>>
      %c0_70 = arith.constant 0 : index
      %c0_71 = arith.constant 0 : index
      %c2_72 = arith.constant 2 : index
      %c0_73 = arith.constant 0 : index
      %126 = vector.load %arg13[%c0_70, %c0_71, %c2_72, %c0_73] : memref<6x15x15x8xf32, #tpu.memory_space<vmem>>, vector<1x12x12x8xf32>
      %127 = vector.shape_cast %126 : vector<1x12x12x8xf32> to vector<12x12x8xf32>
      %128 = vector.broadcast %125 : f32 to vector<12x12x8xf32>
      %129 = arith.mulf %127, %128 : vector<12x12x8xf32>
      %130 = arith.addf %122, %129 : vector<12x12x8xf32>
      %c208_i32 = arith.constant 208 : i32
      %131 = arith.addi %c208_i32, %27 : i32
      %132 = arith.index_cast %131 : i32 to index
      %133 = memref.load %arg4[%132] : memref<864xf32, #tpu.memory_space<smem>>
      %c1_74 = arith.constant 1 : index
      %c0_75 = arith.constant 0 : index
      %c2_76 = arith.constant 2 : index
      %c0_77 = arith.constant 0 : index
      %134 = vector.load %arg13[%c1_74, %c0_75, %c2_76, %c0_77] : memref<6x15x15x8xf32, #tpu.memory_space<vmem>>, vector<1x12x12x8xf32>
      %135 = vector.shape_cast %134 : vector<1x12x12x8xf32> to vector<12x12x8xf32>
      %136 = vector.broadcast %133 : f32 to vector<12x12x8xf32>
      %137 = arith.mulf %135, %136 : vector<12x12x8xf32>
      %138 = arith.addf %130, %137 : vector<12x12x8xf32>
      %c224_i32 = arith.constant 224 : i32
      %139 = arith.addi %c224_i32, %27 : i32
      %140 = arith.index_cast %139 : i32 to index
      %141 = memref.load %arg4[%140] : memref<864xf32, #tpu.memory_space<smem>>
      %c2_78 = arith.constant 2 : index
      %c0_79 = arith.constant 0 : index
      %c2_80 = arith.constant 2 : index
      %c0_81 = arith.constant 0 : index
      %142 = vector.load %arg13[%c2_78, %c0_79, %c2_80, %c0_81] : memref<6x15x15x8xf32, #tpu.memory_space<vmem>>, vector<1x12x12x8xf32>
      %143 = vector.shape_cast %142 : vector<1x12x12x8xf32> to vector<12x12x8xf32>
      %144 = vector.broadcast %141 : f32 to vector<12x12x8xf32>
      %145 = arith.mulf %143, %144 : vector<12x12x8xf32>
      %146 = arith.addf %138, %145 : vector<12x12x8xf32>
      %c240_i32 = arith.constant 240 : i32
      %147 = arith.addi %c240_i32, %27 : i32
      %148 = arith.index_cast %147 : i32 to index
      %149 = memref.load %arg4[%148] : memref<864xf32, #tpu.memory_space<smem>>
      %c3_82 = arith.constant 3 : index
      %c0_83 = arith.constant 0 : index
      %c2_84 = arith.constant 2 : index
      %c0_85 = arith.constant 0 : index
      %150 = vector.load %arg13[%c3_82, %c0_83, %c2_84, %c0_85] : memref<6x15x15x8xf32, #tpu.memory_space<vmem>>, vector<1x12x12x8xf32>
      %151 = vector.shape_cast %150 : vector<1x12x12x8xf32> to vector<12x12x8xf32>
      %152 = vector.broadcast %149 : f32 to vector<12x12x8xf32>
      %153 = arith.mulf %151, %152 : vector<12x12x8xf32>
      %154 = arith.addf %146, %153 : vector<12x12x8xf32>
      %c256_i32 = arith.constant 256 : i32
      %155 = arith.addi %c256_i32, %27 : i32
      %156 = arith.index_cast %155 : i32 to index
      %157 = memref.load %arg4[%156] : memref<864xf32, #tpu.memory_space<smem>>
      %c4_86 = arith.constant 4 : index
      %c0_87 = arith.constant 0 : index
      %c2_88 = arith.constant 2 : index
      %c0_89 = arith.constant 0 : index
      %158 = vector.load %arg13[%c4_86, %c0_87, %c2_88, %c0_89] : memref<6x15x15x8xf32, #tpu.memory_space<vmem>>, vector<1x12x12x8xf32>
      %159 = vector.shape_cast %158 : vector<1x12x12x8xf32> to vector<12x12x8xf32>
      %160 = vector.broadcast %157 : f32 to vector<12x12x8xf32>
      %161 = arith.mulf %159, %160 : vector<12x12x8xf32>
      %162 = arith.addf %154, %161 : vector<12x12x8xf32>
      %c272_i32 = arith.constant 272 : i32
      %163 = arith.addi %c272_i32, %27 : i32
      %164 = arith.index_cast %163 : i32 to index
      %165 = memref.load %arg4[%164] : memref<864xf32, #tpu.memory_space<smem>>
      %c5_90 = arith.constant 5 : index
      %c0_91 = arith.constant 0 : index
      %c2_92 = arith.constant 2 : index
      %c0_93 = arith.constant 0 : index
      %166 = vector.load %arg13[%c5_90, %c0_91, %c2_92, %c0_93] : memref<6x15x15x8xf32, #tpu.memory_space<vmem>>, vector<1x12x12x8xf32>
      %167 = vector.shape_cast %166 : vector<1x12x12x8xf32> to vector<12x12x8xf32>
      %168 = vector.broadcast %165 : f32 to vector<12x12x8xf32>
      %169 = arith.mulf %167, %168 : vector<12x12x8xf32>
      %170 = arith.addf %162, %169 : vector<12x12x8xf32>
      %c288_i32 = arith.constant 288 : i32
      %171 = arith.addi %c288_i32, %27 : i32
      %172 = arith.index_cast %171 : i32 to index
      %173 = memref.load %arg4[%172] : memref<864xf32, #tpu.memory_space<smem>>
      %c0_94 = arith.constant 0 : index
      %c1_95 = arith.constant 1 : index
      %c0_96 = arith.constant 0 : index
      %c0_97 = arith.constant 0 : index
      %174 = vector.load %arg13[%c0_94, %c1_95, %c0_96, %c0_97] : memref<6x15x15x8xf32, #tpu.memory_space<vmem>>, vector<1x12x12x8xf32>
      %175 = vector.shape_cast %174 : vector<1x12x12x8xf32> to vector<12x12x8xf32>
      %176 = vector.broadcast %173 : f32 to vector<12x12x8xf32>
      %177 = arith.mulf %175, %176 : vector<12x12x8xf32>
      %178 = arith.addf %170, %177 : vector<12x12x8xf32>
      %c304_i32 = arith.constant 304 : i32
      %179 = arith.addi %c304_i32, %27 : i32
      %180 = arith.index_cast %179 : i32 to index
      %181 = memref.load %arg4[%180] : memref<864xf32, #tpu.memory_space<smem>>
      %c1_98 = arith.constant 1 : index
      %c1_99 = arith.constant 1 : index
      %c0_100 = arith.constant 0 : index
      %c0_101 = arith.constant 0 : index
      %182 = vector.load %arg13[%c1_98, %c1_99, %c0_100, %c0_101] : memref<6x15x15x8xf32, #tpu.memory_space<vmem>>, vector<1x12x12x8xf32>
      %183 = vector.shape_cast %182 : vector<1x12x12x8xf32> to vector<12x12x8xf32>
      %184 = vector.broadcast %181 : f32 to vector<12x12x8xf32>
      %185 = arith.mulf %183, %184 : vector<12x12x8xf32>
      %186 = arith.addf %178, %185 : vector<12x12x8xf32>
      %c320_i32 = arith.constant 320 : i32
      %187 = arith.addi %c320_i32, %27 : i32
      %188 = arith.index_cast %187 : i32 to index
      %189 = memref.load %arg4[%188] : memref<864xf32, #tpu.memory_space<smem>>
      %c2_102 = arith.constant 2 : index
      %c1_103 = arith.constant 1 : index
      %c0_104 = arith.constant 0 : index
      %c0_105 = arith.constant 0 : index
      %190 = vector.load %arg13[%c2_102, %c1_103, %c0_104, %c0_105] : memref<6x15x15x8xf32, #tpu.memory_space<vmem>>, vector<1x12x12x8xf32>
      %191 = vector.shape_cast %190 : vector<1x12x12x8xf32> to vector<12x12x8xf32>
      %192 = vector.broadcast %189 : f32 to vector<12x12x8xf32>
      %193 = arith.mulf %191, %192 : vector<12x12x8xf32>
      %194 = arith.addf %186, %193 : vector<12x12x8xf32>
      %c336_i32 = arith.constant 336 : i32
      %195 = arith.addi %c336_i32, %27 : i32
      %196 = arith.index_cast %195 : i32 to index
      %197 = memref.load %arg4[%196] : memref<864xf32, #tpu.memory_space<smem>>
      %c3_106 = arith.constant 3 : index
      %c1_107 = arith.constant 1 : index
      %c0_108 = arith.constant 0 : index
      %c0_109 = arith.constant 0 : index
      %198 = vector.load %arg13[%c3_106, %c1_107, %c0_108, %c0_109] : memref<6x15x15x8xf32, #tpu.memory_space<vmem>>, vector<1x12x12x8xf32>
      %199 = vector.shape_cast %198 : vector<1x12x12x8xf32> to vector<12x12x8xf32>
      %200 = vector.broadcast %197 : f32 to vector<12x12x8xf32>
      %201 = arith.mulf %199, %200 : vector<12x12x8xf32>
      %202 = arith.addf %194, %201 : vector<12x12x8xf32>
      %c352_i32 = arith.constant 352 : i32
      %203 = arith.addi %c352_i32, %27 : i32
      %204 = arith.index_cast %203 : i32 to index
      %205 = memref.load %arg4[%204] : memref<864xf32, #tpu.memory_space<smem>>
      %c4_110 = arith.constant 4 : index
      %c1_111 = arith.constant 1 : index
      %c0_112 = arith.constant 0 : index
      %c0_113 = arith.constant 0 : index
      %206 = vector.load %arg13[%c4_110, %c1_111, %c0_112, %c0_113] : memref<6x15x15x8xf32, #tpu.memory_space<vmem>>, vector<1x12x12x8xf32>
      %207 = vector.shape_cast %206 : vector<1x12x12x8xf32> to vector<12x12x8xf32>
      %208 = vector.broadcast %205 : f32 to vector<12x12x8xf32>
      %209 = arith.mulf %207, %208 : vector<12x12x8xf32>
      %210 = arith.addf %202, %209 : vector<12x12x8xf32>
      %c368_i32 = arith.constant 368 : i32
      %211 = arith.addi %c368_i32, %27 : i32
      %212 = arith.index_cast %211 : i32 to index
      %213 = memref.load %arg4[%212] : memref<864xf32, #tpu.memory_space<smem>>
      %c5_114 = arith.constant 5 : index
      %c1_115 = arith.constant 1 : index
      %c0_116 = arith.constant 0 : index
      %c0_117 = arith.constant 0 : index
      %214 = vector.load %arg13[%c5_114, %c1_115, %c0_116, %c0_117] : memref<6x15x15x8xf32, #tpu.memory_space<vmem>>, vector<1x12x12x8xf32>
      %215 = vector.shape_cast %214 : vector<1x12x12x8xf32> to vector<12x12x8xf32>
      %216 = vector.broadcast %213 : f32 to vector<12x12x8xf32>
      %217 = arith.mulf %215, %216 : vector<12x12x8xf32>
      %218 = arith.addf %210, %217 : vector<12x12x8xf32>
      %c384_i32 = arith.constant 384 : i32
      %219 = arith.addi %c384_i32, %27 : i32
      %220 = arith.index_cast %219 : i32 to index
      %221 = memref.load %arg4[%220] : memref<864xf32, #tpu.memory_space<smem>>
      %c0_118 = arith.constant 0 : index
      %c1_119 = arith.constant 1 : index
      %c1_120 = arith.constant 1 : index
      %c0_121 = arith.constant 0 : index
      %222 = vector.load %arg13[%c0_118, %c1_119, %c1_120, %c0_121] : memref<6x15x15x8xf32, #tpu.memory_space<vmem>>, vector<1x12x12x8xf32>
      %223 = vector.shape_cast %222 : vector<1x12x12x8xf32> to vector<12x12x8xf32>
      %224 = vector.broadcast %221 : f32 to vector<12x12x8xf32>
      %225 = arith.mulf %223, %224 : vector<12x12x8xf32>
      %226 = arith.addf %218, %225 : vector<12x12x8xf32>
      %c400_i32 = arith.constant 400 : i32
      %227 = arith.addi %c400_i32, %27 : i32
      %228 = arith.index_cast %227 : i32 to index
      %229 = memref.load %arg4[%228] : memref<864xf32, #tpu.memory_space<smem>>
      %c1_122 = arith.constant 1 : index
      %c1_123 = arith.constant 1 : index
      %c1_124 = arith.constant 1 : index
      %c0_125 = arith.constant 0 : index
      %230 = vector.load %arg13[%c1_122, %c1_123, %c1_124, %c0_125] : memref<6x15x15x8xf32, #tpu.memory_space<vmem>>, vector<1x12x12x8xf32>
      %231 = vector.shape_cast %230 : vector<1x12x12x8xf32> to vector<12x12x8xf32>
      %232 = vector.broadcast %229 : f32 to vector<12x12x8xf32>
      %233 = arith.mulf %231, %232 : vector<12x12x8xf32>
      %234 = arith.addf %226, %233 : vector<12x12x8xf32>
      %c416_i32 = arith.constant 416 : i32
      %235 = arith.addi %c416_i32, %27 : i32
      %236 = arith.index_cast %235 : i32 to index
      %237 = memref.load %arg4[%236] : memref<864xf32, #tpu.memory_space<smem>>
      %c2_126 = arith.constant 2 : index
      %c1_127 = arith.constant 1 : index
      %c1_128 = arith.constant 1 : index
      %c0_129 = arith.constant 0 : index
      %238 = vector.load %arg13[%c2_126, %c1_127, %c1_128, %c0_129] : memref<6x15x15x8xf32, #tpu.memory_space<vmem>>, vector<1x12x12x8xf32>
      %239 = vector.shape_cast %238 : vector<1x12x12x8xf32> to vector<12x12x8xf32>
      %240 = vector.broadcast %237 : f32 to vector<12x12x8xf32>
      %241 = arith.mulf %239, %240 : vector<12x12x8xf32>
      %242 = arith.addf %234, %241 : vector<12x12x8xf32>
      %c432_i32 = arith.constant 432 : i32
      %243 = arith.addi %c432_i32, %27 : i32
      %244 = arith.index_cast %243 : i32 to index
      %245 = memref.load %arg4[%244] : memref<864xf32, #tpu.memory_space<smem>>
      %c3_130 = arith.constant 3 : index
      %c1_131 = arith.constant 1 : index
      %c1_132 = arith.constant 1 : index
      %c0_133 = arith.constant 0 : index
      %246 = vector.load %arg13[%c3_130, %c1_131, %c1_132, %c0_133] : memref<6x15x15x8xf32, #tpu.memory_space<vmem>>, vector<1x12x12x8xf32>
      %247 = vector.shape_cast %246 : vector<1x12x12x8xf32> to vector<12x12x8xf32>
      %248 = vector.broadcast %245 : f32 to vector<12x12x8xf32>
      %249 = arith.mulf %247, %248 : vector<12x12x8xf32>
      %250 = arith.addf %242, %249 : vector<12x12x8xf32>
      %c448_i32 = arith.constant 448 : i32
      %251 = arith.addi %c448_i32, %27 : i32
      %252 = arith.index_cast %251 : i32 to index
      %253 = memref.load %arg4[%252] : memref<864xf32, #tpu.memory_space<smem>>
      %c4_134 = arith.constant 4 : index
      %c1_135 = arith.constant 1 : index
      %c1_136 = arith.constant 1 : index
      %c0_137 = arith.constant 0 : index
      %254 = vector.load %arg13[%c4_134, %c1_135, %c1_136, %c0_137] : memref<6x15x15x8xf32, #tpu.memory_space<vmem>>, vector<1x12x12x8xf32>
      %255 = vector.shape_cast %254 : vector<1x12x12x8xf32> to vector<12x12x8xf32>
      %256 = vector.broadcast %253 : f32 to vector<12x12x8xf32>
      %257 = arith.mulf %255, %256 : vector<12x12x8xf32>
      %258 = arith.addf %250, %257 : vector<12x12x8xf32>
      %c464_i32 = arith.constant 464 : i32
      %259 = arith.addi %c464_i32, %27 : i32
      %260 = arith.index_cast %259 : i32 to index
      %261 = memref.load %arg4[%260] : memref<864xf32, #tpu.memory_space<smem>>
      %c5_138 = arith.constant 5 : index
      %c1_139 = arith.constant 1 : index
      %c1_140 = arith.constant 1 : index
      %c0_141 = arith.constant 0 : index
      %262 = vector.load %arg13[%c5_138, %c1_139, %c1_140, %c0_141] : memref<6x15x15x8xf32, #tpu.memory_space<vmem>>, vector<1x12x12x8xf32>
      %263 = vector.shape_cast %262 : vector<1x12x12x8xf32> to vector<12x12x8xf32>
      %264 = vector.broadcast %261 : f32 to vector<12x12x8xf32>
      %265 = arith.mulf %263, %264 : vector<12x12x8xf32>
      %266 = arith.addf %258, %265 : vector<12x12x8xf32>
      %c480_i32 = arith.constant 480 : i32
      %267 = arith.addi %c480_i32, %27 : i32
      %268 = arith.index_cast %267 : i32 to index
      %269 = memref.load %arg4[%268] : memref<864xf32, #tpu.memory_space<smem>>
      %c0_142 = arith.constant 0 : index
      %c1_143 = arith.constant 1 : index
      %c2_144 = arith.constant 2 : index
      %c0_145 = arith.constant 0 : index
      %270 = vector.load %arg13[%c0_142, %c1_143, %c2_144, %c0_145] : memref<6x15x15x8xf32, #tpu.memory_space<vmem>>, vector<1x12x12x8xf32>
      %271 = vector.shape_cast %270 : vector<1x12x12x8xf32> to vector<12x12x8xf32>
      %272 = vector.broadcast %269 : f32 to vector<12x12x8xf32>
      %273 = arith.mulf %271, %272 : vector<12x12x8xf32>
      %274 = arith.addf %266, %273 : vector<12x12x8xf32>
      %c496_i32 = arith.constant 496 : i32
      %275 = arith.addi %c496_i32, %27 : i32
      %276 = arith.index_cast %275 : i32 to index
      %277 = memref.load %arg4[%276] : memref<864xf32, #tpu.memory_space<smem>>
      %c1_146 = arith.constant 1 : index
      %c1_147 = arith.constant 1 : index
      %c2_148 = arith.constant 2 : index
      %c0_149 = arith.constant 0 : index
      %278 = vector.load %arg13[%c1_146, %c1_147, %c2_148, %c0_149] : memref<6x15x15x8xf32, #tpu.memory_space<vmem>>, vector<1x12x12x8xf32>
      %279 = vector.shape_cast %278 : vector<1x12x12x8xf32> to vector<12x12x8xf32>
      %280 = vector.broadcast %277 : f32 to vector<12x12x8xf32>
      %281 = arith.mulf %279, %280 : vector<12x12x8xf32>
      %282 = arith.addf %274, %281 : vector<12x12x8xf32>
      %c512_i32 = arith.constant 512 : i32
      %283 = arith.addi %c512_i32, %27 : i32
      %284 = arith.index_cast %283 : i32 to index
      %285 = memref.load %arg4[%284] : memref<864xf32, #tpu.memory_space<smem>>
      %c2_150 = arith.constant 2 : index
      %c1_151 = arith.constant 1 : index
      %c2_152 = arith.constant 2 : index
      %c0_153 = arith.constant 0 : index
      %286 = vector.load %arg13[%c2_150, %c1_151, %c2_152, %c0_153] : memref<6x15x15x8xf32, #tpu.memory_space<vmem>>, vector<1x12x12x8xf32>
      %287 = vector.shape_cast %286 : vector<1x12x12x8xf32> to vector<12x12x8xf32>
      %288 = vector.broadcast %285 : f32 to vector<12x12x8xf32>
      %289 = arith.mulf %287, %288 : vector<12x12x8xf32>
      %290 = arith.addf %282, %289 : vector<12x12x8xf32>
      %c528_i32 = arith.constant 528 : i32
      %291 = arith.addi %c528_i32, %27 : i32
      %292 = arith.index_cast %291 : i32 to index
      %293 = memref.load %arg4[%292] : memref<864xf32, #tpu.memory_space<smem>>
      %c3_154 = arith.constant 3 : index
      %c1_155 = arith.constant 1 : index
      %c2_156 = arith.constant 2 : index
      %c0_157 = arith.constant 0 : index
      %294 = vector.load %arg13[%c3_154, %c1_155, %c2_156, %c0_157] : memref<6x15x15x8xf32, #tpu.memory_space<vmem>>, vector<1x12x12x8xf32>
      %295 = vector.shape_cast %294 : vector<1x12x12x8xf32> to vector<12x12x8xf32>
      %296 = vector.broadcast %293 : f32 to vector<12x12x8xf32>
      %297 = arith.mulf %295, %296 : vector<12x12x8xf32>
      %298 = arith.addf %290, %297 : vector<12x12x8xf32>
      %c544_i32 = arith.constant 544 : i32
      %299 = arith.addi %c544_i32, %27 : i32
      %300 = arith.index_cast %299 : i32 to index
      %301 = memref.load %arg4[%300] : memref<864xf32, #tpu.memory_space<smem>>
      %c4_158 = arith.constant 4 : index
      %c1_159 = arith.constant 1 : index
      %c2_160 = arith.constant 2 : index
      %c0_161 = arith.constant 0 : index
      %302 = vector.load %arg13[%c4_158, %c1_159, %c2_160, %c0_161] : memref<6x15x15x8xf32, #tpu.memory_space<vmem>>, vector<1x12x12x8xf32>
      %303 = vector.shape_cast %302 : vector<1x12x12x8xf32> to vector<12x12x8xf32>
      %304 = vector.broadcast %301 : f32 to vector<12x12x8xf32>
      %305 = arith.mulf %303, %304 : vector<12x12x8xf32>
      %306 = arith.addf %298, %305 : vector<12x12x8xf32>
      %c560_i32 = arith.constant 560 : i32
      %307 = arith.addi %c560_i32, %27 : i32
      %308 = arith.index_cast %307 : i32 to index
      %309 = memref.load %arg4[%308] : memref<864xf32, #tpu.memory_space<smem>>
      %c5_162 = arith.constant 5 : index
      %c1_163 = arith.constant 1 : index
      %c2_164 = arith.constant 2 : index
      %c0_165 = arith.constant 0 : index
      %310 = vector.load %arg13[%c5_162, %c1_163, %c2_164, %c0_165] : memref<6x15x15x8xf32, #tpu.memory_space<vmem>>, vector<1x12x12x8xf32>
      %311 = vector.shape_cast %310 : vector<1x12x12x8xf32> to vector<12x12x8xf32>
      %312 = vector.broadcast %309 : f32 to vector<12x12x8xf32>
      %313 = arith.mulf %311, %312 : vector<12x12x8xf32>
      %314 = arith.addf %306, %313 : vector<12x12x8xf32>
      %c576_i32 = arith.constant 576 : i32
      %315 = arith.addi %c576_i32, %27 : i32
      %316 = arith.index_cast %315 : i32 to index
      %317 = memref.load %arg4[%316] : memref<864xf32, #tpu.memory_space<smem>>
      %c0_166 = arith.constant 0 : index
      %c2_167 = arith.constant 2 : index
      %c0_168 = arith.constant 0 : index
      %c0_169 = arith.constant 0 : index
      %318 = vector.load %arg13[%c0_166, %c2_167, %c0_168, %c0_169] : memref<6x15x15x8xf32, #tpu.memory_space<vmem>>, vector<1x12x12x8xf32>
      %319 = vector.shape_cast %318 : vector<1x12x12x8xf32> to vector<12x12x8xf32>
      %320 = vector.broadcast %317 : f32 to vector<12x12x8xf32>
      %321 = arith.mulf %319, %320 : vector<12x12x8xf32>
      %322 = arith.addf %314, %321 : vector<12x12x8xf32>
      %c592_i32 = arith.constant 592 : i32
      %323 = arith.addi %c592_i32, %27 : i32
      %324 = arith.index_cast %323 : i32 to index
      %325 = memref.load %arg4[%324] : memref<864xf32, #tpu.memory_space<smem>>
      %c1_170 = arith.constant 1 : index
      %c2_171 = arith.constant 2 : index
      %c0_172 = arith.constant 0 : index
      %c0_173 = arith.constant 0 : index
      %326 = vector.load %arg13[%c1_170, %c2_171, %c0_172, %c0_173] : memref<6x15x15x8xf32, #tpu.memory_space<vmem>>, vector<1x12x12x8xf32>
      %327 = vector.shape_cast %326 : vector<1x12x12x8xf32> to vector<12x12x8xf32>
      %328 = vector.broadcast %325 : f32 to vector<12x12x8xf32>
      %329 = arith.mulf %327, %328 : vector<12x12x8xf32>
      %330 = arith.addf %322, %329 : vector<12x12x8xf32>
      %c608_i32 = arith.constant 608 : i32
      %331 = arith.addi %c608_i32, %27 : i32
      %332 = arith.index_cast %331 : i32 to index
      %333 = memref.load %arg4[%332] : memref<864xf32, #tpu.memory_space<smem>>
      %c2_174 = arith.constant 2 : index
      %c2_175 = arith.constant 2 : index
      %c0_176 = arith.constant 0 : index
      %c0_177 = arith.constant 0 : index
      %334 = vector.load %arg13[%c2_174, %c2_175, %c0_176, %c0_177] : memref<6x15x15x8xf32, #tpu.memory_space<vmem>>, vector<1x12x12x8xf32>
      %335 = vector.shape_cast %334 : vector<1x12x12x8xf32> to vector<12x12x8xf32>
      %336 = vector.broadcast %333 : f32 to vector<12x12x8xf32>
      %337 = arith.mulf %335, %336 : vector<12x12x8xf32>
      %338 = arith.addf %330, %337 : vector<12x12x8xf32>
      %c624_i32 = arith.constant 624 : i32
      %339 = arith.addi %c624_i32, %27 : i32
      %340 = arith.index_cast %339 : i32 to index
      %341 = memref.load %arg4[%340] : memref<864xf32, #tpu.memory_space<smem>>
      %c3_178 = arith.constant 3 : index
      %c2_179 = arith.constant 2 : index
      %c0_180 = arith.constant 0 : index
      %c0_181 = arith.constant 0 : index
      %342 = vector.load %arg13[%c3_178, %c2_179, %c0_180, %c0_181] : memref<6x15x15x8xf32, #tpu.memory_space<vmem>>, vector<1x12x12x8xf32>
      %343 = vector.shape_cast %342 : vector<1x12x12x8xf32> to vector<12x12x8xf32>
      %344 = vector.broadcast %341 : f32 to vector<12x12x8xf32>
      %345 = arith.mulf %343, %344 : vector<12x12x8xf32>
      %346 = arith.addf %338, %345 : vector<12x12x8xf32>
      %c640_i32 = arith.constant 640 : i32
      %347 = arith.addi %c640_i32, %27 : i32
      %348 = arith.index_cast %347 : i32 to index
      %349 = memref.load %arg4[%348] : memref<864xf32, #tpu.memory_space<smem>>
      %c4_182 = arith.constant 4 : index
      %c2_183 = arith.constant 2 : index
      %c0_184 = arith.constant 0 : index
      %c0_185 = arith.constant 0 : index
      %350 = vector.load %arg13[%c4_182, %c2_183, %c0_184, %c0_185] : memref<6x15x15x8xf32, #tpu.memory_space<vmem>>, vector<1x12x12x8xf32>
      %351 = vector.shape_cast %350 : vector<1x12x12x8xf32> to vector<12x12x8xf32>
      %352 = vector.broadcast %349 : f32 to vector<12x12x8xf32>
      %353 = arith.mulf %351, %352 : vector<12x12x8xf32>
      %354 = arith.addf %346, %353 : vector<12x12x8xf32>
      %c656_i32 = arith.constant 656 : i32
      %355 = arith.addi %c656_i32, %27 : i32
      %356 = arith.index_cast %355 : i32 to index
      %357 = memref.load %arg4[%356] : memref<864xf32, #tpu.memory_space<smem>>
      %c5_186 = arith.constant 5 : index
      %c2_187 = arith.constant 2 : index
      %c0_188 = arith.constant 0 : index
      %c0_189 = arith.constant 0 : index
      %358 = vector.load %arg13[%c5_186, %c2_187, %c0_188, %c0_189] : memref<6x15x15x8xf32, #tpu.memory_space<vmem>>, vector<1x12x12x8xf32>
      %359 = vector.shape_cast %358 : vector<1x12x12x8xf32> to vector<12x12x8xf32>
      %360 = vector.broadcast %357 : f32 to vector<12x12x8xf32>
      %361 = arith.mulf %359, %360 : vector<12x12x8xf32>
      %362 = arith.addf %354, %361 : vector<12x12x8xf32>
      %c672_i32 = arith.constant 672 : i32
      %363 = arith.addi %c672_i32, %27 : i32
      %364 = arith.index_cast %363 : i32 to index
      %365 = memref.load %arg4[%364] : memref<864xf32, #tpu.memory_space<smem>>
      %c0_190 = arith.constant 0 : index
      %c2_191 = arith.constant 2 : index
      %c1_192 = arith.constant 1 : index
      %c0_193 = arith.constant 0 : index
      %366 = vector.load %arg13[%c0_190, %c2_191, %c1_192, %c0_193] : memref<6x15x15x8xf32, #tpu.memory_space<vmem>>, vector<1x12x12x8xf32>
      %367 = vector.shape_cast %366 : vector<1x12x12x8xf32> to vector<12x12x8xf32>
      %368 = vector.broadcast %365 : f32 to vector<12x12x8xf32>
      %369 = arith.mulf %367, %368 : vector<12x12x8xf32>
      %370 = arith.addf %362, %369 : vector<12x12x8xf32>
      %c688_i32 = arith.constant 688 : i32
      %371 = arith.addi %c688_i32, %27 : i32
      %372 = arith.index_cast %371 : i32 to index
      %373 = memref.load %arg4[%372] : memref<864xf32, #tpu.memory_space<smem>>
      %c1_194 = arith.constant 1 : index
      %c2_195 = arith.constant 2 : index
      %c1_196 = arith.constant 1 : index
      %c0_197 = arith.constant 0 : index
      %374 = vector.load %arg13[%c1_194, %c2_195, %c1_196, %c0_197] : memref<6x15x15x8xf32, #tpu.memory_space<vmem>>, vector<1x12x12x8xf32>
      %375 = vector.shape_cast %374 : vector<1x12x12x8xf32> to vector<12x12x8xf32>
      %376 = vector.broadcast %373 : f32 to vector<12x12x8xf32>
      %377 = arith.mulf %375, %376 : vector<12x12x8xf32>
      %378 = arith.addf %370, %377 : vector<12x12x8xf32>
      %c704_i32 = arith.constant 704 : i32
      %379 = arith.addi %c704_i32, %27 : i32
      %380 = arith.index_cast %379 : i32 to index
      %381 = memref.load %arg4[%380] : memref<864xf32, #tpu.memory_space<smem>>
      %c2_198 = arith.constant 2 : index
      %c2_199 = arith.constant 2 : index
      %c1_200 = arith.constant 1 : index
      %c0_201 = arith.constant 0 : index
      %382 = vector.load %arg13[%c2_198, %c2_199, %c1_200, %c0_201] : memref<6x15x15x8xf32, #tpu.memory_space<vmem>>, vector<1x12x12x8xf32>
      %383 = vector.shape_cast %382 : vector<1x12x12x8xf32> to vector<12x12x8xf32>
      %384 = vector.broadcast %381 : f32 to vector<12x12x8xf32>
      %385 = arith.mulf %383, %384 : vector<12x12x8xf32>
      %386 = arith.addf %378, %385 : vector<12x12x8xf32>
      %c720_i32 = arith.constant 720 : i32
      %387 = arith.addi %c720_i32, %27 : i32
      %388 = arith.index_cast %387 : i32 to index
      %389 = memref.load %arg4[%388] : memref<864xf32, #tpu.memory_space<smem>>
      %c3_202 = arith.constant 3 : index
      %c2_203 = arith.constant 2 : index
      %c1_204 = arith.constant 1 : index
      %c0_205 = arith.constant 0 : index
      %390 = vector.load %arg13[%c3_202, %c2_203, %c1_204, %c0_205] : memref<6x15x15x8xf32, #tpu.memory_space<vmem>>, vector<1x12x12x8xf32>
      %391 = vector.shape_cast %390 : vector<1x12x12x8xf32> to vector<12x12x8xf32>
      %392 = vector.broadcast %389 : f32 to vector<12x12x8xf32>
      %393 = arith.mulf %391, %392 : vector<12x12x8xf32>
      %394 = arith.addf %386, %393 : vector<12x12x8xf32>
      %c736_i32 = arith.constant 736 : i32
      %395 = arith.addi %c736_i32, %27 : i32
      %396 = arith.index_cast %395 : i32 to index
      %397 = memref.load %arg4[%396] : memref<864xf32, #tpu.memory_space<smem>>
      %c4_206 = arith.constant 4 : index
      %c2_207 = arith.constant 2 : index
      %c1_208 = arith.constant 1 : index
      %c0_209 = arith.constant 0 : index
      %398 = vector.load %arg13[%c4_206, %c2_207, %c1_208, %c0_209] : memref<6x15x15x8xf32, #tpu.memory_space<vmem>>, vector<1x12x12x8xf32>
      %399 = vector.shape_cast %398 : vector<1x12x12x8xf32> to vector<12x12x8xf32>
      %400 = vector.broadcast %397 : f32 to vector<12x12x8xf32>
      %401 = arith.mulf %399, %400 : vector<12x12x8xf32>
      %402 = arith.addf %394, %401 : vector<12x12x8xf32>
      %c752_i32 = arith.constant 752 : i32
      %403 = arith.addi %c752_i32, %27 : i32
      %404 = arith.index_cast %403 : i32 to index
      %405 = memref.load %arg4[%404] : memref<864xf32, #tpu.memory_space<smem>>
      %c5_210 = arith.constant 5 : index
      %c2_211 = arith.constant 2 : index
      %c1_212 = arith.constant 1 : index
      %c0_213 = arith.constant 0 : index
      %406 = vector.load %arg13[%c5_210, %c2_211, %c1_212, %c0_213] : memref<6x15x15x8xf32, #tpu.memory_space<vmem>>, vector<1x12x12x8xf32>
      %407 = vector.shape_cast %406 : vector<1x12x12x8xf32> to vector<12x12x8xf32>
      %408 = vector.broadcast %405 : f32 to vector<12x12x8xf32>
      %409 = arith.mulf %407, %408 : vector<12x12x8xf32>
      %410 = arith.addf %402, %409 : vector<12x12x8xf32>
      %c768_i32 = arith.constant 768 : i32
      %411 = arith.addi %c768_i32, %27 : i32
      %412 = arith.index_cast %411 : i32 to index
      %413 = memref.load %arg4[%412] : memref<864xf32, #tpu.memory_space<smem>>
      %c0_214 = arith.constant 0 : index
      %c2_215 = arith.constant 2 : index
      %c2_216 = arith.constant 2 : index
      %c0_217 = arith.constant 0 : index
      %414 = vector.load %arg13[%c0_214, %c2_215, %c2_216, %c0_217] : memref<6x15x15x8xf32, #tpu.memory_space<vmem>>, vector<1x12x12x8xf32>
      %415 = vector.shape_cast %414 : vector<1x12x12x8xf32> to vector<12x12x8xf32>
      %416 = vector.broadcast %413 : f32 to vector<12x12x8xf32>
      %417 = arith.mulf %415, %416 : vector<12x12x8xf32>
      %418 = arith.addf %410, %417 : vector<12x12x8xf32>
      %c784_i32 = arith.constant 784 : i32
      %419 = arith.addi %c784_i32, %27 : i32
      %420 = arith.index_cast %419 : i32 to index
      %421 = memref.load %arg4[%420] : memref<864xf32, #tpu.memory_space<smem>>
      %c1_218 = arith.constant 1 : index
      %c2_219 = arith.constant 2 : index
      %c2_220 = arith.constant 2 : index
      %c0_221 = arith.constant 0 : index
      %422 = vector.load %arg13[%c1_218, %c2_219, %c2_220, %c0_221] : memref<6x15x15x8xf32, #tpu.memory_space<vmem>>, vector<1x12x12x8xf32>
      %423 = vector.shape_cast %422 : vector<1x12x12x8xf32> to vector<12x12x8xf32>
      %424 = vector.broadcast %421 : f32 to vector<12x12x8xf32>
      %425 = arith.mulf %423, %424 : vector<12x12x8xf32>
      %426 = arith.addf %418, %425 : vector<12x12x8xf32>
      %c800_i32 = arith.constant 800 : i32
      %427 = arith.addi %c800_i32, %27 : i32
      %428 = arith.index_cast %427 : i32 to index
      %429 = memref.load %arg4[%428] : memref<864xf32, #tpu.memory_space<smem>>
      %c2_222 = arith.constant 2 : index
      %c2_223 = arith.constant 2 : index
      %c2_224 = arith.constant 2 : index
      %c0_225 = arith.constant 0 : index
      %430 = vector.load %arg13[%c2_222, %c2_223, %c2_224, %c0_225] : memref<6x15x15x8xf32, #tpu.memory_space<vmem>>, vector<1x12x12x8xf32>
      %431 = vector.shape_cast %430 : vector<1x12x12x8xf32> to vector<12x12x8xf32>
      %432 = vector.broadcast %429 : f32 to vector<12x12x8xf32>
      %433 = arith.mulf %431, %432 : vector<12x12x8xf32>
      %434 = arith.addf %426, %433 : vector<12x12x8xf32>
      %c816_i32 = arith.constant 816 : i32
      %435 = arith.addi %c816_i32, %27 : i32
      %436 = arith.index_cast %435 : i32 to index
      %437 = memref.load %arg4[%436] : memref<864xf32, #tpu.memory_space<smem>>
      %c3_226 = arith.constant 3 : index
      %c2_227 = arith.constant 2 : index
      %c2_228 = arith.constant 2 : index
      %c0_229 = arith.constant 0 : index
      %438 = vector.load %arg13[%c3_226, %c2_227, %c2_228, %c0_229] : memref<6x15x15x8xf32, #tpu.memory_space<vmem>>, vector<1x12x12x8xf32>
      %439 = vector.shape_cast %438 : vector<1x12x12x8xf32> to vector<12x12x8xf32>
      %440 = vector.broadcast %437 : f32 to vector<12x12x8xf32>
      %441 = arith.mulf %439, %440 : vector<12x12x8xf32>
      %442 = arith.addf %434, %441 : vector<12x12x8xf32>
      %c832_i32 = arith.constant 832 : i32
      %443 = arith.addi %c832_i32, %27 : i32
      %444 = arith.index_cast %443 : i32 to index
      %445 = memref.load %arg4[%444] : memref<864xf32, #tpu.memory_space<smem>>
      %c4_230 = arith.constant 4 : index
      %c2_231 = arith.constant 2 : index
      %c2_232 = arith.constant 2 : index
      %c0_233 = arith.constant 0 : index
      %446 = vector.load %arg13[%c4_230, %c2_231, %c2_232, %c0_233] : memref<6x15x15x8xf32, #tpu.memory_space<vmem>>, vector<1x12x12x8xf32>
      %447 = vector.shape_cast %446 : vector<1x12x12x8xf32> to vector<12x12x8xf32>
      %448 = vector.broadcast %445 : f32 to vector<12x12x8xf32>
      %449 = arith.mulf %447, %448 : vector<12x12x8xf32>
      %450 = arith.addf %442, %449 : vector<12x12x8xf32>
      %c848_i32 = arith.constant 848 : i32
      %451 = arith.addi %c848_i32, %27 : i32
      %452 = arith.index_cast %451 : i32 to index
      %453 = memref.load %arg4[%452] : memref<864xf32, #tpu.memory_space<smem>>
      %c5_234 = arith.constant 5 : index
      %c2_235 = arith.constant 2 : index
      %c2_236 = arith.constant 2 : index
      %c0_237 = arith.constant 0 : index
      %454 = vector.load %arg13[%c5_234, %c2_235, %c2_236, %c0_237] : memref<6x15x15x8xf32, #tpu.memory_space<vmem>>, vector<1x12x12x8xf32>
      %455 = vector.shape_cast %454 : vector<1x12x12x8xf32> to vector<12x12x8xf32>
      %456 = vector.broadcast %453 : f32 to vector<12x12x8xf32>
      %457 = arith.mulf %455, %456 : vector<12x12x8xf32>
      %458 = arith.addf %450, %457 : vector<12x12x8xf32>
      %459 = arith.index_cast %27 : i32 to index
      %460 = memref.load %arg5[%459] : memref<16xf32, #tpu.memory_space<smem>>
      %461 = vector.broadcast %460 : f32 to vector<12x12x8xf32>
      %462 = arith.addf %458, %461 : vector<12x12x8xf32>
      %cst_238 = arith.constant 0.000000e+00 : f32
      %463 = vector.broadcast %cst_238 : f32 to vector<12x12x8xf32>
      %464 = arith.maximumf %462, %463 : vector<12x12x8xf32>
      %465 = vector.extract_strided_slice %464 {offsets = [0, 0, 0], sizes = [1, 12, 8], strides = [1, 1, 1]} : vector<12x12x8xf32> to vector<1x12x8xf32>
      %466 = vector.shape_cast %465 : vector<1x12x8xf32> to vector<12x8xf32>
      %467 = vector.extract_strided_slice %464 {offsets = [1, 0, 0], sizes = [1, 12, 8], strides = [1, 1, 1]} : vector<12x12x8xf32> to vector<1x12x8xf32>
      %468 = vector.shape_cast %467 : vector<1x12x8xf32> to vector<12x8xf32>
      %469 = arith.maximumf %466, %468 : vector<12x8xf32>
      %470 = vector.extract_strided_slice %469 {offsets = [0, 0], sizes = [1, 8], strides = [1, 1]} : vector<12x8xf32> to vector<1x8xf32>
      %471 = vector.extract_strided_slice %469 {offsets = [1, 0], sizes = [1, 8], strides = [1, 1]} : vector<12x8xf32> to vector<1x8xf32>
      %472 = arith.maximumf %470, %471 : vector<1x8xf32>
      %473 = vector.extract_strided_slice %469 {offsets = [2, 0], sizes = [1, 8], strides = [1, 1]} : vector<12x8xf32> to vector<1x8xf32>
      %474 = vector.extract_strided_slice %469 {offsets = [3, 0], sizes = [1, 8], strides = [1, 1]} : vector<12x8xf32> to vector<1x8xf32>
      %475 = arith.maximumf %473, %474 : vector<1x8xf32>
      %476 = vector.extract_strided_slice %469 {offsets = [4, 0], sizes = [1, 8], strides = [1, 1]} : vector<12x8xf32> to vector<1x8xf32>
      %477 = vector.extract_strided_slice %469 {offsets = [5, 0], sizes = [1, 8], strides = [1, 1]} : vector<12x8xf32> to vector<1x8xf32>
      %478 = arith.maximumf %476, %477 : vector<1x8xf32>
      %479 = vector.extract_strided_slice %469 {offsets = [6, 0], sizes = [1, 8], strides = [1, 1]} : vector<12x8xf32> to vector<1x8xf32>
      %480 = vector.extract_strided_slice %469 {offsets = [7, 0], sizes = [1, 8], strides = [1, 1]} : vector<12x8xf32> to vector<1x8xf32>
      %481 = arith.maximumf %479, %480 : vector<1x8xf32>
      %482 = vector.extract_strided_slice %469 {offsets = [8, 0], sizes = [1, 8], strides = [1, 1]} : vector<12x8xf32> to vector<1x8xf32>
      %483 = vector.extract_strided_slice %469 {offsets = [9, 0], sizes = [1, 8], strides = [1, 1]} : vector<12x8xf32> to vector<1x8xf32>
      %484 = arith.maximumf %482, %483 : vector<1x8xf32>
      %485 = vector.extract_strided_slice %469 {offsets = [10, 0], sizes = [1, 8], strides = [1, 1]} : vector<12x8xf32> to vector<1x8xf32>
      %486 = vector.extract_strided_slice %469 {offsets = [11, 0], sizes = [1, 8], strides = [1, 1]} : vector<12x8xf32> to vector<1x8xf32>
      %487 = arith.maximumf %485, %486 : vector<1x8xf32>
      %488 = vector.extract_strided_slice %464 {offsets = [2, 0, 0], sizes = [1, 12, 8], strides = [1, 1, 1]} : vector<12x12x8xf32> to vector<1x12x8xf32>
      %489 = vector.shape_cast %488 : vector<1x12x8xf32> to vector<12x8xf32>
      %490 = vector.extract_strided_slice %464 {offsets = [3, 0, 0], sizes = [1, 12, 8], strides = [1, 1, 1]} : vector<12x12x8xf32> to vector<1x12x8xf32>
      %491 = vector.shape_cast %490 : vector<1x12x8xf32> to vector<12x8xf32>
      %492 = arith.maximumf %489, %491 : vector<12x8xf32>
      %493 = vector.extract_strided_slice %492 {offsets = [0, 0], sizes = [1, 8], strides = [1, 1]} : vector<12x8xf32> to vector<1x8xf32>
      %494 = vector.extract_strided_slice %492 {offsets = [1, 0], sizes = [1, 8], strides = [1, 1]} : vector<12x8xf32> to vector<1x8xf32>
      %495 = arith.maximumf %493, %494 : vector<1x8xf32>
      %496 = vector.extract_strided_slice %492 {offsets = [2, 0], sizes = [1, 8], strides = [1, 1]} : vector<12x8xf32> to vector<1x8xf32>
      %497 = vector.extract_strided_slice %492 {offsets = [3, 0], sizes = [1, 8], strides = [1, 1]} : vector<12x8xf32> to vector<1x8xf32>
      %498 = arith.maximumf %496, %497 : vector<1x8xf32>
      %499 = vector.extract_strided_slice %492 {offsets = [4, 0], sizes = [1, 8], strides = [1, 1]} : vector<12x8xf32> to vector<1x8xf32>
      %500 = vector.extract_strided_slice %492 {offsets = [5, 0], sizes = [1, 8], strides = [1, 1]} : vector<12x8xf32> to vector<1x8xf32>
      %501 = arith.maximumf %499, %500 : vector<1x8xf32>
      %502 = vector.extract_strided_slice %492 {offsets = [6, 0], sizes = [1, 8], strides = [1, 1]} : vector<12x8xf32> to vector<1x8xf32>
      %503 = vector.extract_strided_slice %492 {offsets = [7, 0], sizes = [1, 8], strides = [1, 1]} : vector<12x8xf32> to vector<1x8xf32>
      %504 = arith.maximumf %502, %503 : vector<1x8xf32>
      %505 = vector.extract_strided_slice %492 {offsets = [8, 0], sizes = [1, 8], strides = [1, 1]} : vector<12x8xf32> to vector<1x8xf32>
      %506 = vector.extract_strided_slice %492 {offsets = [9, 0], sizes = [1, 8], strides = [1, 1]} : vector<12x8xf32> to vector<1x8xf32>
      %507 = arith.maximumf %505, %506 : vector<1x8xf32>
      %508 = vector.extract_strided_slice %492 {offsets = [10, 0], sizes = [1, 8], strides = [1, 1]} : vector<12x8xf32> to vector<1x8xf32>
      %509 = vector.extract_strided_slice %492 {offsets = [11, 0], sizes = [1, 8], strides = [1, 1]} : vector<12x8xf32> to vector<1x8xf32>
      %510 = arith.maximumf %508, %509 : vector<1x8xf32>
      %511 = vector.extract_strided_slice %464 {offsets = [4, 0, 0], sizes = [1, 12, 8], strides = [1, 1, 1]} : vector<12x12x8xf32> to vector<1x12x8xf32>
      %512 = vector.shape_cast %511 : vector<1x12x8xf32> to vector<12x8xf32>
      %513 = vector.extract_strided_slice %464 {offsets = [5, 0, 0], sizes = [1, 12, 8], strides = [1, 1, 1]} : vector<12x12x8xf32> to vector<1x12x8xf32>
      %514 = vector.shape_cast %513 : vector<1x12x8xf32> to vector<12x8xf32>
      %515 = arith.maximumf %512, %514 : vector<12x8xf32>
      %516 = vector.extract_strided_slice %515 {offsets = [0, 0], sizes = [1, 8], strides = [1, 1]} : vector<12x8xf32> to vector<1x8xf32>
      %517 = vector.extract_strided_slice %515 {offsets = [1, 0], sizes = [1, 8], strides = [1, 1]} : vector<12x8xf32> to vector<1x8xf32>
      %518 = arith.maximumf %516, %517 : vector<1x8xf32>
      %519 = vector.extract_strided_slice %515 {offsets = [2, 0], sizes = [1, 8], strides = [1, 1]} : vector<12x8xf32> to vector<1x8xf32>
      %520 = vector.extract_strided_slice %515 {offsets = [3, 0], sizes = [1, 8], strides = [1, 1]} : vector<12x8xf32> to vector<1x8xf32>
      %521 = arith.maximumf %519, %520 : vector<1x8xf32>
      %522 = vector.extract_strided_slice %515 {offsets = [4, 0], sizes = [1, 8], strides = [1, 1]} : vector<12x8xf32> to vector<1x8xf32>
      %523 = vector.extract_strided_slice %515 {offsets = [5, 0], sizes = [1, 8], strides = [1, 1]} : vector<12x8xf32> to vector<1x8xf32>
      %524 = arith.maximumf %522, %523 : vector<1x8xf32>
      %525 = vector.extract_strided_slice %515 {offsets = [6, 0], sizes = [1, 8], strides = [1, 1]} : vector<12x8xf32> to vector<1x8xf32>
      %526 = vector.extract_strided_slice %515 {offsets = [7, 0], sizes = [1, 8], strides = [1, 1]} : vector<12x8xf32> to vector<1x8xf32>
      %527 = arith.maximumf %525, %526 : vector<1x8xf32>
      %528 = vector.extract_strided_slice %515 {offsets = [8, 0], sizes = [1, 8], strides = [1, 1]} : vector<12x8xf32> to vector<1x8xf32>
      %529 = vector.extract_strided_slice %515 {offsets = [9, 0], sizes = [1, 8], strides = [1, 1]} : vector<12x8xf32> to vector<1x8xf32>
      %530 = arith.maximumf %528, %529 : vector<1x8xf32>
      %531 = vector.extract_strided_slice %515 {offsets = [10, 0], sizes = [1, 8], strides = [1, 1]} : vector<12x8xf32> to vector<1x8xf32>
      %532 = vector.extract_strided_slice %515 {offsets = [11, 0], sizes = [1, 8], strides = [1, 1]} : vector<12x8xf32> to vector<1x8xf32>
      %533 = arith.maximumf %531, %532 : vector<1x8xf32>
      %534 = vector.extract_strided_slice %464 {offsets = [6, 0, 0], sizes = [1, 12, 8], strides = [1, 1, 1]} : vector<12x12x8xf32> to vector<1x12x8xf32>
      %535 = vector.shape_cast %534 : vector<1x12x8xf32> to vector<12x8xf32>
      %536 = vector.extract_strided_slice %464 {offsets = [7, 0, 0], sizes = [1, 12, 8], strides = [1, 1, 1]} : vector<12x12x8xf32> to vector<1x12x8xf32>
      %537 = vector.shape_cast %536 : vector<1x12x8xf32> to vector<12x8xf32>
      %538 = arith.maximumf %535, %537 : vector<12x8xf32>
      %539 = vector.extract_strided_slice %538 {offsets = [0, 0], sizes = [1, 8], strides = [1, 1]} : vector<12x8xf32> to vector<1x8xf32>
      %540 = vector.extract_strided_slice %538 {offsets = [1, 0], sizes = [1, 8], strides = [1, 1]} : vector<12x8xf32> to vector<1x8xf32>
      %541 = arith.maximumf %539, %540 : vector<1x8xf32>
      %542 = vector.extract_strided_slice %538 {offsets = [2, 0], sizes = [1, 8], strides = [1, 1]} : vector<12x8xf32> to vector<1x8xf32>
      %543 = vector.extract_strided_slice %538 {offsets = [3, 0], sizes = [1, 8], strides = [1, 1]} : vector<12x8xf32> to vector<1x8xf32>
      %544 = arith.maximumf %542, %543 : vector<1x8xf32>
      %545 = vector.extract_strided_slice %538 {offsets = [4, 0], sizes = [1, 8], strides = [1, 1]} : vector<12x8xf32> to vector<1x8xf32>
      %546 = vector.extract_strided_slice %538 {offsets = [5, 0], sizes = [1, 8], strides = [1, 1]} : vector<12x8xf32> to vector<1x8xf32>
      %547 = arith.maximumf %545, %546 : vector<1x8xf32>
      %548 = vector.extract_strided_slice %538 {offsets = [6, 0], sizes = [1, 8], strides = [1, 1]} : vector<12x8xf32> to vector<1x8xf32>
      %549 = vector.extract_strided_slice %538 {offsets = [7, 0], sizes = [1, 8], strides = [1, 1]} : vector<12x8xf32> to vector<1x8xf32>
      %550 = arith.maximumf %548, %549 : vector<1x8xf32>
      %551 = vector.extract_strided_slice %538 {offsets = [8, 0], sizes = [1, 8], strides = [1, 1]} : vector<12x8xf32> to vector<1x8xf32>
      %552 = vector.extract_strided_slice %538 {offsets = [9, 0], sizes = [1, 8], strides = [1, 1]} : vector<12x8xf32> to vector<1x8xf32>
      %553 = arith.maximumf %551, %552 : vector<1x8xf32>
      %554 = vector.extract_strided_slice %538 {offsets = [10, 0], sizes = [1, 8], strides = [1, 1]} : vector<12x8xf32> to vector<1x8xf32>
      %555 = vector.extract_strided_slice %538 {offsets = [11, 0], sizes = [1, 8], strides = [1, 1]} : vector<12x8xf32> to vector<1x8xf32>
      %556 = arith.maximumf %554, %555 : vector<1x8xf32>
      %557 = vector.extract_strided_slice %464 {offsets = [8, 0, 0], sizes = [1, 12, 8], strides = [1, 1, 1]} : vector<12x12x8xf32> to vector<1x12x8xf32>
      %558 = vector.shape_cast %557 : vector<1x12x8xf32> to vector<12x8xf32>
      %559 = vector.extract_strided_slice %464 {offsets = [9, 0, 0], sizes = [1, 12, 8], strides = [1, 1, 1]} : vector<12x12x8xf32> to vector<1x12x8xf32>
      %560 = vector.shape_cast %559 : vector<1x12x8xf32> to vector<12x8xf32>
      %561 = arith.maximumf %558, %560 : vector<12x8xf32>
      %562 = vector.extract_strided_slice %561 {offsets = [0, 0], sizes = [1, 8], strides = [1, 1]} : vector<12x8xf32> to vector<1x8xf32>
      %563 = vector.extract_strided_slice %561 {offsets = [1, 0], sizes = [1, 8], strides = [1, 1]} : vector<12x8xf32> to vector<1x8xf32>
      %564 = arith.maximumf %562, %563 : vector<1x8xf32>
      %565 = vector.extract_strided_slice %561 {offsets = [2, 0], sizes = [1, 8], strides = [1, 1]} : vector<12x8xf32> to vector<1x8xf32>
      %566 = vector.extract_strided_slice %561 {offsets = [3, 0], sizes = [1, 8], strides = [1, 1]} : vector<12x8xf32> to vector<1x8xf32>
      %567 = arith.maximumf %565, %566 : vector<1x8xf32>
      %568 = vector.extract_strided_slice %561 {offsets = [4, 0], sizes = [1, 8], strides = [1, 1]} : vector<12x8xf32> to vector<1x8xf32>
      %569 = vector.extract_strided_slice %561 {offsets = [5, 0], sizes = [1, 8], strides = [1, 1]} : vector<12x8xf32> to vector<1x8xf32>
      %570 = arith.maximumf %568, %569 : vector<1x8xf32>
      %571 = vector.extract_strided_slice %561 {offsets = [6, 0], sizes = [1, 8], strides = [1, 1]} : vector<12x8xf32> to vector<1x8xf32>
      %572 = vector.extract_strided_slice %561 {offsets = [7, 0], sizes = [1, 8], strides = [1, 1]} : vector<12x8xf32> to vector<1x8xf32>
      %573 = arith.maximumf %571, %572 : vector<1x8xf32>
      %574 = vector.extract_strided_slice %561 {offsets = [8, 0], sizes = [1, 8], strides = [1, 1]} : vector<12x8xf32> to vector<1x8xf32>
      %575 = vector.extract_strided_slice %561 {offsets = [9, 0], sizes = [1, 8], strides = [1, 1]} : vector<12x8xf32> to vector<1x8xf32>
      %576 = arith.maximumf %574, %575 : vector<1x8xf32>
      %577 = vector.extract_strided_slice %561 {offsets = [10, 0], sizes = [1, 8], strides = [1, 1]} : vector<12x8xf32> to vector<1x8xf32>
      %578 = vector.extract_strided_slice %561 {offsets = [11, 0], sizes = [1, 8], strides = [1, 1]} : vector<12x8xf32> to vector<1x8xf32>
      %579 = arith.maximumf %577, %578 : vector<1x8xf32>
      %580 = vector.extract_strided_slice %464 {offsets = [10, 0, 0], sizes = [1, 12, 8], strides = [1, 1, 1]} : vector<12x12x8xf32> to vector<1x12x8xf32>
      %581 = vector.shape_cast %580 : vector<1x12x8xf32> to vector<12x8xf32>
      %582 = vector.extract_strided_slice %464 {offsets = [11, 0, 0], sizes = [1, 12, 8], strides = [1, 1, 1]} : vector<12x12x8xf32> to vector<1x12x8xf32>
      %583 = vector.shape_cast %582 : vector<1x12x8xf32> to vector<12x8xf32>
      %584 = arith.maximumf %581, %583 : vector<12x8xf32>
      %585 = vector.extract_strided_slice %584 {offsets = [0, 0], sizes = [1, 8], strides = [1, 1]} : vector<12x8xf32> to vector<1x8xf32>
      %586 = vector.extract_strided_slice %584 {offsets = [1, 0], sizes = [1, 8], strides = [1, 1]} : vector<12x8xf32> to vector<1x8xf32>
      %587 = arith.maximumf %585, %586 : vector<1x8xf32>
      %588 = vector.extract_strided_slice %584 {offsets = [2, 0], sizes = [1, 8], strides = [1, 1]} : vector<12x8xf32> to vector<1x8xf32>
      %589 = vector.extract_strided_slice %584 {offsets = [3, 0], sizes = [1, 8], strides = [1, 1]} : vector<12x8xf32> to vector<1x8xf32>
      %590 = arith.maximumf %588, %589 : vector<1x8xf32>
      %591 = vector.extract_strided_slice %584 {offsets = [4, 0], sizes = [1, 8], strides = [1, 1]} : vector<12x8xf32> to vector<1x8xf32>
      %592 = vector.extract_strided_slice %584 {offsets = [5, 0], sizes = [1, 8], strides = [1, 1]} : vector<12x8xf32> to vector<1x8xf32>
      %593 = arith.maximumf %591, %592 : vector<1x8xf32>
      %594 = vector.extract_strided_slice %584 {offsets = [6, 0], sizes = [1, 8], strides = [1, 1]} : vector<12x8xf32> to vector<1x8xf32>
      %595 = vector.extract_strided_slice %584 {offsets = [7, 0], sizes = [1, 8], strides = [1, 1]} : vector<12x8xf32> to vector<1x8xf32>
      %596 = arith.maximumf %594, %595 : vector<1x8xf32>
      %597 = vector.extract_strided_slice %584 {offsets = [8, 0], sizes = [1, 8], strides = [1, 1]} : vector<12x8xf32> to vector<1x8xf32>
      %598 = vector.extract_strided_slice %584 {offsets = [9, 0], sizes = [1, 8], strides = [1, 1]} : vector<12x8xf32> to vector<1x8xf32>
      %599 = arith.maximumf %597, %598 : vector<1x8xf32>
      %600 = vector.extract_strided_slice %584 {offsets = [10, 0], sizes = [1, 8], strides = [1, 1]} : vector<12x8xf32> to vector<1x8xf32>
      %601 = vector.extract_strided_slice %584 {offsets = [11, 0], sizes = [1, 8], strides = [1, 1]} : vector<12x8xf32> to vector<1x8xf32>
      %602 = arith.maximumf %600, %601 : vector<1x8xf32>
      %603 = tpu.concatenate %472, %475, %478, %481, %484, %487, %495, %498, %501, %504, %507, %510, %518, %521, %524, %527 in 0 : vector<1x8xf32>, vector<1x8xf32>, vector<1x8xf32>, vector<1x8xf32>, vector<1x8xf32>, vector<1x8xf32>, vector<1x8xf32>, vector<1x8xf32>, vector<1x8xf32>, vector<1x8xf32>, vector<1x8xf32>, vector<1x8xf32>, vector<1x8xf32>, vector<1x8xf32>, vector<1x8xf32>, vector<1x8xf32> -> vector<16x8xf32>
      %604 = tpu.concatenate %530, %533, %541, %544, %547, %550, %553, %556, %564, %567, %570, %573, %576, %579, %587, %590 in 0 : vector<1x8xf32>, vector<1x8xf32>, vector<1x8xf32>, vector<1x8xf32>, vector<1x8xf32>, vector<1x8xf32>, vector<1x8xf32>, vector<1x8xf32>, vector<1x8xf32>, vector<1x8xf32>, vector<1x8xf32>, vector<1x8xf32>, vector<1x8xf32>, vector<1x8xf32>, vector<1x8xf32>, vector<1x8xf32> -> vector<16x8xf32>
      %605 = tpu.concatenate %593, %596, %599, %602 in 0 : vector<1x8xf32>, vector<1x8xf32>, vector<1x8xf32>, vector<1x8xf32> -> vector<4x8xf32>
      %606 = tpu.concatenate %603, %604, %605 in 0 : vector<16x8xf32>, vector<16x8xf32>, vector<4x8xf32> -> vector<36x8xf32>
      %c36_i32 = arith.constant 36 : i32
      %607 = arith.muli %27, %c36_i32 : i32
      %608 = arith.index_cast %607 : i32 to index
      %c0_239 = arith.constant 0 : index
      %609 = vector.load %arg14[%608, %c0_239] : memref<576x8xf32, #tpu.memory_space<vmem>>, vector<36x8xf32>
      tpu.vector_store %arg14[%608, %c0_239], %606 {strides = array<i32>} : memref<576x8xf32, #tpu.memory_space<vmem>>, vector<36x8xf32>,
    }
    %c16_i32_3 = arith.constant 16 : i32
    %c0 = arith.constant 0 : index
    %c0_4 = arith.constant 0 : index
    %2 = vector.load %arg14[%c0, %c0_4] : memref<576x8xf32, #tpu.memory_space<vmem>>, vector<576x8xf32>
    %3 = arith.truncf %2 : vector<576x8xf32> to vector<576x8xbf16>
    %c0_5 = arith.constant 0 : index
    %c0_6 = arith.constant 0 : index
    %4 = vector.load %arg6[%c0_5, %c0_6] : memref<120x576xbf16, #tpu.memory_space<vmem>>, vector<120x576xbf16>
    %cst = arith.constant dense<0.000000e+00> : vector<120x8xf32>
    %5 = tpu.matmul %4, %3, %cst {dimension_numbers = #tpu.dot_dimension_numbers<[1], [0], [0], [1], [0, 0, 1, 1], [], []>} : vector<120x576xbf16>, vector<576x8xbf16>, vector<120x8xf32> -> vector<120x8xf32>
    %c0_7 = arith.constant 0 : index
    %c0_8 = arith.constant 0 : index
    %6 = vector.load %arg7[%c0_7, %c0_8] : memref<120x1xf32, #tpu.memory_space<vmem>>, vector<120x1xf32>
    %7 = vector.broadcast %6 : vector<120x1xf32> to vector<120x8xf32>
    %8 = arith.addf %5, %7 : vector<120x8xf32>
    %cst_9 = arith.constant 0.000000e+00 : f32
    %9 = vector.broadcast %cst_9 : f32 to vector<120x8xf32>
    %10 = arith.maximumf %8, %9 : vector<120x8xf32>
    %11 = arith.truncf %10 : vector<120x8xf32> to vector<120x8xbf16>
    %c0_10 = arith.constant 0 : index
    %c0_11 = arith.constant 0 : index
    %12 = vector.load %arg8[%c0_10, %c0_11] : memref<84x120xbf16, #tpu.memory_space<vmem>>, vector<84x120xbf16>
    %cst_12 = arith.constant dense<0.000000e+00> : vector<84x8xf32>
    %13 = tpu.matmul %12, %11, %cst_12 {dimension_numbers = #tpu.dot_dimension_numbers<[1], [0], [0], [1], [0, 0, 1, 1], [], []>} : vector<84x120xbf16>, vector<120x8xbf16>, vector<84x8xf32> -> vector<84x8xf32>
    %c0_13 = arith.constant 0 : index
    %c0_14 = arith.constant 0 : index
    %14 = vector.load %arg9[%c0_13, %c0_14] : memref<84x1xf32, #tpu.memory_space<vmem>>, vector<84x1xf32>
    %15 = vector.broadcast %14 : vector<84x1xf32> to vector<84x8xf32>
    %16 = arith.addf %13, %15 : vector<84x8xf32>
    %cst_15 = arith.constant 0.000000e+00 : f32
    %17 = vector.broadcast %cst_15 : f32 to vector<84x8xf32>
    %18 = arith.maximumf %16, %17 : vector<84x8xf32>
    %19 = arith.truncf %18 : vector<84x8xf32> to vector<84x8xbf16>
    %c0_16 = arith.constant 0 : index
    %c0_17 = arith.constant 0 : index
    %20 = vector.load %arg10[%c0_16, %c0_17] : memref<10x84xbf16, #tpu.memory_space<vmem>>, vector<10x84xbf16>
    %cst_18 = arith.constant dense<0.000000e+00> : vector<10x8xf32>
    %21 = tpu.matmul %20, %19, %cst_18 {dimension_numbers = #tpu.dot_dimension_numbers<[1], [0], [0], [1], [0, 0, 1, 1], [], []>} : vector<10x84xbf16>, vector<84x8xbf16>, vector<10x8xf32> -> vector<10x8xf32>
    %c0_19 = arith.constant 0 : index
    %c0_20 = arith.constant 0 : index
    %22 = vector.load %arg11[%c0_19, %c0_20] : memref<10x1xf32, #tpu.memory_space<vmem>>, vector<10x1xf32>
    %23 = vector.broadcast %22 : vector<10x1xf32> to vector<10x8xf32>
    %24 = arith.addf %21, %23 : vector<10x8xf32>
    %c0_21 = arith.constant 0 : index
    %c0_22 = arith.constant 0 : index
    %25 = vector.load %arg12[%c0_21, %c0_22] : memref<10x8xf32, #tpu.memory_space<vmem>>, vector<10x8xf32>
    tpu.vector_store %arg12[%c0_21, %c0_22], %24 {strides = array<i32>} : memref<10x8xf32, #tpu.memory_space<vmem>>, vector<10x8xf32>,
    return
  }
  func.func @transform_0(%arg0: i32) -> (i32, i32, i32, i32) {
    %c0_i32 = arith.constant 0 : i32
    %c0_i32_0 = arith.constant 0 : i32
    %c0_i32_1 = arith.constant 0 : i32
    %c0_i32_2 = arith.constant 0 : i32
    return %c0_i32, %c0_i32_0, %c0_i32_1, %arg0 : i32, i32, i32, i32
  }
  func.func @transform_1(%arg0: i32) -> i32 {
    %c0_i32 = arith.constant 0 : i32
    %c0_i32_0 = arith.constant 0 : i32
    return %c0_i32 : i32
  }
  func.func @transform_2(%arg0: i32) -> i32 {
    %c0_i32 = arith.constant 0 : i32
    %c0_i32_0 = arith.constant 0 : i32
    return %c0_i32 : i32
  }
  func.func @transform_3(%arg0: i32) -> i32 {
    %c0_i32 = arith.constant 0 : i32
    %c0_i32_0 = arith.constant 0 : i32
    return %c0_i32 : i32
  }
  func.func @transform_4(%arg0: i32) -> i32 {
    %c0_i32 = arith.constant 0 : i32
    %c0_i32_0 = arith.constant 0 : i32
    return %c0_i32 : i32
  }
  func.func @transform_5(%arg0: i32) -> (i32, i32) {
    %c0_i32 = arith.constant 0 : i32
    %c0_i32_0 = arith.constant 0 : i32
    %c0_i32_1 = arith.constant 0 : i32
    return %c0_i32, %c0_i32_0 : i32, i32
  }
  func.func @transform_6(%arg0: i32) -> (i32, i32) {
    %c0_i32 = arith.constant 0 : i32
    %c0_i32_0 = arith.constant 0 : i32
    %c0_i32_1 = arith.constant 0 : i32
    return %c0_i32, %c0_i32_0 : i32, i32
  }
  func.func @transform_7(%arg0: i32) -> (i32, i32) {
    %c0_i32 = arith.constant 0 : i32
    %c0_i32_0 = arith.constant 0 : i32
    %c0_i32_1 = arith.constant 0 : i32
    return %c0_i32, %c0_i32_0 : i32, i32
  }
  func.func @transform_8(%arg0: i32) -> (i32, i32) {
    %c0_i32 = arith.constant 0 : i32
    %c0_i32_0 = arith.constant 0 : i32
    %c0_i32_1 = arith.constant 0 : i32
    return %c0_i32, %c0_i32_0 : i32, i32
  }
  func.func @transform_9(%arg0: i32) -> (i32, i32) {
    %c0_i32 = arith.constant 0 : i32
    %c0_i32_0 = arith.constant 0 : i32
    %c0_i32_1 = arith.constant 0 : i32
    return %c0_i32, %c0_i32_0 : i32, i32
  }
  func.func @transform_10(%arg0: i32) -> (i32, i32) {
    %c0_i32 = arith.constant 0 : i32
    %c0_i32_0 = arith.constant 0 : i32
    %c0_i32_1 = arith.constant 0 : i32
    return %c0_i32, %c0_i32_0 : i32, i32
  }
  func.func @transform_11(%arg0: i32) -> (i32, i32) {
    %c0_i32 = arith.constant 0 : i32
    %c0_i32_0 = arith.constant 0 : i32
    return %c0_i32, %arg0 : i32, i32
  }
}

</mosaic_0001>

<llo_original>
// kernel: net_forward.1
$region0: #{net_forward.1}
  #allocation0 [shape = 'u32[]', space=smem, size = 0x4, offset = 0x4, fixed_abs, tag = 'smem constant byte address 0x4 - core index']
  #allocation1 [shape = 'u32[72,128]{1,0:T(1,128)}', space=vmem, size = 0x9000, scoped, tag = 'internal scratch']
  #allocation2 [shape = 'f32[6,15,15,8]{3,2,1,0:T(8,128)}', space=vmem, size = 0xb4000, scoped, tag = 'scratch operand']
  #allocation3 [shape = 'f32[576,8]{1,0:T(8,128)}', space=vmem, size = 0x48000, scoped, tag = 'scratch operand']
  %s0 = inlined_call_operand.vmem [shape: f32[4,16,16,8], index: 0, kind: input, shape index: {}]
  %s1 = inlined_call_operand.vmem [shape: f32[54], index: 1, kind: input, shape index: {}]
  %s2 = inlined_call_operand.vmem [shape: f32[6], index: 2, kind: input, shape index: {}]
  %s3 = inlined_call_operand.vmem [shape: f32[864], index: 3, kind: input, shape index: {}]
  %s4 = inlined_call_operand.vmem [shape: f32[16], index: 4, kind: input, shape index: {}]
  %s5 = inlined_call_operand.vmem [shape: bf16[120,576], index: 5, kind: input, shape index: {}]
  %s6 = inlined_call_operand.vmem [shape: f32[120,1], index: 6, kind: input, shape index: {}]
  %s7 = inlined_call_operand.vmem [shape: bf16[84,120], index: 7, kind: input, shape index: {}]
  %s8 = inlined_call_operand.vmem [shape: f32[84,1], index: 8, kind: input, shape index: {}]
  %s9 = inlined_call_operand.vmem [shape: bf16[10,84], index: 9, kind: input, shape index: {}]
  %s10 = inlined_call_operand.vmem [shape: f32[10,1], index: 10, kind: input, shape index: {}]
  %s11 = inlined_call_operand.vmem [shape: f32[10,8], index: 11, kind: output, shape index: {}]
  %s12 = sld [smem:[#allocation0]]
  $region84: #{net_forward.1} parent=0
    _
  %s14 = ssub.s32 1, %s12
  %s15 = scalar_select 0, %s14, %s12
  $region1: #{net_forward.1} parent=0
    #allocation4 [shape = 'u8[512]{0}', space=smem, size = 0x200, scoped, tag = 'input window, operand 1, single buffered']
    #allocation5 [shape = 's32[1]{0}', space=sflag, size = 0x4, scoped, tag = 'scoped memory for net_forward.1']
    #allocation6 [shape = 'u8[512]{0}', space=smem, size = 0x200, scoped, tag = 'input window, operand 2, single buffered']
    #allocation7 [shape = 's32[1]{0}', space=sflag, size = 0x4, scoped, tag = 'scoped memory for net_forward.1']
    #allocation8 [shape = 'u8[3584]{0}', space=smem, size = 0xe00, scoped, tag = 'input window, operand 3, single buffered']
    #allocation9 [shape = 'u8[512]{0}', space=smem, size = 0x200, scoped, tag = 'input window, operand 4, single buffered']
    #allocation10 [shape = 's32[1]{0}', space=sflag, size = 0x4, scoped, tag = 'scoped memory for net_forward.1']
    %16 = vsyncpa [#allocation5], 0
    %17 = vsyncpa [#allocation7], 0
    %18 = vsyncpa [#allocation10], 0
    // Predicated region
    $region2: #{net_forward.1} parent=1 // pred_check
      _
    $region3: #{net_forward.1} parent=1 // pred_check_branch
      %20 = sbr.rel (0) target = $region5
    $region4: #{net_forward.1} parent=1 // pred_region
      _
    $region5: #{net_forward.1} parent=1 // pred_fallthru
      _
    // Predicated region
    $region6: #{net_forward.1} parent=1 // pred_check
      _
    $region7: #{net_forward.1} parent=1 // pred_check_branch
      %22 = sbr.rel (0) target = $region9
    $region8: #{net_forward.1} parent=1 // pred_region
      %24 = vsyncadd [#allocation5], 0
      %s26 = sshll.u32 %s1, 4
      %s27 = int_to_ptr.vmem [resolvable:$true] %s26
      %29 = dma.vmem_to_smem %s27, 16, [#allocation4], [#allocation5]
    $region9: #{net_forward.1} parent=1 // pred_fallthru
      _
    // Predicated region
    $region10: #{net_forward.1} parent=1 // pred_check
      _
    $region11: #{net_forward.1} parent=1 // pred_check_branch
      %31 = sbr.rel (0) target = $region13
    $region12: #{net_forward.1} parent=1 // pred_region
      %33 = vsyncadd [#allocation7], 0
      %s35 = sshll.u32 %s2, 4
      %s36 = int_to_ptr.vmem [resolvable:$true] %s35
      %38 = dma.vmem_to_smem %s36, 16, [#allocation6], [#allocation7]
    $region13: #{net_forward.1} parent=1 // pred_fallthru
      _
    // Predicated region
    $region14: #{net_forward.1} parent=1 // pred_check
      _
    $region15: #{net_forward.1} parent=1 // pred_check_branch
      %40 = sbr.rel (0) target = $region17
    $region16: #{net_forward.1} parent=1 // pred_region
      %42 = vsyncadd [#allocation7], 0
      %s44 = sshll.u32 %s3, 4
      %s45 = int_to_ptr.vmem [resolvable:$true] %s44
      %47 = dma.vmem_to_smem %s45, 112, [#allocation8], [#allocation7]
    $region17: #{net_forward.1} parent=1 // pred_fallthru
      _
    // Predicated region
    $region18: #{net_forward.1} parent=1 // pred_check
      _
    $region19: #{net_forward.1} parent=1 // pred_check_branch
      %49 = sbr.rel (0) target = $region21
    $region20: #{net_forward.1} parent=1 // pred_region
      %51 = vsyncadd [#allocation10], 0
      %s53 = sshll.u32 %s4, 4
      %s54 = int_to_ptr.vmem [resolvable:$true] %s53
      %56 = dma.vmem_to_smem %s54, 16, [#allocation9], [#allocation10]
    $region21: #{net_forward.1} parent=1 // pred_fallthru
      _
    // Predicated region
    $region22: #{net_forward.1} parent=1 // pred_check
      _
    $region23: #{net_forward.1} parent=1 // pred_check_branch
      %58 = sbr.rel (0) target = $region25
    $region24: #{net_forward.1} parent=1 // pred_region
      _
    $region25: #{net_forward.1} parent=1 // pred_fallthru
      _
    // Predicated region
    $region26: #{net_forward.1} parent=1 // pred_check
      _
    $region27: #{net_forward.1} parent=1 // pred_check_branch
      %60 = sbr.rel (0) target = $region29
    $region28: #{net_forward.1} parent=1 // pred_region
      _
    $region29: #{net_forward.1} parent=1 // pred_fallthru
      _
    // Predicated region
    $region30: #{net_forward.1} parent=1 // pred_check
      _
    $region31: #{net_forward.1} parent=1 // pred_check_branch
      %62 = sbr.rel (0) target = $region33
    $region32: #{net_forward.1} parent=1 // pred_region
      _
    $region33: #{net_forward.1} parent=1 // pred_fallthru
      _
    // Predicated region
    $region34: #{net_forward.1} parent=1 // pred_check
      _
    $region35: #{net_forward.1} parent=1 // pred_check_branch
      %64 = sbr.rel (0) target = $region37
    $region36: #{net_forward.1} parent=1 // pred_region
      _
    $region37: #{net_forward.1} parent=1 // pred_fallthru
      _
    // Predicated region
    $region38: #{net_forward.1} parent=1 // pred_check
      _
    $region39: #{net_forward.1} parent=1 // pred_check_branch
      %66 = sbr.rel (0) target = $region41
    $region40: #{net_forward.1} parent=1 // pred_region
      _
    $region41: #{net_forward.1} parent=1 // pred_fallthru
      _
    // Predicated region
    $region42: #{net_forward.1} parent=1 // pred_check
      _
    $region43: #{net_forward.1} parent=1 // pred_check_branch
      %68 = sbr.rel (0) target = $region45
    $region44: #{net_forward.1} parent=1 // pred_region
      _
    $region45: #{net_forward.1} parent=1 // pred_fallthru
      _
    // Predicated region
    $region46: #{net_forward.1} parent=1 // pred_check
      _
    $region47: #{net_forward.1} parent=1 // pred_check_branch
      %70 = sbr.rel (0) target = $region49
    $region48: #{net_forward.1} parent=1 // pred_region
      %72 = dma.done [#allocation5], 16
    $region49: #{net_forward.1} parent=1 // pred_fallthru
      _
    // Predicated region
    $region50: #{net_forward.1} parent=1 // pred_check
      _
    $region51: #{net_forward.1} parent=1 // pred_check_branch
      %74 = sbr.rel (0) target = $region53
    $region52: #{net_forward.1} parent=1 // pred_region
      %76 = dma.done [#allocation7], 16
    $region53: #{net_forward.1} parent=1 // pred_fallthru
      _
    // Predicated region
    $region54: #{net_forward.1} parent=1 // pred_check
      _
    $region55: #{net_forward.1} parent=1 // pred_check_branch
      %78 = sbr.rel (0) target = $region57
    $region56: #{net_forward.1} parent=1 // pred_region
      %80 = dma.done [#allocation7], 112
    $region57: #{net_forward.1} parent=1 // pred_fallthru
      _
    // Predicated region
    $region58: #{net_forward.1} parent=1 // pred_check
      _
    $region59: #{net_forward.1} parent=1 // pred_check_branch
      %82 = sbr.rel (0) target = $region61
    $region60: #{net_forward.1} parent=1 // pred_region
      %84 = dma.done [#allocation10], 16
    $region61: #{net_forward.1} parent=1 // pred_fallthru
      _
    %85 = sfence
    loop: start=0, step=1, limit=6
    $region62: #{net_forward.1} parent=1 // loop_pre_header
      _
    $region63: #{net_forward.1} parent=1 // loop_header
      %s88 = sphi 0, %s92
      %p89 = scmp.ge.s32.totalorder %s88, 6
    $region64: #{net_forward.1} parent=1 // loop_header_branch
      %91 = sbr.rel (%p89) target = $region68
    $region65: #{net_forward.1} parent=1 // loop_body
      %s93 = smul.u32 %s88, 9
      %s94 = sld [smem:[#allocation4 + %s93]]
      %s95 = sadd.s32 %s93, 1
      %s96 = sld [smem:[#allocation4 + %s95]]
      %s97 = sadd.s32 %s93, 2
      %s98 = sld [smem:[#allocation4 + %s97]]
      %s99 = sadd.s32 %s93, 3
      %s100 = sld [smem:[#allocation4 + %s99]]
      %s101 = sadd.s32 %s93, 4
      %s102 = sld [smem:[#allocation4 + %s101]]
      %s103 = sadd.s32 %s93, 5
      %s104 = sld [smem:[#allocation4 + %s103]]
      %s105 = sadd.s32 %s93, 6
      %s106 = sld [smem:[#allocation4 + %s105]]
      %s107 = sadd.s32 %s93, 7
      %s108 = sld [smem:[#allocation4 + %s107]]
      %s109 = sadd.s32 %s93, 8
      %s110 = sld [smem:[#allocation4 + %s109]]
      %v111 = vld [vmem:[%s0] sm:$0xff]
      %v112 = vld [vmem:[%s0 + $0x8] sm:$0x7f]
      %v113 = vld [vmem:[%s0 + $0x10] sm:$0xff]
      %v114 = vld [vmem:[%s0 + $0x18] sm:$0x7f]
      %v115 = vld [vmem:[%s0 + $0x20] sm:$0xff]
      %v116 = vld [vmem:[%s0 + $0x28] sm:$0x7f]
      %v117 = vld [vmem:[%s0 + $0x30] sm:$0xff]
      %v118 = vld [vmem:[%s0 + $0x38] sm:$0x7f]
      %v119 = vld [vmem:[%s0 + $0x40] sm:$0xff]
      %v120 = vld [vmem:[%s0 + $0x48] sm:$0x7f]
      %v121 = vld [vmem:[%s0 + $0x50] sm:$0xff]
      %v122 = vld [vmem:[%s0 + $0x58] sm:$0x7f]
      %v123 = vld [vmem:[%s0 + $0x60] sm:$0xff]
      %v124 = vld [vmem:[%s0 + $0x68] sm:$0x7f]
      %v125 = vld [vmem:[%s0 + $0x70] sm:$0xff]
      %v126 = vld [vmem:[%s0 + $0x78] sm:$0x7f]
      %v127 = vld [vmem:[%s0 + $0x80] sm:$0xff]
      %v128 = vld [vmem:[%s0 + $0x88] sm:$0x7f]
      %v129 = vld [vmem:[%s0 + $0x90] sm:$0xff]
      %v130 = vld [vmem:[%s0 + $0x98] sm:$0x7f]
      %v131 = vld [vmem:[%s0 + $0xa0] sm:$0xff]
      %v132 = vld [vmem:[%s0 + $0xa8] sm:$0x7f]
      %v133 = vld [vmem:[%s0 + $0xb0] sm:$0xff]
      %v134 = vld [vmem:[%s0 + $0xb8] sm:$0x7f]
      %v135 = vld [vmem:[%s0 + $0xc0] sm:$0xff]
      %v136 = vld [vmem:[%s0 + $0xc8] sm:$0x7f]
      %v137 = vld [vmem:[%s0 + $0xd0] sm:$0xff]
      %v138 = vld [vmem:[%s0 + $0xd8] sm:$0x7f]
      %v139 = vld [vmem:[%s0 + $0xe0] sm:$0xff]
      %v140 = vld [vmem:[%s0 + $0xe8] sm:$0x7f]
      %v141 = vstv %s94
      %v142 = vmul.f32 %v111, %v141
      %v143 = vmul.f32 %v112, %v141
      %v144 = vmul.f32 %v113, %v141
      %v145 = vmul.f32 %v114, %v141
      %v146 = vmul.f32 %v115, %v141
      %v147 = vmul.f32 %v116, %v141
      %v148 = vmul.f32 %v117, %v141
      %v149 = vmul.f32 %v118, %v141
      %v150 = vmul.f32 %v119, %v141
      %v151 = vmul.f32 %v120, %v141
      %v152 = vmul.f32 %v121, %v141
      %v153 = vmul.f32 %v122, %v141
      %v154 = vmul.f32 %v123, %v141
      %v155 = vmul.f32 %v124, %v141
      %v156 = vmul.f32 %v125, %v141
      %v157 = vmul.f32 %v126, %v141
      %v158 = vmul.f32 %v127, %v141
      %v159 = vmul.f32 %v128, %v141
      %v160 = vmul.f32 %v129, %v141
      %v161 = vmul.f32 %v130, %v141
      %v162 = vmul.f32 %v131, %v141
      %v163 = vmul.f32 %v132, %v141
      %v164 = vmul.f32 %v133, %v141
      %v165 = vmul.f32 %v134, %v141
      %v166 = vmul.f32 %v135, %v141
      %v167 = vmul.f32 %v136, %v141
      %v168 = vmul.f32 %v137, %v141
      %v169 = vmul.f32 %v138, %v141
      %v170 = vmul.f32 %v139, %v141
      %v171 = vmul.f32 %v140, %v141
      %s172 = scalar_lea.vmem %s0, 256
      %v173 = vld [vmem:[%s172] sm:$0xff]
      %v174 = vld [vmem:[%s172 + $0x8] sm:$0x7f]
      %v175 = vld [vmem:[%s172 + $0x10] sm:$0xff]
      %v176 = vld [vmem:[%s172 + $0x18] sm:$0x7f]
      %v177 = vld [vmem:[%s172 + $0x20] sm:$0xff]
      %v178 = vld [vmem:[%s172 + $0x28] sm:$0x7f]
      %v179 = vld [vmem:[%s172 + $0x30] sm:$0xff]
      %v180 = vld [vmem:[%s172 + $0x38] sm:$0x7f]
      %v181 = vld [vmem:[%s172 + $0x40] sm:$0xff]
      %v182 = vld [vmem:[%s172 + $0x48] sm:$0x7f]
      %v183 = vld [vmem:[%s172 + $0x50] sm:$0xff]
      %v184 = vld [vmem:[%s172 + $0x58] sm:$0x7f]
      %v185 = vld [vmem:[%s172 + $0x60] sm:$0xff]
      %v186 = vld [vmem:[%s172 + $0x68] sm:$0x7f]
      %v187 = vld [vmem:[%s172 + $0x70] sm:$0xff]
      %v188 = vld [vmem:[%s172 + $0x78] sm:$0x7f]
      %v189 = vld [vmem:[%s172 + $0x80] sm:$0xff]
      %v190 = vld [vmem:[%s172 + $0x88] sm:$0x7f]
      %v191 = vld [vmem:[%s172 + $0x90] sm:$0xff]
      %v192 = vld [vmem:[%s172 + $0x98] sm:$0x7f]
      %v193 = vld [vmem:[%s172 + $0xa0] sm:$0xff]
      %v194 = vld [vmem:[%s172 + $0xa8] sm:$0x7f]
      %v195 = vld [vmem:[%s172 + $0xb0] sm:$0xff]
      %v196 = vld [vmem:[%s172 + $0xb8] sm:$0x7f]
      %v197 = vld [vmem:[%s172 + $0xc0] sm:$0xff]
      %v198 = vld [vmem:[%s172 + $0xc8] sm:$0x7f]
      %v199 = vld [vmem:[%s172 + $0xd0] sm:$0xff]
      %v200 = vld [vmem:[%s172 + $0xd8] sm:$0x7f]
      %v201 = vld [vmem:[%s172 + $0xe0] sm:$0xff]
      %v202 = vld [vmem:[%s172 + $0xe8] sm:$0x7f]
      %v203 = vstv %s96
      %v204 = vmul.f32 %v173, %v203
      %v205 = vmul.f32 %v174, %v203
      %v206 = vmul.f32 %v175, %v203
      %v207 = vmul.f32 %v176, %v203
      %v208 = vmul.f32 %v177, %v203
      %v209 = vmul.f32 %v178, %v203
      %v210 = vmul.f32 %v179, %v203
      %v211 = vmul.f32 %v180, %v203
      %v212 = vmul.f32 %v181, %v203
      %v213 = vmul.f32 %v182, %v203
      %v214 = vmul.f32 %v183, %v203
      %v215 = vmul.f32 %v184, %v203
      %v216 = vmul.f32 %v185, %v203
      %v217 = vmul.f32 %v186, %v203
      %v218 = vmul.f32 %v187, %v203
      %v219 = vmul.f32 %v188, %v203
      %v220 = vmul.f32 %v189, %v203
      %v221 = vmul.f32 %v190, %v203
      %v222 = vmul.f32 %v191, %v203
      %v223 = vmul.f32 %v192, %v203
      %v224 = vmul.f32 %v193, %v203
      %v225 = vmul.f32 %v194, %v203
      %v226 = vmul.f32 %v195, %v203
      %v227 = vmul.f32 %v196, %v203
      %v228 = vmul.f32 %v197, %v203
      %v229 = vmul.f32 %v198, %v203
      %v230 = vmul.f32 %v199, %v203
      %v231 = vmul.f32 %v200, %v203
      %v232 = vmul.f32 %v201, %v203
      %v233 = vmul.f32 %v202, %v203
      %v234 = vadd.f32 %v142, %v204
      %v235 = vadd.f32 %v143, %v205
      %v236 = vadd.f32 %v144, %v206
      %v237 = vadd.f32 %v145, %v207
      %v238 = vadd.f32 %v146, %v208
      %v239 = vadd.f32 %v147, %v209
      %v240 = vadd.f32 %v148, %v210
      %v241 = vadd.f32 %v149, %v211
      %v242 = vadd.f32 %v150, %v212
      %v243 = vadd.f32 %v151, %v213
      %v244 = vadd.f32 %v152, %v214
      %v245 = vadd.f32 %v153, %v215
      %v246 = vadd.f32 %v154, %v216
      %v247 = vadd.f32 %v155, %v217
      %v248 = vadd.f32 %v156, %v218
      %v249 = vadd.f32 %v157, %v219
      %v250 = vadd.f32 %v158, %v220
      %v251 = vadd.f32 %v159, %v221
      %v252 = vadd.f32 %v160, %v222
      %v253 = vadd.f32 %v161, %v223
      %v254 = vadd.f32 %v162, %v224
      %v255 = vadd.f32 %v163, %v225
      %v256 = vadd.f32 %v164, %v226
      %v257 = vadd.f32 %v165, %v227
      %v258 = vadd.f32 %v166, %v228
      %v259 = vadd.f32 %v167, %v229
      %v260 = vadd.f32 %v168, %v230
      %v261 = vadd.f32 %v169, %v231
      %v262 = vadd.f32 %v170, %v232
      %v263 = vadd.f32 %v171, %v233
      %v264 = vld [vmem:[%s0 + $0x1] sm:$0xff]
      %v265 = vld [vmem:[%s0 + $0x9] sm:$0x7f]
      %v266 = vld [vmem:[%s0 + $0x11] sm:$0xff]
      %v267 = vld [vmem:[%s0 + $0x19] sm:$0x7f]
      %v268 = vld [vmem:[%s0 + $0x21] sm:$0xff]
      %v269 = vld [vmem:[%s0 + $0x29] sm:$0x7f]
      %v270 = vld [vmem:[%s0 + $0x31] sm:$0xff]
      %v271 = vld [vmem:[%s0 + $0x39] sm:$0x7f]
      %v272 = vld [vmem:[%s0 + $0x41] sm:$0xff]
      %v273 = vld [vmem:[%s0 + $0x49] sm:$0x7f]
      %v274 = vld [vmem:[%s0 + $0x51] sm:$0xff]
      %v275 = vld [vmem:[%s0 + $0x59] sm:$0x7f]
      %v276 = vld [vmem:[%s0 + $0x61] sm:$0xff]
      %v277 = vld [vmem:[%s0 + $0x69] sm:$0x7f]
      %v278 = vld [vmem:[%s0 + $0x71] sm:$0xff]
      %v279 = vld [vmem:[%s0 + $0x79] sm:$0x7f]
      %v280 = vld [vmem:[%s0 + $0x81] sm:$0xff]
      %v281 = vld [vmem:[%s0 + $0x89] sm:$0x7f]
      %v282 = vld [vmem:[%s0 + $0x91] sm:$0xff]
      %v283 = vld [vmem:[%s0 + $0x99] sm:$0x7f]
      %v284 = vld [vmem:[%s0 + $0xa1] sm:$0xff]
      %v285 = vld [vmem:[%s0 + $0xa9] sm:$0x7f]
      %v286 = vld [vmem:[%s0 + $0xb1] sm:$0xff]
      %v287 = vld [vmem:[%s0 + $0xb9] sm:$0x7f]
      %v288 = vld [vmem:[%s0 + $0xc1] sm:$0xff]
      %v289 = vld [vmem:[%s0 + $0xc9] sm:$0x7f]
      %v290 = vld [vmem:[%s0 + $0xd1] sm:$0xff]
      %v291 = vld [vmem:[%s0 + $0xd9] sm:$0x7f]
      %v292 = vld [vmem:[%s0 + $0xe1] sm:$0xff]
      %v293 = vld [vmem:[%s0 + $0xe9] sm:$0x7f]
      %v294 = vstv %s98
      %v295 = vmul.f32 %v264, %v294
      %v296 = vmul.f32 %v265, %v294
      %v297 = vmul.f32 %v266, %v294
      %v298 = vmul.f32 %v267, %v294
      %v299 = vmul.f32 %v268, %v294
      %v300 = vmul.f32 %v269, %v294
      %v301 = vmul.f32 %v270, %v294
      %v302 = vmul.f32 %v271, %v294
      %v303 = vmul.f32 %v272, %v294
      %v304 = vmul.f32 %v273, %v294
      %v305 = vmul.f32 %v274, %v294
      %v306 = vmul.f32 %v275, %v294
      %v307 = vmul.f32 %v276, %v294
      %v308 = vmul.f32 %v277, %v294
      %v309 = vmul.f32 %v278, %v294
      %v310 = vmul.f32 %v279, %v294
      %v311 = vmul.f32 %v280, %v294
      %v312 = vmul.f32 %v281, %v294
      %v313 = vmul.f32 %v282, %v294
      %v314 = vmul.f32 %v283, %v294
      %v315 = vmul.f32 %v284, %v294
      %v316 = vmul.f32 %v285, %v294
      %v317 = vmul.f32 %v286, %v294
      %v318 = vmul.f32 %v287, %v294
      %v319 = vmul.f32 %v288, %v294
      %v320 = vmul.f32 %v289, %v294
      %v321 = vmul.f32 %v290, %v294
      %v322 = vmul.f32 %v291, %v294
      %v323 = vmul.f32 %v292, %v294
      %v324 = vmul.f32 %v293, %v294
      %v325 = vadd.f32 %v234, %v295
      %v326 = vadd.f32 %v235, %v296
      %v327 = vadd.f32 %v236, %v297
      %v328 = vadd.f32 %v237, %v298
      %v329 = vadd.f32 %v238, %v299
      %v330 = vadd.f32 %v239, %v300
      %v331 = vadd.f32 %v240, %v301
      %v332 = vadd.f32 %v241, %v302
      %v333 = vadd.f32 %v242, %v303
      %v334 = vadd.f32 %v243, %v304
      %v335 = vadd.f32 %v244, %v305
      %v336 = vadd.f32 %v245, %v306
      %v337 = vadd.f32 %v246, %v307
      %v338 = vadd.f32 %v247, %v308
      %v339 = vadd.f32 %v248, %v309
      %v340 = vadd.f32 %v249, %v310
      %v341 = vadd.f32 %v250, %v311
      %v342 = vadd.f32 %v251, %v312
      %v343 = vadd.f32 %v252, %v313
      %v344 = vadd.f32 %v253, %v314
      %v345 = vadd.f32 %v254, %v315
      %v346 = vadd.f32 %v255, %v316
      %v347 = vadd.f32 %v256, %v317
      %v348 = vadd.f32 %v257, %v318
      %v349 = vadd.f32 %v258, %v319
      %v350 = vadd.f32 %v259, %v320
      %v351 = vadd.f32 %v260, %v321
      %v352 = vadd.f32 %v261, %v322
      %v353 = vadd.f32 %v262, %v323
      %v354 = vadd.f32 %v263, %v324
      %s355 = scalar_lea.vmem %s0, 512
      %v356 = vld [vmem:[%s355] sm:$0xff]
      %v357 = vld [vmem:[%s355 + $0x8] sm:$0x7f]
      %v358 = vld [vmem:[%s355 + $0x10] sm:$0xff]
      %v359 = vld [vmem:[%s355 + $0x18] sm:$0x7f]
      %v360 = vld [vmem:[%s355 + $0x20] sm:$0xff]
      %v361 = vld [vmem:[%s355 + $0x28] sm:$0x7f]
      %v362 = vld [vmem:[%s355 + $0x30] sm:$0xff]
      %v363 = vld [vmem:[%s355 + $0x38] sm:$0x7f]
      %v364 = vld [vmem:[%s355 + $0x40] sm:$0xff]
      %v365 = vld [vmem:[%s355 + $0x48] sm:$0x7f]
      %v366 = vld [vmem:[%s355 + $0x50] sm:$0xff]
      %v367 = vld [vmem:[%s355 + $0x58] sm:$0x7f]
      %v368 = vld [vmem:[%s355 + $0x60] sm:$0xff]
      %v369 = vld [vmem:[%s355 + $0x68] sm:$0x7f]
      %v370 = vld [vmem:[%s355 + $0x70] sm:$0xff]
      %v371 = vld [vmem:[%s355 + $0x78] sm:$0x7f]
      %v372 = vld [vmem:[%s355 + $0x80] sm:$0xff]
      %v373 = vld [vmem:[%s355 + $0x88] sm:$0x7f]
      %v374 = vld [vmem:[%s355 + $0x90] sm:$0xff]
      %v375 = vld [vmem:[%s355 + $0x98] sm:$0x7f]
      %v376 = vld [vmem:[%s355 + $0xa0] sm:$0xff]
      %v377 = vld [vmem:[%s355 + $0xa8] sm:$0x7f]
      %v378 = vld [vmem:[%s355 + $0xb0] sm:$0xff]
      %v379 = vld [vmem:[%s355 + $0xb8] sm:$0x7f]
      %v380 = vld [vmem:[%s355 + $0xc0] sm:$0xff]
      %v381 = vld [vmem:[%s355 + $0xc8] sm:$0x7f]
      %v382 = vld [vmem:[%s355 + $0xd0] sm:$0xff]
      %v383 = vld [vmem:[%s355 + $0xd8] sm:$0x7f]
      %v384 = vld [vmem:[%s355 + $0xe0] sm:$0xff]
      %v385 = vld [vmem:[%s355 + $0xe8] sm:$0x7f]
      %v386 = vstv %s100
      %v387 = vmul.f32 %v356, %v386
      %v388 = vmul.f32 %v357, %v386
      %v389 = vmul.f32 %v358, %v386
      %v390 = vmul.f32 %v359, %v386
      %v391 = vmul.f32 %v360, %v386
      %v392 = vmul.f32 %v361, %v386
      %v393 = vmul.f32 %v362, %v386
      %v394 = vmul.f32 %v363, %v386
      %v395 = vmul.f32 %v364, %v386
      %v396 = vmul.f32 %v365, %v386
      %v397 = vmul.f32 %v366, %v386
      %v398 = vmul.f32 %v367, %v386
      %v399 = vmul.f32 %v368, %v386
      %v400 = vmul.f32 %v369, %v386
      %v401 = vmul.f32 %v370, %v386
      %v402 = vmul.f32 %v371, %v386
      %v403 = vmul.f32 %v372, %v386
      %v404 = vmul.f32 %v373, %v386
      %v405 = vmul.f32 %v374, %v386
      %v406 = vmul.f32 %v375, %v386
      %v407 = vmul.f32 %v376, %v386
      %v408 = vmul.f32 %v377, %v386
      %v409 = vmul.f32 %v378, %v386
      %v410 = vmul.f32 %v379, %v386
      %v411 = vmul.f32 %v380, %v386
      %v412 = vmul.f32 %v381, %v386
      %v413 = vmul.f32 %v382, %v386
      %v414 = vmul.f32 %v383, %v386
      %v415 = vmul.f32 %v384, %v386
      %v416 = vmul.f32 %v385, %v386
      %v417 = vadd.f32 %v325, %v387
      %v418 = vadd.f32 %v326, %v388
      %v419 = vadd.f32 %v327, %v389
      %v420 = vadd.f32 %v328, %v390
      %v421 = vadd.f32 %v329, %v391
      %v422 = vadd.f32 %v330, %v392
      %v423 = vadd.f32 %v331, %v393
      %v424 = vadd.f32 %v332, %v394
      %v425 = vadd.f32 %v333, %v395
      %v426 = vadd.f32 %v334, %v396
      %v427 = vadd.f32 %v335, %v397
      %v428 = vadd.f32 %v336, %v398
      %v429 = vadd.f32 %v337, %v399
      %v430 = vadd.f32 %v338, %v400
      %v431 = vadd.f32 %v339, %v401
      %v432 = vadd.f32 %v340, %v402
      %v433 = vadd.f32 %v341, %v403
      %v434 = vadd.f32 %v342, %v404
      %v435 = vadd.f32 %v343, %v405
      %v436 = vadd.f32 %v344, %v406
      %v437 = vadd.f32 %v345, %v407
      %v438 = vadd.f32 %v346, %v408
      %v439 = vadd.f32 %v347, %v409
      %v440 = vadd.f32 %v348, %v410
      %v441 = vadd.f32 %v349, %v411
      %v442 = vadd.f32 %v350, %v412
      %v443 = vadd.f32 %v351, %v413
      %v444 = vadd.f32 %v352, %v414
      %v445 = vadd.f32 %v353, %v415
      %v446 = vadd.f32 %v354, %v416
      %s447 = scalar_lea.vmem %s0, 768
      %v448 = vld [vmem:[%s447] sm:$0xff]
      %v449 = vld [vmem:[%s447 + $0x8] sm:$0x7f]
      %v450 = vld [vmem:[%s447 + $0x10] sm:$0xff]
      %v451 = vld [vmem:[%s447 + $0x18] sm:$0x7f]
      %v452 = vld [vmem:[%s447 + $0x20] sm:$0xff]
      %v453 = vld [vmem:[%s447 + $0x28] sm:$0x7f]
      %v454 = vld [vmem:[%s447 + $0x30] sm:$0xff]
      %v455 = vld [vmem:[%s447 + $0x38] sm:$0x7f]
      %v456 = vld [vmem:[%s447 + $0x40] sm:$0xff]
      %v457 = vld [vmem:[%s447 + $0x48] sm:$0x7f]
      %v458 = vld [vmem:[%s447 + $0x50] sm:$0xff]
      %v459 = vld [vmem:[%s447 + $0x58] sm:$0x7f]
      %v460 = vld [vmem:[%s447 + $0x60] sm:$0xff]
      %v461 = vld [vmem:[%s447 + $0x68] sm:$0x7f]
      %v462 = vld [vmem:[%s447 + $0x70] sm:$0xff]
      %v463 = vld [vmem:[%s447 + $0x78] sm:$0x7f]
      %v464 = vld [vmem:[%s447 + $0x80] sm:$0xff]
      %v465 = vld [vmem:[%s447 + $0x88] sm:$0x7f]
      %v466 = vld [vmem:[%s447 + $0x90] sm:$0xff]
      %v467 = vld [vmem:[%s447 + $0x98] sm:$0x7f]
      %v468 = vld [vmem:[%s447 + $0xa0] sm:$0xff]
      %v469 = vld [vmem:[%s447 + $0xa8] sm:$0x7f]
      %v470 = vld [vmem:[%s447 + $0xb0] sm:$0xff]
      %v471 = vld [vmem:[%s447 + $0xb8] sm:$0x7f]
      %v472 = vld [vmem:[%s447 + $0xc0] sm:$0xff]
      %v473 = vld [vmem:[%s447 + $0xc8] sm:$0x7f]
      %v474 = vld [vmem:[%s447 + $0xd0] sm:$0xff]
      %v475 = vld [vmem:[%s447 + $0xd8] sm:$0x7f]
      %v476 = vld [vmem:[%s447 + $0xe0] sm:$0xff]
      %v477 = vld [vmem:[%s447 + $0xe8] sm:$0x7f]
      %v478 = vstv %s102
      %v479 = vmul.f32 %v448, %v478
      %v480 = vmul.f32 %v449, %v478
      %v481 = vmul.f32 %v450, %v478
      %v482 = vmul.f32 %v451, %v478
      %v483 = vmul.f32 %v452, %v478
      %v484 = vmul.f32 %v453, %v478
      %v485 = vmul.f32 %v454, %v478
      %v486 = vmul.f32 %v455, %v478
      %v487 = vmul.f32 %v456, %v478
      %v488 = vmul.f32 %v457, %v478
      %v489 = vmul.f32 %v458, %v478
      %v490 = vmul.f32 %v459, %v478
      %v491 = vmul.f32 %v460, %v478
      %v492 = vmul.f32 %v461, %v478
      %v493 = vmul.f32 %v462, %v478
      %v494 = vmul.f32 %v463, %v478
      %v495 = vmul.f32 %v464, %v478
      %v496 = vmul.f32 %v465, %v478
      %v497 = vmul.f32 %v466, %v478
      %v498 = vmul.f32 %v467, %v478
      %v499 = vmul.f32 %v468, %v478
      %v500 = vmul.f32 %v469, %v478
      %v501 = vmul.f32 %v470, %v478
      %v502 = vmul.f32 %v471, %v478
      %v503 = vmul.f32 %v472, %v478
      %v504 = vmul.f32 %v473, %v478
      %v505 = vmul.f32 %v474, %v478
      %v506 = vmul.f32 %v475, %v478
      %v507 = vmul.f32 %v476, %v478
      %v508 = vmul.f32 %v477, %v478
      %v509 = vadd.f32 %v417, %v479
      %v510 = vadd.f32 %v418, %v480
      %v511 = vadd.f32 %v419, %v481
      %v512 = vadd.f32 %v420, %v482
      %v513 = vadd.f32 %v421, %v483
      %v514 = vadd.f32 %v422, %v484
      %v515 = vadd.f32 %v423, %v485
      %v516 = vadd.f32 %v424, %v486
      %v517 = vadd.f32 %v425, %v487
      %v518 = vadd.f32 %v426, %v488
      %v519 = vadd.f32 %v427, %v489
      %v520 = vadd.f32 %v428, %v490
      %v521 = vadd.f32 %v429, %v491
      %v522 = vadd.f32 %v430, %v492
      %v523 = vadd.f32 %v431, %v493
      %v524 = vadd.f32 %v432, %v494
      %v525 = vadd.f32 %v433, %v495
      %v526 = vadd.f32 %v434, %v496
      %v527 = vadd.f32 %v435, %v497
      %v528 = vadd.f32 %v436, %v498
      %v529 = vadd.f32 %v437, %v499
      %v530 = vadd.f32 %v438, %v500
      %v531 = vadd.f32 %v439, %v501
      %v532 = vadd.f32 %v440, %v502
      %v533 = vadd.f32 %v441, %v503
      %v534 = vadd.f32 %v442, %v504
      %v535 = vadd.f32 %v443, %v505
      %v536 = vadd.f32 %v444, %v506
      %v537 = vadd.f32 %v445, %v507
      %v538 = vadd.f32 %v446, %v508
      %v539 = vld [vmem:[%s355 + $0x1] sm:$0xff]
      %v540 = vld [vmem:[%s355 + $0x9] sm:$0x7f]
      %v541 = vld [vmem:[%s355 + $0x11] sm:$0xff]
      %v542 = vld [vmem:[%s355 + $0x19] sm:$0x7f]
      %v543 = vld [vmem:[%s355 + $0x21] sm:$0xff]
      %v544 = vld [vmem:[%s355 + $0x29] sm:$0x7f]
      %v545 = vld [vmem:[%s355 + $0x31] sm:$0xff]
      %v546 = vld [vmem:[%s355 + $0x39] sm:$0x7f]
      %v547 = vld [vmem:[%s355 + $0x41] sm:$0xff]
      %v548 = vld [vmem:[%s355 + $0x49] sm:$0x7f]
      %v549 = vld [vmem:[%s355 + $0x51] sm:$0xff]
      %v550 = vld [vmem:[%s355 + $0x59] sm:$0x7f]
      %v551 = vld [vmem:[%s355 + $0x61] sm:$0xff]
      %v552 = vld [vmem:[%s355 + $0x69] sm:$0x7f]
      %v553 = vld [vmem:[%s355 + $0x71] sm:$0xff]
      %v554 = vld [vmem:[%s355 + $0x79] sm:$0x7f]
      %v555 = vld [vmem:[%s355 + $0x81] sm:$0xff]
      %v556 = vld [vmem:[%s355 + $0x89] sm:$0x7f]
      %v557 = vld [vmem:[%s355 + $0x91] sm:$0xff]
      %v558 = vld [vmem:[%s355 + $0x99] sm:$0x7f]
      %v559 = vld [vmem:[%s355 + $0xa1] sm:$0xff]
      %v560 = vld [vmem:[%s355 + $0xa9] sm:$0x7f]
      %v561 = vld [vmem:[%s355 + $0xb1] sm:$0xff]
      %v562 = vld [vmem:[%s355 + $0xb9] sm:$0x7f]
      %v563 = vld [vmem:[%s355 + $0xc1] sm:$0xff]
      %v564 = vld [vmem:[%s355 + $0xc9] sm:$0x7f]
      %v565 = vld [vmem:[%s355 + $0xd1] sm:$0xff]
      %v566 = vld [vmem:[%s355 + $0xd9] sm:$0x7f]
      %v567 = vld [vmem:[%s355 + $0xe1] sm:$0xff]
      %v568 = vld [vmem:[%s355 + $0xe9] sm:$0x7f]
      %v569 = vstv %s104
      %v570 = vmul.f32 %v539, %v569
      %v571 = vmul.f32 %v540, %v569
      %v572 = vmul.f32 %v541, %v569
      %v573 = vmul.f32 %v542, %v569
      %v574 = vmul.f32 %v543, %v569
      %v575 = vmul.f32 %v544, %v569
      %v576 = vmul.f32 %v545, %v569
      %v577 = vmul.f32 %v546, %v569
      %v578 = vmul.f32 %v547, %v569
      %v579 = vmul.f32 %v548, %v569
      %v580 = vmul.f32 %v549, %v569
      %v581 = vmul.f32 %v550, %v569
      %v582 = vmul.f32 %v551, %v569
      %v583 = vmul.f32 %v552, %v569
      %v584 = vmul.f32 %v553, %v569
      %v585 = vmul.f32 %v554, %v569
      %v586 = vmul.f32 %v555, %v569
      %v587 = vmul.f32 %v556, %v569
      %v588 = vmul.f32 %v557, %v569
      %v589 = vmul.f32 %v558, %v569
      %v590 = vmul.f32 %v559, %v569
      %v591 = vmul.f32 %v560, %v569
      %v592 = vmul.f32 %v561, %v569
      %v593 = vmul.f32 %v562, %v569
      %v594 = vmul.f32 %v563, %v569
      %v595 = vmul.f32 %v564, %v569
      %v596 = vmul.f32 %v565, %v569
      %v597 = vmul.f32 %v566, %v569
      %v598 = vmul.f32 %v567, %v569
      %v599 = vmul.f32 %v568, %v569
      %v600 = vadd.f32 %v509, %v570
      %v601 = vadd.f32 %v510, %v571
      %v602 = vadd.f32 %v511, %v572
      %v603 = vadd.f32 %v512, %v573
      %v604 = vadd.f32 %v513, %v574
      %v605 = vadd.f32 %v514, %v575
      %v606 = vadd.f32 %v515, %v576
      %v607 = vadd.f32 %v516, %v577
      %v608 = vadd.f32 %v517, %v578
      %v609 = vadd.f32 %v518, %v579
      %v610 = vadd.f32 %v519, %v580
      %v611 = vadd.f32 %v520, %v581
      %v612 = vadd.f32 %v521, %v582
      %v613 = vadd.f32 %v522, %v583
      %v614 = vadd.f32 %v523, %v584
      %v615 = vadd.f32 %v524, %v585
      %v616 = vadd.f32 %v525, %v586
      %v617 = vadd.f32 %v526, %v587
      %v618 = vadd.f32 %v527, %v588
      %v619 = vadd.f32 %v528, %v589
      %v620 = vadd.f32 %v529, %v590
      %v621 = vadd.f32 %v530, %v591
      %v622 = vadd.f32 %v531, %v592
      %v623 = vadd.f32 %v532, %v593
      %v624 = vadd.f32 %v533, %v594
      %v625 = vadd.f32 %v534, %v595
      %v626 = vadd.f32 %v535, %v596
      %v627 = vadd.f32 %v536, %v597
      %v628 = vadd.f32 %v537, %v598
      %v629 = vadd.f32 %v538, %v599
      %s630 = scalar_lea.vmem %s0, 16
      %v631 = vld [vmem:[%s630] sm:$0xff]
      %v632 = vld [vmem:[%s630 + $0x8] sm:$0x7f]
      %v633 = vld [vmem:[%s630 + $0x10] sm:$0xff]
      %v634 = vld [vmem:[%s630 + $0x18] sm:$0x7f]
      %v635 = vld [vmem:[%s630 + $0x20] sm:$0xff]
      %v636 = vld [vmem:[%s630 + $0x28] sm:$0x7f]
      %v637 = vld [vmem:[%s630 + $0x30] sm:$0xff]
      %v638 = vld [vmem:[%s630 + $0x38] sm:$0x7f]
      %v639 = vld [vmem:[%s630 + $0x40] sm:$0xff]
      %v640 = vld [vmem:[%s630 + $0x48] sm:$0x7f]
      %v641 = vld [vmem:[%s630 + $0x50] sm:$0xff]
      %v642 = vld [vmem:[%s630 + $0x58] sm:$0x7f]
      %v643 = vld [vmem:[%s630 + $0x60] sm:$0xff]
      %v644 = vld [vmem:[%s630 + $0x68] sm:$0x7f]
      %v645 = vld [vmem:[%s630 + $0x70] sm:$0xff]
      %v646 = vld [vmem:[%s630 + $0x78] sm:$0x7f]
      %v647 = vld [vmem:[%s630 + $0x80] sm:$0xff]
      %v648 = vld [vmem:[%s630 + $0x88] sm:$0x7f]
      %v649 = vld [vmem:[%s630 + $0x90] sm:$0xff]
      %v650 = vld [vmem:[%s630 + $0x98] sm:$0x7f]
      %v651 = vld [vmem:[%s630 + $0xa0] sm:$0xff]
      %v652 = vld [vmem:[%s630 + $0xa8] sm:$0x7f]
      %v653 = vld [vmem:[%s630 + $0xb0] sm:$0xff]
      %v654 = vld [vmem:[%s630 + $0xb8] sm:$0x7f]
      %v655 = vld [vmem:[%s630 + $0xc0] sm:$0xff]
      %v656 = vld [vmem:[%s630 + $0xc8] sm:$0x7f]
      %v657 = vld [vmem:[%s630 + $0xd0] sm:$0xff]
      %v658 = vld [vmem:[%s630 + $0xd8] sm:$0x7f]
      %v659 = vld [vmem:[%s630 + $0xe0] sm:$0xff]
      %v660 = vld [vmem:[%s630 + $0xe8] sm:$0x7f]
      %v661 = vstv %s106
      %v662 = vmul.f32 %v631, %v661
      %v663 = vmul.f32 %v632, %v661
      %v664 = vmul.f32 %v633, %v661
      %v665 = vmul.f32 %v634, %v661
      %v666 = vmul.f32 %v635, %v661
      %v667 = vmul.f32 %v636, %v661
      %v668 = vmul.f32 %v637, %v661
      %v669 = vmul.f32 %v638, %v661
      %v670 = vmul.f32 %v639, %v661
      %v671 = vmul.f32 %v640, %v661
      %v672 = vmul.f32 %v641, %v661
      %v673 = vmul.f32 %v642, %v661
      %v674 = vmul.f32 %v643, %v661
      %v675 = vmul.f32 %v644, %v661
      %v676 = vmul.f32 %v645, %v661
      %v677 = vmul.f32 %v646, %v661
      %v678 = vmul.f32 %v647, %v661
      %v679 = vmul.f32 %v648, %v661
      %v680 = vmul.f32 %v649, %v661
      %v681 = vmul.f32 %v650, %v661
      %v682 = vmul.f32 %v651, %v661
      %v683 = vmul.f32 %v652, %v661
      %v684 = vmul.f32 %v653, %v661
      %v685 = vmul.f32 %v654, %v661
      %v686 = vmul.f32 %v655, %v661
      %v687 = vmul.f32 %v656, %v661
      %v688 = vmul.f32 %v657, %v661
      %v689 = vmul.f32 %v658, %v661
      %v690 = vmul.f32 %v659, %v661
      %v691 = vmul.f32 %v660, %v661
      %v692 = vadd.f32 %v600, %v662
      %v693 = vadd.f32 %v601, %v663
      %v694 = vadd.f32 %v602, %v664
      %v695 = vadd.f32 %v603, %v665
      %v696 = vadd.f32 %v604, %v666
      %v697 = vadd.f32 %v605, %v667
      %v698 = vadd.f32 %v606, %v668
      %v699 = vadd.f32 %v607, %v669
      %v700 = vadd.f32 %v608, %v670
      %v701 = vadd.f32 %v609, %v671
      %v702 = vadd.f32 %v610, %v672
      %v703 = vadd.f32 %v611, %v673
      %v704 = vadd.f32 %v612, %v674
      %v705 = vadd.f32 %v613, %v675
      %v706 = vadd.f32 %v614, %v676
      %v707 = vadd.f32 %v615, %v677
      %v708 = vadd.f32 %v616, %v678
      %v709 = vadd.f32 %v617, %v679
      %v710 = vadd.f32 %v618, %v680
      %v711 = vadd.f32 %v619, %v681
      %v712 = vadd.f32 %v620, %v682
      %v713 = vadd.f32 %v621, %v683
      %v714 = vadd.f32 %v622, %v684
      %v715 = vadd.f32 %v623, %v685
      %v716 = vadd.f32 %v624, %v686
      %v717 = vadd.f32 %v625, %v687
      %v718 = vadd.f32 %v626, %v688
      %v719 = vadd.f32 %v627, %v689
      %v720 = vadd.f32 %v628, %v690
      %v721 = vadd.f32 %v629, %v691
      %s722 = scalar_lea.vmem %s0, 272
      %v723 = vld [vmem:[%s722] sm:$0xff]
      %v724 = vld [vmem:[%s722 + $0x8] sm:$0x7f]
      %v725 = vld [vmem:[%s722 + $0x10] sm:$0xff]
      %v726 = vld [vmem:[%s722 + $0x18] sm:$0x7f]
      %v727 = vld [vmem:[%s722 + $0x20] sm:$0xff]
      %v728 = vld [vmem:[%s722 + $0x28] sm:$0x7f]
      %v729 = vld [vmem:[%s722 + $0x30] sm:$0xff]
      %v730 = vld [vmem:[%s722 + $0x38] sm:$0x7f]
      %v731 = vld [vmem:[%s722 + $0x40] sm:$0xff]
      %v732 = vld [vmem:[%s722 + $0x48] sm:$0x7f]
      %v733 = vld [vmem:[%s722 + $0x50] sm:$0xff]
      %v734 = vld [vmem:[%s722 + $0x58] sm:$0x7f]
      %v735 = vld [vmem:[%s722 + $0x60] sm:$0xff]
      %v736 = vld [vmem:[%s722 + $0x68] sm:$0x7f]
      %v737 = vld [vmem:[%s722 + $0x70] sm:$0xff]
      %v738 = vld [vmem:[%s722 + $0x78] sm:$0x7f]
      %v739 = vld [vmem:[%s722 + $0x80] sm:$0xff]
      %v740 = vld [vmem:[%s722 + $0x88] sm:$0x7f]
      %v741 = vld [vmem:[%s722 + $0x90] sm:$0xff]
      %v742 = vld [vmem:[%s722 + $0x98] sm:$0x7f]
      %v743 = vld [vmem:[%s722 + $0xa0] sm:$0xff]
      %v744 = vld [vmem:[%s722 + $0xa8] sm:$0x7f]
      %v745 = vld [vmem:[%s722 + $0xb0] sm:$0xff]
      %v746 = vld [vmem:[%s722 + $0xb8] sm:$0x7f]
      %v747 = vld [vmem:[%s722 + $0xc0] sm:$0xff]
      %v748 = vld [vmem:[%s722 + $0xc8] sm:$0x7f]
      %v749 = vld [vmem:[%s722 + $0xd0] sm:$0xff]
      %v750 = vld [vmem:[%s722 + $0xd8] sm:$0x7f]
      %v751 = vld [vmem:[%s722 + $0xe0] sm:$0xff]
      %v752 = vld [vmem:[%s722 + $0xe8] sm:$0x7f]
      %v753 = vstv %s108
      %v754 = vmul.f32 %v723, %v753
      %v755 = vmul.f32 %v724, %v753
      %v756 = vmul.f32 %v725, %v753
      %v757 = vmul.f32 %v726, %v753
      %v758 = vmul.f32 %v727, %v753
      %v759 = vmul.f32 %v728, %v753
      %v760 = vmul.f32 %v729, %v753
      %v761 = vmul.f32 %v730, %v753
      %v762 = vmul.f32 %v731, %v753
      %v763 = vmul.f32 %v732, %v753
      %v764 = vmul.f32 %v733, %v753
      %v765 = vmul.f32 %v734, %v753
      %v766 = vmul.f32 %v735, %v753
      %v767 = vmul.f32 %v736, %v753
      %v768 = vmul.f32 %v737, %v753
      %v769 = vmul.f32 %v738, %v753
      %v770 = vmul.f32 %v739, %v753
      %v771 = vmul.f32 %v740, %v753
      %v772 = vmul.f32 %v741, %v753
      %v773 = vmul.f32 %v742, %v753
      %v774 = vmul.f32 %v743, %v753
      %v775 = vmul.f32 %v744, %v753
      %v776 = vmul.f32 %v745, %v753
      %v777 = vmul.f32 %v746, %v753
      %v778 = vmul.f32 %v747, %v753
      %v779 = vmul.f32 %v748, %v753
      %v780 = vmul.f32 %v749, %v753
      %v781 = vmul.f32 %v750, %v753
      %v782 = vmul.f32 %v751, %v753
      %v783 = vmul.f32 %v752, %v753
      %v784 = vadd.f32 %v692, %v754
      %v785 = vadd.f32 %v693, %v755
      %v786 = vadd.f32 %v694, %v756
      %v787 = vadd.f32 %v695, %v757
      %v788 = vadd.f32 %v696, %v758
      %v789 = vadd.f32 %v697, %v759
      %v790 = vadd.f32 %v698, %v760
      %v791 = vadd.f32 %v699, %v761
      %v792 = vadd.f32 %v700, %v762
      %v793 = vadd.f32 %v701, %v763
      %v794 = vadd.f32 %v702, %v764
      %v795 = vadd.f32 %v703, %v765
      %v796 = vadd.f32 %v704, %v766
      %v797 = vadd.f32 %v705, %v767
      %v798 = vadd.f32 %v706, %v768
      %v799 = vadd.f32 %v707, %v769
      %v800 = vadd.f32 %v708, %v770
      %v801 = vadd.f32 %v709, %v771
      %v802 = vadd.f32 %v710, %v772
      %v803 = vadd.f32 %v711, %v773
      %v804 = vadd.f32 %v712, %v774
      %v805 = vadd.f32 %v713, %v775
      %v806 = vadd.f32 %v714, %v776
      %v807 = vadd.f32 %v715, %v777
      %v808 = vadd.f32 %v716, %v778
      %v809 = vadd.f32 %v717, %v779
      %v810 = vadd.f32 %v718, %v780
      %v811 = vadd.f32 %v719, %v781
      %v812 = vadd.f32 %v720, %v782
      %v813 = vadd.f32 %v721, %v783
      %v814 = vld [vmem:[%s630 + $0x1] sm:$0xff]
      %v815 = vld [vmem:[%s630 + $0x9] sm:$0x7f]
      %v816 = vld [vmem:[%s630 + $0x11] sm:$0xff]
      %v817 = vld [vmem:[%s630 + $0x19] sm:$0x7f]
      %v818 = vld [vmem:[%s630 + $0x21] sm:$0xff]
      %v819 = vld [vmem:[%s630 + $0x29] sm:$0x7f]
      %v820 = vld [vmem:[%s630 + $0x31] sm:$0xff]
      %v821 = vld [vmem:[%s630 + $0x39] sm:$0x7f]
      %v822 = vld [vmem:[%s630 + $0x41] sm:$0xff]
      %v823 = vld [vmem:[%s630 + $0x49] sm:$0x7f]
      %v824 = vld [vmem:[%s630 + $0x51] sm:$0xff]
      %v825 = vld [vmem:[%s630 + $0x59] sm:$0x7f]
      %v826 = vld [vmem:[%s630 + $0x61] sm:$0xff]
      %v827 = vld [vmem:[%s630 + $0x69] sm:$0x7f]
      %v828 = vld [vmem:[%s630 + $0x71] sm:$0xff]
      %v829 = vld [vmem:[%s630 + $0x79] sm:$0x7f]
      %v830 = vld [vmem:[%s630 + $0x81] sm:$0xff]
      %v831 = vld [vmem:[%s630 + $0x89] sm:$0x7f]
      %v832 = vld [vmem:[%s630 + $0x91] sm:$0xff]
      %v833 = vld [vmem:[%s630 + $0x99] sm:$0x7f]
      %v834 = vld [vmem:[%s630 + $0xa1] sm:$0xff]
      %v835 = vld [vmem:[%s630 + $0xa9] sm:$0x7f]
      %v836 = vld [vmem:[%s630 + $0xb1] sm:$0xff]
      %v837 = vld [vmem:[%s630 + $0xb9] sm:$0x7f]
      %v838 = vld [vmem:[%s630 + $0xc1] sm:$0xff]
      %v839 = vld [vmem:[%s630 + $0xc9] sm:$0x7f]
      %v840 = vld [vmem:[%s630 + $0xd1] sm:$0xff]
      %v841 = vld [vmem:[%s630 + $0xd9] sm:$0x7f]
      %v842 = vld [vmem:[%s630 + $0xe1] sm:$0xff]
      %v843 = vld [vmem:[%s630 + $0xe9] sm:$0x7f]
      %v844 = vstv %s110
      %v845 = vmul.f32 %v814, %v844
      %v846 = vmul.f32 %v815, %v844
      %v847 = vmul.f32 %v816, %v844
      %v848 = vmul.f32 %v817, %v844
      %v849 = vmul.f32 %v818, %v844
      %v850 = vmul.f32 %v819, %v844
      %v851 = vmul.f32 %v820, %v844
      %v852 = vmul.f32 %v821, %v844
      %v853 = vmul.f32 %v822, %v844
      %v854 = vmul.f32 %v823, %v844
      %v855 = vmul.f32 %v824, %v844
      %v856 = vmul.f32 %v825, %v844
      %v857 = vmul.f32 %v826, %v844
      %v858 = vmul.f32 %v827, %v844
      %v859 = vmul.f32 %v828, %v844
      %v860 = vmul.f32 %v829, %v844
      %v861 = vmul.f32 %v830, %v844
      %v862 = vmul.f32 %v831, %v844
      %v863 = vmul.f32 %v832, %v844
      %v864 = vmul.f32 %v833, %v844
      %v865 = vmul.f32 %v834, %v844
      %v866 = vmul.f32 %v835, %v844
      %v867 = vmul.f32 %v836, %v844
      %v868 = vmul.f32 %v837, %v844
      %v869 = vmul.f32 %v838, %v844
      %v870 = vmul.f32 %v839, %v844
      %v871 = vmul.f32 %v840, %v844
      %v872 = vmul.f32 %v841, %v844
      %v873 = vmul.f32 %v842, %v844
      %v874 = vmul.f32 %v843, %v844
      %v875 = vadd.f32 %v784, %v845
      %v876 = vadd.f32 %v785, %v846
      %v877 = vadd.f32 %v786, %v847
      %v878 = vadd.f32 %v787, %v848
      %v879 = vadd.f32 %v788, %v849
      %v880 = vadd.f32 %v789, %v850
      %v881 = vadd.f32 %v790, %v851
      %v882 = vadd.f32 %v791, %v852
      %v883 = vadd.f32 %v792, %v853
      %v884 = vadd.f32 %v793, %v854
      %v885 = vadd.f32 %v794, %v855
      %v886 = vadd.f32 %v795, %v856
      %v887 = vadd.f32 %v796, %v857
      %v888 = vadd.f32 %v797, %v858
      %v889 = vadd.f32 %v798, %v859
      %v890 = vadd.f32 %v799, %v860
      %v891 = vadd.f32 %v800, %v861
      %v892 = vadd.f32 %v801, %v862
      %v893 = vadd.f32 %v802, %v863
      %v894 = vadd.f32 %v803, %v864
      %v895 = vadd.f32 %v804, %v865
      %v896 = vadd.f32 %v805, %v866
      %v897 = vadd.f32 %v806, %v867
      %v898 = vadd.f32 %v807, %v868
      %v899 = vadd.f32 %v808, %v869
      %v900 = vadd.f32 %v809, %v870
      %v901 = vadd.f32 %v810, %v871
      %v902 = vadd.f32 %v811, %v872
      %v903 = vadd.f32 %v812, %v873
      %v904 = vadd.f32 %v813, %v874
      %v905 = vmul.f32 %v173, %v141
      %v906 = vmul.f32 %v174, %v141
      %v907 = vmul.f32 %v175, %v141
      %v908 = vmul.f32 %v176, %v141
      %v909 = vmul.f32 %v177, %v141
      %v910 = vmul.f32 %v178, %v141
      %v911 = vmul.f32 %v179, %v141
      %v912 = vmul.f32 %v180, %v141
      %v913 = vmul.f32 %v181, %v141
      %v914 = vmul.f32 %v182, %v141
      %v915 = vmul.f32 %v183, %v141
      %v916 = vmul.f32 %v184, %v141
      %v917 = vmul.f32 %v185, %v141
      %v918 = vmul.f32 %v186, %v141
      %v919 = vmul.f32 %v187, %v141
      %v920 = vmul.f32 %v188, %v141
      %v921 = vmul.f32 %v189, %v141
      %v922 = vmul.f32 %v190, %v141
      %v923 = vmul.f32 %v191, %v141
      %v924 = vmul.f32 %v192, %v141
      %v925 = vmul.f32 %v193, %v141
      %v926 = vmul.f32 %v194, %v141
      %v927 = vmul.f32 %v195, %v141
      %v928 = vmul.f32 %v196, %v141
      %v929 = vmul.f32 %v197, %v141
      %v930 = vmul.f32 %v198, %v141
      %v931 = vmul.f32 %v199, %v141
      %v932 = vmul.f32 %v200, %v141
      %v933 = vmul.f32 %v201, %v141
      %v934 = vmul.f32 %v202, %v141
      %v935 = vmul.f32 %v264, %v203
      %v936 = vmul.f32 %v265, %v203
      %v937 = vmul.f32 %v266, %v203
      %v938 = vmul.f32 %v267, %v203
      %v939 = vmul.f32 %v268, %v203
      %v940 = vmul.f32 %v269, %v203
      %v941 = vmul.f32 %v270, %v203
      %v942 = vmul.f32 %v271, %v203
      %v943 = vmul.f32 %v272, %v203
      %v944 = vmul.f32 %v273, %v203
      %v945 = vmul.f32 %v274, %v203
      %v946 = vmul.f32 %v275, %v203
      %v947 = vmul.f32 %v276, %v203
      %v948 = vmul.f32 %v277, %v203
      %v949 = vmul.f32 %v278, %v203
      %v950 = vmul.f32 %v279, %v203
      %v951 = vmul.f32 %v280, %v203
      %v952 = vmul.f32 %v281, %v203
      %v953 = vmul.f32 %v282, %v203
      %v954 = vmul.f32 %v283, %v203
      %v955 = vmul.f32 %v284, %v203
      %v956 = vmul.f32 %v285, %v203
      %v957 = vmul.f32 %v286, %v203
      %v958 = vmul.f32 %v287, %v203
      %v959 = vmul.f32 %v288, %v203
      %v960 = vmul.f32 %v289, %v203
      %v961 = vmul.f32 %v290, %v203
      %v962 = vmul.f32 %v291, %v203
      %v963 = vmul.f32 %v292, %v203
      %v964 = vmul.f32 %v293, %v203
      %v965 = vadd.f32 %v905, %v935
      %v966 = vadd.f32 %v906, %v936
      %v967 = vadd.f32 %v907, %v937
      %v968 = vadd.f32 %v908, %v938
      %v969 = vadd.f32 %v909, %v939
      %v970 = vadd.f32 %v910, %v940
      %v971 = vadd.f32 %v911, %v941
      %v972 = vadd.f32 %v912, %v942
      %v973 = vadd.f32 %v913, %v943
      %v974 = vadd.f32 %v914, %v944
      %v975 = vadd.f32 %v915, %v945
      %v976 = vadd.f32 %v916, %v946
      %v977 = vadd.f32 %v917, %v947
      %v978 = vadd.f32 %v918, %v948
      %v979 = vadd.f32 %v919, %v949
      %v980 = vadd.f32 %v920, %v950
      %v981 = vadd.f32 %v921, %v951
      %v982 = vadd.f32 %v922, %v952
      %v983 = vadd.f32 %v923, %v953
      %v984 = vadd.f32 %v924, %v954
      %v985 = vadd.f32 %v925, %v955
      %v986 = vadd.f32 %v926, %v956
      %v987 = vadd.f32 %v927, %v957
      %v988 = vadd.f32 %v928, %v958
      %v989 = vadd.f32 %v929, %v959
      %v990 = vadd.f32 %v930, %v960
      %v991 = vadd.f32 %v931, %v961
      %v992 = vadd.f32 %v932, %v962
      %v993 = vadd.f32 %v933, %v963
      %v994 = vadd.f32 %v934, %v964
      %v995 = vld [vmem:[%s172 + $0x1] sm:$0xff]
      %v996 = vld [vmem:[%s172 + $0x9] sm:$0x7f]
      %v997 = vld [vmem:[%s172 + $0x11] sm:$0xff]
      %v998 = vld [vmem:[%s172 + $0x19] sm:$0x7f]
      %v999 = vld [vmem:[%s172 + $0x21] sm:$0xff]
      %v1000 = vld [vmem:[%s172 + $0x29] sm:$0x7f]
      %v1001 = vld [vmem:[%s172 + $0x31] sm:$0xff]
      %v1002 = vld [vmem:[%s172 + $0x39] sm:$0x7f]
      %v1003 = vld [vmem:[%s172 + $0x41] sm:$0xff]
      %v1004 = vld [vmem:[%s172 + $0x49] sm:$0x7f]
      %v1005 = vld [vmem:[%s172 + $0x51] sm:$0xff]
      %v1006 = vld [vmem:[%s172 + $0x59] sm:$0x7f]
      %v1007 = vld [vmem:[%s172 + $0x61] sm:$0xff]
      %v1008 = vld [vmem:[%s172 + $0x69] sm:$0x7f]
      %v1009 = vld [vmem:[%s172 + $0x71] sm:$0xff]
      %v1010 = vld [vmem:[%s172 + $0x79] sm:$0x7f]
      %v1011 = vld [vmem:[%s172 + $0x81] sm:$0xff]
      %v1012 = vld [vmem:[%s172 + $0x89] sm:$0x7f]
      %v1013 = vld [vmem:[%s172 + $0x91] sm:$0xff]
      %v1014 = vld [vmem:[%s172 + $0x99] sm:$0x7f]
      %v1015 = vld [vmem:[%s172 + $0xa1] sm:$0xff]
      %v1016 = vld [vmem:[%s172 + $0xa9] sm:$0x7f]
      %v1017 = vld [vmem:[%s172 + $0xb1] sm:$0xff]
      %v1018 = vld [vmem:[%s172 + $0xb9] sm:$0x7f]
      %v1019 = vld [vmem:[%s172 + $0xc1] sm:$0xff]
      %v1020 = vld [vmem:[%s172 + $0xc9] sm:$0x7f]
      %v1021 = vld [vmem:[%s172 + $0xd1] sm:$0xff]
      %v1022 = vld [vmem:[%s172 + $0xd9] sm:$0x7f]
      %v1023 = vld [vmem:[%s172 + $0xe1] sm:$0xff]
      %v1024 = vld [vmem:[%s172 + $0xe9] sm:$0x7f]
      %v1025 = vmul.f32 %v995, %v294
      %v1026 = vmul.f32 %v996, %v294
      %v1027 = vmul.f32 %v997, %v294
      %v1028 = vmul.f32 %v998, %v294
      %v1029 = vmul.f32 %v999, %v294
      %v1030 = vmul.f32 %v1000, %v294
      %v1031 = vmul.f32 %v1001, %v294
      %v1032 = vmul.f32 %v1002, %v294
      %v1033 = vmul.f32 %v1003, %v294
      %v1034 = vmul.f32 %v1004, %v294
      %v1035 = vmul.f32 %v1005, %v294
      %v1036 = vmul.f32 %v1006, %v294
      %v1037 = vmul.f32 %v1007, %v294
      %v1038 = vmul.f32 %v1008, %v294
      %v1039 = vmul.f32 %v1009, %v294
      %v1040 = vmul.f32 %v1010, %v294
      %v1041 = vmul.f32 %v1011, %v294
      %v1042 = vmul.f32 %v1012, %v294
      %v1043 = vmul.f32 %v1013, %v294
      %v1044 = vmul.f32 %v1014, %v294
      %v1045 = vmul.f32 %v1015, %v294
      %v1046 = vmul.f32 %v1016, %v294
      %v1047 = vmul.f32 %v1017, %v294
      %v1048 = vmul.f32 %v1018, %v294
      %v1049 = vmul.f32 %v1019, %v294
      %v1050 = vmul.f32 %v1020, %v294
      %v1051 = vmul.f32 %v1021, %v294
      %v1052 = vmul.f32 %v1022, %v294
      %v1053 = vmul.f32 %v1023, %v294
      %v1054 = vmul.f32 %v1024, %v294
      %v1055 = vadd.f32 %v965, %v1025
      %v1056 = vadd.f32 %v966, %v1026
      %v1057 = vadd.f32 %v967, %v1027
      %v1058 = vadd.f32 %v968, %v1028
      %v1059 = vadd.f32 %v969, %v1029
      %v1060 = vadd.f32 %v970, %v1030
      %v1061 = vadd.f32 %v971, %v1031
      %v1062 = vadd.f32 %v972, %v1032
      %v1063 = vadd.f32 %v973, %v1033
      %v1064 = vadd.f32 %v974, %v1034
      %v1065 = vadd.f32 %v975, %v1035
      %v1066 = vadd.f32 %v976, %v1036
      %v1067 = vadd.f32 %v977, %v1037
      %v1068 = vadd.f32 %v978, %v1038
      %v1069 = vadd.f32 %v979, %v1039
      %v1070 = vadd.f32 %v980, %v1040
      %v1071 = vadd.f32 %v981, %v1041
      %v1072 = vadd.f32 %v982, %v1042
      %v1073 = vadd.f32 %v983, %v1043
      %v1074 = vadd.f32 %v984, %v1044
      %v1075 = vadd.f32 %v985, %v1045
      %v1076 = vadd.f32 %v986, %v1046
      %v1077 = vadd.f32 %v987, %v1047
      %v1078 = vadd.f32 %v988, %v1048
      %v1079 = vadd.f32 %v989, %v1049
      %v1080 = vadd.f32 %v990, %v1050
      %v1081 = vadd.f32 %v991, %v1051
      %v1082 = vadd.f32 %v992, %v1052
      %v1083 = vadd.f32 %v993, %v1053
      %v1084 = vadd.f32 %v994, %v1054
      %v1085 = vmul.f32 %v448, %v386
      %v1086 = vmul.f32 %v449, %v386
      %v1087 = vmul.f32 %v450, %v386
      %v1088 = vmul.f32 %v451, %v386
      %v1089 = vmul.f32 %v452, %v386
      %v1090 = vmul.f32 %v453, %v386
      %v1091 = vmul.f32 %v454, %v386
      %v1092 = vmul.f32 %v455, %v386
      %v1093 = vmul.f32 %v456, %v386
      %v1094 = vmul.f32 %v457, %v386
      %v1095 = vmul.f32 %v458, %v386
      %v1096 = vmul.f32 %v459, %v386
      %v1097 = vmul.f32 %v460, %v386
      %v1098 = vmul.f32 %v461, %v386
      %v1099 = vmul.f32 %v462, %v386
      %v1100 = vmul.f32 %v463, %v386
      %v1101 = vmul.f32 %v464, %v386
      %v1102 = vmul.f32 %v465, %v386
      %v1103 = vmul.f32 %v466, %v386
      %v1104 = vmul.f32 %v467, %v386
      %v1105 = vmul.f32 %v468, %v386
      %v1106 = vmul.f32 %v469, %v386
      %v1107 = vmul.f32 %v470, %v386
      %v1108 = vmul.f32 %v471, %v386
      %v1109 = vmul.f32 %v472, %v386
      %v1110 = vmul.f32 %v473, %v386
      %v1111 = vmul.f32 %v474, %v386
      %v1112 = vmul.f32 %v475, %v386
      %v1113 = vmul.f32 %v476, %v386
      %v1114 = vmul.f32 %v477, %v386
      %v1115 = vadd.f32 %v1055, %v1085
      %v1116 = vadd.f32 %v1056, %v1086
      %v1117 = vadd.f32 %v1057, %v1087
      %v1118 = vadd.f32 %v1058, %v1088
      %v1119 = vadd.f32 %v1059, %v1089
      %v1120 = vadd.f32 %v1060, %v1090
      %v1121 = vadd.f32 %v1061, %v1091
      %v1122 = vadd.f32 %v1062, %v1092
      %v1123 = vadd.f32 %v1063, %v1093
      %v1124 = vadd.f32 %v1064, %v1094
      %v1125 = vadd.f32 %v1065, %v1095
      %v1126 = vadd.f32 %v1066, %v1096
      %v1127 = vadd.f32 %v1067, %v1097
      %v1128 = vadd.f32 %v1068, %v1098
      %v1129 = vadd.f32 %v1069, %v1099
      %v1130 = vadd.f32 %v1070, %v1100
      %v1131 = vadd.f32 %v1071, %v1101
      %v1132 = vadd.f32 %v1072, %v1102
      %v1133 = vadd.f32 %v1073, %v1103
      %v1134 = vadd.f32 %v1074, %v1104
      %v1135 = vadd.f32 %v1075, %v1105
      %v1136 = vadd.f32 %v1076, %v1106
      %v1137 = vadd.f32 %v1077, %v1107
      %v1138 = vadd.f32 %v1078, %v1108
      %v1139 = vadd.f32 %v1079, %v1109
      %v1140 = vadd.f32 %v1080, %v1110
      %v1141 = vadd.f32 %v1081, %v1111
      %v1142 = vadd.f32 %v1082, %v1112
      %v1143 = vadd.f32 %v1083, %v1113
      %v1144 = vadd.f32 %v1084, %v1114
      %v1145 = vmul.f32 %v539, %v478
      %v1146 = vmul.f32 %v540, %v478
      %v1147 = vmul.f32 %v541, %v478
      %v1148 = vmul.f32 %v542, %v478
      %v1149 = vmul.f32 %v543, %v478
      %v1150 = vmul.f32 %v544, %v478
      %v1151 = vmul.f32 %v545, %v478
      %v1152 = vmul.f32 %v546, %v478
      %v1153 = vmul.f32 %v547, %v478
      %v1154 = vmul.f32 %v548, %v478
      %v1155 = vmul.f32 %v549, %v478
      %v1156 = vmul.f32 %v550, %v478
      %v1157 = vmul.f32 %v551, %v478
      %v1158 = vmul.f32 %v552, %v478
      %v1159 = vmul.f32 %v553, %v478
      %v1160 = vmul.f32 %v554, %v478
      %v1161 = vmul.f32 %v555, %v478
      %v1162 = vmul.f32 %v556, %v478
      %v1163 = vmul.f32 %v557, %v478
      %v1164 = vmul.f32 %v558, %v478
      %v1165 = vmul.f32 %v559, %v478
      %v1166 = vmul.f32 %v560, %v478
      %v1167 = vmul.f32 %v561, %v478
      %v1168 = vmul.f32 %v562, %v478
      %v1169 = vmul.f32 %v563, %v478
      %v1170 = vmul.f32 %v564, %v478
      %v1171 = vmul.f32 %v565, %v478
      %v1172 = vmul.f32 %v566, %v478
      %v1173 = vmul.f32 %v567, %v478
      %v1174 = vmul.f32 %v568, %v478
      %v1175 = vadd.f32 %v1115, %v1145
      %v1176 = vadd.f32 %v1116, %v1146
      %v1177 = vadd.f32 %v1117, %v1147
      %v1178 = vadd.f32 %v1118, %v1148
      %v1179 = vadd.f32 %v1119, %v1149
      %v1180 = vadd.f32 %v1120, %v1150
      %v1181 = vadd.f32 %v1121, %v1151
      %v1182 = vadd.f32 %v1122, %v1152
      %v1183 = vadd.f32 %v1123, %v1153
      %v1184 = vadd.f32 %v1124, %v1154
      %v1185 = vadd.f32 %v1125, %v1155
      %v1186 = vadd.f32 %v1126, %v1156
      %v1187 = vadd.f32 %v1127, %v1157
      %v1188 = vadd.f32 %v1128, %v1158
      %v1189 = vadd.f32 %v1129, %v1159
      %v1190 = vadd.f32 %v1130, %v1160
      %v1191 = vadd.f32 %v1131, %v1161
      %v1192 = vadd.f32 %v1132, %v1162
      %v1193 = vadd.f32 %v1133, %v1163
      %v1194 = vadd.f32 %v1134, %v1164
      %v1195 = vadd.f32 %v1135, %v1165
      %v1196 = vadd.f32 %v1136, %v1166
      %v1197 = vadd.f32 %v1137, %v1167
      %v1198 = vadd.f32 %v1138, %v1168
      %v1199 = vadd.f32 %v1139, %v1169
      %v1200 = vadd.f32 %v1140, %v1170
      %v1201 = vadd.f32 %v1141, %v1171
      %v1202 = vadd.f32 %v1142, %v1172
      %v1203 = vadd.f32 %v1143, %v1173
      %v1204 = vadd.f32 %v1144, %v1174
      %v1205 = vld [vmem:[%s447 + $0x1] sm:$0xff]
      %v1206 = vld [vmem:[%s447 + $0x9] sm:$0x7f]
      %v1207 = vld [vmem:[%s447 + $0x11] sm:$0xff]
      %v1208 = vld [vmem:[%s447 + $0x19] sm:$0x7f]
      %v1209 = vld [vmem:[%s447 + $0x21] sm:$0xff]
      %v1210 = vld [vmem:[%s447 + $0x29] sm:$0x7f]
      %v1211 = vld [vmem:[%s447 + $0x31] sm:$0xff]
      %v1212 = vld [vmem:[%s447 + $0x39] sm:$0x7f]
      %v1213 = vld [vmem:[%s447 + $0x41] sm:$0xff]
      %v1214 = vld [vmem:[%s447 + $0x49] sm:$0x7f]
      %v1215 = vld [vmem:[%s447 + $0x51] sm:$0xff]
      %v1216 = vld [vmem:[%s447 + $0x59] sm:$0x7f]
      %v1217 = vld [vmem:[%s447 + $0x61] sm:$0xff]
      %v1218 = vld [vmem:[%s447 + $0x69] sm:$0x7f]
      %v1219 = vld [vmem:[%s447 + $0x71] sm:$0xff]
      %v1220 = vld [vmem:[%s447 + $0x79] sm:$0x7f]
      %v1221 = vld [vmem:[%s447 + $0x81] sm:$0xff]
      %v1222 = vld [vmem:[%s447 + $0x89] sm:$0x7f]
      %v1223 = vld [vmem:[%s447 + $0x91] sm:$0xff]
      %v1224 = vld [vmem:[%s447 + $0x99] sm:$0x7f]
      %v1225 = vld [vmem:[%s447 + $0xa1] sm:$0xff]
      %v1226 = vld [vmem:[%s447 + $0xa9] sm:$0x7f]
      %v1227 = vld [vmem:[%s447 + $0xb1] sm:$0xff]
      %v1228 = vld [vmem:[%s447 + $0xb9] sm:$0x7f]
      %v1229 = vld [vmem:[%s447 + $0xc1] sm:$0xff]
      %v1230 = vld [vmem:[%s447 + $0xc9] sm:$0x7f]
      %v1231 = vld [vmem:[%s447 + $0xd1] sm:$0xff]
      %v1232 = vld [vmem:[%s447 + $0xd9] sm:$0x7f]
      %v1233 = vld [vmem:[%s447 + $0xe1] sm:$0xff]
      %v1234 = vld [vmem:[%s447 + $0xe9] sm:$0x7f]
      %v1235 = vmul.f32 %v1205, %v569
      %v1236 = vmul.f32 %v1206, %v569
      %v1237 = vmul.f32 %v1207, %v569
      %v1238 = vmul.f32 %v1208, %v569
      %v1239 = vmul.f32 %v1209, %v569
      %v1240 = vmul.f32 %v1210, %v569
      %v1241 = vmul.f32 %v1211, %v569
      %v1242 = vmul.f32 %v1212, %v569
      %v1243 = vmul.f32 %v1213, %v569
      %v1244 = vmul.f32 %v1214, %v569
      %v1245 = vmul.f32 %v1215, %v569
      %v1246 = vmul.f32 %v1216, %v569
      %v1247 = vmul.f32 %v1217, %v569
      %v1248 = vmul.f32 %v1218, %v569
      %v1249 = vmul.f32 %v1219, %v569
      %v1250 = vmul.f32 %v1220, %v569
      %v1251 = vmul.f32 %v1221, %v569
      %v1252 = vmul.f32 %v1222, %v569
      %v1253 = vmul.f32 %v1223, %v569
      %v1254 = vmul.f32 %v1224, %v569
      %v1255 = vmul.f32 %v1225, %v569
      %v1256 = vmul.f32 %v1226, %v569
      %v1257 = vmul.f32 %v1227, %v569
      %v1258 = vmul.f32 %v1228, %v569
      %v1259 = vmul.f32 %v1229, %v569
      %v1260 = vmul.f32 %v1230, %v569
      %v1261 = vmul.f32 %v1231, %v569
      %v1262 = vmul.f32 %v1232, %v569
      %v1263 = vmul.f32 %v1233, %v569
      %v1264 = vmul.f32 %v1234, %v569
      %v1265 = vadd.f32 %v1175, %v1235
      %v1266 = vadd.f32 %v1176, %v1236
      %v1267 = vadd.f32 %v1177, %v1237
      %v1268 = vadd.f32 %v1178, %v1238
      %v1269 = vadd.f32 %v1179, %v1239
      %v1270 = vadd.f32 %v1180, %v1240
      %v1271 = vadd.f32 %v1181, %v1241
      %v1272 = vadd.f32 %v1182, %v1242
      %v1273 = vadd.f32 %v1183, %v1243
      %v1274 = vadd.f32 %v1184, %v1244
      %v1275 = vadd.f32 %v1185, %v1245
      %v1276 = vadd.f32 %v1186, %v1246
      %v1277 = vadd.f32 %v1187, %v1247
      %v1278 = vadd.f32 %v1188, %v1248
      %v1279 = vadd.f32 %v1189, %v1249
      %v1280 = vadd.f32 %v1190, %v1250
      %v1281 = vadd.f32 %v1191, %v1251
      %v1282 = vadd.f32 %v1192, %v1252
      %v1283 = vadd.f32 %v1193, %v1253
      %v1284 = vadd.f32 %v1194, %v1254
      %v1285 = vadd.f32 %v1195, %v1255
      %v1286 = vadd.f32 %v1196, %v1256
      %v1287 = vadd.f32 %v1197, %v1257
      %v1288 = vadd.f32 %v1198, %v1258
      %v1289 = vadd.f32 %v1199, %v1259
      %v1290 = vadd.f32 %v1200, %v1260
      %v1291 = vadd.f32 %v1201, %v1261
      %v1292 = vadd.f32 %v1202, %v1262
      %v1293 = vadd.f32 %v1203, %v1263
      %v1294 = vadd.f32 %v1204, %v1264
      %v1295 = vmul.f32 %v723, %v661
      %v1296 = vmul.f32 %v724, %v661
      %v1297 = vmul.f32 %v725, %v661
      %v1298 = vmul.f32 %v726, %v661
      %v1299 = vmul.f32 %v727, %v661
      %v1300 = vmul.f32 %v728, %v661
      %v1301 = vmul.f32 %v729, %v661
      %v1302 = vmul.f32 %v730, %v661
      %v1303 = vmul.f32 %v731, %v661
      %v1304 = vmul.f32 %v732, %v661
      %v1305 = vmul.f32 %v733, %v661
      %v1306 = vmul.f32 %v734, %v661
      %v1307 = vmul.f32 %v735, %v661
      %v1308 = vmul.f32 %v736, %v661
      %v1309 = vmul.f32 %v737, %v661
      %v1310 = vmul.f32 %v738, %v661
      %v1311 = vmul.f32 %v739, %v661
      %v1312 = vmul.f32 %v740, %v661
      %v1313 = vmul.f32 %v741, %v661
      %v1314 = vmul.f32 %v742, %v661
      %v1315 = vmul.f32 %v743, %v661
      %v1316 = vmul.f32 %v744, %v661
      %v1317 = vmul.f32 %v745, %v661
      %v1318 = vmul.f32 %v746, %v661
      %v1319 = vmul.f32 %v747, %v661
      %v1320 = vmul.f32 %v748, %v661
      %v1321 = vmul.f32 %v749, %v661
      %v1322 = vmul.f32 %v750, %v661
      %v1323 = vmul.f32 %v751, %v661
      %v1324 = vmul.f32 %v752, %v661
      %v1325 = vadd.f32 %v1265, %v1295
      %v1326 = vadd.f32 %v1266, %v1296
      %v1327 = vadd.f32 %v1267, %v1297
      %v1328 = vadd.f32 %v1268, %v1298
      %v1329 = vadd.f32 %v1269, %v1299
      %v1330 = vadd.f32 %v1270, %v1300
      %v1331 = vadd.f32 %v1271, %v1301
      %v1332 = vadd.f32 %v1272, %v1302
      %v1333 = vadd.f32 %v1273, %v1303
      %v1334 = vadd.f32 %v1274, %v1304
      %v1335 = vadd.f32 %v1275, %v1305
      %v1336 = vadd.f32 %v1276, %v1306
      %v1337 = vadd.f32 %v1277, %v1307
      %v1338 = vadd.f32 %v1278, %v1308
      %v1339 = vadd.f32 %v1279, %v1309
      %v1340 = vadd.f32 %v1280, %v1310
      %v1341 = vadd.f32 %v1281, %v1311
      %v1342 = vadd.f32 %v1282, %v1312
      %v1343 = vadd.f32 %v1283, %v1313
      %v1344 = vadd.f32 %v1284, %v1314
      %v1345 = vadd.f32 %v1285, %v1315
      %v1346 = vadd.f32 %v1286, %v1316
      %v1347 = vadd.f32 %v1287, %v1317
      %v1348 = vadd.f32 %v1288, %v1318
      %v1349 = vadd.f32 %v1289, %v1319
      %v1350 = vadd.f32 %v1290, %v1320
      %v1351 = vadd.f32 %v1291, %v1321
      %v1352 = vadd.f32 %v1292, %v1322
      %v1353 = vadd.f32 %v1293, %v1323
      %v1354 = vadd.f32 %v1294, %v1324
      %v1355 = vmul.f32 %v814, %v753
      %v1356 = vmul.f32 %v815, %v753
      %v1357 = vmul.f32 %v816, %v753
      %v1358 = vmul.f32 %v817, %v753
      %v1359 = vmul.f32 %v818, %v753
      %v1360 = vmul.f32 %v819, %v753
      %v1361 = vmul.f32 %v820, %v753
      %v1362 = vmul.f32 %v821, %v753
      %v1363 = vmul.f32 %v822, %v753
      %v1364 = vmul.f32 %v823, %v753
      %v1365 = vmul.f32 %v824, %v753
      %v1366 = vmul.f32 %v825, %v753
      %v1367 = vmul.f32 %v826, %v753
      %v1368 = vmul.f32 %v827, %v753
      %v1369 = vmul.f32 %v828, %v753
      %v1370 = vmul.f32 %v829, %v753
      %v1371 = vmul.f32 %v830, %v753
      %v1372 = vmul.f32 %v831, %v753
      %v1373 = vmul.f32 %v832, %v753
      %v1374 = vmul.f32 %v833, %v753
      %v1375 = vmul.f32 %v834, %v753
      %v1376 = vmul.f32 %v835, %v753
      %v1377 = vmul.f32 %v836, %v753
      %v1378 = vmul.f32 %v837, %v753
      %v1379 = vmul.f32 %v838, %v753
      %v1380 = vmul.f32 %v839, %v753
      %v1381 = vmul.f32 %v840, %v753
      %v1382 = vmul.f32 %v841, %v753
      %v1383 = vmul.f32 %v842, %v753
      %v1384 = vmul.f32 %v843, %v753
      %v1385 = vadd.f32 %v1325, %v1355
      %v1386 = vadd.f32 %v1326, %v1356
      %v1387 = vadd.f32 %v1327, %v1357
      %v1388 = vadd.f32 %v1328, %v1358
      %v1389 = vadd.f32 %v1329, %v1359
      %v1390 = vadd.f32 %v1330, %v1360
      %v1391 = vadd.f32 %v1331, %v1361
      %v1392 = vadd.f32 %v1332, %v1362
      %v1393 = vadd.f32 %v1333, %v1363
      %v1394 = vadd.f32 %v1334, %v1364
      %v1395 = vadd.f32 %v1335, %v1365
      %v1396 = vadd.f32 %v1336, %v1366
      %v1397 = vadd.f32 %v1337, %v1367
      %v1398 = vadd.f32 %v1338, %v1368
      %v1399 = vadd.f32 %v1339, %v1369
      %v1400 = vadd.f32 %v1340, %v1370
      %v1401 = vadd.f32 %v1341, %v1371
      %v1402 = vadd.f32 %v1342, %v1372
      %v1403 = vadd.f32 %v1343, %v1373
      %v1404 = vadd.f32 %v1344, %v1374
      %v1405 = vadd.f32 %v1345, %v1375
      %v1406 = vadd.f32 %v1346, %v1376
      %v1407 = vadd.f32 %v1347, %v1377
      %v1408 = vadd.f32 %v1348, %v1378
      %v1409 = vadd.f32 %v1349, %v1379
      %v1410 = vadd.f32 %v1350, %v1380
      %v1411 = vadd.f32 %v1351, %v1381
      %v1412 = vadd.f32 %v1352, %v1382
      %v1413 = vadd.f32 %v1353, %v1383
      %v1414 = vadd.f32 %v1354, %v1384
      %v1415 = vld [vmem:[%s722 + $0x1] sm:$0xff]
      %v1416 = vld [vmem:[%s722 + $0x9] sm:$0x7f]
      %v1417 = vld [vmem:[%s722 + $0x11] sm:$0xff]
      %v1418 = vld [vmem:[%s722 + $0x19] sm:$0x7f]
      %v1419 = vld [vmem:[%s722 + $0x21] sm:$0xff]
      %v1420 = vld [vmem:[%s722 + $0x29] sm:$0x7f]
      %v1421 = vld [vmem:[%s722 + $0x31] sm:$0xff]
      %v1422 = vld [vmem:[%s722 + $0x39] sm:$0x7f]
      %v1423 = vld [vmem:[%s722 + $0x41] sm:$0xff]
      %v1424 = vld [vmem:[%s722 + $0x49] sm:$0x7f]
      %v1425 = vld [vmem:[%s722 + $0x51] sm:$0xff]
      %v1426 = vld [vmem:[%s722 + $0x59] sm:$0x7f]
      %v1427 = vld [vmem:[%s722 + $0x61] sm:$0xff]
      %v1428 = vld [vmem:[%s722 + $0x69] sm:$0x7f]
      %v1429 = vld [vmem:[%s722 + $0x71] sm:$0xff]
      %v1430 = vld [vmem:[%s722 + $0x79] sm:$0x7f]
      %v1431 = vld [vmem:[%s722 + $0x81] sm:$0xff]
      %v1432 = vld [vmem:[%s722 + $0x89] sm:$0x7f]
      %v1433 = vld [vmem:[%s722 + $0x91] sm:$0xff]
      %v1434 = vld [vmem:[%s722 + $0x99] sm:$0x7f]
      %v1435 = vld [vmem:[%s722 + $0xa1] sm:$0xff]
      %v1436 = vld [vmem:[%s722 + $0xa9] sm:$0x7f]
      %v1437 = vld [vmem:[%s722 + $0xb1] sm:$0xff]
      %v1438 = vld [vmem:[%s722 + $0xb9] sm:$0x7f]
      %v1439 = vld [vmem:[%s722 + $0xc1] sm:$0xff]
      %v1440 = vld [vmem:[%s722 + $0xc9] sm:$0x7f]
      %v1441 = vld [vmem:[%s722 + $0xd1] sm:$0xff]
      %v1442 = vld [vmem:[%s722 + $0xd9] sm:$0x7f]
      %v1443 = vld [vmem:[%s722 + $0xe1] sm:$0xff]
      %v1444 = vld [vmem:[%s722 + $0xe9] sm:$0x7f]
      %v1445 = vmul.f32 %v1415, %v844
      %v1446 = vmul.f32 %v1416, %v844
      %v1447 = vmul.f32 %v1417, %v844
      %v1448 = vmul.f32 %v1418, %v844
      %v1449 = vmul.f32 %v1419, %v844
      %v1450 = vmul.f32 %v1420, %v844
      %v1451 = vmul.f32 %v1421, %v844
      %v1452 = vmul.f32 %v1422, %v844
      %v1453 = vmul.f32 %v1423, %v844
      %v1454 = vmul.f32 %v1424, %v844
      %v1455 = vmul.f32 %v1425, %v844
      %v1456 = vmul.f32 %v1426, %v844
      %v1457 = vmul.f32 %v1427, %v844
      %v1458 = vmul.f32 %v1428, %v844
      %v1459 = vmul.f32 %v1429, %v844
      %v1460 = vmul.f32 %v1430, %v844
      %v1461 = vmul.f32 %v1431, %v844
      %v1462 = vmul.f32 %v1432, %v844
      %v1463 = vmul.f32 %v1433, %v844
      %v1464 = vmul.f32 %v1434, %v844
      %v1465 = vmul.f32 %v1435, %v844
      %v1466 = vmul.f32 %v1436, %v844
      %v1467 = vmul.f32 %v1437, %v844
      %v1468 = vmul.f32 %v1438, %v844
      %v1469 = vmul.f32 %v1439, %v844
      %v1470 = vmul.f32 %v1440, %v844
      %v1471 = vmul.f32 %v1441, %v844
      %v1472 = vmul.f32 %v1442, %v844
      %v1473 = vmul.f32 %v1443, %v844
      %v1474 = vmul.f32 %v1444, %v844
      %v1475 = vadd.f32 %v1385, %v1445
      %v1476 = vadd.f32 %v1386, %v1446
      %v1477 = vadd.f32 %v1387, %v1447
      %v1478 = vadd.f32 %v1388, %v1448
      %v1479 = vadd.f32 %v1389, %v1449
      %v1480 = vadd.f32 %v1390, %v1450
      %v1481 = vadd.f32 %v1391, %v1451
      %v1482 = vadd.f32 %v1392, %v1452
      %v1483 = vadd.f32 %v1393, %v1453
      %v1484 = vadd.f32 %v1394, %v1454
      %v1485 = vadd.f32 %v1395, %v1455
      %v1486 = vadd.f32 %v1396, %v1456
      %v1487 = vadd.f32 %v1397, %v1457
      %v1488 = vadd.f32 %v1398, %v1458
      %v1489 = vadd.f32 %v1399, %v1459
      %v1490 = vadd.f32 %v1400, %v1460
      %v1491 = vadd.f32 %v1401, %v1461
      %v1492 = vadd.f32 %v1402, %v1462
      %v1493 = vadd.f32 %v1403, %v1463
      %v1494 = vadd.f32 %v1404, %v1464
      %v1495 = vadd.f32 %v1405, %v1465
      %v1496 = vadd.f32 %v1406, %v1466
      %v1497 = vadd.f32 %v1407, %v1467
      %v1498 = vadd.f32 %v1408, %v1468
      %v1499 = vadd.f32 %v1409, %v1469
      %v1500 = vadd.f32 %v1410, %v1470
      %v1501 = vadd.f32 %v1411, %v1471
      %v1502 = vadd.f32 %v1412, %v1472
      %v1503 = vadd.f32 %v1413, %v1473
      %v1504 = vadd.f32 %v1414, %v1474
      %v1505 = vmax.f32 %v875, %v1475
      %v1506 = vmax.f32 %v876, %v1476
      %v1507 = vmax.f32 %v877, %v1477
      %v1508 = vmax.f32 %v878, %v1478
      %v1509 = vmax.f32 %v879, %v1479
      %v1510 = vmax.f32 %v880, %v1480
      %v1511 = vmax.f32 %v881, %v1481
      %v1512 = vmax.f32 %v882, %v1482
      %v1513 = vmax.f32 %v883, %v1483
      %v1514 = vmax.f32 %v884, %v1484
      %v1515 = vmax.f32 %v885, %v1485
      %v1516 = vmax.f32 %v886, %v1486
      %v1517 = vmax.f32 %v887, %v1487
      %v1518 = vmax.f32 %v888, %v1488
      %v1519 = vmax.f32 %v889, %v1489
      %v1520 = vmax.f32 %v890, %v1490
      %v1521 = vmax.f32 %v891, %v1491
      %v1522 = vmax.f32 %v892, %v1492
      %v1523 = vmax.f32 %v893, %v1493
      %v1524 = vmax.f32 %v894, %v1494
      %v1525 = vmax.f32 %v895, %v1495
      %v1526 = vmax.f32 %v896, %v1496
      %v1527 = vmax.f32 %v897, %v1497
      %v1528 = vmax.f32 %v898, %v1498
      %v1529 = vmax.f32 %v899, %v1499
      %v1530 = vmax.f32 %v900, %v1500
      %v1531 = vmax.f32 %v901, %v1501
      %v1532 = vmax.f32 %v902, %v1502
      %v1533 = vmax.f32 %v903, %v1503
      %v1534 = vmax.f32 %v904, %v1504
      %v1535 = vmul.f32 %v356, %v141
      %v1536 = vmul.f32 %v357, %v141
      %v1537 = vmul.f32 %v358, %v141
      %v1538 = vmul.f32 %v359, %v141
      %v1539 = vmul.f32 %v360, %v141
      %v1540 = vmul.f32 %v361, %v141
      %v1541 = vmul.f32 %v362, %v141
      %v1542 = vmul.f32 %v363, %v141
      %v1543 = vmul.f32 %v364, %v141
      %v1544 = vmul.f32 %v365, %v141
      %v1545 = vmul.f32 %v366, %v141
      %v1546 = vmul.f32 %v367, %v141
      %v1547 = vmul.f32 %v368, %v141
      %v1548 = vmul.f32 %v369, %v141
      %v1549 = vmul.f32 %v370, %v141
      %v1550 = vmul.f32 %v371, %v141
      %v1551 = vmul.f32 %v372, %v141
      %v1552 = vmul.f32 %v373, %v141
      %v1553 = vmul.f32 %v374, %v141
      %v1554 = vmul.f32 %v375, %v141
      %v1555 = vmul.f32 %v376, %v141
      %v1556 = vmul.f32 %v377, %v141
      %v1557 = vmul.f32 %v378, %v141
      %v1558 = vmul.f32 %v379, %v141
      %v1559 = vmul.f32 %v380, %v141
      %v1560 = vmul.f32 %v381, %v141
      %v1561 = vmul.f32 %v382, %v141
      %v1562 = vmul.f32 %v383, %v141
      %v1563 = vmul.f32 %v384, %v141
      %v1564 = vmul.f32 %v385, %v141
      %v1565 = vmul.f32 %v448, %v203
      %v1566 = vmul.f32 %v449, %v203
      %v1567 = vmul.f32 %v450, %v203
      %v1568 = vmul.f32 %v451, %v203
      %v1569 = vmul.f32 %v452, %v203
      %v1570 = vmul.f32 %v453, %v203
      %v1571 = vmul.f32 %v454, %v203
      %v1572 = vmul.f32 %v455, %v203
      %v1573 = vmul.f32 %v456, %v203
      %v1574 = vmul.f32 %v457, %v203
      %v1575 = vmul.f32 %v458, %v203
      %v1576 = vmul.f32 %v459, %v203
      %v1577 = vmul.f32 %v460, %v203
      %v1578 = vmul.f32 %v461, %v203
      %v1579 = vmul.f32 %v462, %v203
      %v1580 = vmul.f32 %v463, %v203
      %v1581 = vmul.f32 %v464, %v203
      %v1582 = vmul.f32 %v465, %v203
      %v1583 = vmul.f32 %v466, %v203
      %v1584 = vmul.f32 %v467, %v203
      %v1585 = vmul.f32 %v468, %v203
      %v1586 = vmul.f32 %v469, %v203
      %v1587 = vmul.f32 %v470, %v203
      %v1588 = vmul.f32 %v471, %v203
      %v1589 = vmul.f32 %v472, %v203
      %v1590 = vmul.f32 %v473, %v203
      %v1591 = vmul.f32 %v474, %v203
      %v1592 = vmul.f32 %v475, %v203
      %v1593 = vmul.f32 %v476, %v203
      %v1594 = vmul.f32 %v477, %v203
      %v1595 = vadd.f32 %v1535, %v1565
      %v1596 = vadd.f32 %v1536, %v1566
      %v1597 = vadd.f32 %v1537, %v1567
      %v1598 = vadd.f32 %v1538, %v1568
      %v1599 = vadd.f32 %v1539, %v1569
      %v1600 = vadd.f32 %v1540, %v1570
      %v1601 = vadd.f32 %v1541, %v1571
      %v1602 = vadd.f32 %v1542, %v1572
      %v1603 = vadd.f32 %v1543, %v1573
      %v1604 = vadd.f32 %v1544, %v1574
      %v1605 = vadd.f32 %v1545, %v1575
      %v1606 = vadd.f32 %v1546, %v1576
      %v1607 = vadd.f32 %v1547, %v1577
      %v1608 = vadd.f32 %v1548, %v1578
      %v1609 = vadd.f32 %v1549, %v1579
      %v1610 = vadd.f32 %v1550, %v1580
      %v1611 = vadd.f32 %v1551, %v1581
      %v1612 = vadd.f32 %v1552, %v1582
      %v1613 = vadd.f32 %v1553, %v1583
      %v1614 = vadd.f32 %v1554, %v1584
      %v1615 = vadd.f32 %v1555, %v1585
      %v1616 = vadd.f32 %v1556, %v1586
      %v1617 = vadd.f32 %v1557, %v1587
      %v1618 = vadd.f32 %v1558, %v1588
      %v1619 = vadd.f32 %v1559, %v1589
      %v1620 = vadd.f32 %v1560, %v1590
      %v1621 = vadd.f32 %v1561, %v1591
      %v1622 = vadd.f32 %v1562, %v1592
      %v1623 = vadd.f32 %v1563, %v1593
      %v1624 = vadd.f32 %v1564, %v1594
      %v1625 = vmul.f32 %v539, %v294
      %v1626 = vmul.f32 %v540, %v294
      %v1627 = vmul.f32 %v541, %v294
      %v1628 = vmul.f32 %v542, %v294
      %v1629 = vmul.f32 %v543, %v294
      %v1630 = vmul.f32 %v544, %v294
      %v1631 = vmul.f32 %v545, %v294
      %v1632 = vmul.f32 %v546, %v294
      %v1633 = vmul.f32 %v547, %v294
      %v1634 = vmul.f32 %v548, %v294
      %v1635 = vmul.f32 %v549, %v294
      %v1636 = vmul.f32 %v550, %v294
      %v1637 = vmul.f32 %v551, %v294
      %v1638 = vmul.f32 %v552, %v294
      %v1639 = vmul.f32 %v553, %v294
      %v1640 = vmul.f32 %v554, %v294
      %v1641 = vmul.f32 %v555, %v294
      %v1642 = vmul.f32 %v556, %v294
      %v1643 = vmul.f32 %v557, %v294
      %v1644 = vmul.f32 %v558, %v294
      %v1645 = vmul.f32 %v559, %v294
      %v1646 = vmul.f32 %v560, %v294
      %v1647 = vmul.f32 %v561, %v294
      %v1648 = vmul.f32 %v562, %v294
      %v1649 = vmul.f32 %v563, %v294
      %v1650 = vmul.f32 %v564, %v294
      %v1651 = vmul.f32 %v565, %v294
      %v1652 = vmul.f32 %v566, %v294
      %v1653 = vmul.f32 %v567, %v294
      %v1654 = vmul.f32 %v568, %v294
      %v1655 = vadd.f32 %v1595, %v1625
      %v1656 = vadd.f32 %v1596, %v1626
      %v1657 = vadd.f32 %v1597, %v1627
      %v1658 = vadd.f32 %v1598, %v1628
      %v1659 = vadd.f32 %v1599, %v1629
      %v1660 = vadd.f32 %v1600, %v1630
      %v1661 = vadd.f32 %v1601, %v1631
      %v1662 = vadd.f32 %v1602, %v1632
      %v1663 = vadd.f32 %v1603, %v1633
      %v1664 = vadd.f32 %v1604, %v1634
      %v1665 = vadd.f32 %v1605, %v1635
      %v1666 = vadd.f32 %v1606, %v1636
      %v1667 = vadd.f32 %v1607, %v1637
      %v1668 = vadd.f32 %v1608, %v1638
      %v1669 = vadd.f32 %v1609, %v1639
      %v1670 = vadd.f32 %v1610, %v1640
      %v1671 = vadd.f32 %v1611, %v1641
      %v1672 = vadd.f32 %v1612, %v1642
      %v1673 = vadd.f32 %v1613, %v1643
      %v1674 = vadd.f32 %v1614, %v1644
      %v1675 = vadd.f32 %v1615, %v1645
      %v1676 = vadd.f32 %v1616, %v1646
      %v1677 = vadd.f32 %v1617, %v1647
      %v1678 = vadd.f32 %v1618, %v1648
      %v1679 = vadd.f32 %v1619, %v1649
      %v1680 = vadd.f32 %v1620, %v1650
      %v1681 = vadd.f32 %v1621, %v1651
      %v1682 = vadd.f32 %v1622, %v1652
      %v1683 = vadd.f32 %v1623, %v1653
      %v1684 = vadd.f32 %v1624, %v1654
      %v1685 = vmul.f32 %v631, %v386
      %v1686 = vmul.f32 %v632, %v386
      %v1687 = vmul.f32 %v633, %v386
      %v1688 = vmul.f32 %v634, %v386
      %v1689 = vmul.f32 %v635, %v386
      %v1690 = vmul.f32 %v636, %v386
      %v1691 = vmul.f32 %v637, %v386
      %v1692 = vmul.f32 %v638, %v386
      %v1693 = vmul.f32 %v639, %v386
      %v1694 = vmul.f32 %v640, %v386
      %v1695 = vmul.f32 %v641, %v386
      %v1696 = vmul.f32 %v642, %v386
      %v1697 = vmul.f32 %v643, %v386
      %v1698 = vmul.f32 %v644, %v386
      %v1699 = vmul.f32 %v645, %v386
      %v1700 = vmul.f32 %v646, %v386
      %v1701 = vmul.f32 %v647, %v386
      %v1702 = vmul.f32 %v648, %v386
      %v1703 = vmul.f32 %v649, %v386
      %v1704 = vmul.f32 %v650, %v386
      %v1705 = vmul.f32 %v651, %v386
      %v1706 = vmul.f32 %v652, %v386
      %v1707 = vmul.f32 %v653, %v386
      %v1708 = vmul.f32 %v654, %v386
      %v1709 = vmul.f32 %v655, %v386
      %v1710 = vmul.f32 %v656, %v386
      %v1711 = vmul.f32 %v657, %v386
      %v1712 = vmul.f32 %v658, %v386
      %v1713 = vmul.f32 %v659, %v386
      %v1714 = vmul.f32 %v660, %v386
      %v1715 = vadd.f32 %v1655, %v1685
      %v1716 = vadd.f32 %v1656, %v1686
      %v1717 = vadd.f32 %v1657, %v1687
      %v1718 = vadd.f32 %v1658, %v1688
      %v1719 = vadd.f32 %v1659, %v1689
      %v1720 = vadd.f32 %v1660, %v1690
      %v1721 = vadd.f32 %v1661, %v1691
      %v1722 = vadd.f32 %v1662, %v1692
      %v1723 = vadd.f32 %v1663, %v1693
      %v1724 = vadd.f32 %v1664, %v1694
      %v1725 = vadd.f32 %v1665, %v1695
      %v1726 = vadd.f32 %v1666, %v1696
      %v1727 = vadd.f32 %v1667, %v1697
      %v1728 = vadd.f32 %v1668, %v1698
      %v1729 = vadd.f32 %v1669, %v1699
      %v1730 = vadd.f32 %v1670, %v1700
      %v1731 = vadd.f32 %v1671, %v1701
      %v1732 = vadd.f32 %v1672, %v1702
      %v1733 = vadd.f32 %v1673, %v1703
      %v1734 = vadd.f32 %v1674, %v1704
      %v1735 = vadd.f32 %v1675, %v1705
      %v1736 = vadd.f32 %v1676, %v1706
      %v1737 = vadd.f32 %v1677, %v1707
      %v1738 = vadd.f32 %v1678, %v1708
      %v1739 = vadd.f32 %v1679, %v1709
      %v1740 = vadd.f32 %v1680, %v1710
      %v1741 = vadd.f32 %v1681, %v1711
      %v1742 = vadd.f32 %v1682, %v1712
      %v1743 = vadd.f32 %v1683, %v1713
      %v1744 = vadd.f32 %v1684, %v1714
      %v1745 = vmul.f32 %v723, %v478
      %v1746 = vmul.f32 %v724, %v478
      %v1747 = vmul.f32 %v725, %v478
      %v1748 = vmul.f32 %v726, %v478
      %v1749 = vmul.f32 %v727, %v478
      %v1750 = vmul.f32 %v728, %v478
      %v1751 = vmul.f32 %v729, %v478
      %v1752 = vmul.f32 %v730, %v478
      %v1753 = vmul.f32 %v731, %v478
      %v1754 = vmul.f32 %v732, %v478
      %v1755 = vmul.f32 %v733, %v478
      %v1756 = vmul.f32 %v734, %v478
      %v1757 = vmul.f32 %v735, %v478
      %v1758 = vmul.f32 %v736, %v478
      %v1759 = vmul.f32 %v737, %v478
      %v1760 = vmul.f32 %v738, %v478
      %v1761 = vmul.f32 %v739, %v478
      %v1762 = vmul.f32 %v740, %v478
      %v1763 = vmul.f32 %v741, %v478
      %v1764 = vmul.f32 %v742, %v478
      %v1765 = vmul.f32 %v743, %v478
      %v1766 = vmul.f32 %v744, %v478
      %v1767 = vmul.f32 %v745, %v478
      %v1768 = vmul.f32 %v746, %v478
      %v1769 = vmul.f32 %v747, %v478
      %v1770 = vmul.f32 %v748, %v478
      %v1771 = vmul.f32 %v749, %v478
      %v1772 = vmul.f32 %v750, %v478
      %v1773 = vmul.f32 %v751, %v478
      %v1774 = vmul.f32 %v752, %v478
      %v1775 = vadd.f32 %v1715, %v1745
      %v1776 = vadd.f32 %v1716, %v1746
      %v1777 = vadd.f32 %v1717, %v1747
      %v1778 = vadd.f32 %v1718, %v1748
      %v1779 = vadd.f32 %v1719, %v1749
      %v1780 = vadd.f32 %v1720, %v1750
      %v1781 = vadd.f32 %v1721, %v1751
      %v1782 = vadd.f32 %v1722, %v1752
      %v1783 = vadd.f32 %v1723, %v1753
      %v1784 = vadd.f32 %v1724, %v1754
      %v1785 = vadd.f32 %v1725, %v1755
      %v1786 = vadd.f32 %v1726, %v1756
      %v1787 = vadd.f32 %v1727, %v1757
      %v1788 = vadd.f32 %v1728, %v1758
      %v1789 = vadd.f32 %v1729, %v1759
      %v1790 = vadd.f32 %v1730, %v1760
      %v1791 = vadd.f32 %v1731, %v1761
      %v1792 = vadd.f32 %v1732, %v1762
      %v1793 = vadd.f32 %v1733, %v1763
      %v1794 = vadd.f32 %v1734, %v1764
      %v1795 = vadd.f32 %v1735, %v1765
      %v1796 = vadd.f32 %v1736, %v1766
      %v1797 = vadd.f32 %v1737, %v1767
      %v1798 = vadd.f32 %v1738, %v1768
      %v1799 = vadd.f32 %v1739, %v1769
      %v1800 = vadd.f32 %v1740, %v1770
      %v1801 = vadd.f32 %v1741, %v1771
      %v1802 = vadd.f32 %v1742, %v1772
      %v1803 = vadd.f32 %v1743, %v1773
      %v1804 = vadd.f32 %v1744, %v1774
      %v1805 = vmul.f32 %v814, %v569
      %v1806 = vmul.f32 %v815, %v569
      %v1807 = vmul.f32 %v816, %v569
      %v1808 = vmul.f32 %v817, %v569
      %v1809 = vmul.f32 %v818, %v569
      %v1810 = vmul.f32 %v819, %v569
      %v1811 = vmul.f32 %v820, %v569
      %v1812 = vmul.f32 %v821, %v569
      %v1813 = vmul.f32 %v822, %v569
      %v1814 = vmul.f32 %v823, %v569
      %v1815 = vmul.f32 %v824, %v569
      %v1816 = vmul.f32 %v825, %v569
      %v1817 = vmul.f32 %v826, %v569
      %v1818 = vmul.f32 %v827, %v569
      %v1819 = vmul.f32 %v828, %v569
      %v1820 = vmul.f32 %v829, %v569
      %v1821 = vmul.f32 %v830, %v569
      %v1822 = vmul.f32 %v831, %v569
      %v1823 = vmul.f32 %v832, %v569
      %v1824 = vmul.f32 %v833, %v569
      %v1825 = vmul.f32 %v834, %v569
      %v1826 = vmul.f32 %v835, %v569
      %v1827 = vmul.f32 %v836, %v569
      %v1828 = vmul.f32 %v837, %v569
      %v1829 = vmul.f32 %v838, %v569
      %v1830 = vmul.f32 %v839, %v569
      %v1831 = vmul.f32 %v840, %v569
      %v1832 = vmul.f32 %v841, %v569
      %v1833 = vmul.f32 %v842, %v569
      %v1834 = vmul.f32 %v843, %v569
      %v1835 = vadd.f32 %v1775, %v1805
      %v1836 = vadd.f32 %v1776, %v1806
      %v1837 = vadd.f32 %v1777, %v1807
      %v1838 = vadd.f32 %v1778, %v1808
      %v1839 = vadd.f32 %v1779, %v1809
      %v1840 = vadd.f32 %v1780, %v1810
      %v1841 = vadd.f32 %v1781, %v1811
      %v1842 = vadd.f32 %v1782, %v1812
      %v1843 = vadd.f32 %v1783, %v1813
      %v1844 = vadd.f32 %v1784, %v1814
      %v1845 = vadd.f32 %v1785, %v1815
      %v1846 = vadd.f32 %v1786, %v1816
      %v1847 = vadd.f32 %v1787, %v1817
      %v1848 = vadd.f32 %v1788, %v1818
      %v1849 = vadd.f32 %v1789, %v1819
      %v1850 = vadd.f32 %v1790, %v1820
      %v1851 = vadd.f32 %v1791, %v1821
      %v1852 = vadd.f32 %v1792, %v1822
      %v1853 = vadd.f32 %v1793, %v1823
      %v1854 = vadd.f32 %v1794, %v1824
      %v1855 = vadd.f32 %v1795, %v1825
      %v1856 = vadd.f32 %v1796, %v1826
      %v1857 = vadd.f32 %v1797, %v1827
      %v1858 = vadd.f32 %v1798, %v1828
      %v1859 = vadd.f32 %v1799, %v1829
      %v1860 = vadd.f32 %v1800, %v1830
      %v1861 = vadd.f32 %v1801, %v1831
      %v1862 = vadd.f32 %v1802, %v1832
      %v1863 = vadd.f32 %v1803, %v1833
      %v1864 = vadd.f32 %v1804, %v1834
      %s1865 = scalar_lea.vmem %s0, 528
      %v1866 = vld [vmem:[%s1865] sm:$0xff]
      %v1867 = vld [vmem:[%s1865 + $0x8] sm:$0x7f]
      %v1868 = vld [vmem:[%s1865 + $0x10] sm:$0xff]
      %v1869 = vld [vmem:[%s1865 + $0x18] sm:$0x7f]
      %v1870 = vld [vmem:[%s1865 + $0x20] sm:$0xff]
      %v1871 = vld [vmem:[%s1865 + $0x28] sm:$0x7f]
      %v1872 = vld [vmem:[%s1865 + $0x30] sm:$0xff]
      %v1873 = vld [vmem:[%s1865 + $0x38] sm:$0x7f]
      %v1874 = vld [vmem:[%s1865 + $0x40] sm:$0xff]
      %v1875 = vld [vmem:[%s1865 + $0x48] sm:$0x7f]
      %v1876 = vld [vmem:[%s1865 + $0x50] sm:$0xff]
      %v1877 = vld [vmem:[%s1865 + $0x58] sm:$0x7f]
      %v1878 = vld [vmem:[%s1865 + $0x60] sm:$0xff]
      %v1879 = vld [vmem:[%s1865 + $0x68] sm:$0x7f]
      %v1880 = vld [vmem:[%s1865 + $0x70] sm:$0xff]
      %v1881 = vld [vmem:[%s1865 + $0x78] sm:$0x7f]
      %v1882 = vld [vmem:[%s1865 + $0x80] sm:$0xff]
      %v1883 = vld [vmem:[%s1865 + $0x88] sm:$0x7f]
      %v1884 = vld [vmem:[%s1865 + $0x90] sm:$0xff]
      %v1885 = vld [vmem:[%s1865 + $0x98] sm:$0x7f]
      %v1886 = vld [vmem:[%s1865 + $0xa0] sm:$0xff]
      %v1887 = vld [vmem:[%s1865 + $0xa8] sm:$0x7f]
      %v1888 = vld [vmem:[%s1865 + $0xb0] sm:$0xff]
      %v1889 = vld [vmem:[%s1865 + $0xb8] sm:$0x7f]
      %v1890 = vld [vmem:[%s1865 + $0xc0] sm:$0xff]
      %v1891 = vld [vmem:[%s1865 + $0xc8] sm:$0x7f]
      %v1892 = vld [vmem:[%s1865 + $0xd0] sm:$0xff]
      %v1893 = vld [vmem:[%s1865 + $0xd8] sm:$0x7f]
      %v1894 = vld [vmem:[%s1865 + $0xe0] sm:$0xff]
      %v1895 = vld [vmem:[%s1865 + $0xe8] sm:$0x7f]
      %v1896 = vmul.f32 %v1866, %v661
      %v1897 = vmul.f32 %v1867, %v661
      %v1898 = vmul.f32 %v1868, %v661
      %v1899 = vmul.f32 %v1869, %v661
      %v1900 = vmul.f32 %v1870, %v661
      %v1901 = vmul.f32 %v1871, %v661
      %v1902 = vmul.f32 %v1872, %v661
      %v1903 = vmul.f32 %v1873, %v661
      %v1904 = vmul.f32 %v1874, %v661
      %v1905 = vmul.f32 %v1875, %v661
      %v1906 = vmul.f32 %v1876, %v661
      %v1907 = vmul.f32 %v1877, %v661
      %v1908 = vmul.f32 %v1878, %v661
      %v1909 = vmul.f32 %v1879, %v661
      %v1910 = vmul.f32 %v1880, %v661
      %v1911 = vmul.f32 %v1881, %v661
      %v1912 = vmul.f32 %v1882, %v661
      %v1913 = vmul.f32 %v1883, %v661
      %v1914 = vmul.f32 %v1884, %v661
      %v1915 = vmul.f32 %v1885, %v661
      %v1916 = vmul.f32 %v1886, %v661
      %v1917 = vmul.f32 %v1887, %v661
      %v1918 = vmul.f32 %v1888, %v661
      %v1919 = vmul.f32 %v1889, %v661
      %v1920 = vmul.f32 %v1890, %v661
      %v1921 = vmul.f32 %v1891, %v661
      %v1922 = vmul.f32 %v1892, %v661
      %v1923 = vmul.f32 %v1893, %v661
      %v1924 = vmul.f32 %v1894, %v661
      %v1925 = vmul.f32 %v1895, %v661
      %v1926 = vadd.f32 %v1835, %v1896
      %v1927 = vadd.f32 %v1836, %v1897
      %v1928 = vadd.f32 %v1837, %v1898
      %v1929 = vadd.f32 %v1838, %v1899
      %v1930 = vadd.f32 %v1839, %v1900
      %v1931 = vadd.f32 %v1840, %v1901
      %v1932 = vadd.f32 %v1841, %v1902
      %v1933 = vadd.f32 %v1842, %v1903
      %v1934 = vadd.f32 %v1843, %v1904
      %v1935 = vadd.f32 %v1844, %v1905
      %v1936 = vadd.f32 %v1845, %v1906
      %v1937 = vadd.f32 %v1846, %v1907
      %v1938 = vadd.f32 %v1847, %v1908
      %v1939 = vadd.f32 %v1848, %v1909
      %v1940 = vadd.f32 %v1849, %v1910
      %v1941 = vadd.f32 %v1850, %v1911
      %v1942 = vadd.f32 %v1851, %v1912
      %v1943 = vadd.f32 %v1852, %v1913
      %v1944 = vadd.f32 %v1853, %v1914
      %v1945 = vadd.f32 %v1854, %v1915
      %v1946 = vadd.f32 %v1855, %v1916
      %v1947 = vadd.f32 %v1856, %v1917
      %v1948 = vadd.f32 %v1857, %v1918
      %v1949 = vadd.f32 %v1858, %v1919
      %v1950 = vadd.f32 %v1859, %v1920
      %v1951 = vadd.f32 %v1860, %v1921
      %v1952 = vadd.f32 %v1861, %v1922
      %v1953 = vadd.f32 %v1862, %v1923
      %v1954 = vadd.f32 %v1863, %v1924
      %v1955 = vadd.f32 %v1864, %v1925
      %s1956 = scalar_lea.vmem %s0, 784
      %v1957 = vld [vmem:[%s1956] sm:$0xff]
      %v1958 = vld [vmem:[%s1956 + $0x8] sm:$0x7f]
      %v1959 = vld [vmem:[%s1956 + $0x10] sm:$0xff]
      %v1960 = vld [vmem:[%s1956 + $0x18] sm:$0x7f]
      %v1961 = vld [vmem:[%s1956 + $0x20] sm:$0xff]
      %v1962 = vld [vmem:[%s1956 + $0x28] sm:$0x7f]
      %v1963 = vld [vmem:[%s1956 + $0x30] sm:$0xff]
      %v1964 = vld [vmem:[%s1956 + $0x38] sm:$0x7f]
      %v1965 = vld [vmem:[%s1956 + $0x40] sm:$0xff]
      %v1966 = vld [vmem:[%s1956 + $0x48] sm:$0x7f]
      %v1967 = vld [vmem:[%s1956 + $0x50] sm:$0xff]
      %v1968 = vld [vmem:[%s1956 + $0x58] sm:$0x7f]
      %v1969 = vld [vmem:[%s1956 + $0x60] sm:$0xff]
      %v1970 = vld [vmem:[%s1956 + $0x68] sm:$0x7f]
      %v1971 = vld [vmem:[%s1956 + $0x70] sm:$0xff]
      %v1972 = vld [vmem:[%s1956 + $0x78] sm:$0x7f]
      %v1973 = vld [vmem:[%s1956 + $0x80] sm:$0xff]
      %v1974 = vld [vmem:[%s1956 + $0x88] sm:$0x7f]
      %v1975 = vld [vmem:[%s1956 + $0x90] sm:$0xff]
      %v1976 = vld [vmem:[%s1956 + $0x98] sm:$0x7f]
      %v1977 = vld [vmem:[%s1956 + $0xa0] sm:$0xff]
      %v1978 = vld [vmem:[%s1956 + $0xa8] sm:$0x7f]
      %v1979 = vld [vmem:[%s1956 + $0xb0] sm:$0xff]
      %v1980 = vld [vmem:[%s1956 + $0xb8] sm:$0x7f]
      %v1981 = vld [vmem:[%s1956 + $0xc0] sm:$0xff]
      %v1982 = vld [vmem:[%s1956 + $0xc8] sm:$0x7f]
      %v1983 = vld [vmem:[%s1956 + $0xd0] sm:$0xff]
      %v1984 = vld [vmem:[%s1956 + $0xd8] sm:$0x7f]
      %v1985 = vld [vmem:[%s1956 + $0xe0] sm:$0xff]
      %v1986 = vld [vmem:[%s1956 + $0xe8] sm:$0x7f]
      %v1987 = vmul.f32 %v1957, %v753
      %v1988 = vmul.f32 %v1958, %v753
      %v1989 = vmul.f32 %v1959, %v753
      %v1990 = vmul.f32 %v1960, %v753
      %v1991 = vmul.f32 %v1961, %v753
      %v1992 = vmul.f32 %v1962, %v753
      %v1993 = vmul.f32 %v1963, %v753
      %v1994 = vmul.f32 %v1964, %v753
      %v1995 = vmul.f32 %v1965, %v753
      %v1996 = vmul.f32 %v1966, %v753
      %v1997 = vmul.f32 %v1967, %v753
      %v1998 = vmul.f32 %v1968, %v753
      %v1999 = vmul.f32 %v1969, %v753
      %v2000 = vmul.f32 %v1970, %v753
      %v2001 = vmul.f32 %v1971, %v753
      %v2002 = vmul.f32 %v1972, %v753
      %v2003 = vmul.f32 %v1973, %v753
      %v2004 = vmul.f32 %v1974, %v753
      %v2005 = vmul.f32 %v1975, %v753
      %v2006 = vmul.f32 %v1976, %v753
      %v2007 = vmul.f32 %v1977, %v753
      %v2008 = vmul.f32 %v1978, %v753
      %v2009 = vmul.f32 %v1979, %v753
      %v2010 = vmul.f32 %v1980, %v753
      %v2011 = vmul.f32 %v1981, %v753
      %v2012 = vmul.f32 %v1982, %v753
      %v2013 = vmul.f32 %v1983, %v753
      %v2014 = vmul.f32 %v1984, %v753
      %v2015 = vmul.f32 %v1985, %v753
      %v2016 = vmul.f32 %v1986, %v753
      %v2017 = vadd.f32 %v1926, %v1987
      %v2018 = vadd.f32 %v1927, %v1988
      %v2019 = vadd.f32 %v1928, %v1989
      %v2020 = vadd.f32 %v1929, %v1990
      %v2021 = vadd.f32 %v1930, %v1991
      %v2022 = vadd.f32 %v1931, %v1992
      %v2023 = vadd.f32 %v1932, %v1993
      %v2024 = vadd.f32 %v1933, %v1994
      %v2025 = vadd.f32 %v1934, %v1995
      %v2026 = vadd.f32 %v1935, %v1996
      %v2027 = vadd.f32 %v1936, %v1997
      %v2028 = vadd.f32 %v1937, %v1998
      %v2029 = vadd.f32 %v1938, %v1999
      %v2030 = vadd.f32 %v1939, %v2000
      %v2031 = vadd.f32 %v1940, %v2001
      %v2032 = vadd.f32 %v1941, %v2002
      %v2033 = vadd.f32 %v1942, %v2003
      %v2034 = vadd.f32 %v1943, %v2004
      %v2035 = vadd.f32 %v1944, %v2005
      %v2036 = vadd.f32 %v1945, %v2006
      %v2037 = vadd.f32 %v1946, %v2007
      %v2038 = vadd.f32 %v1947, %v2008
      %v2039 = vadd.f32 %v1948, %v2009
      %v2040 = vadd.f32 %v1949, %v2010
      %v2041 = vadd.f32 %v1950, %v2011
      %v2042 = vadd.f32 %v1951, %v2012
      %v2043 = vadd.f32 %v1952, %v2013
      %v2044 = vadd.f32 %v1953, %v2014
      %v2045 = vadd.f32 %v1954, %v2015
      %v2046 = vadd.f32 %v1955, %v2016
      %v2047 = vld [vmem:[%s1865 + $0x1] sm:$0xff]
      %v2048 = vld [vmem:[%s1865 + $0x9] sm:$0x7f]
      %v2049 = vld [vmem:[%s1865 + $0x11] sm:$0xff]
      %v2050 = vld [vmem:[%s1865 + $0x19] sm:$0x7f]
      %v2051 = vld [vmem:[%s1865 + $0x21] sm:$0xff]
      %v2052 = vld [vmem:[%s1865 + $0x29] sm:$0x7f]
      %v2053 = vld [vmem:[%s1865 + $0x31] sm:$0xff]
      %v2054 = vld [vmem:[%s1865 + $0x39] sm:$0x7f]
      %v2055 = vld [vmem:[%s1865 + $0x41] sm:$0xff]
      %v2056 = vld [vmem:[%s1865 + $0x49] sm:$0x7f]
      %v2057 = vld [vmem:[%s1865 + $0x51] sm:$0xff]
      %v2058 = vld [vmem:[%s1865 + $0x59] sm:$0x7f]
      %v2059 = vld [vmem:[%s1865 + $0x61] sm:$0xff]
      %v2060 = vld [vmem:[%s1865 + $0x69] sm:$0x7f]
      %v2061 = vld [vmem:[%s1865 + $0x71] sm:$0xff]
      %v2062 = vld [vmem:[%s1865 + $0x79] sm:$0x7f]
      %v2063 = vld [vmem:[%s1865 + $0x81] sm:$0xff]
      %v2064 = vld [vmem:[%s1865 + $0x89] sm:$0x7f]
      %v2065 = vld [vmem:[%s1865 + $0x91] sm:$0xff]
      %v2066 = vld [vmem:[%s1865 + $0x99] sm:$0x7f]
      %v2067 = vld [vmem:[%s1865 + $0xa1] sm:$0xff]
      %v2068 = vld [vmem:[%s1865 + $0xa9] sm:$0x7f]
      %v2069 = vld [vmem:[%s1865 + $0xb1] sm:$0xff]
      %v2070 = vld [vmem:[%s1865 + $0xb9] sm:$0x7f]
      %v2071 = vld [vmem:[%s1865 + $0xc1] sm:$0xff]
      %v2072 = vld [vmem:[%s1865 + $0xc9] sm:$0x7f]
      %v2073 = vld [vmem:[%s1865 + $0xd1] sm:$0xff]
      %v2074 = vld [vmem:[%s1865 + $0xd9] sm:$0x7f]
      %v2075 = vld [vmem:[%s1865 + $0xe1] sm:$0xff]
      %v2076 = vld [vmem:[%s1865 + $0xe9] sm:$0x7f]
      %v2077 = vmul.f32 %v2047, %v844
      %v2078 = vmul.f32 %v2048, %v844
      %v2079 = vmul.f32 %v2049, %v844
      %v2080 = vmul.f32 %v2050, %v844
      %v2081 = vmul.f32 %v2051, %v844
      %v2082 = vmul.f32 %v2052, %v844
      %v2083 = vmul.f32 %v2053, %v844
      %v2084 = vmul.f32 %v2054, %v844
      %v2085 = vmul.f32 %v2055, %v844
      %v2086 = vmul.f32 %v2056, %v844
      %v2087 = vmul.f32 %v2057, %v844
      %v2088 = vmul.f32 %v2058, %v844
      %v2089 = vmul.f32 %v2059, %v844
      %v2090 = vmul.f32 %v2060, %v844
      %v2091 = vmul.f32 %v2061, %v844
      %v2092 = vmul.f32 %v2062, %v844
      %v2093 = vmul.f32 %v2063, %v844
      %v2094 = vmul.f32 %v2064, %v844
      %v2095 = vmul.f32 %v2065, %v844
      %v2096 = vmul.f32 %v2066, %v844
      %v2097 = vmul.f32 %v2067, %v844
      %v2098 = vmul.f32 %v2068, %v844
      %v2099 = vmul.f32 %v2069, %v844
      %v2100 = vmul.f32 %v2070, %v844
      %v2101 = vmul.f32 %v2071, %v844
      %v2102 = vmul.f32 %v2072, %v844
      %v2103 = vmul.f32 %v2073, %v844
      %v2104 = vmul.f32 %v2074, %v844
      %v2105 = vmul.f32 %v2075, %v844
      %v2106 = vmul.f32 %v2076, %v844
      %v2107 = vadd.f32 %v2017, %v2077
      %v2108 = vadd.f32 %v2018, %v2078
      %v2109 = vadd.f32 %v2019, %v2079
      %v2110 = vadd.f32 %v2020, %v2080
      %v2111 = vadd.f32 %v2021, %v2081
      %v2112 = vadd.f32 %v2022, %v2082
      %v2113 = vadd.f32 %v2023, %v2083
      %v2114 = vadd.f32 %v2024, %v2084
      %v2115 = vadd.f32 %v2025, %v2085
      %v2116 = vadd.f32 %v2026, %v2086
      %v2117 = vadd.f32 %v2027, %v2087
      %v2118 = vadd.f32 %v2028, %v2088
      %v2119 = vadd.f32 %v2029, %v2089
      %v2120 = vadd.f32 %v2030, %v2090
      %v2121 = vadd.f32 %v2031, %v2091
      %v2122 = vadd.f32 %v2032, %v2092
      %v2123 = vadd.f32 %v2033, %v2093
      %v2124 = vadd.f32 %v2034, %v2094
      %v2125 = vadd.f32 %v2035, %v2095
      %v2126 = vadd.f32 %v2036, %v2096
      %v2127 = vadd.f32 %v2037, %v2097
      %v2128 = vadd.f32 %v2038, %v2098
      %v2129 = vadd.f32 %v2039, %v2099
      %v2130 = vadd.f32 %v2040, %v2100
      %v2131 = vadd.f32 %v2041, %v2101
      %v2132 = vadd.f32 %v2042, %v2102
      %v2133 = vadd.f32 %v2043, %v2103
      %v2134 = vadd.f32 %v2044, %v2104
      %v2135 = vadd.f32 %v2045, %v2105
      %v2136 = vadd.f32 %v2046, %v2106
      %v2137 = vmax.f32 %v1505, %v2107
      %v2138 = vmax.f32 %v1506, %v2108
      %v2139 = vmax.f32 %v1507, %v2109
      %v2140 = vmax.f32 %v1508, %v2110
      %v2141 = vmax.f32 %v1509, %v2111
      %v2142 = vmax.f32 %v1510, %v2112
      %v2143 = vmax.f32 %v1511, %v2113
      %v2144 = vmax.f32 %v1512, %v2114
      %v2145 = vmax.f32 %v1513, %v2115
      %v2146 = vmax.f32 %v1514, %v2116
      %v2147 = vmax.f32 %v1515, %v2117
      %v2148 = vmax.f32 %v1516, %v2118
      %v2149 = vmax.f32 %v1517, %v2119
      %v2150 = vmax.f32 %v1518, %v2120
      %v2151 = vmax.f32 %v1519, %v2121
      %v2152 = vmax.f32 %v1520, %v2122
      %v2153 = vmax.f32 %v1521, %v2123
      %v2154 = vmax.f32 %v1522, %v2124
      %v2155 = vmax.f32 %v1523, %v2125
      %v2156 = vmax.f32 %v1524, %v2126
      %v2157 = vmax.f32 %v1525, %v2127
      %v2158 = vmax.f32 %v1526, %v2128
      %v2159 = vmax.f32 %v1527, %v2129
      %v2160 = vmax.f32 %v1528, %v2130
      %v2161 = vmax.f32 %v1529, %v2131
      %v2162 = vmax.f32 %v1530, %v2132
      %v2163 = vmax.f32 %v1531, %v2133
      %v2164 = vmax.f32 %v1532, %v2134
      %v2165 = vmax.f32 %v1533, %v2135
      %v2166 = vmax.f32 %v1534, %v2136
      %v2167 = vmul.f32 %v448, %v141
      %v2168 = vmul.f32 %v449, %v141
      %v2169 = vmul.f32 %v450, %v141
      %v2170 = vmul.f32 %v451, %v141
      %v2171 = vmul.f32 %v452, %v141
      %v2172 = vmul.f32 %v453, %v141
      %v2173 = vmul.f32 %v454, %v141
      %v2174 = vmul.f32 %v455, %v141
      %v2175 = vmul.f32 %v456, %v141
      %v2176 = vmul.f32 %v457, %v141
      %v2177 = vmul.f32 %v458, %v141
      %v2178 = vmul.f32 %v459, %v141
      %v2179 = vmul.f32 %v460, %v141
      %v2180 = vmul.f32 %v461, %v141
      %v2181 = vmul.f32 %v462, %v141
      %v2182 = vmul.f32 %v463, %v141
      %v2183 = vmul.f32 %v464, %v141
      %v2184 = vmul.f32 %v465, %v141
      %v2185 = vmul.f32 %v466, %v141
      %v2186 = vmul.f32 %v467, %v141
      %v2187 = vmul.f32 %v468, %v141
      %v2188 = vmul.f32 %v469, %v141
      %v2189 = vmul.f32 %v470, %v141
      %v2190 = vmul.f32 %v471, %v141
      %v2191 = vmul.f32 %v472, %v141
      %v2192 = vmul.f32 %v473, %v141
      %v2193 = vmul.f32 %v474, %v141
      %v2194 = vmul.f32 %v475, %v141
      %v2195 = vmul.f32 %v476, %v141
      %v2196 = vmul.f32 %v477, %v141
      %v2197 = vmul.f32 %v539, %v203
      %v2198 = vmul.f32 %v540, %v203
      %v2199 = vmul.f32 %v541, %v203
      %v2200 = vmul.f32 %v542, %v203
      %v2201 = vmul.f32 %v543, %v203
      %v2202 = vmul.f32 %v544, %v203
      %v2203 = vmul.f32 %v545, %v203
      %v2204 = vmul.f32 %v546, %v203
      %v2205 = vmul.f32 %v547, %v203
      %v2206 = vmul.f32 %v548, %v203
      %v2207 = vmul.f32 %v549, %v203
      %v2208 = vmul.f32 %v550, %v203
      %v2209 = vmul.f32 %v551, %v203
      %v2210 = vmul.f32 %v552, %v203
      %v2211 = vmul.f32 %v553, %v203
      %v2212 = vmul.f32 %v554, %v203
      %v2213 = vmul.f32 %v555, %v203
      %v2214 = vmul.f32 %v556, %v203
      %v2215 = vmul.f32 %v557, %v203
      %v2216 = vmul.f32 %v558, %v203
      %v2217 = vmul.f32 %v559, %v203
      %v2218 = vmul.f32 %v560, %v203
      %v2219 = vmul.f32 %v561, %v203
      %v2220 = vmul.f32 %v562, %v203
      %v2221 = vmul.f32 %v563, %v203
      %v2222 = vmul.f32 %v564, %v203
      %v2223 = vmul.f32 %v565, %v203
      %v2224 = vmul.f32 %v566, %v203
      %v2225 = vmul.f32 %v567, %v203
      %v2226 = vmul.f32 %v568, %v203
      %v2227 = vadd.f32 %v2167, %v2197
      %v2228 = vadd.f32 %v2168, %v2198
      %v2229 = vadd.f32 %v2169, %v2199
      %v2230 = vadd.f32 %v2170, %v2200
      %v2231 = vadd.f32 %v2171, %v2201
      %v2232 = vadd.f32 %v2172, %v2202
      %v2233 = vadd.f32 %v2173, %v2203
      %v2234 = vadd.f32 %v2174, %v2204
      %v2235 = vadd.f32 %v2175, %v2205
      %v2236 = vadd.f32 %v2176, %v2206
      %v2237 = vadd.f32 %v2177, %v2207
      %v2238 = vadd.f32 %v2178, %v2208
      %v2239 = vadd.f32 %v2179, %v2209
      %v2240 = vadd.f32 %v2180, %v2210
      %v2241 = vadd.f32 %v2181, %v2211
      %v2242 = vadd.f32 %v2182, %v2212
      %v2243 = vadd.f32 %v2183, %v2213
      %v2244 = vadd.f32 %v2184, %v2214
      %v2245 = vadd.f32 %v2185, %v2215
      %v2246 = vadd.f32 %v2186, %v2216
      %v2247 = vadd.f32 %v2187, %v2217
      %v2248 = vadd.f32 %v2188, %v2218
      %v2249 = vadd.f32 %v2189, %v2219
      %v2250 = vadd.f32 %v2190, %v2220
      %v2251 = vadd.f32 %v2191, %v2221
      %v2252 = vadd.f32 %v2192, %v2222
      %v2253 = vadd.f32 %v2193, %v2223
      %v2254 = vadd.f32 %v2194, %v2224
      %v2255 = vadd.f32 %v2195, %v2225
      %v2256 = vadd.f32 %v2196, %v2226
      %v2257 = vmul.f32 %v1205, %v294
      %v2258 = vmul.f32 %v1206, %v294
      %v2259 = vmul.f32 %v1207, %v294
      %v2260 = vmul.f32 %v1208, %v294
      %v2261 = vmul.f32 %v1209, %v294
      %v2262 = vmul.f32 %v1210, %v294
      %v2263 = vmul.f32 %v1211, %v294
      %v2264 = vmul.f32 %v1212, %v294
      %v2265 = vmul.f32 %v1213, %v294
      %v2266 = vmul.f32 %v1214, %v294
      %v2267 = vmul.f32 %v1215, %v294
      %v2268 = vmul.f32 %v1216, %v294
      %v2269 = vmul.f32 %v1217, %v294
      %v2270 = vmul.f32 %v1218, %v294
      %v2271 = vmul.f32 %v1219, %v294
      %v2272 = vmul.f32 %v1220, %v294
      %v2273 = vmul.f32 %v1221, %v294
      %v2274 = vmul.f32 %v1222, %v294
      %v2275 = vmul.f32 %v1223, %v294
      %v2276 = vmul.f32 %v1224, %v294
      %v2277 = vmul.f32 %v1225, %v294
      %v2278 = vmul.f32 %v1226, %v294
      %v2279 = vmul.f32 %v1227, %v294
      %v2280 = vmul.f32 %v1228, %v294
      %v2281 = vmul.f32 %v1229, %v294
      %v2282 = vmul.f32 %v1230, %v294
      %v2283 = vmul.f32 %v1231, %v294
      %v2284 = vmul.f32 %v1232, %v294
      %v2285 = vmul.f32 %v1233, %v294
      %v2286 = vmul.f32 %v1234, %v294
      %v2287 = vadd.f32 %v2227, %v2257
      %v2288 = vadd.f32 %v2228, %v2258
      %v2289 = vadd.f32 %v2229, %v2259
      %v2290 = vadd.f32 %v2230, %v2260
      %v2291 = vadd.f32 %v2231, %v2261
      %v2292 = vadd.f32 %v2232, %v2262
      %v2293 = vadd.f32 %v2233, %v2263
      %v2294 = vadd.f32 %v2234, %v2264
      %v2295 = vadd.f32 %v2235, %v2265
      %v2296 = vadd.f32 %v2236, %v2266
      %v2297 = vadd.f32 %v2237, %v2267
      %v2298 = vadd.f32 %v2238, %v2268
      %v2299 = vadd.f32 %v2239, %v2269
      %v2300 = vadd.f32 %v2240, %v2270
      %v2301 = vadd.f32 %v2241, %v2271
      %v2302 = vadd.f32 %v2242, %v2272
      %v2303 = vadd.f32 %v2243, %v2273
      %v2304 = vadd.f32 %v2244, %v2274
      %v2305 = vadd.f32 %v2245, %v2275
      %v2306 = vadd.f32 %v2246, %v2276
      %v2307 = vadd.f32 %v2247, %v2277
      %v2308 = vadd.f32 %v2248, %v2278
      %v2309 = vadd.f32 %v2249, %v2279
      %v2310 = vadd.f32 %v2250, %v2280
      %v2311 = vadd.f32 %v2251, %v2281
      %v2312 = vadd.f32 %v2252, %v2282
      %v2313 = vadd.f32 %v2253, %v2283
      %v2314 = vadd.f32 %v2254, %v2284
      %v2315 = vadd.f32 %v2255, %v2285
      %v2316 = vadd.f32 %v2256, %v2286
      %v2317 = vmul.f32 %v723, %v386
      %v2318 = vmul.f32 %v724, %v386
      %v2319 = vmul.f32 %v725, %v386
      %v2320 = vmul.f32 %v726, %v386
      %v2321 = vmul.f32 %v727, %v386
      %v2322 = vmul.f32 %v728, %v386
      %v2323 = vmul.f32 %v729, %v386
      %v2324 = vmul.f32 %v730, %v386
      %v2325 = vmul.f32 %v731, %v386
      %v2326 = vmul.f32 %v732, %v386
      %v2327 = vmul.f32 %v733, %v386
      %v2328 = vmul.f32 %v734, %v386
      %v2329 = vmul.f32 %v735, %v386
      %v2330 = vmul.f32 %v736, %v386
      %v2331 = vmul.f32 %v737, %v386
      %v2332 = vmul.f32 %v738, %v386
      %v2333 = vmul.f32 %v739, %v386
      %v2334 = vmul.f32 %v740, %v386
      %v2335 = vmul.f32 %v741, %v386
      %v2336 = vmul.f32 %v742, %v386
      %v2337 = vmul.f32 %v743, %v386
      %v2338 = vmul.f32 %v744, %v386
      %v2339 = vmul.f32 %v745, %v386
      %v2340 = vmul.f32 %v746, %v386
      %v2341 = vmul.f32 %v747, %v386
      %v2342 = vmul.f32 %v748, %v386
      %v2343 = vmul.f32 %v749, %v386
      %v2344 = vmul.f32 %v750, %v386
      %v2345 = vmul.f32 %v751, %v386
      %v2346 = vmul.f32 %v752, %v386
      %v2347 = vadd.f32 %v2287, %v2317
      %v2348 = vadd.f32 %v2288, %v2318
      %v2349 = vadd.f32 %v2289, %v2319
      %v2350 = vadd.f32 %v2290, %v2320
      %v2351 = vadd.f32 %v2291, %v2321
      %v2352 = vadd.f32 %v2292, %v2322
      %v2353 = vadd.f32 %v2293, %v2323
      %v2354 = vadd.f32 %v2294, %v2324
      %v2355 = vadd.f32 %v2295, %v2325
      %v2356 = vadd.f32 %v2296, %v2326
      %v2357 = vadd.f32 %v2297, %v2327
      %v2358 = vadd.f32 %v2298, %v2328
      %v2359 = vadd.f32 %v2299, %v2329
      %v2360 = vadd.f32 %v2300, %v2330
      %v2361 = vadd.f32 %v2301, %v2331
      %v2362 = vadd.f32 %v2302, %v2332
      %v2363 = vadd.f32 %v2303, %v2333
      %v2364 = vadd.f32 %v2304, %v2334
      %v2365 = vadd.f32 %v2305, %v2335
      %v2366 = vadd.f32 %v2306, %v2336
      %v2367 = vadd.f32 %v2307, %v2337
      %v2368 = vadd.f32 %v2308, %v2338
      %v2369 = vadd.f32 %v2309, %v2339
      %v2370 = vadd.f32 %v2310, %v2340
      %v2371 = vadd.f32 %v2311, %v2341
      %v2372 = vadd.f32 %v2312, %v2342
      %v2373 = vadd.f32 %v2313, %v2343
      %v2374 = vadd.f32 %v2314, %v2344
      %v2375 = vadd.f32 %v2315, %v2345
      %v2376 = vadd.f32 %v2316, %v2346
      %v2377 = vmul.f32 %v814, %v478
      %v2378 = vmul.f32 %v815, %v478
      %v2379 = vmul.f32 %v816, %v478
      %v2380 = vmul.f32 %v817, %v478
      %v2381 = vmul.f32 %v818, %v478
      %v2382 = vmul.f32 %v819, %v478
      %v2383 = vmul.f32 %v820, %v478
      %v2384 = vmul.f32 %v821, %v478
      %v2385 = vmul.f32 %v822, %v478
      %v2386 = vmul.f32 %v823, %v478
      %v2387 = vmul.f32 %v824, %v478
      %v2388 = vmul.f32 %v825, %v478
      %v2389 = vmul.f32 %v826, %v478
      %v2390 = vmul.f32 %v827, %v478
      %v2391 = vmul.f32 %v828, %v478
      %v2392 = vmul.f32 %v829, %v478
      %v2393 = vmul.f32 %v830, %v478
      %v2394 = vmul.f32 %v831, %v478
      %v2395 = vmul.f32 %v832, %v478
      %v2396 = vmul.f32 %v833, %v478
      %v2397 = vmul.f32 %v834, %v478
      %v2398 = vmul.f32 %v835, %v478
      %v2399 = vmul.f32 %v836, %v478
      %v2400 = vmul.f32 %v837, %v478
      %v2401 = vmul.f32 %v838, %v478
      %v2402 = vmul.f32 %v839, %v478
      %v2403 = vmul.f32 %v840, %v478
      %v2404 = vmul.f32 %v841, %v478
      %v2405 = vmul.f32 %v842, %v478
      %v2406 = vmul.f32 %v843, %v478
      %v2407 = vadd.f32 %v2347, %v2377
      %v2408 = vadd.f32 %v2348, %v2378
      %v2409 = vadd.f32 %v2349, %v2379
      %v2410 = vadd.f32 %v2350, %v2380
      %v2411 = vadd.f32 %v2351, %v2381
      %v2412 = vadd.f32 %v2352, %v2382
      %v2413 = vadd.f32 %v2353, %v2383
      %v2414 = vadd.f32 %v2354, %v2384
      %v2415 = vadd.f32 %v2355, %v2385
      %v2416 = vadd.f32 %v2356, %v2386
      %v2417 = vadd.f32 %v2357, %v2387
      %v2418 = vadd.f32 %v2358, %v2388
      %v2419 = vadd.f32 %v2359, %v2389
      %v2420 = vadd.f32 %v2360, %v2390
      %v2421 = vadd.f32 %v2361, %v2391
      %v2422 = vadd.f32 %v2362, %v2392
      %v2423 = vadd.f32 %v2363, %v2393
      %v2424 = vadd.f32 %v2364, %v2394
      %v2425 = vadd.f32 %v2365, %v2395
      %v2426 = vadd.f32 %v2366, %v2396
      %v2427 = vadd.f32 %v2367, %v2397
      %v2428 = vadd.f32 %v2368, %v2398
      %v2429 = vadd.f32 %v2369, %v2399
      %v2430 = vadd.f32 %v2370, %v2400
      %v2431 = vadd.f32 %v2371, %v2401
      %v2432 = vadd.f32 %v2372, %v2402
      %v2433 = vadd.f32 %v2373, %v2403
      %v2434 = vadd.f32 %v2374, %v2404
      %v2435 = vadd.f32 %v2375, %v2405
      %v2436 = vadd.f32 %v2376, %v2406
      %v2437 = vmul.f32 %v1415, %v569
      %v2438 = vmul.f32 %v1416, %v569
      %v2439 = vmul.f32 %v1417, %v569
      %v2440 = vmul.f32 %v1418, %v569
      %v2441 = vmul.f32 %v1419, %v569
      %v2442 = vmul.f32 %v1420, %v569
      %v2443 = vmul.f32 %v1421, %v569
      %v2444 = vmul.f32 %v1422, %v569
      %v2445 = vmul.f32 %v1423, %v569
      %v2446 = vmul.f32 %v1424, %v569
      %v2447 = vmul.f32 %v1425, %v569
      %v2448 = vmul.f32 %v1426, %v569
      %v2449 = vmul.f32 %v1427, %v569
      %v2450 = vmul.f32 %v1428, %v569
      %v2451 = vmul.f32 %v1429, %v569
      %v2452 = vmul.f32 %v1430, %v569
      %v2453 = vmul.f32 %v1431, %v569
      %v2454 = vmul.f32 %v1432, %v569
      %v2455 = vmul.f32 %v1433, %v569
      %v2456 = vmul.f32 %v1434, %v569
      %v2457 = vmul.f32 %v1435, %v569
      %v2458 = vmul.f32 %v1436, %v569
      %v2459 = vmul.f32 %v1437, %v569
      %v2460 = vmul.f32 %v1438, %v569
      %v2461 = vmul.f32 %v1439, %v569
      %v2462 = vmul.f32 %v1440, %v569
      %v2463 = vmul.f32 %v1441, %v569
      %v2464 = vmul.f32 %v1442, %v569
      %v2465 = vmul.f32 %v1443, %v569
      %v2466 = vmul.f32 %v1444, %v569
      %v2467 = vadd.f32 %v2407, %v2437
      %v2468 = vadd.f32 %v2408, %v2438
      %v2469 = vadd.f32 %v2409, %v2439
      %v2470 = vadd.f32 %v2410, %v2440
      %v2471 = vadd.f32 %v2411, %v2441
      %v2472 = vadd.f32 %v2412, %v2442
      %v2473 = vadd.f32 %v2413, %v2443
      %v2474 = vadd.f32 %v2414, %v2444
      %v2475 = vadd.f32 %v2415, %v2445
      %v2476 = vadd.f32 %v2416, %v2446
      %v2477 = vadd.f32 %v2417, %v2447
      %v2478 = vadd.f32 %v2418, %v2448
      %v2479 = vadd.f32 %v2419, %v2449
      %v2480 = vadd.f32 %v2420, %v2450
      %v2481 = vadd.f32 %v2421, %v2451
      %v2482 = vadd.f32 %v2422, %v2452
      %v2483 = vadd.f32 %v2423, %v2453
      %v2484 = vadd.f32 %v2424, %v2454
      %v2485 = vadd.f32 %v2425, %v2455
      %v2486 = vadd.f32 %v2426, %v2456
      %v2487 = vadd.f32 %v2427, %v2457
      %v2488 = vadd.f32 %v2428, %v2458
      %v2489 = vadd.f32 %v2429, %v2459
      %v2490 = vadd.f32 %v2430, %v2460
      %v2491 = vadd.f32 %v2431, %v2461
      %v2492 = vadd.f32 %v2432, %v2462
      %v2493 = vadd.f32 %v2433, %v2463
      %v2494 = vadd.f32 %v2434, %v2464
      %v2495 = vadd.f32 %v2435, %v2465
      %v2496 = vadd.f32 %v2436, %v2466
      %v2497 = vmul.f32 %v1957, %v661
      %v2498 = vmul.f32 %v1958, %v661
      %v2499 = vmul.f32 %v1959, %v661
      %v2500 = vmul.f32 %v1960, %v661
      %v2501 = vmul.f32 %v1961, %v661
      %v2502 = vmul.f32 %v1962, %v661
      %v2503 = vmul.f32 %v1963, %v661
      %v2504 = vmul.f32 %v1964, %v661
      %v2505 = vmul.f32 %v1965, %v661
      %v2506 = vmul.f32 %v1966, %v661
      %v2507 = vmul.f32 %v1967, %v661
      %v2508 = vmul.f32 %v1968, %v661
      %v2509 = vmul.f32 %v1969, %v661
      %v2510 = vmul.f32 %v1970, %v661
      %v2511 = vmul.f32 %v1971, %v661
      %v2512 = vmul.f32 %v1972, %v661
      %v2513 = vmul.f32 %v1973, %v661
      %v2514 = vmul.f32 %v1974, %v661
      %v2515 = vmul.f32 %v1975, %v661
      %v2516 = vmul.f32 %v1976, %v661
      %v2517 = vmul.f32 %v1977, %v661
      %v2518 = vmul.f32 %v1978, %v661
      %v2519 = vmul.f32 %v1979, %v661
      %v2520 = vmul.f32 %v1980, %v661
      %v2521 = vmul.f32 %v1981, %v661
      %v2522 = vmul.f32 %v1982, %v661
      %v2523 = vmul.f32 %v1983, %v661
      %v2524 = vmul.f32 %v1984, %v661
      %v2525 = vmul.f32 %v1985, %v661
      %v2526 = vmul.f32 %v1986, %v661
      %v2527 = vadd.f32 %v2467, %v2497
      %v2528 = vadd.f32 %v2468, %v2498
      %v2529 = vadd.f32 %v2469, %v2499
      %v2530 = vadd.f32 %v2470, %v2500
      %v2531 = vadd.f32 %v2471, %v2501
      %v2532 = vadd.f32 %v2472, %v2502
      %v2533 = vadd.f32 %v2473, %v2503
      %v2534 = vadd.f32 %v2474, %v2504
      %v2535 = vadd.f32 %v2475, %v2505
      %v2536 = vadd.f32 %v2476, %v2506
      %v2537 = vadd.f32 %v2477, %v2507
      %v2538 = vadd.f32 %v2478, %v2508
      %v2539 = vadd.f32 %v2479, %v2509
      %v2540 = vadd.f32 %v2480, %v2510
      %v2541 = vadd.f32 %v2481, %v2511
      %v2542 = vadd.f32 %v2482, %v2512
      %v2543 = vadd.f32 %v2483, %v2513
      %v2544 = vadd.f32 %v2484, %v2514
      %v2545 = vadd.f32 %v2485, %v2515
      %v2546 = vadd.f32 %v2486, %v2516
      %v2547 = vadd.f32 %v2487, %v2517
      %v2548 = vadd.f32 %v2488, %v2518
      %v2549 = vadd.f32 %v2489, %v2519
      %v2550 = vadd.f32 %v2490, %v2520
      %v2551 = vadd.f32 %v2491, %v2521
      %v2552 = vadd.f32 %v2492, %v2522
      %v2553 = vadd.f32 %v2493, %v2523
      %v2554 = vadd.f32 %v2494, %v2524
      %v2555 = vadd.f32 %v2495, %v2525
      %v2556 = vadd.f32 %v2496, %v2526
      %v2557 = vmul.f32 %v2047, %v753
      %v2558 = vmul.f32 %v2048, %v753
      %v2559 = vmul.f32 %v2049, %v753
      %v2560 = vmul.f32 %v2050, %v753
      %v2561 = vmul.f32 %v2051, %v753
      %v2562 = vmul.f32 %v2052, %v753
      %v2563 = vmul.f32 %v2053, %v753
      %v2564 = vmul.f32 %v2054, %v753
      %v2565 = vmul.f32 %v2055, %v753
      %v2566 = vmul.f32 %v2056, %v753
      %v2567 = vmul.f32 %v2057, %v753
      %v2568 = vmul.f32 %v2058, %v753
      %v2569 = vmul.f32 %v2059, %v753
      %v2570 = vmul.f32 %v2060, %v753
      %v2571 = vmul.f32 %v2061, %v753
      %v2572 = vmul.f32 %v2062, %v753
      %v2573 = vmul.f32 %v2063, %v753
      %v2574 = vmul.f32 %v2064, %v753
      %v2575 = vmul.f32 %v2065, %v753
      %v2576 = vmul.f32 %v2066, %v753
      %v2577 = vmul.f32 %v2067, %v753
      %v2578 = vmul.f32 %v2068, %v753
      %v2579 = vmul.f32 %v2069, %v753
      %v2580 = vmul.f32 %v2070, %v753
      %v2581 = vmul.f32 %v2071, %v753
      %v2582 = vmul.f32 %v2072, %v753
      %v2583 = vmul.f32 %v2073, %v753
      %v2584 = vmul.f32 %v2074, %v753
      %v2585 = vmul.f32 %v2075, %v753
      %v2586 = vmul.f32 %v2076, %v753
      %v2587 = vadd.f32 %v2527, %v2557
      %v2588 = vadd.f32 %v2528, %v2558
      %v2589 = vadd.f32 %v2529, %v2559
      %v2590 = vadd.f32 %v2530, %v2560
      %v2591 = vadd.f32 %v2531, %v2561
      %v2592 = vadd.f32 %v2532, %v2562
      %v2593 = vadd.f32 %v2533, %v2563
      %v2594 = vadd.f32 %v2534, %v2564
      %v2595 = vadd.f32 %v2535, %v2565
      %v2596 = vadd.f32 %v2536, %v2566
      %v2597 = vadd.f32 %v2537, %v2567
      %v2598 = vadd.f32 %v2538, %v2568
      %v2599 = vadd.f32 %v2539, %v2569
      %v2600 = vadd.f32 %v2540, %v2570
      %v2601 = vadd.f32 %v2541, %v2571
      %v2602 = vadd.f32 %v2542, %v2572
      %v2603 = vadd.f32 %v2543, %v2573
      %v2604 = vadd.f32 %v2544, %v2574
      %v2605 = vadd.f32 %v2545, %v2575
      %v2606 = vadd.f32 %v2546, %v2576
      %v2607 = vadd.f32 %v2547, %v2577
      %v2608 = vadd.f32 %v2548, %v2578
      %v2609 = vadd.f32 %v2549, %v2579
      %v2610 = vadd.f32 %v2550, %v2580
      %v2611 = vadd.f32 %v2551, %v2581
      %v2612 = vadd.f32 %v2552, %v2582
      %v2613 = vadd.f32 %v2553, %v2583
      %v2614 = vadd.f32 %v2554, %v2584
      %v2615 = vadd.f32 %v2555, %v2585
      %v2616 = vadd.f32 %v2556, %v2586
      %v2617 = vld [vmem:[%s1956 + $0x1] sm:$0xff]
      %v2618 = vld [vmem:[%s1956 + $0x9] sm:$0x7f]
      %v2619 = vld [vmem:[%s1956 + $0x11] sm:$0xff]
      %v2620 = vld [vmem:[%s1956 + $0x19] sm:$0x7f]
      %v2621 = vld [vmem:[%s1956 + $0x21] sm:$0xff]
      %v2622 = vld [vmem:[%s1956 + $0x29] sm:$0x7f]
      %v2623 = vld [vmem:[%s1956 + $0x31] sm:$0xff]
      %v2624 = vld [vmem:[%s1956 + $0x39] sm:$0x7f]
      %v2625 = vld [vmem:[%s1956 + $0x41] sm:$0xff]
      %v2626 = vld [vmem:[%s1956 + $0x49] sm:$0x7f]
      %v2627 = vld [vmem:[%s1956 + $0x51] sm:$0xff]
      %v2628 = vld [vmem:[%s1956 + $0x59] sm:$0x7f]
      %v2629 = vld [vmem:[%s1956 + $0x61] sm:$0xff]
      %v2630 = vld [vmem:[%s1956 + $0x69] sm:$0x7f]
      %v2631 = vld [vmem:[%s1956 + $0x71] sm:$0xff]
      %v2632 = vld [vmem:[%s1956 + $0x79] sm:$0x7f]
      %v2633 = vld [vmem:[%s1956 + $0x81] sm:$0xff]
      %v2634 = vld [vmem:[%s1956 + $0x89] sm:$0x7f]
      %v2635 = vld [vmem:[%s1956 + $0x91] sm:$0xff]
      %v2636 = vld [vmem:[%s1956 + $0x99] sm:$0x7f]
      %v2637 = vld [vmem:[%s1956 + $0xa1] sm:$0xff]
      %v2638 = vld [vmem:[%s1956 + $0xa9] sm:$0x7f]
      %v2639 = vld [vmem:[%s1956 + $0xb1] sm:$0xff]
      %v2640 = vld [vmem:[%s1956 + $0xb9] sm:$0x7f]
      %v2641 = vld [vmem:[%s1956 + $0xc1] sm:$0xff]
      %v2642 = vld [vmem:[%s1956 + $0xc9] sm:$0x7f]
      %v2643 = vld [vmem:[%s1956 + $0xd1] sm:$0xff]
      %v2644 = vld [vmem:[%s1956 + $0xd9] sm:$0x7f]
      %v2645 = vld [vmem:[%s1956 + $0xe1] sm:$0xff]
      %v2646 = vld [vmem:[%s1956 + $0xe9] sm:$0x7f]
      %v2647 = vmul.f32 %v2617, %v844
      %v2648 = vmul.f32 %v2618, %v844
      %v2649 = vmul.f32 %v2619, %v844
      %v2650 = vmul.f32 %v2620, %v844
      %v2651 = vmul.f32 %v2621, %v844
      %v2652 = vmul.f32 %v2622, %v844
      %v2653 = vmul.f32 %v2623, %v844
      %v2654 = vmul.f32 %v2624, %v844
      %v2655 = vmul.f32 %v2625, %v844
      %v2656 = vmul.f32 %v2626, %v844
      %v2657 = vmul.f32 %v2627, %v844
      %v2658 = vmul.f32 %v2628, %v844
      %v2659 = vmul.f32 %v2629, %v844
      %v2660 = vmul.f32 %v2630, %v844
      %v2661 = vmul.f32 %v2631, %v844
      %v2662 = vmul.f32 %v2632, %v844
      %v2663 = vmul.f32 %v2633, %v844
      %v2664 = vmul.f32 %v2634, %v844
      %v2665 = vmul.f32 %v2635, %v844
      %v2666 = vmul.f32 %v2636, %v844
      %v2667 = vmul.f32 %v2637, %v844
      %v2668 = vmul.f32 %v2638, %v844
      %v2669 = vmul.f32 %v2639, %v844
      %v2670 = vmul.f32 %v2640, %v844
      %v2671 = vmul.f32 %v2641, %v844
      %v2672 = vmul.f32 %v2642, %v844
      %v2673 = vmul.f32 %v2643, %v844
      %v2674 = vmul.f32 %v2644, %v844
      %v2675 = vmul.f32 %v2645, %v844
      %v2676 = vmul.f32 %v2646, %v844
      %v2677 = vadd.f32 %v2587, %v2647
      %v2678 = vadd.f32 %v2588, %v2648
      %v2679 = vadd.f32 %v2589, %v2649
      %v2680 = vadd.f32 %v2590, %v2650
      %v2681 = vadd.f32 %v2591, %v2651
      %v2682 = vadd.f32 %v2592, %v2652
      %v2683 = vadd.f32 %v2593, %v2653
      %v2684 = vadd.f32 %v2594, %v2654
      %v2685 = vadd.f32 %v2595, %v2655
      %v2686 = vadd.f32 %v2596, %v2656
      %v2687 = vadd.f32 %v2597, %v2657
      %v2688 = vadd.f32 %v2598, %v2658
      %v2689 = vadd.f32 %v2599, %v2659
      %v2690 = vadd.f32 %v2600, %v2660
      %v2691 = vadd.f32 %v2601, %v2661
      %v2692 = vadd.f32 %v2602, %v2662
      %v2693 = vadd.f32 %v2603, %v2663
      %v2694 = vadd.f32 %v2604, %v2664
      %v2695 = vadd.f32 %v2605, %v2665
      %v2696 = vadd.f32 %v2606, %v2666
      %v2697 = vadd.f32 %v2607, %v2667
      %v2698 = vadd.f32 %v2608, %v2668
      %v2699 = vadd.f32 %v2609, %v2669
      %v2700 = vadd.f32 %v2610, %v2670
      %v2701 = vadd.f32 %v2611, %v2671
      %v2702 = vadd.f32 %v2612, %v2672
      %v2703 = vadd.f32 %v2613, %v2673
      %v2704 = vadd.f32 %v2614, %v2674
      %v2705 = vadd.f32 %v2615, %v2675
      %v2706 = vadd.f32 %v2616, %v2676
      %v2707 = vmax.f32 %v2137, %v2677
      %v2708 = vmax.f32 %v2138, %v2678
      %v2709 = vmax.f32 %v2139, %v2679
      %v2710 = vmax.f32 %v2140, %v2680
      %v2711 = vmax.f32 %v2141, %v2681
      %v2712 = vmax.f32 %v2142, %v2682
      %v2713 = vmax.f32 %v2143, %v2683
      %v2714 = vmax.f32 %v2144, %v2684
      %v2715 = vmax.f32 %v2145, %v2685
      %v2716 = vmax.f32 %v2146, %v2686
      %v2717 = vmax.f32 %v2147, %v2687
      %v2718 = vmax.f32 %v2148, %v2688
      %v2719 = vmax.f32 %v2149, %v2689
      %v2720 = vmax.f32 %v2150, %v2690
      %v2721 = vmax.f32 %v2151, %v2691
      %v2722 = vmax.f32 %v2152, %v2692
      %v2723 = vmax.f32 %v2153, %v2693
      %v2724 = vmax.f32 %v2154, %v2694
      %v2725 = vmax.f32 %v2155, %v2695
      %v2726 = vmax.f32 %v2156, %v2696
      %v2727 = vmax.f32 %v2157, %v2697
      %v2728 = vmax.f32 %v2158, %v2698
      %v2729 = vmax.f32 %v2159, %v2699
      %v2730 = vmax.f32 %v2160, %v2700
      %v2731 = vmax.f32 %v2161, %v2701
      %v2732 = vmax.f32 %v2162, %v2702
      %v2733 = vmax.f32 %v2163, %v2703
      %v2734 = vmax.f32 %v2164, %v2704
      %v2735 = vmax.f32 %v2165, %v2705
      %v2736 = vmax.f32 %v2166, %v2706
      %s2737 = sld [smem:[#allocation6 + %s88]]
      %v2738 = vstv %s2737
      %v2739 = vadd.f32 %v2707, %v2738
      %v2740 = vadd.f32 %v2708, %v2738
      %v2741 = vadd.f32 %v2709, %v2738
      %v2742 = vadd.f32 %v2710, %v2738
      %v2743 = vadd.f32 %v2711, %v2738
      %v2744 = vadd.f32 %v2712, %v2738
      %v2745 = vadd.f32 %v2713, %v2738
      %v2746 = vadd.f32 %v2714, %v2738
      %v2747 = vadd.f32 %v2715, %v2738
      %v2748 = vadd.f32 %v2716, %v2738
      %v2749 = vadd.f32 %v2717, %v2738
      %v2750 = vadd.f32 %v2718, %v2738
      %v2751 = vadd.f32 %v2719, %v2738
      %v2752 = vadd.f32 %v2720, %v2738
      %v2753 = vadd.f32 %v2721, %v2738
      %v2754 = vadd.f32 %v2722, %v2738
      %v2755 = vadd.f32 %v2723, %v2738
      %v2756 = vadd.f32 %v2724, %v2738
      %v2757 = vadd.f32 %v2725, %v2738
      %v2758 = vadd.f32 %v2726, %v2738
      %v2759 = vadd.f32 %v2727, %v2738
      %v2760 = vadd.f32 %v2728, %v2738
      %v2761 = vadd.f32 %v2729, %v2738
      %v2762 = vadd.f32 %v2730, %v2738
      %v2763 = vadd.f32 %v2731, %v2738
      %v2764 = vadd.f32 %v2732, %v2738
      %v2765 = vadd.f32 %v2733, %v2738
      %v2766 = vadd.f32 %v2734, %v2738
      %v2767 = vadd.f32 %v2735, %v2738
      %v2768 = vadd.f32 %v2736, %v2738
      %v2769 = vmax.f32 %v2739, 0.0
      %v2770 = vmax.f32 %v2740, 0.0
      %v2771 = vmax.f32 %v2741, 0.0
      %v2772 = vmax.f32 %v2742, 0.0
      %v2773 = vmax.f32 %v2743, 0.0
      %v2774 = vmax.f32 %v2744, 0.0
      %v2775 = vmax.f32 %v2745, 0.0
      %v2776 = vmax.f32 %v2746, 0.0
      %v2777 = vmax.f32 %v2747, 0.0
      %v2778 = vmax.f32 %v2748, 0.0
      %v2779 = vmax.f32 %v2749, 0.0
      %v2780 = vmax.f32 %v2750, 0.0
      %v2781 = vmax.f32 %v2751, 0.0
      %v2782 = vmax.f32 %v2752, 0.0
      %v2783 = vmax.f32 %v2753, 0.0
      %v2784 = vmax.f32 %v2754, 0.0
      %v2785 = vmax.f32 %v2755, 0.0
      %v2786 = vmax.f32 %v2756, 0.0
      %v2787 = vmax.f32 %v2757, 0.0
      %v2788 = vmax.f32 %v2758, 0.0
      %v2789 = vmax.f32 %v2759, 0.0
      %v2790 = vmax.f32 %v2760, 0.0
      %v2791 = vmax.f32 %v2761, 0.0
      %v2792 = vmax.f32 %v2762, 0.0
      %v2793 = vmax.f32 %v2763, 0.0
      %v2794 = vmax.f32 %v2764, 0.0
      %v2795 = vmax.f32 %v2765, 0.0
      %v2796 = vmax.f32 %v2766, 0.0
      %v2797 = vmax.f32 %v2767, 0.0
      %v2798 = vmax.f32 %v2768, 0.0
      %s2799 = smul.u32 %s88, 240
      %s2800 = scalar_lea.vmem [#allocation2], %s2799
      %vm2801 = vcmask 64512
      %2802 = vst.msk [vmem:[%s2800] sm:$0xff] %vm2801, %v2769
      %vm2803 = vcmask 63488
      %2804 = vst.msk [vmem:[%s2800 + $0x8] sm:$0x7f] %vm2803, %v2770
      %2805 = vst.msk [vmem:[%s2800 + $0x10] sm:$0xff] %vm2801, %v2771
      %2806 = vst.msk [vmem:[%s2800 + $0x18] sm:$0x7f] %vm2803, %v2772
      %2807 = vst.msk [vmem:[%s2800 + $0x20] sm:$0xff] %vm2801, %v2773
      %2808 = vst.msk [vmem:[%s2800 + $0x28] sm:$0x7f] %vm2803, %v2774
      %2809 = vst.msk [vmem:[%s2800 + $0x30] sm:$0xff] %vm2801, %v2775
      %2810 = vst.msk [vmem:[%s2800 + $0x38] sm:$0x7f] %vm2803, %v2776
      %2811 = vst.msk [vmem:[%s2800 + $0x40] sm:$0xff] %vm2801, %v2777
      %2812 = vst.msk [vmem:[%s2800 + $0x48] sm:$0x7f] %vm2803, %v2778
      %2813 = vst.msk [vmem:[%s2800 + $0x50] sm:$0xff] %vm2801, %v2779
      %2814 = vst.msk [vmem:[%s2800 + $0x58] sm:$0x7f] %vm2803, %v2780
      %2815 = vst.msk [vmem:[%s2800 + $0x60] sm:$0xff] %vm2801, %v2781
      %2816 = vst.msk [vmem:[%s2800 + $0x68] sm:$0x7f] %vm2803, %v2782
      %2817 = vst.msk [vmem:[%s2800 + $0x70] sm:$0xff] %vm2801, %v2783
      %2818 = vst.msk [vmem:[%s2800 + $0x78] sm:$0x7f] %vm2803, %v2784
      %2819 = vst.msk [vmem:[%s2800 + $0x80] sm:$0xff] %vm2801, %v2785
      %2820 = vst.msk [vmem:[%s2800 + $0x88] sm:$0x7f] %vm2803, %v2786
      %2821 = vst.msk [vmem:[%s2800 + $0x90] sm:$0xff] %vm2801, %v2787
      %2822 = vst.msk [vmem:[%s2800 + $0x98] sm:$0x7f] %vm2803, %v2788
      %2823 = vst.msk [vmem:[%s2800 + $0xa0] sm:$0xff] %vm2801, %v2789
      %2824 = vst.msk [vmem:[%s2800 + $0xa8] sm:$0x7f] %vm2803, %v2790
      %2825 = vst.msk [vmem:[%s2800 + $0xb0] sm:$0xff] %vm2801, %v2791
      %2826 = vst.msk [vmem:[%s2800 + $0xb8] sm:$0x7f] %vm2803, %v2792
      %2827 = vst.msk [vmem:[%s2800 + $0xc0] sm:$0xff] %vm2801, %v2793
      %2828 = vst.msk [vmem:[%s2800 + $0xc8] sm:$0x7f] %vm2803, %v2794
      %2829 = vst.msk [vmem:[%s2800 + $0xd0] sm:$0xff] %vm2801, %v2795
      %2830 = vst.msk [vmem:[%s2800 + $0xd8] sm:$0x7f] %vm2803, %v2796
      %2831 = vst.msk [vmem:[%s2800 + $0xe0] sm:$0xff] %vm2801, %v2797
      %2832 = vst.msk [vmem:[%s2800 + $0xe8] sm:$0x7f] %vm2803, %v2798
    $region66: #{net_forward.1} parent=1 // loop_footer
      %s92 = sadd.s32 1, %s88
    $region67: #{net_forward.1} parent=1 // loop_footer_branch
      %87 = sbr.rel target = $region63
    $region68: #{net_forward.1} parent=1 // loop_exit
      _
    loop: start=0, step=1, limit=16
    $region69: #{net_forward.1} parent=1 // loop_pre_header
      _
    $region70: #{net_forward.1} parent=1 // loop_header
      %s2834 = sphi 0, %s2838
      %p2835 = scmp.ge.s32.totalorder %s2834, 16
    $region71: #{net_forward.1} parent=1 // loop_header_branch
      %2837 = sbr.rel (%p2835) target = $region75
    $region72: #{net_forward.1} parent=1 // loop_body
      %s2839 = sld [smem:[#allocation8 + %s2834]]
      %v2840 = vld [vmem:[#allocation2] sm:$0xff]
      %v2841 = vld [vmem:[#allocation2 + $0x8] sm:$0xf]
      %v2842 = vld [vmem:[#allocation2 + $0x10] sm:$0xff]
      %v2843 = vld [vmem:[#allocation2 + $0x18] sm:$0xf]
      %v2844 = vld [vmem:[#allocation2 + $0x20] sm:$0xff]
      %v2845 = vld [vmem:[#allocation2 + $0x28] sm:$0xf]
      %v2846 = vld [vmem:[#allocation2 + $0x30] sm:$0xff]
      %v2847 = vld [vmem:[#allocation2 + $0x38] sm:$0xf]
      %v2848 = vld [vmem:[#allocation2 + $0x40] sm:$0xff]
      %v2849 = vld [vmem:[#allocation2 + $0x48] sm:$0xf]
      %v2850 = vld [vmem:[#allocation2 + $0x50] sm:$0xff]
      %v2851 = vld [vmem:[#allocation2 + $0x58] sm:$0xf]
      %v2852 = vld [vmem:[#allocation2 + $0x60] sm:$0xff]
      %v2853 = vld [vmem:[#allocation2 + $0x68] sm:$0xf]
      %v2854 = vld [vmem:[#allocation2 + $0x70] sm:$0xff]
      %v2855 = vld [vmem:[#allocation2 + $0x78] sm:$0xf]
      %v2856 = vld [vmem:[#allocation2 + $0x80] sm:$0xff]
      %v2857 = vld [vmem:[#allocation2 + $0x88] sm:$0xf]
      %v2858 = vld [vmem:[#allocation2 + $0x90] sm:$0xff]
      %v2859 = vld [vmem:[#allocation2 + $0x98] sm:$0xf]
      %v2860 = vld [vmem:[#allocation2 + $0xa0] sm:$0xff]
      %v2861 = vld [vmem:[#allocation2 + $0xa8] sm:$0xf]
      %v2862 = vld [vmem:[#allocation2 + $0xb0] sm:$0xff]
      %v2863 = vld [vmem:[#allocation2 + $0xb8] sm:$0xf]
      %v2864 = vstv %s2839
      %v2865 = vmul.f32 %v2840, %v2864
      %v2866 = vmul.f32 %v2841, %v2864
      %v2867 = vmul.f32 %v2842, %v2864
      %v2868 = vmul.f32 %v2843, %v2864
      %v2869 = vmul.f32 %v2844, %v2864
      %v2870 = vmul.f32 %v2845, %v2864
      %v2871 = vmul.f32 %v2846, %v2864
      %v2872 = vmul.f32 %v2847, %v2864
      %v2873 = vmul.f32 %v2848, %v2864
      %v2874 = vmul.f32 %v2849, %v2864
      %v2875 = vmul.f32 %v2850, %v2864
      %v2876 = vmul.f32 %v2851, %v2864
      %v2877 = vmul.f32 %v2852, %v2864
      %v2878 = vmul.f32 %v2853, %v2864
      %v2879 = vmul.f32 %v2854, %v2864
      %v2880 = vmul.f32 %v2855, %v2864
      %v2881 = vmul.f32 %v2856, %v2864
      %v2882 = vmul.f32 %v2857, %v2864
      %v2883 = vmul.f32 %v2858, %v2864
      %v2884 = vmul.f32 %v2859, %v2864
      %v2885 = vmul.f32 %v2860, %v2864
      %v2886 = vmul.f32 %v2861, %v2864
      %v2887 = vmul.f32 %v2862, %v2864
      %v2888 = vmul.f32 %v2863, %v2864
      %s2889 = sadd.s32 %s2834, 16
      %s2890 = sld [smem:[#allocation8 + %s2889]]
      %s2891 = scalar_lea.vmem [#allocation2], 240
      %v2892 = vld [vmem:[%s2891] sm:$0xff]
      %v2893 = vld [vmem:[%s2891 + $0x8] sm:$0xf]
      %v2894 = vld [vmem:[%s2891 + $0x10] sm:$0xff]
      %v2895 = vld [vmem:[%s2891 + $0x18] sm:$0xf]
      %v2896 = vld [vmem:[%s2891 + $0x20] sm:$0xff]
      %v2897 = vld [vmem:[%s2891 + $0x28] sm:$0xf]
      %v2898 = vld [vmem:[%s2891 + $0x30] sm:$0xff]
      %v2899 = vld [vmem:[%s2891 + $0x38] sm:$0xf]
      %v2900 = vld [vmem:[%s2891 + $0x40] sm:$0xff]
      %v2901 = vld [vmem:[%s2891 + $0x48] sm:$0xf]
      %v2902 = vld [vmem:[%s2891 + $0x50] sm:$0xff]
      %v2903 = vld [vmem:[%s2891 + $0x58] sm:$0xf]
      %v2904 = vld [vmem:[%s2891 + $0x60] sm:$0xff]
      %v2905 = vld [vmem:[%s2891 + $0x68] sm:$0xf]
      %v2906 = vld [vmem:[%s2891 + $0x70] sm:$0xff]
      %v2907 = vld [vmem:[%s2891 + $0x78] sm:$0xf]
      %v2908 = vld [vmem:[%s2891 + $0x80] sm:$0xff]
      %v2909 = vld [vmem:[%s2891 + $0x88] sm:$0xf]
      %v2910 = vld [vmem:[%s2891 + $0x90] sm:$0xff]
      %v2911 = vld [vmem:[%s2891 + $0x98] sm:$0xf]
      %v2912 = vld [vmem:[%s2891 + $0xa0] sm:$0xff]
      %v2913 = vld [vmem:[%s2891 + $0xa8] sm:$0xf]
      %v2914 = vld [vmem:[%s2891 + $0xb0] sm:$0xff]
      %v2915 = vld [vmem:[%s2891 + $0xb8] sm:$0xf]
      %v2916 = vstv %s2890
      %v2917 = vmul.f32 %v2892, %v2916
      %v2918 = vmul.f32 %v2893, %v2916
      %v2919 = vmul.f32 %v2894, %v2916
      %v2920 = vmul.f32 %v2895, %v2916
      %v2921 = vmul.f32 %v2896, %v2916
      %v2922 = vmul.f32 %v2897, %v2916
      %v2923 = vmul.f32 %v2898, %v2916
      %v2924 = vmul.f32 %v2899, %v2916
      %v2925 = vmul.f32 %v2900, %v2916
      %v2926 = vmul.f32 %v2901, %v2916
      %v2927 = vmul.f32 %v2902, %v2916
      %v2928 = vmul.f32 %v2903, %v2916
      %v2929 = vmul.f32 %v2904, %v2916
      %v2930 = vmul.f32 %v2905, %v2916
      %v2931 = vmul.f32 %v2906, %v2916
      %v2932 = vmul.f32 %v2907, %v2916
      %v2933 = vmul.f32 %v2908, %v2916
      %v2934 = vmul.f32 %v2909, %v2916
      %v2935 = vmul.f32 %v2910, %v2916
      %v2936 = vmul.f32 %v2911, %v2916
      %v2937 = vmul.f32 %v2912, %v2916
      %v2938 = vmul.f32 %v2913, %v2916
      %v2939 = vmul.f32 %v2914, %v2916
      %v2940 = vmul.f32 %v2915, %v2916
      %v2941 = vadd.f32 %v2865, %v2917
      %v2942 = vadd.f32 %v2866, %v2918
      %v2943 = vadd.f32 %v2867, %v2919
      %v2944 = vadd.f32 %v2868, %v2920
      %v2945 = vadd.f32 %v2869, %v2921
      %v2946 = vadd.f32 %v2870, %v2922
      %v2947 = vadd.f32 %v2871, %v2923
      %v2948 = vadd.f32 %v2872, %v2924
      %v2949 = vadd.f32 %v2873, %v2925
      %v2950 = vadd.f32 %v2874, %v2926
      %v2951 = vadd.f32 %v2875, %v2927
      %v2952 = vadd.f32 %v2876, %v2928
      %v2953 = vadd.f32 %v2877, %v2929
      %v2954 = vadd.f32 %v2878, %v2930
      %v2955 = vadd.f32 %v2879, %v2931
      %v2956 = vadd.f32 %v2880, %v2932
      %v2957 = vadd.f32 %v2881, %v2933
      %v2958 = vadd.f32 %v2882, %v2934
      %v2959 = vadd.f32 %v2883, %v2935
      %v2960 = vadd.f32 %v2884, %v2936
      %v2961 = vadd.f32 %v2885, %v2937
      %v2962 = vadd.f32 %v2886, %v2938
      %v2963 = vadd.f32 %v2887, %v2939
      %v2964 = vadd.f32 %v2888, %v2940
      %s2965 = sadd.s32 %s2834, 32
      %s2966 = sld [smem:[#allocation8 + %s2965]]
      %s2967 = scalar_lea.vmem [#allocation2], 480
      %v2968 = vld [vmem:[%s2967] sm:$0xff]
      %v2969 = vld [vmem:[%s2967 + $0x8] sm:$0xf]
      %v2970 = vld [vmem:[%s2967 + $0x10] sm:$0xff]
      %v2971 = vld [vmem:[%s2967 + $0x18] sm:$0xf]
      %v2972 = vld [vmem:[%s2967 + $0x20] sm:$0xff]
      %v2973 = vld [vmem:[%s2967 + $0x28] sm:$0xf]
      %v2974 = vld [vmem:[%s2967 + $0x30] sm:$0xff]
      %v2975 = vld [vmem:[%s2967 + $0x38] sm:$0xf]
      %v2976 = vld [vmem:[%s2967 + $0x40] sm:$0xff]
      %v2977 = vld [vmem:[%s2967 + $0x48] sm:$0xf]
      %v2978 = vld [vmem:[%s2967 + $0x50] sm:$0xff]
      %v2979 = vld [vmem:[%s2967 + $0x58] sm:$0xf]
      %v2980 = vld [vmem:[%s2967 + $0x60] sm:$0xff]
      %v2981 = vld [vmem:[%s2967 + $0x68] sm:$0xf]
      %v2982 = vld [vmem:[%s2967 + $0x70] sm:$0xff]
      %v2983 = vld [vmem:[%s2967 + $0x78] sm:$0xf]
      %v2984 = vld [vmem:[%s2967 + $0x80] sm:$0xff]
      %v2985 = vld [vmem:[%s2967 + $0x88] sm:$0xf]
      %v2986 = vld [vmem:[%s2967 + $0x90] sm:$0xff]
      %v2987 = vld [vmem:[%s2967 + $0x98] sm:$0xf]
      %v2988 = vld [vmem:[%s2967 + $0xa0] sm:$0xff]
      %v2989 = vld [vmem:[%s2967 + $0xa8] sm:$0xf]
      %v2990 = vld [vmem:[%s2967 + $0xb0] sm:$0xff]
      %v2991 = vld [vmem:[%s2967 + $0xb8] sm:$0xf]
      %v2992 = vstv %s2966
      %v2993 = vmul.f32 %v2968, %v2992
      %v2994 = vmul.f32 %v2969, %v2992
      %v2995 = vmul.f32 %v2970, %v2992
      %v2996 = vmul.f32 %v2971, %v2992
      %v2997 = vmul.f32 %v2972, %v2992
      %v2998 = vmul.f32 %v2973, %v2992
      %v2999 = vmul.f32 %v2974, %v2992
      %v3000 = vmul.f32 %v2975, %v2992
      %v3001 = vmul.f32 %v2976, %v2992
      %v3002 = vmul.f32 %v2977, %v2992
      %v3003 = vmul.f32 %v2978, %v2992
      %v3004 = vmul.f32 %v2979, %v2992
      %v3005 = vmul.f32 %v2980, %v2992
      %v3006 = vmul.f32 %v2981, %v2992
      %v3007 = vmul.f32 %v2982, %v2992
      %v3008 = vmul.f32 %v2983, %v2992
      %v3009 = vmul.f32 %v2984, %v2992
      %v3010 = vmul.f32 %v2985, %v2992
      %v3011 = vmul.f32 %v2986, %v2992
      %v3012 = vmul.f32 %v2987, %v2992
      %v3013 = vmul.f32 %v2988, %v2992
      %v3014 = vmul.f32 %v2989, %v2992
      %v3015 = vmul.f32 %v2990, %v2992
      %v3016 = vmul.f32 %v2991, %v2992
      %v3017 = vadd.f32 %v2941, %v2993
      %v3018 = vadd.f32 %v2942, %v2994
      %v3019 = vadd.f32 %v2943, %v2995
      %v3020 = vadd.f32 %v2944, %v2996
      %v3021 = vadd.f32 %v2945, %v2997
      %v3022 = vadd.f32 %v2946, %v2998
      %v3023 = vadd.f32 %v2947, %v2999
      %v3024 = vadd.f32 %v2948, %v3000
      %v3025 = vadd.f32 %v2949, %v3001
      %v3026 = vadd.f32 %v2950, %v3002
      %v3027 = vadd.f32 %v2951, %v3003
      %v3028 = vadd.f32 %v2952, %v3004
      %v3029 = vadd.f32 %v2953, %v3005
      %v3030 = vadd.f32 %v2954, %v3006
      %v3031 = vadd.f32 %v2955, %v3007
      %v3032 = vadd.f32 %v2956, %v3008
      %v3033 = vadd.f32 %v2957, %v3009
      %v3034 = vadd.f32 %v2958, %v3010
      %v3035 = vadd.f32 %v2959, %v3011
      %v3036 = vadd.f32 %v2960, %v3012
      %v3037 = vadd.f32 %v2961, %v3013
      %v3038 = vadd.f32 %v2962, %v3014
      %v3039 = vadd.f32 %v2963, %v3015
      %v3040 = vadd.f32 %v2964, %v3016
      %s3041 = sadd.s32 %s2834, 48
      %s3042 = sld [smem:[#allocation8 + %s3041]]
      %s3043 = scalar_lea.vmem [#allocation2], 720
      %v3044 = vld [vmem:[%s3043] sm:$0xff]
      %v3045 = vld [vmem:[%s3043 + $0x8] sm:$0xf]
      %v3046 = vld [vmem:[%s3043 + $0x10] sm:$0xff]
      %v3047 = vld [vmem:[%s3043 + $0x18] sm:$0xf]
      %v3048 = vld [vmem:[%s3043 + $0x20] sm:$0xff]
      %v3049 = vld [vmem:[%s3043 + $0x28] sm:$0xf]
      %v3050 = vld [vmem:[%s3043 + $0x30] sm:$0xff]
      %v3051 = vld [vmem:[%s3043 + $0x38] sm:$0xf]
      %v3052 = vld [vmem:[%s3043 + $0x40] sm:$0xff]
      %v3053 = vld [vmem:[%s3043 + $0x48] sm:$0xf]
      %v3054 = vld [vmem:[%s3043 + $0x50] sm:$0xff]
      %v3055 = vld [vmem:[%s3043 + $0x58] sm:$0xf]
      %v3056 = vld [vmem:[%s3043 + $0x60] sm:$0xff]
      %v3057 = vld [vmem:[%s3043 + $0x68] sm:$0xf]
      %v3058 = vld [vmem:[%s3043 + $0x70] sm:$0xff]
      %v3059 = vld [vmem:[%s3043 + $0x78] sm:$0xf]
      %v3060 = vld [vmem:[%s3043 + $0x80] sm:$0xff]
      %v3061 = vld [vmem:[%s3043 + $0x88] sm:$0xf]
      %v3062 = vld [vmem:[%s3043 + $0x90] sm:$0xff]
      %v3063 = vld [vmem:[%s3043 + $0x98] sm:$0xf]
      %v3064 = vld [vmem:[%s3043 + $0xa0] sm:$0xff]
      %v3065 = vld [vmem:[%s3043 + $0xa8] sm:$0xf]
      %v3066 = vld [vmem:[%s3043 + $0xb0] sm:$0xff]
      %v3067 = vld [vmem:[%s3043 + $0xb8] sm:$0xf]
      %v3068 = vstv %s3042
      %v3069 = vmul.f32 %v3044, %v3068
      %v3070 = vmul.f32 %v3045, %v3068
      %v3071 = vmul.f32 %v3046, %v3068
      %v3072 = vmul.f32 %v3047, %v3068
      %v3073 = vmul.f32 %v3048, %v3068
      %v3074 = vmul.f32 %v3049, %v3068
      %v3075 = vmul.f32 %v3050, %v3068
      %v3076 = vmul.f32 %v3051, %v3068
      %v3077 = vmul.f32 %v3052, %v3068
      %v3078 = vmul.f32 %v3053, %v3068
      %v3079 = vmul.f32 %v3054, %v3068
      %v3080 = vmul.f32 %v3055, %v3068
      %v3081 = vmul.f32 %v3056, %v3068
      %v3082 = vmul.f32 %v3057, %v3068
      %v3083 = vmul.f32 %v3058, %v3068
      %v3084 = vmul.f32 %v3059, %v3068
      %v3085 = vmul.f32 %v3060, %v3068
      %v3086 = vmul.f32 %v3061, %v3068
      %v3087 = vmul.f32 %v3062, %v3068
      %v3088 = vmul.f32 %v3063, %v3068
      %v3089 = vmul.f32 %v3064, %v3068
      %v3090 = vmul.f32 %v3065, %v3068
      %v3091 = vmul.f32 %v3066, %v3068
      %v3092 = vmul.f32 %v3067, %v3068
      %v3093 = vadd.f32 %v3017, %v3069
      %v3094 = vadd.f32 %v3018, %v3070
      %v3095 = vadd.f32 %v3019, %v3071
      %v3096 = vadd.f32 %v3020, %v3072
      %v3097 = vadd.f32 %v3021, %v3073
      %v3098 = vadd.f32 %v3022, %v3074
      %v3099 = vadd.f32 %v3023, %v3075
      %v3100 = vadd.f32 %v3024, %v3076
      %v3101 = vadd.f32 %v3025, %v3077
      %v3102 = vadd.f32 %v3026, %v3078
      %v3103 = vadd.f32 %v3027, %v3079
      %v3104 = vadd.f32 %v3028, %v3080
      %v3105 = vadd.f32 %v3029, %v3081
      %v3106 = vadd.f32 %v3030, %v3082
      %v3107 = vadd.f32 %v3031, %v3083
      %v3108 = vadd.f32 %v3032, %v3084
      %v3109 = vadd.f32 %v3033, %v3085
      %v3110 = vadd.f32 %v3034, %v3086
      %v3111 = vadd.f32 %v3035, %v3087
      %v3112 = vadd.f32 %v3036, %v3088
      %v3113 = vadd.f32 %v3037, %v3089
      %v3114 = vadd.f32 %v3038, %v3090
      %v3115 = vadd.f32 %v3039, %v3091
      %v3116 = vadd.f32 %v3040, %v3092
      %s3117 = sadd.s32 %s2834, 64
      %s3118 = sld [smem:[#allocation8 + %s3117]]
      %s3119 = scalar_lea.vmem [#allocation2], 960
      %v3120 = vld [vmem:[%s3119] sm:$0xff]
      %v3121 = vld [vmem:[%s3119 + $0x8] sm:$0xf]
      %v3122 = vld [vmem:[%s3119 + $0x10] sm:$0xff]
      %v3123 = vld [vmem:[%s3119 + $0x18] sm:$0xf]
      %v3124 = vld [vmem:[%s3119 + $0x20] sm:$0xff]
      %v3125 = vld [vmem:[%s3119 + $0x28] sm:$0xf]
      %v3126 = vld [vmem:[%s3119 + $0x30] sm:$0xff]
      %v3127 = vld [vmem:[%s3119 + $0x38] sm:$0xf]
      %v3128 = vld [vmem:[%s3119 + $0x40] sm:$0xff]
      %v3129 = vld [vmem:[%s3119 + $0x48] sm:$0xf]
      %v3130 = vld [vmem:[%s3119 + $0x50] sm:$0xff]
      %v3131 = vld [vmem:[%s3119 + $0x58] sm:$0xf]
      %v3132 = vld [vmem:[%s3119 + $0x60] sm:$0xff]
      %v3133 = vld [vmem:[%s3119 + $0x68] sm:$0xf]
      %v3134 = vld [vmem:[%s3119 + $0x70] sm:$0xff]
      %v3135 = vld [vmem:[%s3119 + $0x78] sm:$0xf]
      %v3136 = vld [vmem:[%s3119 + $0x80] sm:$0xff]
      %v3137 = vld [vmem:[%s3119 + $0x88] sm:$0xf]
      %v3138 = vld [vmem:[%s3119 + $0x90] sm:$0xff]
      %v3139 = vld [vmem:[%s3119 + $0x98] sm:$0xf]
      %v3140 = vld [vmem:[%s3119 + $0xa0] sm:$0xff]
      %v3141 = vld [vmem:[%s3119 + $0xa8] sm:$0xf]
      %v3142 = vld [vmem:[%s3119 + $0xb0] sm:$0xff]
      %v3143 = vld [vmem:[%s3119 + $0xb8] sm:$0xf]
      %v3144 = vstv %s3118
      %v3145 = vmul.f32 %v3120, %v3144
      %v3146 = vmul.f32 %v3121, %v3144
      %v3147 = vmul.f32 %v3122, %v3144
      %v3148 = vmul.f32 %v3123, %v3144
      %v3149 = vmul.f32 %v3124, %v3144
      %v3150 = vmul.f32 %v3125, %v3144
      %v3151 = vmul.f32 %v3126, %v3144
      %v3152 = vmul.f32 %v3127, %v3144
      %v3153 = vmul.f32 %v3128, %v3144
      %v3154 = vmul.f32 %v3129, %v3144
      %v3155 = vmul.f32 %v3130, %v3144
      %v3156 = vmul.f32 %v3131, %v3144
      %v3157 = vmul.f32 %v3132, %v3144
      %v3158 = vmul.f32 %v3133, %v3144
      %v3159 = vmul.f32 %v3134, %v3144
      %v3160 = vmul.f32 %v3135, %v3144
      %v3161 = vmul.f32 %v3136, %v3144
      %v3162 = vmul.f32 %v3137, %v3144
      %v3163 = vmul.f32 %v3138, %v3144
      %v3164 = vmul.f32 %v3139, %v3144
      %v3165 = vmul.f32 %v3140, %v3144
      %v3166 = vmul.f32 %v3141, %v3144
      %v3167 = vmul.f32 %v3142, %v3144
      %v3168 = vmul.f32 %v3143, %v3144
      %v3169 = vadd.f32 %v3093, %v3145
      %v3170 = vadd.f32 %v3094, %v3146
      %v3171 = vadd.f32 %v3095, %v3147
      %v3172 = vadd.f32 %v3096, %v3148
      %v3173 = vadd.f32 %v3097, %v3149
      %v3174 = vadd.f32 %v3098, %v3150
      %v3175 = vadd.f32 %v3099, %v3151
      %v3176 = vadd.f32 %v3100, %v3152
      %v3177 = vadd.f32 %v3101, %v3153
      %v3178 = vadd.f32 %v3102, %v3154
      %v3179 = vadd.f32 %v3103, %v3155
      %v3180 = vadd.f32 %v3104, %v3156
      %v3181 = vadd.f32 %v3105, %v3157
      %v3182 = vadd.f32 %v3106, %v3158
      %v3183 = vadd.f32 %v3107, %v3159
      %v3184 = vadd.f32 %v3108, %v3160
      %v3185 = vadd.f32 %v3109, %v3161
      %v3186 = vadd.f32 %v3110, %v3162
      %v3187 = vadd.f32 %v3111, %v3163
      %v3188 = vadd.f32 %v3112, %v3164
      %v3189 = vadd.f32 %v3113, %v3165
      %v3190 = vadd.f32 %v3114, %v3166
      %v3191 = vadd.f32 %v3115, %v3167
      %v3192 = vadd.f32 %v3116, %v3168
      %s3193 = sadd.s32 %s2834, 80
      %s3194 = sld [smem:[#allocation8 + %s3193]]
      %s3195 = scalar_lea.vmem [#allocation2], 1200
      %v3196 = vld [vmem:[%s3195] sm:$0xff]
      %v3197 = vld [vmem:[%s3195 + $0x8] sm:$0xf]
      %v3198 = vld [vmem:[%s3195 + $0x10] sm:$0xff]
      %v3199 = vld [vmem:[%s3195 + $0x18] sm:$0xf]
      %v3200 = vld [vmem:[%s3195 + $0x20] sm:$0xff]
      %v3201 = vld [vmem:[%s3195 + $0x28] sm:$0xf]
      %v3202 = vld [vmem:[%s3195 + $0x30] sm:$0xff]
      %v3203 = vld [vmem:[%s3195 + $0x38] sm:$0xf]
      %v3204 = vld [vmem:[%s3195 + $0x40] sm:$0xff]
      %v3205 = vld [vmem:[%s3195 + $0x48] sm:$0xf]
      %v3206 = vld [vmem:[%s3195 + $0x50] sm:$0xff]
      %v3207 = vld [vmem:[%s3195 + $0x58] sm:$0xf]
      %v3208 = vld [vmem:[%s3195 + $0x60] sm:$0xff]
      %v3209 = vld [vmem:[%s3195 + $0x68] sm:$0xf]
      %v3210 = vld [vmem:[%s3195 + $0x70] sm:$0xff]
      %v3211 = vld [vmem:[%s3195 + $0x78] sm:$0xf]
      %v3212 = vld [vmem:[%s3195 + $0x80] sm:$0xff]
      %v3213 = vld [vmem:[%s3195 + $0x88] sm:$0xf]
      %v3214 = vld [vmem:[%s3195 + $0x90] sm:$0xff]
      %v3215 = vld [vmem:[%s3195 + $0x98] sm:$0xf]
      %v3216 = vld [vmem:[%s3195 + $0xa0] sm:$0xff]
      %v3217 = vld [vmem:[%s3195 + $0xa8] sm:$0xf]
      %v3218 = vld [vmem:[%s3195 + $0xb0] sm:$0xff]
      %v3219 = vld [vmem:[%s3195 + $0xb8] sm:$0xf]
      %v3220 = vstv %s3194
      %v3221 = vmul.f32 %v3196, %v3220
      %v3222 = vmul.f32 %v3197, %v3220
      %v3223 = vmul.f32 %v3198, %v3220
      %v3224 = vmul.f32 %v3199, %v3220
      %v3225 = vmul.f32 %v3200, %v3220
      %v3226 = vmul.f32 %v3201, %v3220
      %v3227 = vmul.f32 %v3202, %v3220
      %v3228 = vmul.f32 %v3203, %v3220
      %v3229 = vmul.f32 %v3204, %v3220
      %v3230 = vmul.f32 %v3205, %v3220
      %v3231 = vmul.f32 %v3206, %v3220
      %v3232 = vmul.f32 %v3207, %v3220
      %v3233 = vmul.f32 %v3208, %v3220
      %v3234 = vmul.f32 %v3209, %v3220
      %v3235 = vmul.f32 %v3210, %v3220
      %v3236 = vmul.f32 %v3211, %v3220
      %v3237 = vmul.f32 %v3212, %v3220
      %v3238 = vmul.f32 %v3213, %v3220
      %v3239 = vmul.f32 %v3214, %v3220
      %v3240 = vmul.f32 %v3215, %v3220
      %v3241 = vmul.f32 %v3216, %v3220
      %v3242 = vmul.f32 %v3217, %v3220
      %v3243 = vmul.f32 %v3218, %v3220
      %v3244 = vmul.f32 %v3219, %v3220
      %v3245 = vadd.f32 %v3169, %v3221
      %v3246 = vadd.f32 %v3170, %v3222
      %v3247 = vadd.f32 %v3171, %v3223
      %v3248 = vadd.f32 %v3172, %v3224
      %v3249 = vadd.f32 %v3173, %v3225
      %v3250 = vadd.f32 %v3174, %v3226
      %v3251 = vadd.f32 %v3175, %v3227
      %v3252 = vadd.f32 %v3176, %v3228
      %v3253 = vadd.f32 %v3177, %v3229
      %v3254 = vadd.f32 %v3178, %v3230
      %v3255 = vadd.f32 %v3179, %v3231
      %v3256 = vadd.f32 %v3180, %v3232
      %v3257 = vadd.f32 %v3181, %v3233
      %v3258 = vadd.f32 %v3182, %v3234
      %v3259 = vadd.f32 %v3183, %v3235
      %v3260 = vadd.f32 %v3184, %v3236
      %v3261 = vadd.f32 %v3185, %v3237
      %v3262 = vadd.f32 %v3186, %v3238
      %v3263 = vadd.f32 %v3187, %v3239
      %v3264 = vadd.f32 %v3188, %v3240
      %v3265 = vadd.f32 %v3189, %v3241
      %v3266 = vadd.f32 %v3190, %v3242
      %v3267 = vadd.f32 %v3191, %v3243
      %v3268 = vadd.f32 %v3192, %v3244
      %s3269 = sadd.s32 %s2834, 96
      %s3270 = sld [smem:[#allocation8 + %s3269]]
      %v3271 = vld [vmem:[#allocation2 + $0x1] sm:$0xff]
      %v3272 = vld [vmem:[#allocation2 + $0x9] sm:$0xf]
      %v3273 = vld [vmem:[#allocation2 + $0x11] sm:$0xff]
      %v3274 = vld [vmem:[#allocation2 + $0x19] sm:$0xf]
      %v3275 = vld [vmem:[#allocation2 + $0x21] sm:$0xff]
      %v3276 = vld [vmem:[#allocation2 + $0x29] sm:$0xf]
      %v3277 = vld [vmem:[#allocation2 + $0x31] sm:$0xff]
      %v3278 = vld [vmem:[#allocation2 + $0x39] sm:$0xf]
      %v3279 = vld [vmem:[#allocation2 + $0x41] sm:$0xff]
      %v3280 = vld [vmem:[#allocation2 + $0x49] sm:$0xf]
      %v3281 = vld [vmem:[#allocation2 + $0x51] sm:$0xff]
      %v3282 = vld [vmem:[#allocation2 + $0x59] sm:$0xf]
      %v3283 = vld [vmem:[#allocation2 + $0x61] sm:$0xff]
      %v3284 = vld [vmem:[#allocation2 + $0x69] sm:$0xf]
      %v3285 = vld [vmem:[#allocation2 + $0x71] sm:$0xff]
      %v3286 = vld [vmem:[#allocation2 + $0x79] sm:$0xf]
      %v3287 = vld [vmem:[#allocation2 + $0x81] sm:$0xff]
      %v3288 = vld [vmem:[#allocation2 + $0x89] sm:$0xf]
      %v3289 = vld [vmem:[#allocation2 + $0x91] sm:$0xff]
      %v3290 = vld [vmem:[#allocation2 + $0x99] sm:$0xf]
      %v3291 = vld [vmem:[#allocation2 + $0xa1] sm:$0xff]
      %v3292 = vld [vmem:[#allocation2 + $0xa9] sm:$0xf]
      %v3293 = vld [vmem:[#allocation2 + $0xb1] sm:$0xff]
      %v3294 = vld [vmem:[#allocation2 + $0xb9] sm:$0xf]
      %v3295 = vstv %s3270
      %v3296 = vmul.f32 %v3271, %v3295
      %v3297 = vmul.f32 %v3272, %v3295
      %v3298 = vmul.f32 %v3273, %v3295
      %v3299 = vmul.f32 %v3274, %v3295
      %v3300 = vmul.f32 %v3275, %v3295
      %v3301 = vmul.f32 %v3276, %v3295
      %v3302 = vmul.f32 %v3277, %v3295
      %v3303 = vmul.f32 %v3278, %v3295
      %v3304 = vmul.f32 %v3279, %v3295
      %v3305 = vmul.f32 %v3280, %v3295
      %v3306 = vmul.f32 %v3281, %v3295
      %v3307 = vmul.f32 %v3282, %v3295
      %v3308 = vmul.f32 %v3283, %v3295
      %v3309 = vmul.f32 %v3284, %v3295
      %v3310 = vmul.f32 %v3285, %v3295
      %v3311 = vmul.f32 %v3286, %v3295
      %v3312 = vmul.f32 %v3287, %v3295
      %v3313 = vmul.f32 %v3288, %v3295
      %v3314 = vmul.f32 %v3289, %v3295
      %v3315 = vmul.f32 %v3290, %v3295
      %v3316 = vmul.f32 %v3291, %v3295
      %v3317 = vmul.f32 %v3292, %v3295
      %v3318 = vmul.f32 %v3293, %v3295
      %v3319 = vmul.f32 %v3294, %v3295
      %v3320 = vadd.f32 %v3245, %v3296
      %v3321 = vadd.f32 %v3246, %v3297
      %v3322 = vadd.f32 %v3247, %v3298
      %v3323 = vadd.f32 %v3248, %v3299
      %v3324 = vadd.f32 %v3249, %v3300
      %v3325 = vadd.f32 %v3250, %v3301
      %v3326 = vadd.f32 %v3251, %v3302
      %v3327 = vadd.f32 %v3252, %v3303
      %v3328 = vadd.f32 %v3253, %v3304
      %v3329 = vadd.f32 %v3254, %v3305
      %v3330 = vadd.f32 %v3255, %v3306
      %v3331 = vadd.f32 %v3256, %v3307
      %v3332 = vadd.f32 %v3257, %v3308
      %v3333 = vadd.f32 %v3258, %v3309
      %v3334 = vadd.f32 %v3259, %v3310
      %v3335 = vadd.f32 %v3260, %v3311
      %v3336 = vadd.f32 %v3261, %v3312
      %v3337 = vadd.f32 %v3262, %v3313
      %v3338 = vadd.f32 %v3263, %v3314
      %v3339 = vadd.f32 %v3264, %v3315
      %v3340 = vadd.f32 %v3265, %v3316
      %v3341 = vadd.f32 %v3266, %v3317
      %v3342 = vadd.f32 %v3267, %v3318
      %v3343 = vadd.f32 %v3268, %v3319
      %s3344 = sadd.s32 %s2834, 112
      %s3345 = sld [smem:[#allocation8 + %s3344]]
      %v3346 = vld [vmem:[%s2891 + $0x1] sm:$0xff]
      %v3347 = vld [vmem:[%s2891 + $0x9] sm:$0xf]
      %v3348 = vld [vmem:[%s2891 + $0x11] sm:$0xff]
      %v3349 = vld [vmem:[%s2891 + $0x19] sm:$0xf]
      %v3350 = vld [vmem:[%s2891 + $0x21] sm:$0xff]
      %v3351 = vld [vmem:[%s2891 + $0x29] sm:$0xf]
      %v3352 = vld [vmem:[%s2891 + $0x31] sm:$0xff]
      %v3353 = vld [vmem:[%s2891 + $0x39] sm:$0xf]
      %v3354 = vld [vmem:[%s2891 + $0x41] sm:$0xff]
      %v3355 = vld [vmem:[%s2891 + $0x49] sm:$0xf]
      %v3356 = vld [vmem:[%s2891 + $0x51] sm:$0xff]
      %v3357 = vld [vmem:[%s2891 + $0x59] sm:$0xf]
      %v3358 = vld [vmem:[%s2891 + $0x61] sm:$0xff]
      %v3359 = vld [vmem:[%s2891 + $0x69] sm:$0xf]
      %v3360 = vld [vmem:[%s2891 + $0x71] sm:$0xff]
      %v3361 = vld [vmem:[%s2891 + $0x79] sm:$0xf]
      %v3362 = vld [vmem:[%s2891 + $0x81] sm:$0xff]
      %v3363 = vld [vmem:[%s2891 + $0x89] sm:$0xf]
      %v3364 = vld [vmem:[%s2891 + $0x91] sm:$0xff]
      %v3365 = vld [vmem:[%s2891 + $0x99] sm:$0xf]
      %v3366 = vld [vmem:[%s2891 + $0xa1] sm:$0xff]
      %v3367 = vld [vmem:[%s2891 + $0xa9] sm:$0xf]
      %v3368 = vld [vmem:[%s2891 + $0xb1] sm:$0xff]
      %v3369 = vld [vmem:[%s2891 + $0xb9] sm:$0xf]
      %v3370 = vstv %s3345
      %v3371 = vmul.f32 %v3346, %v3370
      %v3372 = vmul.f32 %v3347, %v3370
      %v3373 = vmul.f32 %v3348, %v3370
      %v3374 = vmul.f32 %v3349, %v3370
      %v3375 = vmul.f32 %v3350, %v3370
      %v3376 = vmul.f32 %v3351, %v3370
      %v3377 = vmul.f32 %v3352, %v3370
      %v3378 = vmul.f32 %v3353, %v3370
      %v3379 = vmul.f32 %v3354, %v3370
      %v3380 = vmul.f32 %v3355, %v3370
      %v3381 = vmul.f32 %v3356, %v3370
      %v3382 = vmul.f32 %v3357, %v3370
      %v3383 = vmul.f32 %v3358, %v3370
      %v3384 = vmul.f32 %v3359, %v3370
      %v3385 = vmul.f32 %v3360, %v3370
      %v3386 = vmul.f32 %v3361, %v3370
      %v3387 = vmul.f32 %v3362, %v3370
      %v3388 = vmul.f32 %v3363, %v3370
      %v3389 = vmul.f32 %v3364, %v3370
      %v3390 = vmul.f32 %v3365, %v3370
      %v3391 = vmul.f32 %v3366, %v3370
      %v3392 = vmul.f32 %v3367, %v3370
      %v3393 = vmul.f32 %v3368, %v3370
      %v3394 = vmul.f32 %v3369, %v3370
      %v3395 = vadd.f32 %v3320, %v3371
      %v3396 = vadd.f32 %v3321, %v3372
      %v3397 = vadd.f32 %v3322, %v3373
      %v3398 = vadd.f32 %v3323, %v3374
      %v3399 = vadd.f32 %v3324, %v3375
      %v3400 = vadd.f32 %v3325, %v3376
      %v3401 = vadd.f32 %v3326, %v3377
      %v3402 = vadd.f32 %v3327, %v3378
      %v3403 = vadd.f32 %v3328, %v3379
      %v3404 = vadd.f32 %v3329, %v3380
      %v3405 = vadd.f32 %v3330, %v3381
      %v3406 = vadd.f32 %v3331, %v3382
      %v3407 = vadd.f32 %v3332, %v3383
      %v3408 = vadd.f32 %v3333, %v3384
      %v3409 = vadd.f32 %v3334, %v3385
      %v3410 = vadd.f32 %v3335, %v3386
      %v3411 = vadd.f32 %v3336, %v3387
      %v3412 = vadd.f32 %v3337, %v3388
      %v3413 = vadd.f32 %v3338, %v3389
      %v3414 = vadd.f32 %v3339, %v3390
      %v3415 = vadd.f32 %v3340, %v3391
      %v3416 = vadd.f32 %v3341, %v3392
      %v3417 = vadd.f32 %v3342, %v3393
      %v3418 = vadd.f32 %v3343, %v3394
      %s3419 = sadd.s32 %s2834, 128
      %s3420 = sld [smem:[#allocation8 + %s3419]]
      %v3421 = vld [vmem:[%s2967 + $0x1] sm:$0xff]
      %v3422 = vld [vmem:[%s2967 + $0x9] sm:$0xf]
      %v3423 = vld [vmem:[%s2967 + $0x11] sm:$0xff]
      %v3424 = vld [vmem:[%s2967 + $0x19] sm:$0xf]
      %v3425 = vld [vmem:[%s2967 + $0x21] sm:$0xff]
      %v3426 = vld [vmem:[%s2967 + $0x29] sm:$0xf]
      %v3427 = vld [vmem:[%s2967 + $0x31] sm:$0xff]
      %v3428 = vld [vmem:[%s2967 + $0x39] sm:$0xf]
      %v3429 = vld [vmem:[%s2967 + $0x41] sm:$0xff]
      %v3430 = vld [vmem:[%s2967 + $0x49] sm:$0xf]
      %v3431 = vld [vmem:[%s2967 + $0x51] sm:$0xff]
      %v3432 = vld [vmem:[%s2967 + $0x59] sm:$0xf]
      %v3433 = vld [vmem:[%s2967 + $0x61] sm:$0xff]
      %v3434 = vld [vmem:[%s2967 + $0x69] sm:$0xf]
      %v3435 = vld [vmem:[%s2967 + $0x71] sm:$0xff]
      %v3436 = vld [vmem:[%s2967 + $0x79] sm:$0xf]
      %v3437 = vld [vmem:[%s2967 + $0x81] sm:$0xff]
      %v3438 = vld [vmem:[%s2967 + $0x89] sm:$0xf]
      %v3439 = vld [vmem:[%s2967 + $0x91] sm:$0xff]
      %v3440 = vld [vmem:[%s2967 + $0x99] sm:$0xf]
      %v3441 = vld [vmem:[%s2967 + $0xa1] sm:$0xff]
      %v3442 = vld [vmem:[%s2967 + $0xa9] sm:$0xf]
      %v3443 = vld [vmem:[%s2967 + $0xb1] sm:$0xff]
      %v3444 = vld [vmem:[%s2967 + $0xb9] sm:$0xf]
      %v3445 = vstv %s3420
      %v3446 = vmul.f32 %v3421, %v3445
      %v3447 = vmul.f32 %v3422, %v3445
      %v3448 = vmul.f32 %v3423, %v3445
      %v3449 = vmul.f32 %v3424, %v3445
      %v3450 = vmul.f32 %v3425, %v3445
      %v3451 = vmul.f32 %v3426, %v3445
      %v3452 = vmul.f32 %v3427, %v3445
      %v3453 = vmul.f32 %v3428, %v3445
      %v3454 = vmul.f32 %v3429, %v3445
      %v3455 = vmul.f32 %v3430, %v3445
      %v3456 = vmul.f32 %v3431, %v3445
      %v3457 = vmul.f32 %v3432, %v3445
      %v3458 = vmul.f32 %v3433, %v3445
      %v3459 = vmul.f32 %v3434, %v3445
      %v3460 = vmul.f32 %v3435, %v3445
      %v3461 = vmul.f32 %v3436, %v3445
      %v3462 = vmul.f32 %v3437, %v3445
      %v3463 = vmul.f32 %v3438, %v3445
      %v3464 = vmul.f32 %v3439, %v3445
      %v3465 = vmul.f32 %v3440, %v3445
      %v3466 = vmul.f32 %v3441, %v3445
      %v3467 = vmul.f32 %v3442, %v3445
      %v3468 = vmul.f32 %v3443, %v3445
      %v3469 = vmul.f32 %v3444, %v3445
      %v3470 = vadd.f32 %v3395, %v3446
      %v3471 = vadd.f32 %v3396, %v3447
      %v3472 = vadd.f32 %v3397, %v3448
      %v3473 = vadd.f32 %v3398, %v3449
      %v3474 = vadd.f32 %v3399, %v3450
      %v3475 = vadd.f32 %v3400, %v3451
      %v3476 = vadd.f32 %v3401, %v3452
      %v3477 = vadd.f32 %v3402, %v3453
      %v3478 = vadd.f32 %v3403, %v3454
      %v3479 = vadd.f32 %v3404, %v3455
      %v3480 = vadd.f32 %v3405, %v3456
      %v3481 = vadd.f32 %v3406, %v3457
      %v3482 = vadd.f32 %v3407, %v3458
      %v3483 = vadd.f32 %v3408, %v3459
      %v3484 = vadd.f32 %v3409, %v3460
      %v3485 = vadd.f32 %v3410, %v3461
      %v3486 = vadd.f32 %v3411, %v3462
      %v3487 = vadd.f32 %v3412, %v3463
      %v3488 = vadd.f32 %v3413, %v3464
      %v3489 = vadd.f32 %v3414, %v3465
      %v3490 = vadd.f32 %v3415, %v3466
      %v3491 = vadd.f32 %v3416, %v3467
      %v3492 = vadd.f32 %v3417, %v3468
      %v3493 = vadd.f32 %v3418, %v3469
      %s3494 = sadd.s32 %s2834, 144
      %s3495 = sld [smem:[#allocation8 + %s3494]]
      %v3496 = vld [vmem:[%s3043 + $0x1] sm:$0xff]
      %v3497 = vld [vmem:[%s3043 + $0x9] sm:$0xf]
      %v3498 = vld [vmem:[%s3043 + $0x11] sm:$0xff]
      %v3499 = vld [vmem:[%s3043 + $0x19] sm:$0xf]
      %v3500 = vld [vmem:[%s3043 + $0x21] sm:$0xff]
      %v3501 = vld [vmem:[%s3043 + $0x29] sm:$0xf]
      %v3502 = vld [vmem:[%s3043 + $0x31] sm:$0xff]
      %v3503 = vld [vmem:[%s3043 + $0x39] sm:$0xf]
      %v3504 = vld [vmem:[%s3043 + $0x41] sm:$0xff]
      %v3505 = vld [vmem:[%s3043 + $0x49] sm:$0xf]
      %v3506 = vld [vmem:[%s3043 + $0x51] sm:$0xff]
      %v3507 = vld [vmem:[%s3043 + $0x59] sm:$0xf]
      %v3508 = vld [vmem:[%s3043 + $0x61] sm:$0xff]
      %v3509 = vld [vmem:[%s3043 + $0x69] sm:$0xf]
      %v3510 = vld [vmem:[%s3043 + $0x71] sm:$0xff]
      %v3511 = vld [vmem:[%s3043 + $0x79] sm:$0xf]
      %v3512 = vld [vmem:[%s3043 + $0x81] sm:$0xff]
      %v3513 = vld [vmem:[%s3043 + $0x89] sm:$0xf]
      %v3514 = vld [vmem:[%s3043 + $0x91] sm:$0xff]
      %v3515 = vld [vmem:[%s3043 + $0x99] sm:$0xf]
      %v3516 = vld [vmem:[%s3043 + $0xa1] sm:$0xff]
      %v3517 = vld [vmem:[%s3043 + $0xa9] sm:$0xf]
      %v3518 = vld [vmem:[%s3043 + $0xb1] sm:$0xff]
      %v3519 = vld [vmem:[%s3043 + $0xb9] sm:$0xf]
      %v3520 = vstv %s3495
      %v3521 = vmul.f32 %v3496, %v3520
      %v3522 = vmul.f32 %v3497, %v3520
      %v3523 = vmul.f32 %v3498, %v3520
      %v3524 = vmul.f32 %v3499, %v3520
      %v3525 = vmul.f32 %v3500, %v3520
      %v3526 = vmul.f32 %v3501, %v3520
      %v3527 = vmul.f32 %v3502, %v3520
      %v3528 = vmul.f32 %v3503, %v3520
      %v3529 = vmul.f32 %v3504, %v3520
      %v3530 = vmul.f32 %v3505, %v3520
      %v3531 = vmul.f32 %v3506, %v3520
      %v3532 = vmul.f32 %v3507, %v3520
      %v3533 = vmul.f32 %v3508, %v3520
      %v3534 = vmul.f32 %v3509, %v3520
      %v3535 = vmul.f32 %v3510, %v3520
      %v3536 = vmul.f32 %v3511, %v3520
      %v3537 = vmul.f32 %v3512, %v3520
      %v3538 = vmul.f32 %v3513, %v3520
      %v3539 = vmul.f32 %v3514, %v3520
      %v3540 = vmul.f32 %v3515, %v3520
      %v3541 = vmul.f32 %v3516, %v3520
      %v3542 = vmul.f32 %v3517, %v3520
      %v3543 = vmul.f32 %v3518, %v3520
      %v3544 = vmul.f32 %v3519, %v3520
      %v3545 = vadd.f32 %v3470, %v3521
      %v3546 = vadd.f32 %v3471, %v3522
      %v3547 = vadd.f32 %v3472, %v3523
      %v3548 = vadd.f32 %v3473, %v3524
      %v3549 = vadd.f32 %v3474, %v3525
      %v3550 = vadd.f32 %v3475, %v3526
      %v3551 = vadd.f32 %v3476, %v3527
      %v3552 = vadd.f32 %v3477, %v3528
      %v3553 = vadd.f32 %v3478, %v3529
      %v3554 = vadd.f32 %v3479, %v3530
      %v3555 = vadd.f32 %v3480, %v3531
      %v3556 = vadd.f32 %v3481, %v3532
      %v3557 = vadd.f32 %v3482, %v3533
      %v3558 = vadd.f32 %v3483, %v3534
      %v3559 = vadd.f32 %v3484, %v3535
      %v3560 = vadd.f32 %v3485, %v3536
      %v3561 = vadd.f32 %v3486, %v3537
      %v3562 = vadd.f32 %v3487, %v3538
      %v3563 = vadd.f32 %v3488, %v3539
      %v3564 = vadd.f32 %v3489, %v3540
      %v3565 = vadd.f32 %v3490, %v3541
      %v3566 = vadd.f32 %v3491, %v3542
      %v3567 = vadd.f32 %v3492, %v3543
      %v3568 = vadd.f32 %v3493, %v3544
      %s3569 = sadd.s32 %s2834, 160
      %s3570 = sld [smem:[#allocation8 + %s3569]]
      %v3571 = vld [vmem:[%s3119 + $0x1] sm:$0xff]
      %v3572 = vld [vmem:[%s3119 + $0x9] sm:$0xf]
      %v3573 = vld [vmem:[%s3119 + $0x11] sm:$0xff]
      %v3574 = vld [vmem:[%s3119 + $0x19] sm:$0xf]
      %v3575 = vld [vmem:[%s3119 + $0x21] sm:$0xff]
      %v3576 = vld [vmem:[%s3119 + $0x29] sm:$0xf]
      %v3577 = vld [vmem:[%s3119 + $0x31] sm:$0xff]
      %v3578 = vld [vmem:[%s3119 + $0x39] sm:$0xf]
      %v3579 = vld [vmem:[%s3119 + $0x41] sm:$0xff]
      %v3580 = vld [vmem:[%s3119 + $0x49] sm:$0xf]
      %v3581 = vld [vmem:[%s3119 + $0x51] sm:$0xff]
      %v3582 = vld [vmem:[%s3119 + $0x59] sm:$0xf]
      %v3583 = vld [vmem:[%s3119 + $0x61] sm:$0xff]
      %v3584 = vld [vmem:[%s3119 + $0x69] sm:$0xf]
      %v3585 = vld [vmem:[%s3119 + $0x71] sm:$0xff]
      %v3586 = vld [vmem:[%s3119 + $0x79] sm:$0xf]
      %v3587 = vld [vmem:[%s3119 + $0x81] sm:$0xff]
      %v3588 = vld [vmem:[%s3119 + $0x89] sm:$0xf]
      %v3589 = vld [vmem:[%s3119 + $0x91] sm:$0xff]
      %v3590 = vld [vmem:[%s3119 + $0x99] sm:$0xf]
      %v3591 = vld [vmem:[%s3119 + $0xa1] sm:$0xff]
      %v3592 = vld [vmem:[%s3119 + $0xa9] sm:$0xf]
      %v3593 = vld [vmem:[%s3119 + $0xb1] sm:$0xff]
      %v3594 = vld [vmem:[%s3119 + $0xb9] sm:$0xf]
      %v3595 = vstv %s3570
      %v3596 = vmul.f32 %v3571, %v3595
      %v3597 = vmul.f32 %v3572, %v3595
      %v3598 = vmul.f32 %v3573, %v3595
      %v3599 = vmul.f32 %v3574, %v3595
      %v3600 = vmul.f32 %v3575, %v3595
      %v3601 = vmul.f32 %v3576, %v3595
      %v3602 = vmul.f32 %v3577, %v3595
      %v3603 = vmul.f32 %v3578, %v3595
      %v3604 = vmul.f32 %v3579, %v3595
      %v3605 = vmul.f32 %v3580, %v3595
      %v3606 = vmul.f32 %v3581, %v3595
      %v3607 = vmul.f32 %v3582, %v3595
      %v3608 = vmul.f32 %v3583, %v3595
      %v3609 = vmul.f32 %v3584, %v3595
      %v3610 = vmul.f32 %v3585, %v3595
      %v3611 = vmul.f32 %v3586, %v3595
      %v3612 = vmul.f32 %v3587, %v3595
      %v3613 = vmul.f32 %v3588, %v3595
      %v3614 = vmul.f32 %v3589, %v3595
      %v3615 = vmul.f32 %v3590, %v3595
      %v3616 = vmul.f32 %v3591, %v3595
      %v3617 = vmul.f32 %v3592, %v3595
      %v3618 = vmul.f32 %v3593, %v3595
      %v3619 = vmul.f32 %v3594, %v3595
      %v3620 = vadd.f32 %v3545, %v3596
      %v3621 = vadd.f32 %v3546, %v3597
      %v3622 = vadd.f32 %v3547, %v3598
      %v3623 = vadd.f32 %v3548, %v3599
      %v3624 = vadd.f32 %v3549, %v3600
      %v3625 = vadd.f32 %v3550, %v3601
      %v3626 = vadd.f32 %v3551, %v3602
      %v3627 = vadd.f32 %v3552, %v3603
      %v3628 = vadd.f32 %v3553, %v3604
      %v3629 = vadd.f32 %v3554, %v3605
      %v3630 = vadd.f32 %v3555, %v3606
      %v3631 = vadd.f32 %v3556, %v3607
      %v3632 = vadd.f32 %v3557, %v3608
      %v3633 = vadd.f32 %v3558, %v3609
      %v3634 = vadd.f32 %v3559, %v3610
      %v3635 = vadd.f32 %v3560, %v3611
      %v3636 = vadd.f32 %v3561, %v3612
      %v3637 = vadd.f32 %v3562, %v3613
      %v3638 = vadd.f32 %v3563, %v3614
      %v3639 = vadd.f32 %v3564, %v3615
      %v3640 = vadd.f32 %v3565, %v3616
      %v3641 = vadd.f32 %v3566, %v3617
      %v3642 = vadd.f32 %v3567, %v3618
      %v3643 = vadd.f32 %v3568, %v3619
      %s3644 = sadd.s32 %s2834, 176
      %s3645 = sld [smem:[#allocation8 + %s3644]]
      %v3646 = vld [vmem:[%s3195 + $0x1] sm:$0xff]
      %v3647 = vld [vmem:[%s3195 + $0x9] sm:$0xf]
      %v3648 = vld [vmem:[%s3195 + $0x11] sm:$0xff]
      %v3649 = vld [vmem:[%s3195 + $0x19] sm:$0xf]
      %v3650 = vld [vmem:[%s3195 + $0x21] sm:$0xff]
      %v3651 = vld [vmem:[%s3195 + $0x29] sm:$0xf]
      %v3652 = vld [vmem:[%s3195 + $0x31] sm:$0xff]
      %v3653 = vld [vmem:[%s3195 + $0x39] sm:$0xf]
      %v3654 = vld [vmem:[%s3195 + $0x41] sm:$0xff]
      %v3655 = vld [vmem:[%s3195 + $0x49] sm:$0xf]
      %v3656 = vld [vmem:[%s3195 + $0x51] sm:$0xff]
      %v3657 = vld [vmem:[%s3195 + $0x59] sm:$0xf]
      %v3658 = vld [vmem:[%s3195 + $0x61] sm:$0xff]
      %v3659 = vld [vmem:[%s3195 + $0x69] sm:$0xf]
      %v3660 = vld [vmem:[%s3195 + $0x71] sm:$0xff]
      %v3661 = vld [vmem:[%s3195 + $0x79] sm:$0xf]
      %v3662 = vld [vmem:[%s3195 + $0x81] sm:$0xff]
      %v3663 = vld [vmem:[%s3195 + $0x89] sm:$0xf]
      %v3664 = vld [vmem:[%s3195 + $0x91] sm:$0xff]
      %v3665 = vld [vmem:[%s3195 + $0x99] sm:$0xf]
      %v3666 = vld [vmem:[%s3195 + $0xa1] sm:$0xff]
      %v3667 = vld [vmem:[%s3195 + $0xa9] sm:$0xf]
      %v3668 = vld [vmem:[%s3195 + $0xb1] sm:$0xff]
      %v3669 = vld [vmem:[%s3195 + $0xb9] sm:$0xf]
      %v3670 = vstv %s3645
      %v3671 = vmul.f32 %v3646, %v3670
      %v3672 = vmul.f32 %v3647, %v3670
      %v3673 = vmul.f32 %v3648, %v3670
      %v3674 = vmul.f32 %v3649, %v3670
      %v3675 = vmul.f32 %v3650, %v3670
      %v3676 = vmul.f32 %v3651, %v3670
      %v3677 = vmul.f32 %v3652, %v3670
      %v3678 = vmul.f32 %v3653, %v3670
      %v3679 = vmul.f32 %v3654, %v3670
      %v3680 = vmul.f32 %v3655, %v3670
      %v3681 = vmul.f32 %v3656, %v3670
      %v3682 = vmul.f32 %v3657, %v3670
      %v3683 = vmul.f32 %v3658, %v3670
      %v3684 = vmul.f32 %v3659, %v3670
      %v3685 = vmul.f32 %v3660, %v3670
      %v3686 = vmul.f32 %v3661, %v3670
      %v3687 = vmul.f32 %v3662, %v3670
      %v3688 = vmul.f32 %v3663, %v3670
      %v3689 = vmul.f32 %v3664, %v3670
      %v3690 = vmul.f32 %v3665, %v3670
      %v3691 = vmul.f32 %v3666, %v3670
      %v3692 = vmul.f32 %v3667, %v3670
      %v3693 = vmul.f32 %v3668, %v3670
      %v3694 = vmul.f32 %v3669, %v3670
      %v3695 = vadd.f32 %v3620, %v3671
      %v3696 = vadd.f32 %v3621, %v3672
      %v3697 = vadd.f32 %v3622, %v3673
      %v3698 = vadd.f32 %v3623, %v3674
      %v3699 = vadd.f32 %v3624, %v3675
      %v3700 = vadd.f32 %v3625, %v3676
      %v3701 = vadd.f32 %v3626, %v3677
      %v3702 = vadd.f32 %v3627, %v3678
      %v3703 = vadd.f32 %v3628, %v3679
      %v3704 = vadd.f32 %v3629, %v3680
      %v3705 = vadd.f32 %v3630, %v3681
      %v3706 = vadd.f32 %v3631, %v3682
      %v3707 = vadd.f32 %v3632, %v3683
      %v3708 = vadd.f32 %v3633, %v3684
      %v3709 = vadd.f32 %v3634, %v3685
      %v3710 = vadd.f32 %v3635, %v3686
      %v3711 = vadd.f32 %v3636, %v3687
      %v3712 = vadd.f32 %v3637, %v3688
      %v3713 = vadd.f32 %v3638, %v3689
      %v3714 = vadd.f32 %v3639, %v3690
      %v3715 = vadd.f32 %v3640, %v3691
      %v3716 = vadd.f32 %v3641, %v3692
      %v3717 = vadd.f32 %v3642, %v3693
      %v3718 = vadd.f32 %v3643, %v3694
      %s3719 = sadd.s32 %s2834, 192
      %s3720 = sld [smem:[#allocation8 + %s3719]]
      %v3721 = vld [vmem:[#allocation2 + $0x2] sm:$0xff]
      %v3722 = vld [vmem:[#allocation2 + $0xa] sm:$0xf]
      %v3723 = vld [vmem:[#allocation2 + $0x12] sm:$0xff]
      %v3724 = vld [vmem:[#allocation2 + $0x1a] sm:$0xf]
      %v3725 = vld [vmem:[#allocation2 + $0x22] sm:$0xff]
      %v3726 = vld [vmem:[#allocation2 + $0x2a] sm:$0xf]
      %v3727 = vld [vmem:[#allocation2 + $0x32] sm:$0xff]
      %v3728 = vld [vmem:[#allocation2 + $0x3a] sm:$0xf]
      %v3729 = vld [vmem:[#allocation2 + $0x42] sm:$0xff]
      %v3730 = vld [vmem:[#allocation2 + $0x4a] sm:$0xf]
      %v3731 = vld [vmem:[#allocation2 + $0x52] sm:$0xff]
      %v3732 = vld [vmem:[#allocation2 + $0x5a] sm:$0xf]
      %v3733 = vld [vmem:[#allocation2 + $0x62] sm:$0xff]
      %v3734 = vld [vmem:[#allocation2 + $0x6a] sm:$0xf]
      %v3735 = vld [vmem:[#allocation2 + $0x72] sm:$0xff]
      %v3736 = vld [vmem:[#allocation2 + $0x7a] sm:$0xf]
      %v3737 = vld [vmem:[#allocation2 + $0x82] sm:$0xff]
      %v3738 = vld [vmem:[#allocation2 + $0x8a] sm:$0xf]
      %v3739 = vld [vmem:[#allocation2 + $0x92] sm:$0xff]
      %v3740 = vld [vmem:[#allocation2 + $0x9a] sm:$0xf]
      %v3741 = vld [vmem:[#allocation2 + $0xa2] sm:$0xff]
      %v3742 = vld [vmem:[#allocation2 + $0xaa] sm:$0xf]
      %v3743 = vld [vmem:[#allocation2 + $0xb2] sm:$0xff]
      %v3744 = vld [vmem:[#allocation2 + $0xba] sm:$0xf]
      %v3745 = vstv %s3720
      %v3746 = vmul.f32 %v3721, %v3745
      %v3747 = vmul.f32 %v3722, %v3745
      %v3748 = vmul.f32 %v3723, %v3745
      %v3749 = vmul.f32 %v3724, %v3745
      %v3750 = vmul.f32 %v3725, %v3745
      %v3751 = vmul.f32 %v3726, %v3745
      %v3752 = vmul.f32 %v3727, %v3745
      %v3753 = vmul.f32 %v3728, %v3745
      %v3754 = vmul.f32 %v3729, %v3745
      %v3755 = vmul.f32 %v3730, %v3745
      %v3756 = vmul.f32 %v3731, %v3745
      %v3757 = vmul.f32 %v3732, %v3745
      %v3758 = vmul.f32 %v3733, %v3745
      %v3759 = vmul.f32 %v3734, %v3745
      %v3760 = vmul.f32 %v3735, %v3745
      %v3761 = vmul.f32 %v3736, %v3745
      %v3762 = vmul.f32 %v3737, %v3745
      %v3763 = vmul.f32 %v3738, %v3745
      %v3764 = vmul.f32 %v3739, %v3745
      %v3765 = vmul.f32 %v3740, %v3745
      %v3766 = vmul.f32 %v3741, %v3745
      %v3767 = vmul.f32 %v3742, %v3745
      %v3768 = vmul.f32 %v3743, %v3745
      %v3769 = vmul.f32 %v3744, %v3745
      %v3770 = vadd.f32 %v3695, %v3746
      %v3771 = vadd.f32 %v3696, %v3747
      %v3772 = vadd.f32 %v3697, %v3748
      %v3773 = vadd.f32 %v3698, %v3749
      %v3774 = vadd.f32 %v3699, %v3750
      %v3775 = vadd.f32 %v3700, %v3751
      %v3776 = vadd.f32 %v3701, %v3752
      %v3777 = vadd.f32 %v3702, %v3753
      %v3778 = vadd.f32 %v3703, %v3754
      %v3779 = vadd.f32 %v3704, %v3755
      %v3780 = vadd.f32 %v3705, %v3756
      %v3781 = vadd.f32 %v3706, %v3757
      %v3782 = vadd.f32 %v3707, %v3758
      %v3783 = vadd.f32 %v3708, %v3759
      %v3784 = vadd.f32 %v3709, %v3760
      %v3785 = vadd.f32 %v3710, %v3761
      %v3786 = vadd.f32 %v3711, %v3762
      %v3787 = vadd.f32 %v3712, %v3763
      %v3788 = vadd.f32 %v3713, %v3764
      %v3789 = vadd.f32 %v3714, %v3765
      %v3790 = vadd.f32 %v3715, %v3766
      %v3791 = vadd.f32 %v3716, %v3767
      %v3792 = vadd.f32 %v3717, %v3768
      %v3793 = vadd.f32 %v3718, %v3769
      %s3794 = sadd.s32 %s2834, 208
      %s3795 = sld [smem:[#allocation8 + %s3794]]
      %v3796 = vld [vmem:[%s2891 + $0x2] sm:$0xff]
      %v3797 = vld [vmem:[%s2891 + $0xa] sm:$0xf]
      %v3798 = vld [vmem:[%s2891 + $0x12] sm:$0xff]
      %v3799 = vld [vmem:[%s2891 + $0x1a] sm:$0xf]
      %v3800 = vld [vmem:[%s2891 + $0x22] sm:$0xff]
      %v3801 = vld [vmem:[%s2891 + $0x2a] sm:$0xf]
      %v3802 = vld [vmem:[%s2891 + $0x32] sm:$0xff]
      %v3803 = vld [vmem:[%s2891 + $0x3a] sm:$0xf]
      %v3804 = vld [vmem:[%s2891 + $0x42] sm:$0xff]
      %v3805 = vld [vmem:[%s2891 + $0x4a] sm:$0xf]
      %v3806 = vld [vmem:[%s2891 + $0x52] sm:$0xff]
      %v3807 = vld [vmem:[%s2891 + $0x5a] sm:$0xf]
      %v3808 = vld [vmem:[%s2891 + $0x62] sm:$0xff]
      %v3809 = vld [vmem:[%s2891 + $0x6a] sm:$0xf]
      %v3810 = vld [vmem:[%s2891 + $0x72] sm:$0xff]
      %v3811 = vld [vmem:[%s2891 + $0x7a] sm:$0xf]
      %v3812 = vld [vmem:[%s2891 + $0x82] sm:$0xff]
      %v3813 = vld [vmem:[%s2891 + $0x8a] sm:$0xf]
      %v3814 = vld [vmem:[%s2891 + $0x92] sm:$0xff]
      %v3815 = vld [vmem:[%s2891 + $0x9a] sm:$0xf]
      %v3816 = vld [vmem:[%s2891 + $0xa2] sm:$0xff]
      %v3817 = vld [vmem:[%s2891 + $0xaa] sm:$0xf]
      %v3818 = vld [vmem:[%s2891 + $0xb2] sm:$0xff]
      %v3819 = vld [vmem:[%s2891 + $0xba] sm:$0xf]
      %v3820 = vstv %s3795
      %v3821 = vmul.f32 %v3796, %v3820
      %v3822 = vmul.f32 %v3797, %v3820
      %v3823 = vmul.f32 %v3798, %v3820
      %v3824 = vmul.f32 %v3799, %v3820
      %v3825 = vmul.f32 %v3800, %v3820
      %v3826 = vmul.f32 %v3801, %v3820
      %v3827 = vmul.f32 %v3802, %v3820
      %v3828 = vmul.f32 %v3803, %v3820
      %v3829 = vmul.f32 %v3804, %v3820
      %v3830 = vmul.f32 %v3805, %v3820
      %v3831 = vmul.f32 %v3806, %v3820
      %v3832 = vmul.f32 %v3807, %v3820
      %v3833 = vmul.f32 %v3808, %v3820
      %v3834 = vmul.f32 %v3809, %v3820
      %v3835 = vmul.f32 %v3810, %v3820
      %v3836 = vmul.f32 %v3811, %v3820
      %v3837 = vmul.f32 %v3812, %v3820
      %v3838 = vmul.f32 %v3813, %v3820
      %v3839 = vmul.f32 %v3814, %v3820
      %v3840 = vmul.f32 %v3815, %v3820
      %v3841 = vmul.f32 %v3816, %v3820
      %v3842 = vmul.f32 %v3817, %v3820
      %v3843 = vmul.f32 %v3818, %v3820
      %v3844 = vmul.f32 %v3819, %v3820
      %v3845 = vadd.f32 %v3770, %v3821
      %v3846 = vadd.f32 %v3771, %v3822
      %v3847 = vadd.f32 %v3772, %v3823
      %v3848 = vadd.f32 %v3773, %v3824
      %v3849 = vadd.f32 %v3774, %v3825
      %v3850 = vadd.f32 %v3775, %v3826
      %v3851 = vadd.f32 %v3776, %v3827
      %v3852 = vadd.f32 %v3777, %v3828
      %v3853 = vadd.f32 %v3778, %v3829
      %v3854 = vadd.f32 %v3779, %v3830
      %v3855 = vadd.f32 %v3780, %v3831
      %v3856 = vadd.f32 %v3781, %v3832
      %v3857 = vadd.f32 %v3782, %v3833
      %v3858 = vadd.f32 %v3783, %v3834
      %v3859 = vadd.f32 %v3784, %v3835
      %v3860 = vadd.f32 %v3785, %v3836
      %v3861 = vadd.f32 %v3786, %v3837
      %v3862 = vadd.f32 %v3787, %v3838
      %v3863 = vadd.f32 %v3788, %v3839
      %v3864 = vadd.f32 %v3789, %v3840
      %v3865 = vadd.f32 %v3790, %v3841
      %v3866 = vadd.f32 %v3791, %v3842
      %v3867 = vadd.f32 %v3792, %v3843
      %v3868 = vadd.f32 %v3793, %v3844
      %s3869 = sadd.s32 %s2834, 224
      %s3870 = sld [smem:[#allocation8 + %s3869]]
      %v3871 = vld [vmem:[%s2967 + $0x2] sm:$0xff]
      %v3872 = vld [vmem:[%s2967 + $0xa] sm:$0xf]
      %v3873 = vld [vmem:[%s2967 + $0x12] sm:$0xff]
      %v3874 = vld [vmem:[%s2967 + $0x1a] sm:$0xf]
      %v3875 = vld [vmem:[%s2967 + $0x22] sm:$0xff]
      %v3876 = vld [vmem:[%s2967 + $0x2a] sm:$0xf]
      %v3877 = vld [vmem:[%s2967 + $0x32] sm:$0xff]
      %v3878 = vld [vmem:[%s2967 + $0x3a] sm:$0xf]
      %v3879 = vld [vmem:[%s2967 + $0x42] sm:$0xff]
      %v3880 = vld [vmem:[%s2967 + $0x4a] sm:$0xf]
      %v3881 = vld [vmem:[%s2967 + $0x52] sm:$0xff]
      %v3882 = vld [vmem:[%s2967 + $0x5a] sm:$0xf]
      %v3883 = vld [vmem:[%s2967 + $0x62] sm:$0xff]
      %v3884 = vld [vmem:[%s2967 + $0x6a] sm:$0xf]
      %v3885 = vld [vmem:[%s2967 + $0x72] sm:$0xff]
      %v3886 = vld [vmem:[%s2967 + $0x7a] sm:$0xf]
      %v3887 = vld [vmem:[%s2967 + $0x82] sm:$0xff]
      %v3888 = vld [vmem:[%s2967 + $0x8a] sm:$0xf]
      %v3889 = vld [vmem:[%s2967 + $0x92] sm:$0xff]
      %v3890 = vld [vmem:[%s2967 + $0x9a] sm:$0xf]
      %v3891 = vld [vmem:[%s2967 + $0xa2] sm:$0xff]
      %v3892 = vld [vmem:[%s2967 + $0xaa] sm:$0xf]
      %v3893 = vld [vmem:[%s2967 + $0xb2] sm:$0xff]
      %v3894 = vld [vmem:[%s2967 + $0xba] sm:$0xf]
      %v3895 = vstv %s3870
      %v3896 = vmul.f32 %v3871, %v3895
      %v3897 = vmul.f32 %v3872, %v3895
      %v3898 = vmul.f32 %v3873, %v3895
      %v3899 = vmul.f32 %v3874, %v3895
      %v3900 = vmul.f32 %v3875, %v3895
      %v3901 = vmul.f32 %v3876, %v3895
      %v3902 = vmul.f32 %v3877, %v3895
      %v3903 = vmul.f32 %v3878, %v3895
      %v3904 = vmul.f32 %v3879, %v3895
      %v3905 = vmul.f32 %v3880, %v3895
      %v3906 = vmul.f32 %v3881, %v3895
      %v3907 = vmul.f32 %v3882, %v3895
      %v3908 = vmul.f32 %v3883, %v3895
      %v3909 = vmul.f32 %v3884, %v3895
      %v3910 = vmul.f32 %v3885, %v3895
      %v3911 = vmul.f32 %v3886, %v3895
      %v3912 = vmul.f32 %v3887, %v3895
      %v3913 = vmul.f32 %v3888, %v3895
      %v3914 = vmul.f32 %v3889, %v3895
      %v3915 = vmul.f32 %v3890, %v3895
      %v3916 = vmul.f32 %v3891, %v3895
      %v3917 = vmul.f32 %v3892, %v3895
      %v3918 = vmul.f32 %v3893, %v3895
      %v3919 = vmul.f32 %v3894, %v3895
      %v3920 = vadd.f32 %v3845, %v3896
      %v3921 = vadd.f32 %v3846, %v3897
      %v3922 = vadd.f32 %v3847, %v3898
      %v3923 = vadd.f32 %v3848, %v3899
      %v3924 = vadd.f32 %v3849, %v3900
      %v3925 = vadd.f32 %v3850, %v3901
      %v3926 = vadd.f32 %v3851, %v3902
      %v3927 = vadd.f32 %v3852, %v3903
      %v3928 = vadd.f32 %v3853, %v3904
      %v3929 = vadd.f32 %v3854, %v3905
      %v3930 = vadd.f32 %v3855, %v3906
      %v3931 = vadd.f32 %v3856, %v3907
      %v3932 = vadd.f32 %v3857, %v3908
      %v3933 = vadd.f32 %v3858, %v3909
      %v3934 = vadd.f32 %v3859, %v3910
      %v3935 = vadd.f32 %v3860, %v3911
      %v3936 = vadd.f32 %v3861, %v3912
      %v3937 = vadd.f32 %v3862, %v3913
      %v3938 = vadd.f32 %v3863, %v3914
      %v3939 = vadd.f32 %v3864, %v3915
      %v3940 = vadd.f32 %v3865, %v3916
      %v3941 = vadd.f32 %v3866, %v3917
      %v3942 = vadd.f32 %v3867, %v3918
      %v3943 = vadd.f32 %v3868, %v3919
      %s3944 = sadd.s32 %s2834, 240
      %s3945 = sld [smem:[#allocation8 + %s3944]]
      %v3946 = vld [vmem:[%s3043 + $0x2] sm:$0xff]
      %v3947 = vld [vmem:[%s3043 + $0xa] sm:$0xf]
      %v3948 = vld [vmem:[%s3043 + $0x12] sm:$0xff]
      %v3949 = vld [vmem:[%s3043 + $0x1a] sm:$0xf]
      %v3950 = vld [vmem:[%s3043 + $0x22] sm:$0xff]
      %v3951 = vld [vmem:[%s3043 + $0x2a] sm:$0xf]
      %v3952 = vld [vmem:[%s3043 + $0x32] sm:$0xff]
      %v3953 = vld [vmem:[%s3043 + $0x3a] sm:$0xf]
      %v3954 = vld [vmem:[%s3043 + $0x42] sm:$0xff]
      %v3955 = vld [vmem:[%s3043 + $0x4a] sm:$0xf]
      %v3956 = vld [vmem:[%s3043 + $0x52] sm:$0xff]
      %v3957 = vld [vmem:[%s3043 + $0x5a] sm:$0xf]
      %v3958 = vld [vmem:[%s3043 + $0x62] sm:$0xff]
      %v3959 = vld [vmem:[%s3043 + $0x6a] sm:$0xf]
      %v3960 = vld [vmem:[%s3043 + $0x72] sm:$0xff]
      %v3961 = vld [vmem:[%s3043 + $0x7a] sm:$0xf]
      %v3962 = vld [vmem:[%s3043 + $0x82] sm:$0xff]
      %v3963 = vld [vmem:[%s3043 + $0x8a] sm:$0xf]
      %v3964 = vld [vmem:[%s3043 + $0x92] sm:$0xff]
      %v3965 = vld [vmem:[%s3043 + $0x9a] sm:$0xf]
      %v3966 = vld [vmem:[%s3043 + $0xa2] sm:$0xff]
      %v3967 = vld [vmem:[%s3043 + $0xaa] sm:$0xf]
      %v3968 = vld [vmem:[%s3043 + $0xb2] sm:$0xff]
      %v3969 = vld [vmem:[%s3043 + $0xba] sm:$0xf]
      %v3970 = vstv %s3945
      %v3971 = vmul.f32 %v3946, %v3970
      %v3972 = vmul.f32 %v3947, %v3970
      %v3973 = vmul.f32 %v3948, %v3970
      %v3974 = vmul.f32 %v3949, %v3970
      %v3975 = vmul.f32 %v3950, %v3970
      %v3976 = vmul.f32 %v3951, %v3970
      %v3977 = vmul.f32 %v3952, %v3970
      %v3978 = vmul.f32 %v3953, %v3970
      %v3979 = vmul.f32 %v3954, %v3970
      %v3980 = vmul.f32 %v3955, %v3970
      %v3981 = vmul.f32 %v3956, %v3970
      %v3982 = vmul.f32 %v3957, %v3970
      %v3983 = vmul.f32 %v3958, %v3970
      %v3984 = vmul.f32 %v3959, %v3970
      %v3985 = vmul.f32 %v3960, %v3970
      %v3986 = vmul.f32 %v3961, %v3970
      %v3987 = vmul.f32 %v3962, %v3970
      %v3988 = vmul.f32 %v3963, %v3970
      %v3989 = vmul.f32 %v3964, %v3970
      %v3990 = vmul.f32 %v3965, %v3970
      %v3991 = vmul.f32 %v3966, %v3970
      %v3992 = vmul.f32 %v3967, %v3970
      %v3993 = vmul.f32 %v3968, %v3970
      %v3994 = vmul.f32 %v3969, %v3970
      %v3995 = vadd.f32 %v3920, %v3971
      %v3996 = vadd.f32 %v3921, %v3972
      %v3997 = vadd.f32 %v3922, %v3973
      %v3998 = vadd.f32 %v3923, %v3974
      %v3999 = vadd.f32 %v3924, %v3975
      %v4000 = vadd.f32 %v3925, %v3976
      %v4001 = vadd.f32 %v3926, %v3977
      %v4002 = vadd.f32 %v3927, %v3978
      %v4003 = vadd.f32 %v3928, %v3979
      %v4004 = vadd.f32 %v3929, %v3980
      %v4005 = vadd.f32 %v3930, %v3981
      %v4006 = vadd.f32 %v3931, %v3982
      %v4007 = vadd.f32 %v3932, %v3983
      %v4008 = vadd.f32 %v3933, %v3984
      %v4009 = vadd.f32 %v3934, %v3985
      %v4010 = vadd.f32 %v3935, %v3986
      %v4011 = vadd.f32 %v3936, %v3987
      %v4012 = vadd.f32 %v3937, %v3988
      %v4013 = vadd.f32 %v3938, %v3989
      %v4014 = vadd.f32 %v3939, %v3990
      %v4015 = vadd.f32 %v3940, %v3991
      %v4016 = vadd.f32 %v3941, %v3992
      %v4017 = vadd.f32 %v3942, %v3993
      %v4018 = vadd.f32 %v3943, %v3994
      %s4019 = sadd.s32 %s2834, 256
      %s4020 = sld [smem:[#allocation8 + %s4019]]
      %v4021 = vld [vmem:[%s3119 + $0x2] sm:$0xff]
      %v4022 = vld [vmem:[%s3119 + $0xa] sm:$0xf]
      %v4023 = vld [vmem:[%s3119 + $0x12] sm:$0xff]
      %v4024 = vld [vmem:[%s3119 + $0x1a] sm:$0xf]
      %v4025 = vld [vmem:[%s3119 + $0x22] sm:$0xff]
      %v4026 = vld [vmem:[%s3119 + $0x2a] sm:$0xf]
      %v4027 = vld [vmem:[%s3119 + $0x32] sm:$0xff]
      %v4028 = vld [vmem:[%s3119 + $0x3a] sm:$0xf]
      %v4029 = vld [vmem:[%s3119 + $0x42] sm:$0xff]
      %v4030 = vld [vmem:[%s3119 + $0x4a] sm:$0xf]
      %v4031 = vld [vmem:[%s3119 + $0x52] sm:$0xff]
      %v4032 = vld [vmem:[%s3119 + $0x5a] sm:$0xf]
      %v4033 = vld [vmem:[%s3119 + $0x62] sm:$0xff]
      %v4034 = vld [vmem:[%s3119 + $0x6a] sm:$0xf]
      %v4035 = vld [vmem:[%s3119 + $0x72] sm:$0xff]
      %v4036 = vld [vmem:[%s3119 + $0x7a] sm:$0xf]
      %v4037 = vld [vmem:[%s3119 + $0x82] sm:$0xff]
      %v4038 = vld [vmem:[%s3119 + $0x8a] sm:$0xf]
      %v4039 = vld [vmem:[%s3119 + $0x92] sm:$0xff]
      %v4040 = vld [vmem:[%s3119 + $0x9a] sm:$0xf]
      %v4041 = vld [vmem:[%s3119 + $0xa2] sm:$0xff]
      %v4042 = vld [vmem:[%s3119 + $0xaa] sm:$0xf]
      %v4043 = vld [vmem:[%s3119 + $0xb2] sm:$0xff]
      %v4044 = vld [vmem:[%s3119 + $0xba] sm:$0xf]
      %v4045 = vstv %s4020
      %v4046 = vmul.f32 %v4021, %v4045
      %v4047 = vmul.f32 %v4022, %v4045
      %v4048 = vmul.f32 %v4023, %v4045
      %v4049 = vmul.f32 %v4024, %v4045
      %v4050 = vmul.f32 %v4025, %v4045
      %v4051 = vmul.f32 %v4026, %v4045
      %v4052 = vmul.f32 %v4027, %v4045
      %v4053 = vmul.f32 %v4028, %v4045
      %v4054 = vmul.f32 %v4029, %v4045
      %v4055 = vmul.f32 %v4030, %v4045
      %v4056 = vmul.f32 %v4031, %v4045
      %v4057 = vmul.f32 %v4032, %v4045
      %v4058 = vmul.f32 %v4033, %v4045
      %v4059 = vmul.f32 %v4034, %v4045
      %v4060 = vmul.f32 %v4035, %v4045
      %v4061 = vmul.f32 %v4036, %v4045
      %v4062 = vmul.f32 %v4037, %v4045
      %v4063 = vmul.f32 %v4038, %v4045
      %v4064 = vmul.f32 %v4039, %v4045
      %v4065 = vmul.f32 %v4040, %v4045
      %v4066 = vmul.f32 %v4041, %v4045
      %v4067 = vmul.f32 %v4042, %v4045
      %v4068 = vmul.f32 %v4043, %v4045
      %v4069 = vmul.f32 %v4044, %v4045
      %v4070 = vadd.f32 %v3995, %v4046
      %v4071 = vadd.f32 %v3996, %v4047
      %v4072 = vadd.f32 %v3997, %v4048
      %v4073 = vadd.f32 %v3998, %v4049
      %v4074 = vadd.f32 %v3999, %v4050
      %v4075 = vadd.f32 %v4000, %v4051
      %v4076 = vadd.f32 %v4001, %v4052
      %v4077 = vadd.f32 %v4002, %v4053
      %v4078 = vadd.f32 %v4003, %v4054
      %v4079 = vadd.f32 %v4004, %v4055
      %v4080 = vadd.f32 %v4005, %v4056
      %v4081 = vadd.f32 %v4006, %v4057
      %v4082 = vadd.f32 %v4007, %v4058
      %v4083 = vadd.f32 %v4008, %v4059
      %v4084 = vadd.f32 %v4009, %v4060
      %v4085 = vadd.f32 %v4010, %v4061
      %v4086 = vadd.f32 %v4011, %v4062
      %v4087 = vadd.f32 %v4012, %v4063
      %v4088 = vadd.f32 %v4013, %v4064
      %v4089 = vadd.f32 %v4014, %v4065
      %v4090 = vadd.f32 %v4015, %v4066
      %v4091 = vadd.f32 %v4016, %v4067
      %v4092 = vadd.f32 %v4017, %v4068
      %v4093 = vadd.f32 %v4018, %v4069
      %s4094 = sadd.s32 %s2834, 272
      %s4095 = sld [smem:[#allocation8 + %s4094]]
      %v4096 = vld [vmem:[%s3195 + $0x2] sm:$0xff]
      %v4097 = vld [vmem:[%s3195 + $0xa] sm:$0xf]
      %v4098 = vld [vmem:[%s3195 + $0x12] sm:$0xff]
      %v4099 = vld [vmem:[%s3195 + $0x1a] sm:$0xf]
      %v4100 = vld [vmem:[%s3195 + $0x22] sm:$0xff]
      %v4101 = vld [vmem:[%s3195 + $0x2a] sm:$0xf]
      %v4102 = vld [vmem:[%s3195 + $0x32] sm:$0xff]
      %v4103 = vld [vmem:[%s3195 + $0x3a] sm:$0xf]
      %v4104 = vld [vmem:[%s3195 + $0x42] sm:$0xff]
      %v4105 = vld [vmem:[%s3195 + $0x4a] sm:$0xf]
      %v4106 = vld [vmem:[%s3195 + $0x52] sm:$0xff]
      %v4107 = vld [vmem:[%s3195 + $0x5a] sm:$0xf]
      %v4108 = vld [vmem:[%s3195 + $0x62] sm:$0xff]
      %v4109 = vld [vmem:[%s3195 + $0x6a] sm:$0xf]
      %v4110 = vld [vmem:[%s3195 + $0x72] sm:$0xff]
      %v4111 = vld [vmem:[%s3195 + $0x7a] sm:$0xf]
      %v4112 = vld [vmem:[%s3195 + $0x82] sm:$0xff]
      %v4113 = vld [vmem:[%s3195 + $0x8a] sm:$0xf]
      %v4114 = vld [vmem:[%s3195 + $0x92] sm:$0xff]
      %v4115 = vld [vmem:[%s3195 + $0x9a] sm:$0xf]
      %v4116 = vld [vmem:[%s3195 + $0xa2] sm:$0xff]
      %v4117 = vld [vmem:[%s3195 + $0xaa] sm:$0xf]
      %v4118 = vld [vmem:[%s3195 + $0xb2] sm:$0xff]
      %v4119 = vld [vmem:[%s3195 + $0xba] sm:$0xf]
      %v4120 = vstv %s4095
      %v4121 = vmul.f32 %v4096, %v4120
      %v4122 = vmul.f32 %v4097, %v4120
      %v4123 = vmul.f32 %v4098, %v4120
      %v4124 = vmul.f32 %v4099, %v4120
      %v4125 = vmul.f32 %v4100, %v4120
      %v4126 = vmul.f32 %v4101, %v4120
      %v4127 = vmul.f32 %v4102, %v4120
      %v4128 = vmul.f32 %v4103, %v4120
      %v4129 = vmul.f32 %v4104, %v4120
      %v4130 = vmul.f32 %v4105, %v4120
      %v4131 = vmul.f32 %v4106, %v4120
      %v4132 = vmul.f32 %v4107, %v4120
      %v4133 = vmul.f32 %v4108, %v4120
      %v4134 = vmul.f32 %v4109, %v4120
      %v4135 = vmul.f32 %v4110, %v4120
      %v4136 = vmul.f32 %v4111, %v4120
      %v4137 = vmul.f32 %v4112, %v4120
      %v4138 = vmul.f32 %v4113, %v4120
      %v4139 = vmul.f32 %v4114, %v4120
      %v4140 = vmul.f32 %v4115, %v4120
      %v4141 = vmul.f32 %v4116, %v4120
      %v4142 = vmul.f32 %v4117, %v4120
      %v4143 = vmul.f32 %v4118, %v4120
      %v4144 = vmul.f32 %v4119, %v4120
      %v4145 = vadd.f32 %v4070, %v4121
      %v4146 = vadd.f32 %v4071, %v4122
      %v4147 = vadd.f32 %v4072, %v4123
      %v4148 = vadd.f32 %v4073, %v4124
      %v4149 = vadd.f32 %v4074, %v4125
      %v4150 = vadd.f32 %v4075, %v4126
      %v4151 = vadd.f32 %v4076, %v4127
      %v4152 = vadd.f32 %v4077, %v4128
      %v4153 = vadd.f32 %v4078, %v4129
      %v4154 = vadd.f32 %v4079, %v4130
      %v4155 = vadd.f32 %v4080, %v4131
      %v4156 = vadd.f32 %v4081, %v4132
      %v4157 = vadd.f32 %v4082, %v4133
      %v4158 = vadd.f32 %v4083, %v4134
      %v4159 = vadd.f32 %v4084, %v4135
      %v4160 = vadd.f32 %v4085, %v4136
      %v4161 = vadd.f32 %v4086, %v4137
      %v4162 = vadd.f32 %v4087, %v4138
      %v4163 = vadd.f32 %v4088, %v4139
      %v4164 = vadd.f32 %v4089, %v4140
      %v4165 = vadd.f32 %v4090, %v4141
      %v4166 = vadd.f32 %v4091, %v4142
      %v4167 = vadd.f32 %v4092, %v4143
      %v4168 = vadd.f32 %v4093, %v4144
      %s4169 = sadd.s32 %s2834, 288
      %s4170 = sld [smem:[#allocation8 + %s4169]]
      %s4171 = scalar_lea.vmem [#allocation2], 16
      %v4172 = vld [vmem:[%s4171] sm:$0xff]
      %v4173 = vld [vmem:[%s4171 + $0x8] sm:$0xf]
      %v4174 = vld [vmem:[%s4171 + $0x10] sm:$0xff]
      %v4175 = vld [vmem:[%s4171 + $0x18] sm:$0xf]
      %v4176 = vld [vmem:[%s4171 + $0x20] sm:$0xff]
      %v4177 = vld [vmem:[%s4171 + $0x28] sm:$0xf]
      %v4178 = vld [vmem:[%s4171 + $0x30] sm:$0xff]
      %v4179 = vld [vmem:[%s4171 + $0x38] sm:$0xf]
      %v4180 = vld [vmem:[%s4171 + $0x40] sm:$0xff]
      %v4181 = vld [vmem:[%s4171 + $0x48] sm:$0xf]
      %v4182 = vld [vmem:[%s4171 + $0x50] sm:$0xff]
      %v4183 = vld [vmem:[%s4171 + $0x58] sm:$0xf]
      %v4184 = vld [vmem:[%s4171 + $0x60] sm:$0xff]
      %v4185 = vld [vmem:[%s4171 + $0x68] sm:$0xf]
      %v4186 = vld [vmem:[%s4171 + $0x70] sm:$0xff]
      %v4187 = vld [vmem:[%s4171 + $0x78] sm:$0xf]
      %v4188 = vld [vmem:[%s4171 + $0x80] sm:$0xff]
      %v4189 = vld [vmem:[%s4171 + $0x88] sm:$0xf]
      %v4190 = vld [vmem:[%s4171 + $0x90] sm:$0xff]
      %v4191 = vld [vmem:[%s4171 + $0x98] sm:$0xf]
      %v4192 = vld [vmem:[%s4171 + $0xa0] sm:$0xff]
      %v4193 = vld [vmem:[%s4171 + $0xa8] sm:$0xf]
      %v4194 = vld [vmem:[%s4171 + $0xb0] sm:$0xff]
      %v4195 = vld [vmem:[%s4171 + $0xb8] sm:$0xf]
      %v4196 = vstv %s4170
      %v4197 = vmul.f32 %v4172, %v4196
      %v4198 = vmul.f32 %v4173, %v4196
      %v4199 = vmul.f32 %v4174, %v4196
      %v4200 = vmul.f32 %v4175, %v4196
      %v4201 = vmul.f32 %v4176, %v4196
      %v4202 = vmul.f32 %v4177, %v4196
      %v4203 = vmul.f32 %v4178, %v4196
      %v4204 = vmul.f32 %v4179, %v4196
      %v4205 = vmul.f32 %v4180, %v4196
      %v4206 = vmul.f32 %v4181, %v4196
      %v4207 = vmul.f32 %v4182, %v4196
      %v4208 = vmul.f32 %v4183, %v4196
      %v4209 = vmul.f32 %v4184, %v4196
      %v4210 = vmul.f32 %v4185, %v4196
      %v4211 = vmul.f32 %v4186, %v4196
      %v4212 = vmul.f32 %v4187, %v4196
      %v4213 = vmul.f32 %v4188, %v4196
      %v4214 = vmul.f32 %v4189, %v4196
      %v4215 = vmul.f32 %v4190, %v4196
      %v4216 = vmul.f32 %v4191, %v4196
      %v4217 = vmul.f32 %v4192, %v4196
      %v4218 = vmul.f32 %v4193, %v4196
      %v4219 = vmul.f32 %v4194, %v4196
      %v4220 = vmul.f32 %v4195, %v4196
      %v4221 = vadd.f32 %v4145, %v4197
      %v4222 = vadd.f32 %v4146, %v4198
      %v4223 = vadd.f32 %v4147, %v4199
      %v4224 = vadd.f32 %v4148, %v4200
      %v4225 = vadd.f32 %v4149, %v4201
      %v4226 = vadd.f32 %v4150, %v4202
      %v4227 = vadd.f32 %v4151, %v4203
      %v4228 = vadd.f32 %v4152, %v4204
      %v4229 = vadd.f32 %v4153, %v4205
      %v4230 = vadd.f32 %v4154, %v4206
      %v4231 = vadd.f32 %v4155, %v4207
      %v4232 = vadd.f32 %v4156, %v4208
      %v4233 = vadd.f32 %v4157, %v4209
      %v4234 = vadd.f32 %v4158, %v4210
      %v4235 = vadd.f32 %v4159, %v4211
      %v4236 = vadd.f32 %v4160, %v4212
      %v4237 = vadd.f32 %v4161, %v4213
      %v4238 = vadd.f32 %v4162, %v4214
      %v4239 = vadd.f32 %v4163, %v4215
      %v4240 = vadd.f32 %v4164, %v4216
      %v4241 = vadd.f32 %v4165, %v4217
      %v4242 = vadd.f32 %v4166, %v4218
      %v4243 = vadd.f32 %v4167, %v4219
      %v4244 = vadd.f32 %v4168, %v4220
      %s4245 = sadd.s32 %s2834, 304
      %s4246 = sld [smem:[#allocation8 + %s4245]]
      %s4247 = scalar_lea.vmem [#allocation2], 256
      %v4248 = vld [vmem:[%s4247] sm:$0xff]
      %v4249 = vld [vmem:[%s4247 + $0x8] sm:$0xf]
      %v4250 = vld [vmem:[%s4247 + $0x10] sm:$0xff]
      %v4251 = vld [vmem:[%s4247 + $0x18] sm:$0xf]
      %v4252 = vld [vmem:[%s4247 + $0x20] sm:$0xff]
      %v4253 = vld [vmem:[%s4247 + $0x28] sm:$0xf]
      %v4254 = vld [vmem:[%s4247 + $0x30] sm:$0xff]
      %v4255 = vld [vmem:[%s4247 + $0x38] sm:$0xf]
      %v4256 = vld [vmem:[%s4247 + $0x40] sm:$0xff]
      %v4257 = vld [vmem:[%s4247 + $0x48] sm:$0xf]
      %v4258 = vld [vmem:[%s4247 + $0x50] sm:$0xff]
      %v4259 = vld [vmem:[%s4247 + $0x58] sm:$0xf]
      %v4260 = vld [vmem:[%s4247 + $0x60] sm:$0xff]
      %v4261 = vld [vmem:[%s4247 + $0x68] sm:$0xf]
      %v4262 = vld [vmem:[%s4247 + $0x70] sm:$0xff]
      %v4263 = vld [vmem:[%s4247 + $0x78] sm:$0xf]
      %v4264 = vld [vmem:[%s4247 + $0x80] sm:$0xff]
      %v4265 = vld [vmem:[%s4247 + $0x88] sm:$0xf]
      %v4266 = vld [vmem:[%s4247 + $0x90] sm:$0xff]
      %v4267 = vld [vmem:[%s4247 + $0x98] sm:$0xf]
      %v4268 = vld [vmem:[%s4247 + $0xa0] sm:$0xff]
      %v4269 = vld [vmem:[%s4247 + $0xa8] sm:$0xf]
      %v4270 = vld [vmem:[%s4247 + $0xb0] sm:$0xff]
      %v4271 = vld [vmem:[%s4247 + $0xb8] sm:$0xf]
      %v4272 = vstv %s4246
      %v4273 = vmul.f32 %v4248, %v4272
      %v4274 = vmul.f32 %v4249, %v4272
      %v4275 = vmul.f32 %v4250, %v4272
      %v4276 = vmul.f32 %v4251, %v4272
      %v4277 = vmul.f32 %v4252, %v4272
      %v4278 = vmul.f32 %v4253, %v4272
      %v4279 = vmul.f32 %v4254, %v4272
      %v4280 = vmul.f32 %v4255, %v4272
      %v4281 = vmul.f32 %v4256, %v4272
      %v4282 = vmul.f32 %v4257, %v4272
      %v4283 = vmul.f32 %v4258, %v4272
      %v4284 = vmul.f32 %v4259, %v4272
      %v4285 = vmul.f32 %v4260, %v4272
      %v4286 = vmul.f32 %v4261, %v4272
      %v4287 = vmul.f32 %v4262, %v4272
      %v4288 = vmul.f32 %v4263, %v4272
      %v4289 = vmul.f32 %v4264, %v4272
      %v4290 = vmul.f32 %v4265, %v4272
      %v4291 = vmul.f32 %v4266, %v4272
      %v4292 = vmul.f32 %v4267, %v4272
      %v4293 = vmul.f32 %v4268, %v4272
      %v4294 = vmul.f32 %v4269, %v4272
      %v4295 = vmul.f32 %v4270, %v4272
      %v4296 = vmul.f32 %v4271, %v4272
      %v4297 = vadd.f32 %v4221, %v4273
      %v4298 = vadd.f32 %v4222, %v4274
      %v4299 = vadd.f32 %v4223, %v4275
      %v4300 = vadd.f32 %v4224, %v4276
      %v4301 = vadd.f32 %v4225, %v4277
      %v4302 = vadd.f32 %v4226, %v4278
      %v4303 = vadd.f32 %v4227, %v4279
      %v4304 = vadd.f32 %v4228, %v4280
      %v4305 = vadd.f32 %v4229, %v4281
      %v4306 = vadd.f32 %v4230, %v4282
      %v4307 = vadd.f32 %v4231, %v4283
      %v4308 = vadd.f32 %v4232, %v4284
      %v4309 = vadd.f32 %v4233, %v4285
      %v4310 = vadd.f32 %v4234, %v4286
      %v4311 = vadd.f32 %v4235, %v4287
      %v4312 = vadd.f32 %v4236, %v4288
      %v4313 = vadd.f32 %v4237, %v4289
      %v4314 = vadd.f32 %v4238, %v4290
      %v4315 = vadd.f32 %v4239, %v4291
      %v4316 = vadd.f32 %v4240, %v4292
      %v4317 = vadd.f32 %v4241, %v4293
      %v4318 = vadd.f32 %v4242, %v4294
      %v4319 = vadd.f32 %v4243, %v4295
      %v4320 = vadd.f32 %v4244, %v4296
      %s4321 = sadd.s32 %s2834, 320
      %s4322 = sld [smem:[#allocation8 + %s4321]]
      %s4323 = scalar_lea.vmem [#allocation2], 496
      %v4324 = vld [vmem:[%s4323] sm:$0xff]
      %v4325 = vld [vmem:[%s4323 + $0x8] sm:$0xf]
      %v4326 = vld [vmem:[%s4323 + $0x10] sm:$0xff]
      %v4327 = vld [vmem:[%s4323 + $0x18] sm:$0xf]
      %v4328 = vld [vmem:[%s4323 + $0x20] sm:$0xff]
      %v4329 = vld [vmem:[%s4323 + $0x28] sm:$0xf]
      %v4330 = vld [vmem:[%s4323 + $0x30] sm:$0xff]
      %v4331 = vld [vmem:[%s4323 + $0x38] sm:$0xf]
      %v4332 = vld [vmem:[%s4323 + $0x40] sm:$0xff]
      %v4333 = vld [vmem:[%s4323 + $0x48] sm:$0xf]
      %v4334 = vld [vmem:[%s4323 + $0x50] sm:$0xff]
      %v4335 = vld [vmem:[%s4323 + $0x58] sm:$0xf]
      %v4336 = vld [vmem:[%s4323 + $0x60] sm:$0xff]
      %v4337 = vld [vmem:[%s4323 + $0x68] sm:$0xf]
      %v4338 = vld [vmem:[%s4323 + $0x70] sm:$0xff]
      %v4339 = vld [vmem:[%s4323 + $0x78] sm:$0xf]
      %v4340 = vld [vmem:[%s4323 + $0x80] sm:$0xff]
      %v4341 = vld [vmem:[%s4323 + $0x88] sm:$0xf]
      %v4342 = vld [vmem:[%s4323 + $0x90] sm:$0xff]
      %v4343 = vld [vmem:[%s4323 + $0x98] sm:$0xf]
      %v4344 = vld [vmem:[%s4323 + $0xa0] sm:$0xff]
      %v4345 = vld [vmem:[%s4323 + $0xa8] sm:$0xf]
      %v4346 = vld [vmem:[%s4323 + $0xb0] sm:$0xff]
      %v4347 = vld [vmem:[%s4323 + $0xb8] sm:$0xf]
      %v4348 = vstv %s4322
      %v4349 = vmul.f32 %v4324, %v4348
      %v4350 = vmul.f32 %v4325, %v4348
      %v4351 = vmul.f32 %v4326, %v4348
      %v4352 = vmul.f32 %v4327, %v4348
      %v4353 = vmul.f32 %v4328, %v4348
      %v4354 = vmul.f32 %v4329, %v4348
      %v4355 = vmul.f32 %v4330, %v4348
      %v4356 = vmul.f32 %v4331, %v4348
      %v4357 = vmul.f32 %v4332, %v4348
      %v4358 = vmul.f32 %v4333, %v4348
      %v4359 = vmul.f32 %v4334, %v4348
      %v4360 = vmul.f32 %v4335, %v4348
      %v4361 = vmul.f32 %v4336, %v4348
      %v4362 = vmul.f32 %v4337, %v4348
      %v4363 = vmul.f32 %v4338, %v4348
      %v4364 = vmul.f32 %v4339, %v4348
      %v4365 = vmul.f32 %v4340, %v4348
      %v4366 = vmul.f32 %v4341, %v4348
      %v4367 = vmul.f32 %v4342, %v4348
      %v4368 = vmul.f32 %v4343, %v4348
      %v4369 = vmul.f32 %v4344, %v4348
      %v4370 = vmul.f32 %v4345, %v4348
      %v4371 = vmul.f32 %v4346, %v4348
      %v4372 = vmul.f32 %v4347, %v4348
      %v4373 = vadd.f32 %v4297, %v4349
      %v4374 = vadd.f32 %v4298, %v4350
      %v4375 = vadd.f32 %v4299, %v4351
      %v4376 = vadd.f32 %v4300, %v4352
      %v4377 = vadd.f32 %v4301, %v4353
      %v4378 = vadd.f32 %v4302, %v4354
      %v4379 = vadd.f32 %v4303, %v4355
      %v4380 = vadd.f32 %v4304, %v4356
      %v4381 = vadd.f32 %v4305, %v4357
      %v4382 = vadd.f32 %v4306, %v4358
      %v4383 = vadd.f32 %v4307, %v4359
      %v4384 = vadd.f32 %v4308, %v4360
      %v4385 = vadd.f32 %v4309, %v4361
      %v4386 = vadd.f32 %v4310, %v4362
      %v4387 = vadd.f32 %v4311, %v4363
      %v4388 = vadd.f32 %v4312, %v4364
      %v4389 = vadd.f32 %v4313, %v4365
      %v4390 = vadd.f32 %v4314, %v4366
      %v4391 = vadd.f32 %v4315, %v4367
      %v4392 = vadd.f32 %v4316, %v4368
      %v4393 = vadd.f32 %v4317, %v4369
      %v4394 = vadd.f32 %v4318, %v4370
      %v4395 = vadd.f32 %v4319, %v4371
      %v4396 = vadd.f32 %v4320, %v4372
      %s4397 = sadd.s32 %s2834, 336
      %s4398 = sld [smem:[#allocation8 + %s4397]]
      %s4399 = scalar_lea.vmem [#allocation2], 736
      %v4400 = vld [vmem:[%s4399] sm:$0xff]
      %v4401 = vld [vmem:[%s4399 + $0x8] sm:$0xf]
      %v4402 = vld [vmem:[%s4399 + $0x10] sm:$0xff]
      %v4403 = vld [vmem:[%s4399 + $0x18] sm:$0xf]
      %v4404 = vld [vmem:[%s4399 + $0x20] sm:$0xff]
      %v4405 = vld [vmem:[%s4399 + $0x28] sm:$0xf]
      %v4406 = vld [vmem:[%s4399 + $0x30] sm:$0xff]
      %v4407 = vld [vmem:[%s4399 + $0x38] sm:$0xf]
      %v4408 = vld [vmem:[%s4399 + $0x40] sm:$0xff]
      %v4409 = vld [vmem:[%s4399 + $0x48] sm:$0xf]
      %v4410 = vld [vmem:[%s4399 + $0x50] sm:$0xff]
      %v4411 = vld [vmem:[%s4399 + $0x58] sm:$0xf]
      %v4412 = vld [vmem:[%s4399 + $0x60] sm:$0xff]
      %v4413 = vld [vmem:[%s4399 + $0x68] sm:$0xf]
      %v4414 = vld [vmem:[%s4399 + $0x70] sm:$0xff]
      %v4415 = vld [vmem:[%s4399 + $0x78] sm:$0xf]
      %v4416 = vld [vmem:[%s4399 + $0x80] sm:$0xff]
      %v4417 = vld [vmem:[%s4399 + $0x88] sm:$0xf]
      %v4418 = vld [vmem:[%s4399 + $0x90] sm:$0xff]
      %v4419 = vld [vmem:[%s4399 + $0x98] sm:$0xf]
      %v4420 = vld [vmem:[%s4399 + $0xa0] sm:$0xff]
      %v4421 = vld [vmem:[%s4399 + $0xa8] sm:$0xf]
      %v4422 = vld [vmem:[%s4399 + $0xb0] sm:$0xff]
      %v4423 = vld [vmem:[%s4399 + $0xb8] sm:$0xf]
      %v4424 = vstv %s4398
      %v4425 = vmul.f32 %v4400, %v4424
      %v4426 = vmul.f32 %v4401, %v4424
      %v4427 = vmul.f32 %v4402, %v4424
      %v4428 = vmul.f32 %v4403, %v4424
      %v4429 = vmul.f32 %v4404, %v4424
      %v4430 = vmul.f32 %v4405, %v4424
      %v4431 = vmul.f32 %v4406, %v4424
      %v4432 = vmul.f32 %v4407, %v4424
      %v4433 = vmul.f32 %v4408, %v4424
      %v4434 = vmul.f32 %v4409, %v4424
      %v4435 = vmul.f32 %v4410, %v4424
      %v4436 = vmul.f32 %v4411, %v4424
      %v4437 = vmul.f32 %v4412, %v4424
      %v4438 = vmul.f32 %v4413, %v4424
      %v4439 = vmul.f32 %v4414, %v4424
      %v4440 = vmul.f32 %v4415, %v4424
      %v4441 = vmul.f32 %v4416, %v4424
      %v4442 = vmul.f32 %v4417, %v4424
      %v4443 = vmul.f32 %v4418, %v4424
      %v4444 = vmul.f32 %v4419, %v4424
      %v4445 = vmul.f32 %v4420, %v4424
      %v4446 = vmul.f32 %v4421, %v4424
      %v4447 = vmul.f32 %v4422, %v4424
      %v4448 = vmul.f32 %v4423, %v4424
      %v4449 = vadd.f32 %v4373, %v4425
      %v4450 = vadd.f32 %v4374, %v4426
      %v4451 = vadd.f32 %v4375, %v4427
      %v4452 = vadd.f32 %v4376, %v4428
      %v4453 = vadd.f32 %v4377, %v4429
      %v4454 = vadd.f32 %v4378, %v4430
      %v4455 = vadd.f32 %v4379, %v4431
      %v4456 = vadd.f32 %v4380, %v4432
      %v4457 = vadd.f32 %v4381, %v4433
      %v4458 = vadd.f32 %v4382, %v4434
      %v4459 = vadd.f32 %v4383, %v4435
      %v4460 = vadd.f32 %v4384, %v4436
      %v4461 = vadd.f32 %v4385, %v4437
      %v4462 = vadd.f32 %v4386, %v4438
      %v4463 = vadd.f32 %v4387, %v4439
      %v4464 = vadd.f32 %v4388, %v4440
      %v4465 = vadd.f32 %v4389, %v4441
      %v4466 = vadd.f32 %v4390, %v4442
      %v4467 = vadd.f32 %v4391, %v4443
      %v4468 = vadd.f32 %v4392, %v4444
      %v4469 = vadd.f32 %v4393, %v4445
      %v4470 = vadd.f32 %v4394, %v4446
      %v4471 = vadd.f32 %v4395, %v4447
      %v4472 = vadd.f32 %v4396, %v4448
      %s4473 = sadd.s32 %s2834, 352
      %s4474 = sld [smem:[#allocation8 + %s4473]]
      %s4475 = scalar_lea.vmem [#allocation2], 976
      %v4476 = vld [vmem:[%s4475] sm:$0xff]
      %v4477 = vld [vmem:[%s4475 + $0x8] sm:$0xf]
      %v4478 = vld [vmem:[%s4475 + $0x10] sm:$0xff]
      %v4479 = vld [vmem:[%s4475 + $0x18] sm:$0xf]
      %v4480 = vld [vmem:[%s4475 + $0x20] sm:$0xff]
      %v4481 = vld [vmem:[%s4475 + $0x28] sm:$0xf]
      %v4482 = vld [vmem:[%s4475 + $0x30] sm:$0xff]
      %v4483 = vld [vmem:[%s4475 + $0x38] sm:$0xf]
      %v4484 = vld [vmem:[%s4475 + $0x40] sm:$0xff]
      %v4485 = vld [vmem:[%s4475 + $0x48] sm:$0xf]
      %v4486 = vld [vmem:[%s4475 + $0x50] sm:$0xff]
      %v4487 = vld [vmem:[%s4475 + $0x58] sm:$0xf]
      %v4488 = vld [vmem:[%s4475 + $0x60] sm:$0xff]
      %v4489 = vld [vmem:[%s4475 + $0x68] sm:$0xf]
      %v4490 = vld [vmem:[%s4475 + $0x70] sm:$0xff]
      %v4491 = vld [vmem:[%s4475 + $0x78] sm:$0xf]
      %v4492 = vld [vmem:[%s4475 + $0x80] sm:$0xff]
      %v4493 = vld [vmem:[%s4475 + $0x88] sm:$0xf]
      %v4494 = vld [vmem:[%s4475 + $0x90] sm:$0xff]
      %v4495 = vld [vmem:[%s4475 + $0x98] sm:$0xf]
      %v4496 = vld [vmem:[%s4475 + $0xa0] sm:$0xff]
      %v4497 = vld [vmem:[%s4475 + $0xa8] sm:$0xf]
      %v4498 = vld [vmem:[%s4475 + $0xb0] sm:$0xff]
      %v4499 = vld [vmem:[%s4475 + $0xb8] sm:$0xf]
      %v4500 = vstv %s4474
      %v4501 = vmul.f32 %v4476, %v4500
      %v4502 = vmul.f32 %v4477, %v4500
      %v4503 = vmul.f32 %v4478, %v4500
      %v4504 = vmul.f32 %v4479, %v4500
      %v4505 = vmul.f32 %v4480, %v4500
      %v4506 = vmul.f32 %v4481, %v4500
      %v4507 = vmul.f32 %v4482, %v4500
      %v4508 = vmul.f32 %v4483, %v4500
      %v4509 = vmul.f32 %v4484, %v4500
      %v4510 = vmul.f32 %v4485, %v4500
      %v4511 = vmul.f32 %v4486, %v4500
      %v4512 = vmul.f32 %v4487, %v4500
      %v4513 = vmul.f32 %v4488, %v4500
      %v4514 = vmul.f32 %v4489, %v4500
      %v4515 = vmul.f32 %v4490, %v4500
      %v4516 = vmul.f32 %v4491, %v4500
      %v4517 = vmul.f32 %v4492, %v4500
      %v4518 = vmul.f32 %v4493, %v4500
      %v4519 = vmul.f32 %v4494, %v4500
      %v4520 = vmul.f32 %v4495, %v4500
      %v4521 = vmul.f32 %v4496, %v4500
      %v4522 = vmul.f32 %v4497, %v4500
      %v4523 = vmul.f32 %v4498, %v4500
      %v4524 = vmul.f32 %v4499, %v4500
      %v4525 = vadd.f32 %v4449, %v4501
      %v4526 = vadd.f32 %v4450, %v4502
      %v4527 = vadd.f32 %v4451, %v4503
      %v4528 = vadd.f32 %v4452, %v4504
      %v4529 = vadd.f32 %v4453, %v4505
      %v4530 = vadd.f32 %v4454, %v4506
      %v4531 = vadd.f32 %v4455, %v4507
      %v4532 = vadd.f32 %v4456, %v4508
      %v4533 = vadd.f32 %v4457, %v4509
      %v4534 = vadd.f32 %v4458, %v4510
      %v4535 = vadd.f32 %v4459, %v4511
      %v4536 = vadd.f32 %v4460, %v4512
      %v4537 = vadd.f32 %v4461, %v4513
      %v4538 = vadd.f32 %v4462, %v4514
      %v4539 = vadd.f32 %v4463, %v4515
      %v4540 = vadd.f32 %v4464, %v4516
      %v4541 = vadd.f32 %v4465, %v4517
      %v4542 = vadd.f32 %v4466, %v4518
      %v4543 = vadd.f32 %v4467, %v4519
      %v4544 = vadd.f32 %v4468, %v4520
      %v4545 = vadd.f32 %v4469, %v4521
      %v4546 = vadd.f32 %v4470, %v4522
      %v4547 = vadd.f32 %v4471, %v4523
      %v4548 = vadd.f32 %v4472, %v4524
      %s4549 = sadd.s32 %s2834, 368
      %s4550 = sld [smem:[#allocation8 + %s4549]]
      %s4551 = scalar_lea.vmem [#allocation2], 1216
      %v4552 = vld [vmem:[%s4551] sm:$0xff]
      %v4553 = vld [vmem:[%s4551 + $0x8] sm:$0xf]
      %v4554 = vld [vmem:[%s4551 + $0x10] sm:$0xff]
      %v4555 = vld [vmem:[%s4551 + $0x18] sm:$0xf]
      %v4556 = vld [vmem:[%s4551 + $0x20] sm:$0xff]
      %v4557 = vld [vmem:[%s4551 + $0x28] sm:$0xf]
      %v4558 = vld [vmem:[%s4551 + $0x30] sm:$0xff]
      %v4559 = vld [vmem:[%s4551 + $0x38] sm:$0xf]
      %v4560 = vld [vmem:[%s4551 + $0x40] sm:$0xff]
      %v4561 = vld [vmem:[%s4551 + $0x48] sm:$0xf]
      %v4562 = vld [vmem:[%s4551 + $0x50] sm:$0xff]
      %v4563 = vld [vmem:[%s4551 + $0x58] sm:$0xf]
      %v4564 = vld [vmem:[%s4551 + $0x60] sm:$0xff]
      %v4565 = vld [vmem:[%s4551 + $0x68] sm:$0xf]
      %v4566 = vld [vmem:[%s4551 + $0x70] sm:$0xff]
      %v4567 = vld [vmem:[%s4551 + $0x78] sm:$0xf]
      %v4568 = vld [vmem:[%s4551 + $0x80] sm:$0xff]
      %v4569 = vld [vmem:[%s4551 + $0x88] sm:$0xf]
      %v4570 = vld [vmem:[%s4551 + $0x90] sm:$0xff]
      %v4571 = vld [vmem:[%s4551 + $0x98] sm:$0xf]
      %v4572 = vld [vmem:[%s4551 + $0xa0] sm:$0xff]
      %v4573 = vld [vmem:[%s4551 + $0xa8] sm:$0xf]
      %v4574 = vld [vmem:[%s4551 + $0xb0] sm:$0xff]
      %v4575 = vld [vmem:[%s4551 + $0xb8] sm:$0xf]
      %v4576 = vstv %s4550
      %v4577 = vmul.f32 %v4552, %v4576
      %v4578 = vmul.f32 %v4553, %v4576
      %v4579 = vmul.f32 %v4554, %v4576
      %v4580 = vmul.f32 %v4555, %v4576
      %v4581 = vmul.f32 %v4556, %v4576
      %v4582 = vmul.f32 %v4557, %v4576
      %v4583 = vmul.f32 %v4558, %v4576
      %v4584 = vmul.f32 %v4559, %v4576
      %v4585 = vmul.f32 %v4560, %v4576
      %v4586 = vmul.f32 %v4561, %v4576
      %v4587 = vmul.f32 %v4562, %v4576
      %v4588 = vmul.f32 %v4563, %v4576
      %v4589 = vmul.f32 %v4564, %v4576
      %v4590 = vmul.f32 %v4565, %v4576
      %v4591 = vmul.f32 %v4566, %v4576
      %v4592 = vmul.f32 %v4567, %v4576
      %v4593 = vmul.f32 %v4568, %v4576
      %v4594 = vmul.f32 %v4569, %v4576
      %v4595 = vmul.f32 %v4570, %v4576
      %v4596 = vmul.f32 %v4571, %v4576
      %v4597 = vmul.f32 %v4572, %v4576
      %v4598 = vmul.f32 %v4573, %v4576
      %v4599 = vmul.f32 %v4574, %v4576
      %v4600 = vmul.f32 %v4575, %v4576
      %v4601 = vadd.f32 %v4525, %v4577
      %v4602 = vadd.f32 %v4526, %v4578
      %v4603 = vadd.f32 %v4527, %v4579
      %v4604 = vadd.f32 %v4528, %v4580
      %v4605 = vadd.f32 %v4529, %v4581
      %v4606 = vadd.f32 %v4530, %v4582
      %v4607 = vadd.f32 %v4531, %v4583
      %v4608 = vadd.f32 %v4532, %v4584
      %v4609 = vadd.f32 %v4533, %v4585
      %v4610 = vadd.f32 %v4534, %v4586
      %v4611 = vadd.f32 %v4535, %v4587
      %v4612 = vadd.f32 %v4536, %v4588
      %v4613 = vadd.f32 %v4537, %v4589
      %v4614 = vadd.f32 %v4538, %v4590
      %v4615 = vadd.f32 %v4539, %v4591
      %v4616 = vadd.f32 %v4540, %v4592
      %v4617 = vadd.f32 %v4541, %v4593
      %v4618 = vadd.f32 %v4542, %v4594
      %v4619 = vadd.f32 %v4543, %v4595
      %v4620 = vadd.f32 %v4544, %v4596
      %v4621 = vadd.f32 %v4545, %v4597
      %v4622 = vadd.f32 %v4546, %v4598
      %v4623 = vadd.f32 %v4547, %v4599
      %v4624 = vadd.f32 %v4548, %v4600
      %s4625 = sadd.s32 %s2834, 384
      %s4626 = sld [smem:[#allocation8 + %s4625]]
      %v4627 = vld [vmem:[%s4171 + $0x1] sm:$0xff]
      %v4628 = vld [vmem:[%s4171 + $0x9] sm:$0xf]
      %v4629 = vld [vmem:[%s4171 + $0x11] sm:$0xff]
      %v4630 = vld [vmem:[%s4171 + $0x19] sm:$0xf]
      %v4631 = vld [vmem:[%s4171 + $0x21] sm:$0xff]
      %v4632 = vld [vmem:[%s4171 + $0x29] sm:$0xf]
      %v4633 = vld [vmem:[%s4171 + $0x31] sm:$0xff]
      %v4634 = vld [vmem:[%s4171 + $0x39] sm:$0xf]
      %v4635 = vld [vmem:[%s4171 + $0x41] sm:$0xff]
      %v4636 = vld [vmem:[%s4171 + $0x49] sm:$0xf]
      %v4637 = vld [vmem:[%s4171 + $0x51] sm:$0xff]
      %v4638 = vld [vmem:[%s4171 + $0x59] sm:$0xf]
      %v4639 = vld [vmem:[%s4171 + $0x61] sm:$0xff]
      %v4640 = vld [vmem:[%s4171 + $0x69] sm:$0xf]
      %v4641 = vld [vmem:[%s4171 + $0x71] sm:$0xff]
      %v4642 = vld [vmem:[%s4171 + $0x79] sm:$0xf]
      %v4643 = vld [vmem:[%s4171 + $0x81] sm:$0xff]
      %v4644 = vld [vmem:[%s4171 + $0x89] sm:$0xf]
      %v4645 = vld [vmem:[%s4171 + $0x91] sm:$0xff]
      %v4646 = vld [vmem:[%s4171 + $0x99] sm:$0xf]
      %v4647 = vld [vmem:[%s4171 + $0xa1] sm:$0xff]
      %v4648 = vld [vmem:[%s4171 + $0xa9] sm:$0xf]
      %v4649 = vld [vmem:[%s4171 + $0xb1] sm:$0xff]
      %v4650 = vld [vmem:[%s4171 + $0xb9] sm:$0xf]
      %v4651 = vstv %s4626
      %v4652 = vmul.f32 %v4627, %v4651
      %v4653 = vmul.f32 %v4628, %v4651
      %v4654 = vmul.f32 %v4629, %v4651
      %v4655 = vmul.f32 %v4630, %v4651
      %v4656 = vmul.f32 %v4631, %v4651
      %v4657 = vmul.f32 %v4632, %v4651
      %v4658 = vmul.f32 %v4633, %v4651
      %v4659 = vmul.f32 %v4634, %v4651
      %v4660 = vmul.f32 %v4635, %v4651
      %v4661 = vmul.f32 %v4636, %v4651
      %v4662 = vmul.f32 %v4637, %v4651
      %v4663 = vmul.f32 %v4638, %v4651
      %v4664 = vmul.f32 %v4639, %v4651
      %v4665 = vmul.f32 %v4640, %v4651
      %v4666 = vmul.f32 %v4641, %v4651
      %v4667 = vmul.f32 %v4642, %v4651
      %v4668 = vmul.f32 %v4643, %v4651
      %v4669 = vmul.f32 %v4644, %v4651
      %v4670 = vmul.f32 %v4645, %v4651
      %v4671 = vmul.f32 %v4646, %v4651
      %v4672 = vmul.f32 %v4647, %v4651
      %v4673 = vmul.f32 %v4648, %v4651
      %v4674 = vmul.f32 %v4649, %v4651
      %v4675 = vmul.f32 %v4650, %v4651
      %v4676 = vadd.f32 %v4601, %v4652
      %v4677 = vadd.f32 %v4602, %v4653
      %v4678 = vadd.f32 %v4603, %v4654
      %v4679 = vadd.f32 %v4604, %v4655
      %v4680 = vadd.f32 %v4605, %v4656
      %v4681 = vadd.f32 %v4606, %v4657
      %v4682 = vadd.f32 %v4607, %v4658
      %v4683 = vadd.f32 %v4608, %v4659
      %v4684 = vadd.f32 %v4609, %v4660
      %v4685 = vadd.f32 %v4610, %v4661
      %v4686 = vadd.f32 %v4611, %v4662
      %v4687 = vadd.f32 %v4612, %v4663
      %v4688 = vadd.f32 %v4613, %v4664
      %v4689 = vadd.f32 %v4614, %v4665
      %v4690 = vadd.f32 %v4615, %v4666
      %v4691 = vadd.f32 %v4616, %v4667
      %v4692 = vadd.f32 %v4617, %v4668
      %v4693 = vadd.f32 %v4618, %v4669
      %v4694 = vadd.f32 %v4619, %v4670
      %v4695 = vadd.f32 %v4620, %v4671
      %v4696 = vadd.f32 %v4621, %v4672
      %v4697 = vadd.f32 %v4622, %v4673
      %v4698 = vadd.f32 %v4623, %v4674
      %v4699 = vadd.f32 %v4624, %v4675
      %s4700 = sadd.s32 %s2834, 400
      %s4701 = sld [smem:[#allocation8 + %s4700]]
      %v4702 = vld [vmem:[%s4247 + $0x1] sm:$0xff]
      %v4703 = vld [vmem:[%s4247 + $0x9] sm:$0xf]
      %v4704 = vld [vmem:[%s4247 + $0x11] sm:$0xff]
      %v4705 = vld [vmem:[%s4247 + $0x19] sm:$0xf]
      %v4706 = vld [vmem:[%s4247 + $0x21] sm:$0xff]
      %v4707 = vld [vmem:[%s4247 + $0x29] sm:$0xf]
      %v4708 = vld [vmem:[%s4247 + $0x31] sm:$0xff]
      %v4709 = vld [vmem:[%s4247 + $0x39] sm:$0xf]
      %v4710 = vld [vmem:[%s4247 + $0x41] sm:$0xff]
      %v4711 = vld [vmem:[%s4247 + $0x49] sm:$0xf]
      %v4712 = vld [vmem:[%s4247 + $0x51] sm:$0xff]
      %v4713 = vld [vmem:[%s4247 + $0x59] sm:$0xf]
      %v4714 = vld [vmem:[%s4247 + $0x61] sm:$0xff]
      %v4715 = vld [vmem:[%s4247 + $0x69] sm:$0xf]
      %v4716 = vld [vmem:[%s4247 + $0x71] sm:$0xff]
      %v4717 = vld [vmem:[%s4247 + $0x79] sm:$0xf]
      %v4718 = vld [vmem:[%s4247 + $0x81] sm:$0xff]
      %v4719 = vld [vmem:[%s4247 + $0x89] sm:$0xf]
      %v4720 = vld [vmem:[%s4247 + $0x91] sm:$0xff]
      %v4721 = vld [vmem:[%s4247 + $0x99] sm:$0xf]
      %v4722 = vld [vmem:[%s4247 + $0xa1] sm:$0xff]
      %v4723 = vld [vmem:[%s4247 + $0xa9] sm:$0xf]
      %v4724 = vld [vmem:[%s4247 + $0xb1] sm:$0xff]
      %v4725 = vld [vmem:[%s4247 + $0xb9] sm:$0xf]
      %v4726 = vstv %s4701
      %v4727 = vmul.f32 %v4702, %v4726
      %v4728 = vmul.f32 %v4703, %v4726
      %v4729 = vmul.f32 %v4704, %v4726
      %v4730 = vmul.f32 %v4705, %v4726
      %v4731 = vmul.f32 %v4706, %v4726
      %v4732 = vmul.f32 %v4707, %v4726
      %v4733 = vmul.f32 %v4708, %v4726
      %v4734 = vmul.f32 %v4709, %v4726
      %v4735 = vmul.f32 %v4710, %v4726
      %v4736 = vmul.f32 %v4711, %v4726
      %v4737 = vmul.f32 %v4712, %v4726
      %v4738 = vmul.f32 %v4713, %v4726
      %v4739 = vmul.f32 %v4714, %v4726
      %v4740 = vmul.f32 %v4715, %v4726
      %v4741 = vmul.f32 %v4716, %v4726
      %v4742 = vmul.f32 %v4717, %v4726
      %v4743 = vmul.f32 %v4718, %v4726
      %v4744 = vmul.f32 %v4719, %v4726
      %v4745 = vmul.f32 %v4720, %v4726
      %v4746 = vmul.f32 %v4721, %v4726
      %v4747 = vmul.f32 %v4722, %v4726
      %v4748 = vmul.f32 %v4723, %v4726
      %v4749 = vmul.f32 %v4724, %v4726
      %v4750 = vmul.f32 %v4725, %v4726
      %v4751 = vadd.f32 %v4676, %v4727
      %v4752 = vadd.f32 %v4677, %v4728
      %v4753 = vadd.f32 %v4678, %v4729
      %v4754 = vadd.f32 %v4679, %v4730
      %v4755 = vadd.f32 %v4680, %v4731
      %v4756 = vadd.f32 %v4681, %v4732
      %v4757 = vadd.f32 %v4682, %v4733
      %v4758 = vadd.f32 %v4683, %v4734
      %v4759 = vadd.f32 %v4684, %v4735
      %v4760 = vadd.f32 %v4685, %v4736
      %v4761 = vadd.f32 %v4686, %v4737
      %v4762 = vadd.f32 %v4687, %v4738
      %v4763 = vadd.f32 %v4688, %v4739
      %v4764 = vadd.f32 %v4689, %v4740
      %v4765 = vadd.f32 %v4690, %v4741
      %v4766 = vadd.f32 %v4691, %v4742
      %v4767 = vadd.f32 %v4692, %v4743
      %v4768 = vadd.f32 %v4693, %v4744
      %v4769 = vadd.f32 %v4694, %v4745
      %v4770 = vadd.f32 %v4695, %v4746
      %v4771 = vadd.f32 %v4696, %v4747
      %v4772 = vadd.f32 %v4697, %v4748
      %v4773 = vadd.f32 %v4698, %v4749
      %v4774 = vadd.f32 %v4699, %v4750
      %s4775 = sadd.s32 %s2834, 416
      %s4776 = sld [smem:[#allocation8 + %s4775]]
      %v4777 = vld [vmem:[%s4323 + $0x1] sm:$0xff]
      %v4778 = vld [vmem:[%s4323 + $0x9] sm:$0xf]
      %v4779 = vld [vmem:[%s4323 + $0x11] sm:$0xff]
      %v4780 = vld [vmem:[%s4323 + $0x19] sm:$0xf]
      %v4781 = vld [vmem:[%s4323 + $0x21] sm:$0xff]
      %v4782 = vld [vmem:[%s4323 + $0x29] sm:$0xf]
      %v4783 = vld [vmem:[%s4323 + $0x31] sm:$0xff]
      %v4784 = vld [vmem:[%s4323 + $0x39] sm:$0xf]
      %v4785 = vld [vmem:[%s4323 + $0x41] sm:$0xff]
      %v4786 = vld [vmem:[%s4323 + $0x49] sm:$0xf]
      %v4787 = vld [vmem:[%s4323 + $0x51] sm:$0xff]
      %v4788 = vld [vmem:[%s4323 + $0x59] sm:$0xf]
      %v4789 = vld [vmem:[%s4323 + $0x61] sm:$0xff]
      %v4790 = vld [vmem:[%s4323 + $0x69] sm:$0xf]
      %v4791 = vld [vmem:[%s4323 + $0x71] sm:$0xff]
      %v4792 = vld [vmem:[%s4323 + $0x79] sm:$0xf]
      %v4793 = vld [vmem:[%s4323 + $0x81] sm:$0xff]
      %v4794 = vld [vmem:[%s4323 + $0x89] sm:$0xf]
      %v4795 = vld [vmem:[%s4323 + $0x91] sm:$0xff]
      %v4796 = vld [vmem:[%s4323 + $0x99] sm:$0xf]
      %v4797 = vld [vmem:[%s4323 + $0xa1] sm:$0xff]
      %v4798 = vld [vmem:[%s4323 + $0xa9] sm:$0xf]
      %v4799 = vld [vmem:[%s4323 + $0xb1] sm:$0xff]
      %v4800 = vld [vmem:[%s4323 + $0xb9] sm:$0xf]
      %v4801 = vstv %s4776
      %v4802 = vmul.f32 %v4777, %v4801
      %v4803 = vmul.f32 %v4778, %v4801
      %v4804 = vmul.f32 %v4779, %v4801
      %v4805 = vmul.f32 %v4780, %v4801
      %v4806 = vmul.f32 %v4781, %v4801
      %v4807 = vmul.f32 %v4782, %v4801
      %v4808 = vmul.f32 %v4783, %v4801
      %v4809 = vmul.f32 %v4784, %v4801
      %v4810 = vmul.f32 %v4785, %v4801
      %v4811 = vmul.f32 %v4786, %v4801
      %v4812 = vmul.f32 %v4787, %v4801
      %v4813 = vmul.f32 %v4788, %v4801
      %v4814 = vmul.f32 %v4789, %v4801
      %v4815 = vmul.f32 %v4790, %v4801
      %v4816 = vmul.f32 %v4791, %v4801
      %v4817 = vmul.f32 %v4792, %v4801
      %v4818 = vmul.f32 %v4793, %v4801
      %v4819 = vmul.f32 %v4794, %v4801
      %v4820 = vmul.f32 %v4795, %v4801
      %v4821 = vmul.f32 %v4796, %v4801
      %v4822 = vmul.f32 %v4797, %v4801
      %v4823 = vmul.f32 %v4798, %v4801
      %v4824 = vmul.f32 %v4799, %v4801
      %v4825 = vmul.f32 %v4800, %v4801
      %v4826 = vadd.f32 %v4751, %v4802
      %v4827 = vadd.f32 %v4752, %v4803
      %v4828 = vadd.f32 %v4753, %v4804
      %v4829 = vadd.f32 %v4754, %v4805
      %v4830 = vadd.f32 %v4755, %v4806
      %v4831 = vadd.f32 %v4756, %v4807
      %v4832 = vadd.f32 %v4757, %v4808
      %v4833 = vadd.f32 %v4758, %v4809
      %v4834 = vadd.f32 %v4759, %v4810
      %v4835 = vadd.f32 %v4760, %v4811
      %v4836 = vadd.f32 %v4761, %v4812
      %v4837 = vadd.f32 %v4762, %v4813
      %v4838 = vadd.f32 %v4763, %v4814
      %v4839 = vadd.f32 %v4764, %v4815
      %v4840 = vadd.f32 %v4765, %v4816
      %v4841 = vadd.f32 %v4766, %v4817
      %v4842 = vadd.f32 %v4767, %v4818
      %v4843 = vadd.f32 %v4768, %v4819
      %v4844 = vadd.f32 %v4769, %v4820
      %v4845 = vadd.f32 %v4770, %v4821
      %v4846 = vadd.f32 %v4771, %v4822
      %v4847 = vadd.f32 %v4772, %v4823
      %v4848 = vadd.f32 %v4773, %v4824
      %v4849 = vadd.f32 %v4774, %v4825
      %s4850 = sadd.s32 %s2834, 432
      %s4851 = sld [smem:[#allocation8 + %s4850]]
      %v4852 = vld [vmem:[%s4399 + $0x1] sm:$0xff]
      %v4853 = vld [vmem:[%s4399 + $0x9] sm:$0xf]
      %v4854 = vld [vmem:[%s4399 + $0x11] sm:$0xff]
      %v4855 = vld [vmem:[%s4399 + $0x19] sm:$0xf]
      %v4856 = vld [vmem:[%s4399 + $0x21] sm:$0xff]
      %v4857 = vld [vmem:[%s4399 + $0x29] sm:$0xf]
      %v4858 = vld [vmem:[%s4399 + $0x31] sm:$0xff]
      %v4859 = vld [vmem:[%s4399 + $0x39] sm:$0xf]
      %v4860 = vld [vmem:[%s4399 + $0x41] sm:$0xff]
      %v4861 = vld [vmem:[%s4399 + $0x49] sm:$0xf]
      %v4862 = vld [vmem:[%s4399 + $0x51] sm:$0xff]
      %v4863 = vld [vmem:[%s4399 + $0x59] sm:$0xf]
      %v4864 = vld [vmem:[%s4399 + $0x61] sm:$0xff]
      %v4865 = vld [vmem:[%s4399 + $0x69] sm:$0xf]
      %v4866 = vld [vmem:[%s4399 + $0x71] sm:$0xff]
      %v4867 = vld [vmem:[%s4399 + $0x79] sm:$0xf]
      %v4868 = vld [vmem:[%s4399 + $0x81] sm:$0xff]
      %v4869 = vld [vmem:[%s4399 + $0x89] sm:$0xf]
      %v4870 = vld [vmem:[%s4399 + $0x91] sm:$0xff]
      %v4871 = vld [vmem:[%s4399 + $0x99] sm:$0xf]
      %v4872 = vld [vmem:[%s4399 + $0xa1] sm:$0xff]
      %v4873 = vld [vmem:[%s4399 + $0xa9] sm:$0xf]
      %v4874 = vld [vmem:[%s4399 + $0xb1] sm:$0xff]
      %v4875 = vld [vmem:[%s4399 + $0xb9] sm:$0xf]
      %v4876 = vstv %s4851
      %v4877 = vmul.f32 %v4852, %v4876
      %v4878 = vmul.f32 %v4853, %v4876
      %v4879 = vmul.f32 %v4854, %v4876
      %v4880 = vmul.f32 %v4855, %v4876
      %v4881 = vmul.f32 %v4856, %v4876
      %v4882 = vmul.f32 %v4857, %v4876
      %v4883 = vmul.f32 %v4858, %v4876
      %v4884 = vmul.f32 %v4859, %v4876
      %v4885 = vmul.f32 %v4860, %v4876
      %v4886 = vmul.f32 %v4861, %v4876
      %v4887 = vmul.f32 %v4862, %v4876
      %v4888 = vmul.f32 %v4863, %v4876
      %v4889 = vmul.f32 %v4864, %v4876
      %v4890 = vmul.f32 %v4865, %v4876
      %v4891 = vmul.f32 %v4866, %v4876
      %v4892 = vmul.f32 %v4867, %v4876
      %v4893 = vmul.f32 %v4868, %v4876
      %v4894 = vmul.f32 %v4869, %v4876
      %v4895 = vmul.f32 %v4870, %v4876
      %v4896 = vmul.f32 %v4871, %v4876
      %v4897 = vmul.f32 %v4872, %v4876
      %v4898 = vmul.f32 %v4873, %v4876
      %v4899 = vmul.f32 %v4874, %v4876
      %v4900 = vmul.f32 %v4875, %v4876
      %v4901 = vadd.f32 %v4826, %v4877
      %v4902 = vadd.f32 %v4827, %v4878
      %v4903 = vadd.f32 %v4828, %v4879
      %v4904 = vadd.f32 %v4829, %v4880
      %v4905 = vadd.f32 %v4830, %v4881
      %v4906 = vadd.f32 %v4831, %v4882
      %v4907 = vadd.f32 %v4832, %v4883
      %v4908 = vadd.f32 %v4833, %v4884
      %v4909 = vadd.f32 %v4834, %v4885
      %v4910 = vadd.f32 %v4835, %v4886
      %v4911 = vadd.f32 %v4836, %v4887
      %v4912 = vadd.f32 %v4837, %v4888
      %v4913 = vadd.f32 %v4838, %v4889
      %v4914 = vadd.f32 %v4839, %v4890
      %v4915 = vadd.f32 %v4840, %v4891
      %v4916 = vadd.f32 %v4841, %v4892
      %v4917 = vadd.f32 %v4842, %v4893
      %v4918 = vadd.f32 %v4843, %v4894
      %v4919 = vadd.f32 %v4844, %v4895
      %v4920 = vadd.f32 %v4845, %v4896
      %v4921 = vadd.f32 %v4846, %v4897
      %v4922 = vadd.f32 %v4847, %v4898
      %v4923 = vadd.f32 %v4848, %v4899
      %v4924 = vadd.f32 %v4849, %v4900
      %s4925 = sadd.s32 %s2834, 448
      %s4926 = sld [smem:[#allocation8 + %s4925]]
      %v4927 = vld [vmem:[%s4475 + $0x1] sm:$0xff]
      %v4928 = vld [vmem:[%s4475 + $0x9] sm:$0xf]
      %v4929 = vld [vmem:[%s4475 + $0x11] sm:$0xff]
      %v4930 = vld [vmem:[%s4475 + $0x19] sm:$0xf]
      %v4931 = vld [vmem:[%s4475 + $0x21] sm:$0xff]
      %v4932 = vld [vmem:[%s4475 + $0x29] sm:$0xf]
      %v4933 = vld [vmem:[%s4475 + $0x31] sm:$0xff]
      %v4934 = vld [vmem:[%s4475 + $0x39] sm:$0xf]
      %v4935 = vld [vmem:[%s4475 + $0x41] sm:$0xff]
      %v4936 = vld [vmem:[%s4475 + $0x49] sm:$0xf]
      %v4937 = vld [vmem:[%s4475 + $0x51] sm:$0xff]
      %v4938 = vld [vmem:[%s4475 + $0x59] sm:$0xf]
      %v4939 = vld [vmem:[%s4475 + $0x61] sm:$0xff]
      %v4940 = vld [vmem:[%s4475 + $0x69] sm:$0xf]
      %v4941 = vld [vmem:[%s4475 + $0x71] sm:$0xff]
      %v4942 = vld [vmem:[%s4475 + $0x79] sm:$0xf]
      %v4943 = vld [vmem:[%s4475 + $0x81] sm:$0xff]
      %v4944 = vld [vmem:[%s4475 + $0x89] sm:$0xf]
      %v4945 = vld [vmem:[%s4475 + $0x91] sm:$0xff]
      %v4946 = vld [vmem:[%s4475 + $0x99] sm:$0xf]
      %v4947 = vld [vmem:[%s4475 + $0xa1] sm:$0xff]
      %v4948 = vld [vmem:[%s4475 + $0xa9] sm:$0xf]
      %v4949 = vld [vmem:[%s4475 + $0xb1] sm:$0xff]
      %v4950 = vld [vmem:[%s4475 + $0xb9] sm:$0xf]
      %v4951 = vstv %s4926
      %v4952 = vmul.f32 %v4927, %v4951
      %v4953 = vmul.f32 %v4928, %v4951
      %v4954 = vmul.f32 %v4929, %v4951
      %v4955 = vmul.f32 %v4930, %v4951
      %v4956 = vmul.f32 %v4931, %v4951
      %v4957 = vmul.f32 %v4932, %v4951
      %v4958 = vmul.f32 %v4933, %v4951
      %v4959 = vmul.f32 %v4934, %v4951
      %v4960 = vmul.f32 %v4935, %v4951
      %v4961 = vmul.f32 %v4936, %v4951
      %v4962 = vmul.f32 %v4937, %v4951
      %v4963 = vmul.f32 %v4938, %v4951
      %v4964 = vmul.f32 %v4939, %v4951
      %v4965 = vmul.f32 %v4940, %v4951
      %v4966 = vmul.f32 %v4941, %v4951
      %v4967 = vmul.f32 %v4942, %v4951
      %v4968 = vmul.f32 %v4943, %v4951
      %v4969 = vmul.f32 %v4944, %v4951
      %v4970 = vmul.f32 %v4945, %v4951
      %v4971 = vmul.f32 %v4946, %v4951
      %v4972 = vmul.f32 %v4947, %v4951
      %v4973 = vmul.f32 %v4948, %v4951
      %v4974 = vmul.f32 %v4949, %v4951
      %v4975 = vmul.f32 %v4950, %v4951
      %v4976 = vadd.f32 %v4901, %v4952
      %v4977 = vadd.f32 %v4902, %v4953
      %v4978 = vadd.f32 %v4903, %v4954
      %v4979 = vadd.f32 %v4904, %v4955
      %v4980 = vadd.f32 %v4905, %v4956
      %v4981 = vadd.f32 %v4906, %v4957
      %v4982 = vadd.f32 %v4907, %v4958
      %v4983 = vadd.f32 %v4908, %v4959
      %v4984 = vadd.f32 %v4909, %v4960
      %v4985 = vadd.f32 %v4910, %v4961
      %v4986 = vadd.f32 %v4911, %v4962
      %v4987 = vadd.f32 %v4912, %v4963
      %v4988 = vadd.f32 %v4913, %v4964
      %v4989 = vadd.f32 %v4914, %v4965
      %v4990 = vadd.f32 %v4915, %v4966
      %v4991 = vadd.f32 %v4916, %v4967
      %v4992 = vadd.f32 %v4917, %v4968
      %v4993 = vadd.f32 %v4918, %v4969
      %v4994 = vadd.f32 %v4919, %v4970
      %v4995 = vadd.f32 %v4920, %v4971
      %v4996 = vadd.f32 %v4921, %v4972
      %v4997 = vadd.f32 %v4922, %v4973
      %v4998 = vadd.f32 %v4923, %v4974
      %v4999 = vadd.f32 %v4924, %v4975
      %s5000 = sadd.s32 %s2834, 464
      %s5001 = sld [smem:[#allocation8 + %s5000]]
      %v5002 = vld [vmem:[%s4551 + $0x1] sm:$0xff]
      %v5003 = vld [vmem:[%s4551 + $0x9] sm:$0xf]
      %v5004 = vld [vmem:[%s4551 + $0x11] sm:$0xff]
      %v5005 = vld [vmem:[%s4551 + $0x19] sm:$0xf]
      %v5006 = vld [vmem:[%s4551 + $0x21] sm:$0xff]
      %v5007 = vld [vmem:[%s4551 + $0x29] sm:$0xf]
      %v5008 = vld [vmem:[%s4551 + $0x31] sm:$0xff]
      %v5009 = vld [vmem:[%s4551 + $0x39] sm:$0xf]
      %v5010 = vld [vmem:[%s4551 + $0x41] sm:$0xff]
      %v5011 = vld [vmem:[%s4551 + $0x49] sm:$0xf]
      %v5012 = vld [vmem:[%s4551 + $0x51] sm:$0xff]
      %v5013 = vld [vmem:[%s4551 + $0x59] sm:$0xf]
      %v5014 = vld [vmem:[%s4551 + $0x61] sm:$0xff]
      %v5015 = vld [vmem:[%s4551 + $0x69] sm:$0xf]
      %v5016 = vld [vmem:[%s4551 + $0x71] sm:$0xff]
      %v5017 = vld [vmem:[%s4551 + $0x79] sm:$0xf]
      %v5018 = vld [vmem:[%s4551 + $0x81] sm:$0xff]
      %v5019 = vld [vmem:[%s4551 + $0x89] sm:$0xf]
      %v5020 = vld [vmem:[%s4551 + $0x91] sm:$0xff]
      %v5021 = vld [vmem:[%s4551 + $0x99] sm:$0xf]
      %v5022 = vld [vmem:[%s4551 + $0xa1] sm:$0xff]
      %v5023 = vld [vmem:[%s4551 + $0xa9] sm:$0xf]
      %v5024 = vld [vmem:[%s4551 + $0xb1] sm:$0xff]
      %v5025 = vld [vmem:[%s4551 + $0xb9] sm:$0xf]
      %v5026 = vstv %s5001
      %v5027 = vmul.f32 %v5002, %v5026
      %v5028 = vmul.f32 %v5003, %v5026
      %v5029 = vmul.f32 %v5004, %v5026
      %v5030 = vmul.f32 %v5005, %v5026
      %v5031 = vmul.f32 %v5006, %v5026
      %v5032 = vmul.f32 %v5007, %v5026
      %v5033 = vmul.f32 %v5008, %v5026
      %v5034 = vmul.f32 %v5009, %v5026
      %v5035 = vmul.f32 %v5010, %v5026
      %v5036 = vmul.f32 %v5011, %v5026
      %v5037 = vmul.f32 %v5012, %v5026
      %v5038 = vmul.f32 %v5013, %v5026
      %v5039 = vmul.f32 %v5014, %v5026
      %v5040 = vmul.f32 %v5015, %v5026
      %v5041 = vmul.f32 %v5016, %v5026
      %v5042 = vmul.f32 %v5017, %v5026
      %v5043 = vmul.f32 %v5018, %v5026
      %v5044 = vmul.f32 %v5019, %v5026
      %v5045 = vmul.f32 %v5020, %v5026
      %v5046 = vmul.f32 %v5021, %v5026
      %v5047 = vmul.f32 %v5022, %v5026
      %v5048 = vmul.f32 %v5023, %v5026
      %v5049 = vmul.f32 %v5024, %v5026
      %v5050 = vmul.f32 %v5025, %v5026
      %v5051 = vadd.f32 %v4976, %v5027
      %v5052 = vadd.f32 %v4977, %v5028
      %v5053 = vadd.f32 %v4978, %v5029
      %v5054 = vadd.f32 %v4979, %v5030
      %v5055 = vadd.f32 %v4980, %v5031
      %v5056 = vadd.f32 %v4981, %v5032
      %v5057 = vadd.f32 %v4982, %v5033
      %v5058 = vadd.f32 %v4983, %v5034
      %v5059 = vadd.f32 %v4984, %v5035
      %v5060 = vadd.f32 %v4985, %v5036
      %v5061 = vadd.f32 %v4986, %v5037
      %v5062 = vadd.f32 %v4987, %v5038
      %v5063 = vadd.f32 %v4988, %v5039
      %v5064 = vadd.f32 %v4989, %v5040
      %v5065 = vadd.f32 %v4990, %v5041
      %v5066 = vadd.f32 %v4991, %v5042
      %v5067 = vadd.f32 %v4992, %v5043
      %v5068 = vadd.f32 %v4993, %v5044
      %v5069 = vadd.f32 %v4994, %v5045
      %v5070 = vadd.f32 %v4995, %v5046
      %v5071 = vadd.f32 %v4996, %v5047
      %v5072 = vadd.f32 %v4997, %v5048
      %v5073 = vadd.f32 %v4998, %v5049
      %v5074 = vadd.f32 %v4999, %v5050
      %s5075 = sadd.s32 %s2834, 480
      %s5076 = sld [smem:[#allocation8 + %s5075]]
      %v5077 = vld [vmem:[%s4171 + $0x2] sm:$0xff]
      %v5078 = vld [vmem:[%s4171 + $0xa] sm:$0xf]
      %v5079 = vld [vmem:[%s4171 + $0x12] sm:$0xff]
      %v5080 = vld [vmem:[%s4171 + $0x1a] sm:$0xf]
      %v5081 = vld [vmem:[%s4171 + $0x22] sm:$0xff]
      %v5082 = vld [vmem:[%s4171 + $0x2a] sm:$0xf]
      %v5083 = vld [vmem:[%s4171 + $0x32] sm:$0xff]
      %v5084 = vld [vmem:[%s4171 + $0x3a] sm:$0xf]
      %v5085 = vld [vmem:[%s4171 + $0x42] sm:$0xff]
      %v5086 = vld [vmem:[%s4171 + $0x4a] sm:$0xf]
      %v5087 = vld [vmem:[%s4171 + $0x52] sm:$0xff]
      %v5088 = vld [vmem:[%s4171 + $0x5a] sm:$0xf]
      %v5089 = vld [vmem:[%s4171 + $0x62] sm:$0xff]
      %v5090 = vld [vmem:[%s4171 + $0x6a] sm:$0xf]
      %v5091 = vld [vmem:[%s4171 + $0x72] sm:$0xff]
      %v5092 = vld [vmem:[%s4171 + $0x7a] sm:$0xf]
      %v5093 = vld [vmem:[%s4171 + $0x82] sm:$0xff]
      %v5094 = vld [vmem:[%s4171 + $0x8a] sm:$0xf]
      %v5095 = vld [vmem:[%s4171 + $0x92] sm:$0xff]
      %v5096 = vld [vmem:[%s4171 + $0x9a] sm:$0xf]
      %v5097 = vld [vmem:[%s4171 + $0xa2] sm:$0xff]
      %v5098 = vld [vmem:[%s4171 + $0xaa] sm:$0xf]
      %v5099 = vld [vmem:[%s4171 + $0xb2] sm:$0xff]
      %v5100 = vld [vmem:[%s4171 + $0xba] sm:$0xf]
      %v5101 = vstv %s5076
      %v5102 = vmul.f32 %v5077, %v5101
      %v5103 = vmul.f32 %v5078, %v5101
      %v5104 = vmul.f32 %v5079, %v5101
      %v5105 = vmul.f32 %v5080, %v5101
      %v5106 = vmul.f32 %v5081, %v5101
      %v5107 = vmul.f32 %v5082, %v5101
      %v5108 = vmul.f32 %v5083, %v5101
      %v5109 = vmul.f32 %v5084, %v5101
      %v5110 = vmul.f32 %v5085, %v5101
      %v5111 = vmul.f32 %v5086, %v5101
      %v5112 = vmul.f32 %v5087, %v5101
      %v5113 = vmul.f32 %v5088, %v5101
      %v5114 = vmul.f32 %v5089, %v5101
      %v5115 = vmul.f32 %v5090, %v5101
      %v5116 = vmul.f32 %v5091, %v5101
      %v5117 = vmul.f32 %v5092, %v5101
      %v5118 = vmul.f32 %v5093, %v5101
      %v5119 = vmul.f32 %v5094, %v5101
      %v5120 = vmul.f32 %v5095, %v5101
      %v5121 = vmul.f32 %v5096, %v5101
      %v5122 = vmul.f32 %v5097, %v5101
      %v5123 = vmul.f32 %v5098, %v5101
      %v5124 = vmul.f32 %v5099, %v5101
      %v5125 = vmul.f32 %v5100, %v5101
      %v5126 = vadd.f32 %v5051, %v5102
      %v5127 = vadd.f32 %v5052, %v5103
      %v5128 = vadd.f32 %v5053, %v5104
      %v5129 = vadd.f32 %v5054, %v5105
      %v5130 = vadd.f32 %v5055, %v5106
      %v5131 = vadd.f32 %v5056, %v5107
      %v5132 = vadd.f32 %v5057, %v5108
      %v5133 = vadd.f32 %v5058, %v5109
      %v5134 = vadd.f32 %v5059, %v5110
      %v5135 = vadd.f32 %v5060, %v5111
      %v5136 = vadd.f32 %v5061, %v5112
      %v5137 = vadd.f32 %v5062, %v5113
      %v5138 = vadd.f32 %v5063, %v5114
      %v5139 = vadd.f32 %v5064, %v5115
      %v5140 = vadd.f32 %v5065, %v5116
      %v5141 = vadd.f32 %v5066, %v5117
      %v5142 = vadd.f32 %v5067, %v5118
      %v5143 = vadd.f32 %v5068, %v5119
      %v5144 = vadd.f32 %v5069, %v5120
      %v5145 = vadd.f32 %v5070, %v5121
      %v5146 = vadd.f32 %v5071, %v5122
      %v5147 = vadd.f32 %v5072, %v5123
      %v5148 = vadd.f32 %v5073, %v5124
      %v5149 = vadd.f32 %v5074, %v5125
      %s5150 = sadd.s32 %s2834, 496
      %s5151 = sld [smem:[#allocation8 + %s5150]]
      %v5152 = vld [vmem:[%s4247 + $0x2] sm:$0xff]
      %v5153 = vld [vmem:[%s4247 + $0xa] sm:$0xf]
      %v5154 = vld [vmem:[%s4247 + $0x12] sm:$0xff]
      %v5155 = vld [vmem:[%s4247 + $0x1a] sm:$0xf]
      %v5156 = vld [vmem:[%s4247 + $0x22] sm:$0xff]
      %v5157 = vld [vmem:[%s4247 + $0x2a] sm:$0xf]
      %v5158 = vld [vmem:[%s4247 + $0x32] sm:$0xff]
      %v5159 = vld [vmem:[%s4247 + $0x3a] sm:$0xf]
      %v5160 = vld [vmem:[%s4247 + $0x42] sm:$0xff]
      %v5161 = vld [vmem:[%s4247 + $0x4a] sm:$0xf]
      %v5162 = vld [vmem:[%s4247 + $0x52] sm:$0xff]
      %v5163 = vld [vmem:[%s4247 + $0x5a] sm:$0xf]
      %v5164 = vld [vmem:[%s4247 + $0x62] sm:$0xff]
      %v5165 = vld [vmem:[%s4247 + $0x6a] sm:$0xf]
      %v5166 = vld [vmem:[%s4247 + $0x72] sm:$0xff]
      %v5167 = vld [vmem:[%s4247 + $0x7a] sm:$0xf]
      %v5168 = vld [vmem:[%s4247 + $0x82] sm:$0xff]
      %v5169 = vld [vmem:[%s4247 + $0x8a] sm:$0xf]
      %v5170 = vld [vmem:[%s4247 + $0x92] sm:$0xff]
      %v5171 = vld [vmem:[%s4247 + $0x9a] sm:$0xf]
      %v5172 = vld [vmem:[%s4247 + $0xa2] sm:$0xff]
      %v5173 = vld [vmem:[%s4247 + $0xaa] sm:$0xf]
      %v5174 = vld [vmem:[%s4247 + $0xb2] sm:$0xff]
      %v5175 = vld [vmem:[%s4247 + $0xba] sm:$0xf]
      %v5176 = vstv %s5151
      %v5177 = vmul.f32 %v5152, %v5176
      %v5178 = vmul.f32 %v5153, %v5176
      %v5179 = vmul.f32 %v5154, %v5176
      %v5180 = vmul.f32 %v5155, %v5176
      %v5181 = vmul.f32 %v5156, %v5176
      %v5182 = vmul.f32 %v5157, %v5176
      %v5183 = vmul.f32 %v5158, %v5176
      %v5184 = vmul.f32 %v5159, %v5176
      %v5185 = vmul.f32 %v5160, %v5176
      %v5186 = vmul.f32 %v5161, %v5176
      %v5187 = vmul.f32 %v5162, %v5176
      %v5188 = vmul.f32 %v5163, %v5176
      %v5189 = vmul.f32 %v5164, %v5176
      %v5190 = vmul.f32 %v5165, %v5176
      %v5191 = vmul.f32 %v5166, %v5176
      %v5192 = vmul.f32 %v5167, %v5176
      %v5193 = vmul.f32 %v5168, %v5176
      %v5194 = vmul.f32 %v5169, %v5176
      %v5195 = vmul.f32 %v5170, %v5176
      %v5196 = vmul.f32 %v5171, %v5176
      %v5197 = vmul.f32 %v5172, %v5176
      %v5198 = vmul.f32 %v5173, %v5176
      %v5199 = vmul.f32 %v5174, %v5176
      %v5200 = vmul.f32 %v5175, %v5176
      %v5201 = vadd.f32 %v5126, %v5177
      %v5202 = vadd.f32 %v5127, %v5178
      %v5203 = vadd.f32 %v5128, %v5179
      %v5204 = vadd.f32 %v5129, %v5180
      %v5205 = vadd.f32 %v5130, %v5181
      %v5206 = vadd.f32 %v5131, %v5182
      %v5207 = vadd.f32 %v5132, %v5183
      %v5208 = vadd.f32 %v5133, %v5184
      %v5209 = vadd.f32 %v5134, %v5185
      %v5210 = vadd.f32 %v5135, %v5186
      %v5211 = vadd.f32 %v5136, %v5187
      %v5212 = vadd.f32 %v5137, %v5188
      %v5213 = vadd.f32 %v5138, %v5189
      %v5214 = vadd.f32 %v5139, %v5190
      %v5215 = vadd.f32 %v5140, %v5191
      %v5216 = vadd.f32 %v5141, %v5192
      %v5217 = vadd.f32 %v5142, %v5193
      %v5218 = vadd.f32 %v5143, %v5194
      %v5219 = vadd.f32 %v5144, %v5195
      %v5220 = vadd.f32 %v5145, %v5196
      %v5221 = vadd.f32 %v5146, %v5197
      %v5222 = vadd.f32 %v5147, %v5198
      %v5223 = vadd.f32 %v5148, %v5199
      %v5224 = vadd.f32 %v5149, %v5200
      %s5225 = sadd.s32 %s2834, 512
      %s5226 = sld [smem:[#allocation8 + %s5225]]
      %v5227 = vld [vmem:[%s4323 + $0x2] sm:$0xff]
      %v5228 = vld [vmem:[%s4323 + $0xa] sm:$0xf]
      %v5229 = vld [vmem:[%s4323 + $0x12] sm:$0xff]
      %v5230 = vld [vmem:[%s4323 + $0x1a] sm:$0xf]
      %v5231 = vld [vmem:[%s4323 + $0x22] sm:$0xff]
      %v5232 = vld [vmem:[%s4323 + $0x2a] sm:$0xf]
      %v5233 = vld [vmem:[%s4323 + $0x32] sm:$0xff]
      %v5234 = vld [vmem:[%s4323 + $0x3a] sm:$0xf]
      %v5235 = vld [vmem:[%s4323 + $0x42] sm:$0xff]
      %v5236 = vld [vmem:[%s4323 + $0x4a] sm:$0xf]
      %v5237 = vld [vmem:[%s4323 + $0x52] sm:$0xff]
      %v5238 = vld [vmem:[%s4323 + $0x5a] sm:$0xf]
      %v5239 = vld [vmem:[%s4323 + $0x62] sm:$0xff]
      %v5240 = vld [vmem:[%s4323 + $0x6a] sm:$0xf]
      %v5241 = vld [vmem:[%s4323 + $0x72] sm:$0xff]
      %v5242 = vld [vmem:[%s4323 + $0x7a] sm:$0xf]
      %v5243 = vld [vmem:[%s4323 + $0x82] sm:$0xff]
      %v5244 = vld [vmem:[%s4323 + $0x8a] sm:$0xf]
      %v5245 = vld [vmem:[%s4323 + $0x92] sm:$0xff]
      %v5246 = vld [vmem:[%s4323 + $0x9a] sm:$0xf]
      %v5247 = vld [vmem:[%s4323 + $0xa2] sm:$0xff]
      %v5248 = vld [vmem:[%s4323 + $0xaa] sm:$0xf]
      %v5249 = vld [vmem:[%s4323 + $0xb2] sm:$0xff]
      %v5250 = vld [vmem:[%s4323 + $0xba] sm:$0xf]
      %v5251 = vstv %s5226
      %v5252 = vmul.f32 %v5227, %v5251
      %v5253 = vmul.f32 %v5228, %v5251
      %v5254 = vmul.f32 %v5229, %v5251
      %v5255 = vmul.f32 %v5230, %v5251
      %v5256 = vmul.f32 %v5231, %v5251
      %v5257 = vmul.f32 %v5232, %v5251
      %v5258 = vmul.f32 %v5233, %v5251
      %v5259 = vmul.f32 %v5234, %v5251
      %v5260 = vmul.f32 %v5235, %v5251
      %v5261 = vmul.f32 %v5236, %v5251
      %v5262 = vmul.f32 %v5237, %v5251
      %v5263 = vmul.f32 %v5238, %v5251
      %v5264 = vmul.f32 %v5239, %v5251
      %v5265 = vmul.f32 %v5240, %v5251
      %v5266 = vmul.f32 %v5241, %v5251
      %v5267 = vmul.f32 %v5242, %v5251
      %v5268 = vmul.f32 %v5243, %v5251
      %v5269 = vmul.f32 %v5244, %v5251
      %v5270 = vmul.f32 %v5245, %v5251
      %v5271 = vmul.f32 %v5246, %v5251
      %v5272 = vmul.f32 %v5247, %v5251
      %v5273 = vmul.f32 %v5248, %v5251
      %v5274 = vmul.f32 %v5249, %v5251
      %v5275 = vmul.f32 %v5250, %v5251
      %v5276 = vadd.f32 %v5201, %v5252
      %v5277 = vadd.f32 %v5202, %v5253
      %v5278 = vadd.f32 %v5203, %v5254
      %v5279 = vadd.f32 %v5204, %v5255
      %v5280 = vadd.f32 %v5205, %v5256
      %v5281 = vadd.f32 %v5206, %v5257
      %v5282 = vadd.f32 %v5207, %v5258
      %v5283 = vadd.f32 %v5208, %v5259
      %v5284 = vadd.f32 %v5209, %v5260
      %v5285 = vadd.f32 %v5210, %v5261
      %v5286 = vadd.f32 %v5211, %v5262
      %v5287 = vadd.f32 %v5212, %v5263
      %v5288 = vadd.f32 %v5213, %v5264
      %v5289 = vadd.f32 %v5214, %v5265
      %v5290 = vadd.f32 %v5215, %v5266
      %v5291 = vadd.f32 %v5216, %v5267
      %v5292 = vadd.f32 %v5217, %v5268
      %v5293 = vadd.f32 %v5218, %v5269
      %v5294 = vadd.f32 %v5219, %v5270
      %v5295 = vadd.f32 %v5220, %v5271
      %v5296 = vadd.f32 %v5221, %v5272
      %v5297 = vadd.f32 %v5222, %v5273
      %v5298 = vadd.f32 %v5223, %v5274
      %v5299 = vadd.f32 %v5224, %v5275
      %s5300 = sadd.s32 %s2834, 528
      %s5301 = sld [smem:[#allocation8 + %s5300]]
      %v5302 = vld [vmem:[%s4399 + $0x2] sm:$0xff]
      %v5303 = vld [vmem:[%s4399 + $0xa] sm:$0xf]
      %v5304 = vld [vmem:[%s4399 + $0x12] sm:$0xff]
      %v5305 = vld [vmem:[%s4399 + $0x1a] sm:$0xf]
      %v5306 = vld [vmem:[%s4399 + $0x22] sm:$0xff]
      %v5307 = vld [vmem:[%s4399 + $0x2a] sm:$0xf]
      %v5308 = vld [vmem:[%s4399 + $0x32] sm:$0xff]
      %v5309 = vld [vmem:[%s4399 + $0x3a] sm:$0xf]
      %v5310 = vld [vmem:[%s4399 + $0x42] sm:$0xff]
      %v5311 = vld [vmem:[%s4399 + $0x4a] sm:$0xf]
      %v5312 = vld [vmem:[%s4399 + $0x52] sm:$0xff]
      %v5313 = vld [vmem:[%s4399 + $0x5a] sm:$0xf]
      %v5314 = vld [vmem:[%s4399 + $0x62] sm:$0xff]
      %v5315 = vld [vmem:[%s4399 + $0x6a] sm:$0xf]
      %v5316 = vld [vmem:[%s4399 + $0x72] sm:$0xff]
      %v5317 = vld [vmem:[%s4399 + $0x7a] sm:$0xf]
      %v5318 = vld [vmem:[%s4399 + $0x82] sm:$0xff]
      %v5319 = vld [vmem:[%s4399 + $0x8a] sm:$0xf]
      %v5320 = vld [vmem:[%s4399 + $0x92] sm:$0xff]
      %v5321 = vld [vmem:[%s4399 + $0x9a] sm:$0xf]
      %v5322 = vld [vmem:[%s4399 + $0xa2] sm:$0xff]
      %v5323 = vld [vmem:[%s4399 + $0xaa] sm:$0xf]
      %v5324 = vld [vmem:[%s4399 + $0xb2] sm:$0xff]
      %v5325 = vld [vmem:[%s4399 + $0xba] sm:$0xf]
      %v5326 = vstv %s5301
      %v5327 = vmul.f32 %v5302, %v5326
      %v5328 = vmul.f32 %v5303, %v5326
      %v5329 = vmul.f32 %v5304, %v5326
      %v5330 = vmul.f32 %v5305, %v5326
      %v5331 = vmul.f32 %v5306, %v5326
      %v5332 = vmul.f32 %v5307, %v5326
      %v5333 = vmul.f32 %v5308, %v5326
      %v5334 = vmul.f32 %v5309, %v5326
      %v5335 = vmul.f32 %v5310, %v5326
      %v5336 = vmul.f32 %v5311, %v5326
      %v5337 = vmul.f32 %v5312, %v5326
      %v5338 = vmul.f32 %v5313, %v5326
      %v5339 = vmul.f32 %v5314, %v5326
      %v5340 = vmul.f32 %v5315, %v5326
      %v5341 = vmul.f32 %v5316, %v5326
      %v5342 = vmul.f32 %v5317, %v5326
      %v5343 = vmul.f32 %v5318, %v5326
      %v5344 = vmul.f32 %v5319, %v5326
      %v5345 = vmul.f32 %v5320, %v5326
      %v5346 = vmul.f32 %v5321, %v5326
      %v5347 = vmul.f32 %v5322, %v5326
      %v5348 = vmul.f32 %v5323, %v5326
      %v5349 = vmul.f32 %v5324, %v5326
      %v5350 = vmul.f32 %v5325, %v5326
      %v5351 = vadd.f32 %v5276, %v5327
      %v5352 = vadd.f32 %v5277, %v5328
      %v5353 = vadd.f32 %v5278, %v5329
      %v5354 = vadd.f32 %v5279, %v5330
      %v5355 = vadd.f32 %v5280, %v5331
      %v5356 = vadd.f32 %v5281, %v5332
      %v5357 = vadd.f32 %v5282, %v5333
      %v5358 = vadd.f32 %v5283, %v5334
      %v5359 = vadd.f32 %v5284, %v5335
      %v5360 = vadd.f32 %v5285, %v5336
      %v5361 = vadd.f32 %v5286, %v5337
      %v5362 = vadd.f32 %v5287, %v5338
      %v5363 = vadd.f32 %v5288, %v5339
      %v5364 = vadd.f32 %v5289, %v5340
      %v5365 = vadd.f32 %v5290, %v5341
      %v5366 = vadd.f32 %v5291, %v5342
      %v5367 = vadd.f32 %v5292, %v5343
      %v5368 = vadd.f32 %v5293, %v5344
      %v5369 = vadd.f32 %v5294, %v5345
      %v5370 = vadd.f32 %v5295, %v5346
      %v5371 = vadd.f32 %v5296, %v5347
      %v5372 = vadd.f32 %v5297, %v5348
      %v5373 = vadd.f32 %v5298, %v5349
      %v5374 = vadd.f32 %v5299, %v5350
      %s5375 = sadd.s32 %s2834, 544
      %s5376 = sld [smem:[#allocation8 + %s5375]]
      %v5377 = vld [vmem:[%s4475 + $0x2] sm:$0xff]
      %v5378 = vld [vmem:[%s4475 + $0xa] sm:$0xf]
      %v5379 = vld [vmem:[%s4475 + $0x12] sm:$0xff]
      %v5380 = vld [vmem:[%s4475 + $0x1a] sm:$0xf]
      %v5381 = vld [vmem:[%s4475 + $0x22] sm:$0xff]
      %v5382 = vld [vmem:[%s4475 + $0x2a] sm:$0xf]
      %v5383 = vld [vmem:[%s4475 + $0x32] sm:$0xff]
      %v5384 = vld [vmem:[%s4475 + $0x3a] sm:$0xf]
      %v5385 = vld [vmem:[%s4475 + $0x42] sm:$0xff]
      %v5386 = vld [vmem:[%s4475 + $0x4a] sm:$0xf]
      %v5387 = vld [vmem:[%s4475 + $0x52] sm:$0xff]
      %v5388 = vld [vmem:[%s4475 + $0x5a] sm:$0xf]
      %v5389 = vld [vmem:[%s4475 + $0x62] sm:$0xff]
      %v5390 = vld [vmem:[%s4475 + $0x6a] sm:$0xf]
      %v5391 = vld [vmem:[%s4475 + $0x72] sm:$0xff]
      %v5392 = vld [vmem:[%s4475 + $0x7a] sm:$0xf]
      %v5393 = vld [vmem:[%s4475 + $0x82] sm:$0xff]
      %v5394 = vld [vmem:[%s4475 + $0x8a] sm:$0xf]
      %v5395 = vld [vmem:[%s4475 + $0x92] sm:$0xff]
      %v5396 = vld [vmem:[%s4475 + $0x9a] sm:$0xf]
      %v5397 = vld [vmem:[%s4475 + $0xa2] sm:$0xff]
      %v5398 = vld [vmem:[%s4475 + $0xaa] sm:$0xf]
      %v5399 = vld [vmem:[%s4475 + $0xb2] sm:$0xff]
      %v5400 = vld [vmem:[%s4475 + $0xba] sm:$0xf]
      %v5401 = vstv %s5376
      %v5402 = vmul.f32 %v5377, %v5401
      %v5403 = vmul.f32 %v5378, %v5401
      %v5404 = vmul.f32 %v5379, %v5401
      %v5405 = vmul.f32 %v5380, %v5401
      %v5406 = vmul.f32 %v5381, %v5401
      %v5407 = vmul.f32 %v5382, %v5401
      %v5408 = vmul.f32 %v5383, %v5401
      %v5409 = vmul.f32 %v5384, %v5401
      %v5410 = vmul.f32 %v5385, %v5401
      %v5411 = vmul.f32 %v5386, %v5401
      %v5412 = vmul.f32 %v5387, %v5401
      %v5413 = vmul.f32 %v5388, %v5401
      %v5414 = vmul.f32 %v5389, %v5401
      %v5415 = vmul.f32 %v5390, %v5401
      %v5416 = vmul.f32 %v5391, %v5401
      %v5417 = vmul.f32 %v5392, %v5401
      %v5418 = vmul.f32 %v5393, %v5401
      %v5419 = vmul.f32 %v5394, %v5401
      %v5420 = vmul.f32 %v5395, %v5401
      %v5421 = vmul.f32 %v5396, %v5401
      %v5422 = vmul.f32 %v5397, %v5401
      %v5423 = vmul.f32 %v5398, %v5401
      %v5424 = vmul.f32 %v5399, %v5401
      %v5425 = vmul.f32 %v5400, %v5401
      %v5426 = vadd.f32 %v5351, %v5402
      %v5427 = vadd.f32 %v5352, %v5403
      %v5428 = vadd.f32 %v5353, %v5404
      %v5429 = vadd.f32 %v5354, %v5405
      %v5430 = vadd.f32 %v5355, %v5406
      %v5431 = vadd.f32 %v5356, %v5407
      %v5432 = vadd.f32 %v5357, %v5408
      %v5433 = vadd.f32 %v5358, %v5409
      %v5434 = vadd.f32 %v5359, %v5410
      %v5435 = vadd.f32 %v5360, %v5411
      %v5436 = vadd.f32 %v5361, %v5412
      %v5437 = vadd.f32 %v5362, %v5413
      %v5438 = vadd.f32 %v5363, %v5414
      %v5439 = vadd.f32 %v5364, %v5415
      %v5440 = vadd.f32 %v5365, %v5416
      %v5441 = vadd.f32 %v5366, %v5417
      %v5442 = vadd.f32 %v5367, %v5418
      %v5443 = vadd.f32 %v5368, %v5419
      %v5444 = vadd.f32 %v5369, %v5420
      %v5445 = vadd.f32 %v5370, %v5421
      %v5446 = vadd.f32 %v5371, %v5422
      %v5447 = vadd.f32 %v5372, %v5423
      %v5448 = vadd.f32 %v5373, %v5424
      %v5449 = vadd.f32 %v5374, %v5425
      %s5450 = sadd.s32 %s2834, 560
      %s5451 = sld [smem:[#allocation8 + %s5450]]
      %v5452 = vld [vmem:[%s4551 + $0x2] sm:$0xff]
      %v5453 = vld [vmem:[%s4551 + $0xa] sm:$0xf]
      %v5454 = vld [vmem:[%s4551 + $0x12] sm:$0xff]
      %v5455 = vld [vmem:[%s4551 + $0x1a] sm:$0xf]
      %v5456 = vld [vmem:[%s4551 + $0x22] sm:$0xff]
      %v5457 = vld [vmem:[%s4551 + $0x2a] sm:$0xf]
      %v5458 = vld [vmem:[%s4551 + $0x32] sm:$0xff]
      %v5459 = vld [vmem:[%s4551 + $0x3a] sm:$0xf]
      %v5460 = vld [vmem:[%s4551 + $0x42] sm:$0xff]
      %v5461 = vld [vmem:[%s4551 + $0x4a] sm:$0xf]
      %v5462 = vld [vmem:[%s4551 + $0x52] sm:$0xff]
      %v5463 = vld [vmem:[%s4551 + $0x5a] sm:$0xf]
      %v5464 = vld [vmem:[%s4551 + $0x62] sm:$0xff]
      %v5465 = vld [vmem:[%s4551 + $0x6a] sm:$0xf]
      %v5466 = vld [vmem:[%s4551 + $0x72] sm:$0xff]
      %v5467 = vld [vmem:[%s4551 + $0x7a] sm:$0xf]
      %v5468 = vld [vmem:[%s4551 + $0x82] sm:$0xff]
      %v5469 = vld [vmem:[%s4551 + $0x8a] sm:$0xf]
      %v5470 = vld [vmem:[%s4551 + $0x92] sm:$0xff]
      %v5471 = vld [vmem:[%s4551 + $0x9a] sm:$0xf]
      %v5472 = vld [vmem:[%s4551 + $0xa2] sm:$0xff]
      %v5473 = vld [vmem:[%s4551 + $0xaa] sm:$0xf]
      %v5474 = vld [vmem:[%s4551 + $0xb2] sm:$0xff]
      %v5475 = vld [vmem:[%s4551 + $0xba] sm:$0xf]
      %v5476 = vstv %s5451
      %v5477 = vmul.f32 %v5452, %v5476
      %v5478 = vmul.f32 %v5453, %v5476
      %v5479 = vmul.f32 %v5454, %v5476
      %v5480 = vmul.f32 %v5455, %v5476
      %v5481 = vmul.f32 %v5456, %v5476
      %v5482 = vmul.f32 %v5457, %v5476
      %v5483 = vmul.f32 %v5458, %v5476
      %v5484 = vmul.f32 %v5459, %v5476
      %v5485 = vmul.f32 %v5460, %v5476
      %v5486 = vmul.f32 %v5461, %v5476
      %v5487 = vmul.f32 %v5462, %v5476
      %v5488 = vmul.f32 %v5463, %v5476
      %v5489 = vmul.f32 %v5464, %v5476
      %v5490 = vmul.f32 %v5465, %v5476
      %v5491 = vmul.f32 %v5466, %v5476
      %v5492 = vmul.f32 %v5467, %v5476
      %v5493 = vmul.f32 %v5468, %v5476
      %v5494 = vmul.f32 %v5469, %v5476
      %v5495 = vmul.f32 %v5470, %v5476
      %v5496 = vmul.f32 %v5471, %v5476
      %v5497 = vmul.f32 %v5472, %v5476
      %v5498 = vmul.f32 %v5473, %v5476
      %v5499 = vmul.f32 %v5474, %v5476
      %v5500 = vmul.f32 %v5475, %v5476
      %v5501 = vadd.f32 %v5426, %v5477
      %v5502 = vadd.f32 %v5427, %v5478
      %v5503 = vadd.f32 %v5428, %v5479
      %v5504 = vadd.f32 %v5429, %v5480
      %v5505 = vadd.f32 %v5430, %v5481
      %v5506 = vadd.f32 %v5431, %v5482
      %v5507 = vadd.f32 %v5432, %v5483
      %v5508 = vadd.f32 %v5433, %v5484
      %v5509 = vadd.f32 %v5434, %v5485
      %v5510 = vadd.f32 %v5435, %v5486
      %v5511 = vadd.f32 %v5436, %v5487
      %v5512 = vadd.f32 %v5437, %v5488
      %v5513 = vadd.f32 %v5438, %v5489
      %v5514 = vadd.f32 %v5439, %v5490
      %v5515 = vadd.f32 %v5440, %v5491
      %v5516 = vadd.f32 %v5441, %v5492
      %v5517 = vadd.f32 %v5442, %v5493
      %v5518 = vadd.f32 %v5443, %v5494
      %v5519 = vadd.f32 %v5444, %v5495
      %v5520 = vadd.f32 %v5445, %v5496
      %v5521 = vadd.f32 %v5446, %v5497
      %v5522 = vadd.f32 %v5447, %v5498
      %v5523 = vadd.f32 %v5448, %v5499
      %v5524 = vadd.f32 %v5449, %v5500
      %s5525 = sadd.s32 %s2834, 576
      %s5526 = sld [smem:[#allocation8 + %s5525]]
      %s5527 = scalar_lea.vmem [#allocation2], 32
      %v5528 = vld [vmem:[%s5527] sm:$0xff]
      %v5529 = vld [vmem:[%s5527 + $0x8] sm:$0xf]
      %v5530 = vld [vmem:[%s5527 + $0x10] sm:$0xff]
      %v5531 = vld [vmem:[%s5527 + $0x18] sm:$0xf]
      %v5532 = vld [vmem:[%s5527 + $0x20] sm:$0xff]
      %v5533 = vld [vmem:[%s5527 + $0x28] sm:$0xf]
      %v5534 = vld [vmem:[%s5527 + $0x30] sm:$0xff]
      %v5535 = vld [vmem:[%s5527 + $0x38] sm:$0xf]
      %v5536 = vld [vmem:[%s5527 + $0x40] sm:$0xff]
      %v5537 = vld [vmem:[%s5527 + $0x48] sm:$0xf]
      %v5538 = vld [vmem:[%s5527 + $0x50] sm:$0xff]
      %v5539 = vld [vmem:[%s5527 + $0x58] sm:$0xf]
      %v5540 = vld [vmem:[%s5527 + $0x60] sm:$0xff]
      %v5541 = vld [vmem:[%s5527 + $0x68] sm:$0xf]
      %v5542 = vld [vmem:[%s5527 + $0x70] sm:$0xff]
      %v5543 = vld [vmem:[%s5527 + $0x78] sm:$0xf]
      %v5544 = vld [vmem:[%s5527 + $0x80] sm:$0xff]
      %v5545 = vld [vmem:[%s5527 + $0x88] sm:$0xf]
      %v5546 = vld [vmem:[%s5527 + $0x90] sm:$0xff]
      %v5547 = vld [vmem:[%s5527 + $0x98] sm:$0xf]
      %v5548 = vld [vmem:[%s5527 + $0xa0] sm:$0xff]
      %v5549 = vld [vmem:[%s5527 + $0xa8] sm:$0xf]
      %v5550 = vld [vmem:[%s5527 + $0xb0] sm:$0xff]
      %v5551 = vld [vmem:[%s5527 + $0xb8] sm:$0xf]
      %v5552 = vstv %s5526
      %v5553 = vmul.f32 %v5528, %v5552
      %v5554 = vmul.f32 %v5529, %v5552
      %v5555 = vmul.f32 %v5530, %v5552
      %v5556 = vmul.f32 %v5531, %v5552
      %v5557 = vmul.f32 %v5532, %v5552
      %v5558 = vmul.f32 %v5533, %v5552
      %v5559 = vmul.f32 %v5534, %v5552
      %v5560 = vmul.f32 %v5535, %v5552
      %v5561 = vmul.f32 %v5536, %v5552
      %v5562 = vmul.f32 %v5537, %v5552
      %v5563 = vmul.f32 %v5538, %v5552
      %v5564 = vmul.f32 %v5539, %v5552
      %v5565 = vmul.f32 %v5540, %v5552
      %v5566 = vmul.f32 %v5541, %v5552
      %v5567 = vmul.f32 %v5542, %v5552
      %v5568 = vmul.f32 %v5543, %v5552
      %v5569 = vmul.f32 %v5544, %v5552
      %v5570 = vmul.f32 %v5545, %v5552
      %v5571 = vmul.f32 %v5546, %v5552
      %v5572 = vmul.f32 %v5547, %v5552
      %v5573 = vmul.f32 %v5548, %v5552
      %v5574 = vmul.f32 %v5549, %v5552
      %v5575 = vmul.f32 %v5550, %v5552
      %v5576 = vmul.f32 %v5551, %v5552
      %v5577 = vadd.f32 %v5501, %v5553
      %v5578 = vadd.f32 %v5502, %v5554
      %v5579 = vadd.f32 %v5503, %v5555
      %v5580 = vadd.f32 %v5504, %v5556
      %v5581 = vadd.f32 %v5505, %v5557
      %v5582 = vadd.f32 %v5506, %v5558
      %v5583 = vadd.f32 %v5507, %v5559
      %v5584 = vadd.f32 %v5508, %v5560
      %v5585 = vadd.f32 %v5509, %v5561
      %v5586 = vadd.f32 %v5510, %v5562
      %v5587 = vadd.f32 %v5511, %v5563
      %v5588 = vadd.f32 %v5512, %v5564
      %v5589 = vadd.f32 %v5513, %v5565
      %v5590 = vadd.f32 %v5514, %v5566
      %v5591 = vadd.f32 %v5515, %v5567
      %v5592 = vadd.f32 %v5516, %v5568
      %v5593 = vadd.f32 %v5517, %v5569
      %v5594 = vadd.f32 %v5518, %v5570
      %v5595 = vadd.f32 %v5519, %v5571
      %v5596 = vadd.f32 %v5520, %v5572
      %v5597 = vadd.f32 %v5521, %v5573
      %v5598 = vadd.f32 %v5522, %v5574
      %v5599 = vadd.f32 %v5523, %v5575
      %v5600 = vadd.f32 %v5524, %v5576
      %s5601 = sadd.s32 %s2834, 592
      %s5602 = sld [smem:[#allocation8 + %s5601]]
      %s5603 = scalar_lea.vmem [#allocation2], 272
      %v5604 = vld [vmem:[%s5603] sm:$0xff]
      %v5605 = vld [vmem:[%s5603 + $0x8] sm:$0xf]
      %v5606 = vld [vmem:[%s5603 + $0x10] sm:$0xff]
      %v5607 = vld [vmem:[%s5603 + $0x18] sm:$0xf]
      %v5608 = vld [vmem:[%s5603 + $0x20] sm:$0xff]
      %v5609 = vld [vmem:[%s5603 + $0x28] sm:$0xf]
      %v5610 = vld [vmem:[%s5603 + $0x30] sm:$0xff]
      %v5611 = vld [vmem:[%s5603 + $0x38] sm:$0xf]
      %v5612 = vld [vmem:[%s5603 + $0x40] sm:$0xff]
      %v5613 = vld [vmem:[%s5603 + $0x48] sm:$0xf]
      %v5614 = vld [vmem:[%s5603 + $0x50] sm:$0xff]
      %v5615 = vld [vmem:[%s5603 + $0x58] sm:$0xf]
      %v5616 = vld [vmem:[%s5603 + $0x60] sm:$0xff]
      %v5617 = vld [vmem:[%s5603 + $0x68] sm:$0xf]
      %v5618 = vld [vmem:[%s5603 + $0x70] sm:$0xff]
      %v5619 = vld [vmem:[%s5603 + $0x78] sm:$0xf]
      %v5620 = vld [vmem:[%s5603 + $0x80] sm:$0xff]
      %v5621 = vld [vmem:[%s5603 + $0x88] sm:$0xf]
      %v5622 = vld [vmem:[%s5603 + $0x90] sm:$0xff]
      %v5623 = vld [vmem:[%s5603 + $0x98] sm:$0xf]
      %v5624 = vld [vmem:[%s5603 + $0xa0] sm:$0xff]
      %v5625 = vld [vmem:[%s5603 + $0xa8] sm:$0xf]
      %v5626 = vld [vmem:[%s5603 + $0xb0] sm:$0xff]
      %v5627 = vld [vmem:[%s5603 + $0xb8] sm:$0xf]
      %v5628 = vstv %s5602
      %v5629 = vmul.f32 %v5604, %v5628
      %v5630 = vmul.f32 %v5605, %v5628
      %v5631 = vmul.f32 %v5606, %v5628
      %v5632 = vmul.f32 %v5607, %v5628
      %v5633 = vmul.f32 %v5608, %v5628
      %v5634 = vmul.f32 %v5609, %v5628
      %v5635 = vmul.f32 %v5610, %v5628
      %v5636 = vmul.f32 %v5611, %v5628
      %v5637 = vmul.f32 %v5612, %v5628
      %v5638 = vmul.f32 %v5613, %v5628
      %v5639 = vmul.f32 %v5614, %v5628
      %v5640 = vmul.f32 %v5615, %v5628
      %v5641 = vmul.f32 %v5616, %v5628
      %v5642 = vmul.f32 %v5617, %v5628
      %v5643 = vmul.f32 %v5618, %v5628
      %v5644 = vmul.f32 %v5619, %v5628
      %v5645 = vmul.f32 %v5620, %v5628
      %v5646 = vmul.f32 %v5621, %v5628
      %v5647 = vmul.f32 %v5622, %v5628
      %v5648 = vmul.f32 %v5623, %v5628
      %v5649 = vmul.f32 %v5624, %v5628
      %v5650 = vmul.f32 %v5625, %v5628
      %v5651 = vmul.f32 %v5626, %v5628
      %v5652 = vmul.f32 %v5627, %v5628
      %v5653 = vadd.f32 %v5577, %v5629
      %v5654 = vadd.f32 %v5578, %v5630
      %v5655 = vadd.f32 %v5579, %v5631
      %v5656 = vadd.f32 %v5580, %v5632
      %v5657 = vadd.f32 %v5581, %v5633
      %v5658 = vadd.f32 %v5582, %v5634
      %v5659 = vadd.f32 %v5583, %v5635
      %v5660 = vadd.f32 %v5584, %v5636
      %v5661 = vadd.f32 %v5585, %v5637
      %v5662 = vadd.f32 %v5586, %v5638
      %v5663 = vadd.f32 %v5587, %v5639
      %v5664 = vadd.f32 %v5588, %v5640
      %v5665 = vadd.f32 %v5589, %v5641
      %v5666 = vadd.f32 %v5590, %v5642
      %v5667 = vadd.f32 %v5591, %v5643
      %v5668 = vadd.f32 %v5592, %v5644
      %v5669 = vadd.f32 %v5593, %v5645
      %v5670 = vadd.f32 %v5594, %v5646
      %v5671 = vadd.f32 %v5595, %v5647
      %v5672 = vadd.f32 %v5596, %v5648
      %v5673 = vadd.f32 %v5597, %v5649
      %v5674 = vadd.f32 %v5598, %v5650
      %v5675 = vadd.f32 %v5599, %v5651
      %v5676 = vadd.f32 %v5600, %v5652
      %s5677 = sadd.s32 %s2834, 608
      %s5678 = sld [smem:[#allocation8 + %s5677]]
      %s5679 = scalar_lea.vmem [#allocation2], 512
      %v5680 = vld [vmem:[%s5679] sm:$0xff]
      %v5681 = vld [vmem:[%s5679 + $0x8] sm:$0xf]
      %v5682 = vld [vmem:[%s5679 + $0x10] sm:$0xff]
      %v5683 = vld [vmem:[%s5679 + $0x18] sm:$0xf]
      %v5684 = vld [vmem:[%s5679 + $0x20] sm:$0xff]
      %v5685 = vld [vmem:[%s5679 + $0x28] sm:$0xf]
      %v5686 = vld [vmem:[%s5679 + $0x30] sm:$0xff]
      %v5687 = vld [vmem:[%s5679 + $0x38] sm:$0xf]
      %v5688 = vld [vmem:[%s5679 + $0x40] sm:$0xff]
      %v5689 = vld [vmem:[%s5679 + $0x48] sm:$0xf]
      %v5690 = vld [vmem:[%s5679 + $0x50] sm:$0xff]
      %v5691 = vld [vmem:[%s5679 + $0x58] sm:$0xf]
      %v5692 = vld [vmem:[%s5679 + $0x60] sm:$0xff]
      %v5693 = vld [vmem:[%s5679 + $0x68] sm:$0xf]
      %v5694 = vld [vmem:[%s5679 + $0x70] sm:$0xff]
      %v5695 = vld [vmem:[%s5679 + $0x78] sm:$0xf]
      %v5696 = vld [vmem:[%s5679 + $0x80] sm:$0xff]
      %v5697 = vld [vmem:[%s5679 + $0x88] sm:$0xf]
      %v5698 = vld [vmem:[%s5679 + $0x90] sm:$0xff]
      %v5699 = vld [vmem:[%s5679 + $0x98] sm:$0xf]
      %v5700 = vld [vmem:[%s5679 + $0xa0] sm:$0xff]
      %v5701 = vld [vmem:[%s5679 + $0xa8] sm:$0xf]
      %v5702 = vld [vmem:[%s5679 + $0xb0] sm:$0xff]
      %v5703 = vld [vmem:[%s5679 + $0xb8] sm:$0xf]
      %v5704 = vstv %s5678
      %v5705 = vmul.f32 %v5680, %v5704
      %v5706 = vmul.f32 %v5681, %v5704
      %v5707 = vmul.f32 %v5682, %v5704
      %v5708 = vmul.f32 %v5683, %v5704
      %v5709 = vmul.f32 %v5684, %v5704
      %v5710 = vmul.f32 %v5685, %v5704
      %v5711 = vmul.f32 %v5686, %v5704
      %v5712 = vmul.f32 %v5687, %v5704
      %v5713 = vmul.f32 %v5688, %v5704
      %v5714 = vmul.f32 %v5689, %v5704
      %v5715 = vmul.f32 %v5690, %v5704
      %v5716 = vmul.f32 %v5691, %v5704
      %v5717 = vmul.f32 %v5692, %v5704
      %v5718 = vmul.f32 %v5693, %v5704
      %v5719 = vmul.f32 %v5694, %v5704
      %v5720 = vmul.f32 %v5695, %v5704
      %v5721 = vmul.f32 %v5696, %v5704
      %v5722 = vmul.f32 %v5697, %v5704
      %v5723 = vmul.f32 %v5698, %v5704
      %v5724 = vmul.f32 %v5699, %v5704
      %v5725 = vmul.f32 %v5700, %v5704
      %v5726 = vmul.f32 %v5701, %v5704
      %v5727 = vmul.f32 %v5702, %v5704
      %v5728 = vmul.f32 %v5703, %v5704
      %v5729 = vadd.f32 %v5653, %v5705
      %v5730 = vadd.f32 %v5654, %v5706
      %v5731 = vadd.f32 %v5655, %v5707
      %v5732 = vadd.f32 %v5656, %v5708
      %v5733 = vadd.f32 %v5657, %v5709
      %v5734 = vadd.f32 %v5658, %v5710
      %v5735 = vadd.f32 %v5659, %v5711
      %v5736 = vadd.f32 %v5660, %v5712
      %v5737 = vadd.f32 %v5661, %v5713
      %v5738 = vadd.f32 %v5662, %v5714
      %v5739 = vadd.f32 %v5663, %v5715
      %v5740 = vadd.f32 %v5664, %v5716
      %v5741 = vadd.f32 %v5665, %v5717
      %v5742 = vadd.f32 %v5666, %v5718
      %v5743 = vadd.f32 %v5667, %v5719
      %v5744 = vadd.f32 %v5668, %v5720
      %v5745 = vadd.f32 %v5669, %v5721
      %v5746 = vadd.f32 %v5670, %v5722
      %v5747 = vadd.f32 %v5671, %v5723
      %v5748 = vadd.f32 %v5672, %v5724
      %v5749 = vadd.f32 %v5673, %v5725
      %v5750 = vadd.f32 %v5674, %v5726
      %v5751 = vadd.f32 %v5675, %v5727
      %v5752 = vadd.f32 %v5676, %v5728
      %s5753 = sadd.s32 %s2834, 624
      %s5754 = sld [smem:[#allocation8 + %s5753]]
      %s5755 = scalar_lea.vmem [#allocation2], 752
      %v5756 = vld [vmem:[%s5755] sm:$0xff]
      %v5757 = vld [vmem:[%s5755 + $0x8] sm:$0xf]
      %v5758 = vld [vmem:[%s5755 + $0x10] sm:$0xff]
      %v5759 = vld [vmem:[%s5755 + $0x18] sm:$0xf]
      %v5760 = vld [vmem:[%s5755 + $0x20] sm:$0xff]
      %v5761 = vld [vmem:[%s5755 + $0x28] sm:$0xf]
      %v5762 = vld [vmem:[%s5755 + $0x30] sm:$0xff]
      %v5763 = vld [vmem:[%s5755 + $0x38] sm:$0xf]
      %v5764 = vld [vmem:[%s5755 + $0x40] sm:$0xff]
      %v5765 = vld [vmem:[%s5755 + $0x48] sm:$0xf]
      %v5766 = vld [vmem:[%s5755 + $0x50] sm:$0xff]
      %v5767 = vld [vmem:[%s5755 + $0x58] sm:$0xf]
      %v5768 = vld [vmem:[%s5755 + $0x60] sm:$0xff]
      %v5769 = vld [vmem:[%s5755 + $0x68] sm:$0xf]
      %v5770 = vld [vmem:[%s5755 + $0x70] sm:$0xff]
      %v5771 = vld [vmem:[%s5755 + $0x78] sm:$0xf]
      %v5772 = vld [vmem:[%s5755 + $0x80] sm:$0xff]
      %v5773 = vld [vmem:[%s5755 + $0x88] sm:$0xf]
      %v5774 = vld [vmem:[%s5755 + $0x90] sm:$0xff]
      %v5775 = vld [vmem:[%s5755 + $0x98] sm:$0xf]
      %v5776 = vld [vmem:[%s5755 + $0xa0] sm:$0xff]
      %v5777 = vld [vmem:[%s5755 + $0xa8] sm:$0xf]
      %v5778 = vld [vmem:[%s5755 + $0xb0] sm:$0xff]
      %v5779 = vld [vmem:[%s5755 + $0xb8] sm:$0xf]
      %v5780 = vstv %s5754
      %v5781 = vmul.f32 %v5756, %v5780
      %v5782 = vmul.f32 %v5757, %v5780
      %v5783 = vmul.f32 %v5758, %v5780
      %v5784 = vmul.f32 %v5759, %v5780
      %v5785 = vmul.f32 %v5760, %v5780
      %v5786 = vmul.f32 %v5761, %v5780
      %v5787 = vmul.f32 %v5762, %v5780
      %v5788 = vmul.f32 %v5763, %v5780
      %v5789 = vmul.f32 %v5764, %v5780
      %v5790 = vmul.f32 %v5765, %v5780
      %v5791 = vmul.f32 %v5766, %v5780
      %v5792 = vmul.f32 %v5767, %v5780
      %v5793 = vmul.f32 %v5768, %v5780
      %v5794 = vmul.f32 %v5769, %v5780
      %v5795 = vmul.f32 %v5770, %v5780
      %v5796 = vmul.f32 %v5771, %v5780
      %v5797 = vmul.f32 %v5772, %v5780
      %v5798 = vmul.f32 %v5773, %v5780
      %v5799 = vmul.f32 %v5774, %v5780
      %v5800 = vmul.f32 %v5775, %v5780
      %v5801 = vmul.f32 %v5776, %v5780
      %v5802 = vmul.f32 %v5777, %v5780
      %v5803 = vmul.f32 %v5778, %v5780
      %v5804 = vmul.f32 %v5779, %v5780
      %v5805 = vadd.f32 %v5729, %v5781
      %v5806 = vadd.f32 %v5730, %v5782
      %v5807 = vadd.f32 %v5731, %v5783
      %v5808 = vadd.f32 %v5732, %v5784
      %v5809 = vadd.f32 %v5733, %v5785
      %v5810 = vadd.f32 %v5734, %v5786
      %v5811 = vadd.f32 %v5735, %v5787
      %v5812 = vadd.f32 %v5736, %v5788
      %v5813 = vadd.f32 %v5737, %v5789
      %v5814 = vadd.f32 %v5738, %v5790
      %v5815 = vadd.f32 %v5739, %v5791
      %v5816 = vadd.f32 %v5740, %v5792
      %v5817 = vadd.f32 %v5741, %v5793
      %v5818 = vadd.f32 %v5742, %v5794
      %v5819 = vadd.f32 %v5743, %v5795
      %v5820 = vadd.f32 %v5744, %v5796
      %v5821 = vadd.f32 %v5745, %v5797
      %v5822 = vadd.f32 %v5746, %v5798
      %v5823 = vadd.f32 %v5747, %v5799
      %v5824 = vadd.f32 %v5748, %v5800
      %v5825 = vadd.f32 %v5749, %v5801
      %v5826 = vadd.f32 %v5750, %v5802
      %v5827 = vadd.f32 %v5751, %v5803
      %v5828 = vadd.f32 %v5752, %v5804
      %s5829 = sadd.s32 %s2834, 640
      %s5830 = sld [smem:[#allocation8 + %s5829]]
      %s5831 = scalar_lea.vmem [#allocation2], 992
      %v5832 = vld [vmem:[%s5831] sm:$0xff]
      %v5833 = vld [vmem:[%s5831 + $0x8] sm:$0xf]
      %v5834 = vld [vmem:[%s5831 + $0x10] sm:$0xff]
      %v5835 = vld [vmem:[%s5831 + $0x18] sm:$0xf]
      %v5836 = vld [vmem:[%s5831 + $0x20] sm:$0xff]
      %v5837 = vld [vmem:[%s5831 + $0x28] sm:$0xf]
      %v5838 = vld [vmem:[%s5831 + $0x30] sm:$0xff]
      %v5839 = vld [vmem:[%s5831 + $0x38] sm:$0xf]
      %v5840 = vld [vmem:[%s5831 + $0x40] sm:$0xff]
      %v5841 = vld [vmem:[%s5831 + $0x48] sm:$0xf]
      %v5842 = vld [vmem:[%s5831 + $0x50] sm:$0xff]
      %v5843 = vld [vmem:[%s5831 + $0x58] sm:$0xf]
      %v5844 = vld [vmem:[%s5831 + $0x60] sm:$0xff]
      %v5845 = vld [vmem:[%s5831 + $0x68] sm:$0xf]
      %v5846 = vld [vmem:[%s5831 + $0x70] sm:$0xff]
      %v5847 = vld [vmem:[%s5831 + $0x78] sm:$0xf]
      %v5848 = vld [vmem:[%s5831 + $0x80] sm:$0xff]
      %v5849 = vld [vmem:[%s5831 + $0x88] sm:$0xf]
      %v5850 = vld [vmem:[%s5831 + $0x90] sm:$0xff]
      %v5851 = vld [vmem:[%s5831 + $0x98] sm:$0xf]
      %v5852 = vld [vmem:[%s5831 + $0xa0] sm:$0xff]
      %v5853 = vld [vmem:[%s5831 + $0xa8] sm:$0xf]
      %v5854 = vld [vmem:[%s5831 + $0xb0] sm:$0xff]
      %v5855 = vld [vmem:[%s5831 + $0xb8] sm:$0xf]
      %v5856 = vstv %s5830
      %v5857 = vmul.f32 %v5832, %v5856
      %v5858 = vmul.f32 %v5833, %v5856
      %v5859 = vmul.f32 %v5834, %v5856
      %v5860 = vmul.f32 %v5835, %v5856
      %v5861 = vmul.f32 %v5836, %v5856
      %v5862 = vmul.f32 %v5837, %v5856
      %v5863 = vmul.f32 %v5838, %v5856
      %v5864 = vmul.f32 %v5839, %v5856
      %v5865 = vmul.f32 %v5840, %v5856
      %v5866 = vmul.f32 %v5841, %v5856
      %v5867 = vmul.f32 %v5842, %v5856
      %v5868 = vmul.f32 %v5843, %v5856
      %v5869 = vmul.f32 %v5844, %v5856
      %v5870 = vmul.f32 %v5845, %v5856
      %v5871 = vmul.f32 %v5846, %v5856
      %v5872 = vmul.f32 %v5847, %v5856
      %v5873 = vmul.f32 %v5848, %v5856
      %v5874 = vmul.f32 %v5849, %v5856
      %v5875 = vmul.f32 %v5850, %v5856
      %v5876 = vmul.f32 %v5851, %v5856
      %v5877 = vmul.f32 %v5852, %v5856
      %v5878 = vmul.f32 %v5853, %v5856
      %v5879 = vmul.f32 %v5854, %v5856
      %v5880 = vmul.f32 %v5855, %v5856
      %v5881 = vadd.f32 %v5805, %v5857
      %v5882 = vadd.f32 %v5806, %v5858
      %v5883 = vadd.f32 %v5807, %v5859
      %v5884 = vadd.f32 %v5808, %v5860
      %v5885 = vadd.f32 %v5809, %v5861
      %v5886 = vadd.f32 %v5810, %v5862
      %v5887 = vadd.f32 %v5811, %v5863
      %v5888 = vadd.f32 %v5812, %v5864
      %v5889 = vadd.f32 %v5813, %v5865
      %v5890 = vadd.f32 %v5814, %v5866
      %v5891 = vadd.f32 %v5815, %v5867
      %v5892 = vadd.f32 %v5816, %v5868
      %v5893 = vadd.f32 %v5817, %v5869
      %v5894 = vadd.f32 %v5818, %v5870
      %v5895 = vadd.f32 %v5819, %v5871
      %v5896 = vadd.f32 %v5820, %v5872
      %v5897 = vadd.f32 %v5821, %v5873
      %v5898 = vadd.f32 %v5822, %v5874
      %v5899 = vadd.f32 %v5823, %v5875
      %v5900 = vadd.f32 %v5824, %v5876
      %v5901 = vadd.f32 %v5825, %v5877
      %v5902 = vadd.f32 %v5826, %v5878
      %v5903 = vadd.f32 %v5827, %v5879
      %v5904 = vadd.f32 %v5828, %v5880
      %s5905 = sadd.s32 %s2834, 656
      %s5906 = sld [smem:[#allocation8 + %s5905]]
      %s5907 = scalar_lea.vmem [#allocation2], 1232
      %v5908 = vld [vmem:[%s5907] sm:$0xff]
      %v5909 = vld [vmem:[%s5907 + $0x8] sm:$0xf]
      %v5910 = vld [vmem:[%s5907 + $0x10] sm:$0xff]
      %v5911 = vld [vmem:[%s5907 + $0x18] sm:$0xf]
      %v5912 = vld [vmem:[%s5907 + $0x20] sm:$0xff]
      %v5913 = vld [vmem:[%s5907 + $0x28] sm:$0xf]
      %v5914 = vld [vmem:[%s5907 + $0x30] sm:$0xff]
      %v5915 = vld [vmem:[%s5907 + $0x38] sm:$0xf]
      %v5916 = vld [vmem:[%s5907 + $0x40] sm:$0xff]
      %v5917 = vld [vmem:[%s5907 + $0x48] sm:$0xf]
      %v5918 = vld [vmem:[%s5907 + $0x50] sm:$0xff]
      %v5919 = vld [vmem:[%s5907 + $0x58] sm:$0xf]
      %v5920 = vld [vmem:[%s5907 + $0x60] sm:$0xff]
      %v5921 = vld [vmem:[%s5907 + $0x68] sm:$0xf]
      %v5922 = vld [vmem:[%s5907 + $0x70] sm:$0xff]
      %v5923 = vld [vmem:[%s5907 + $0x78] sm:$0xf]
      %v5924 = vld [vmem:[%s5907 + $0x80] sm:$0xff]
      %v5925 = vld [vmem:[%s5907 + $0x88] sm:$0xf]
      %v5926 = vld [vmem:[%s5907 + $0x90] sm:$0xff]
      %v5927 = vld [vmem:[%s5907 + $0x98] sm:$0xf]
      %v5928 = vld [vmem:[%s5907 + $0xa0] sm:$0xff]
      %v5929 = vld [vmem:[%s5907 + $0xa8] sm:$0xf]
      %v5930 = vld [vmem:[%s5907 + $0xb0] sm:$0xff]
      %v5931 = vld [vmem:[%s5907 + $0xb8] sm:$0xf]
      %v5932 = vstv %s5906
      %v5933 = vmul.f32 %v5908, %v5932
      %v5934 = vmul.f32 %v5909, %v5932
      %v5935 = vmul.f32 %v5910, %v5932
      %v5936 = vmul.f32 %v5911, %v5932
      %v5937 = vmul.f32 %v5912, %v5932
      %v5938 = vmul.f32 %v5913, %v5932
      %v5939 = vmul.f32 %v5914, %v5932
      %v5940 = vmul.f32 %v5915, %v5932
      %v5941 = vmul.f32 %v5916, %v5932
      %v5942 = vmul.f32 %v5917, %v5932
      %v5943 = vmul.f32 %v5918, %v5932
      %v5944 = vmul.f32 %v5919, %v5932
      %v5945 = vmul.f32 %v5920, %v5932
      %v5946 = vmul.f32 %v5921, %v5932
      %v5947 = vmul.f32 %v5922, %v5932
      %v5948 = vmul.f32 %v5923, %v5932
      %v5949 = vmul.f32 %v5924, %v5932
      %v5950 = vmul.f32 %v5925, %v5932
      %v5951 = vmul.f32 %v5926, %v5932
      %v5952 = vmul.f32 %v5927, %v5932
      %v5953 = vmul.f32 %v5928, %v5932
      %v5954 = vmul.f32 %v5929, %v5932
      %v5955 = vmul.f32 %v5930, %v5932
      %v5956 = vmul.f32 %v5931, %v5932
      %v5957 = vadd.f32 %v5881, %v5933
      %v5958 = vadd.f32 %v5882, %v5934
      %v5959 = vadd.f32 %v5883, %v5935
      %v5960 = vadd.f32 %v5884, %v5936
      %v5961 = vadd.f32 %v5885, %v5937
      %v5962 = vadd.f32 %v5886, %v5938
      %v5963 = vadd.f32 %v5887, %v5939
      %v5964 = vadd.f32 %v5888, %v5940
      %v5965 = vadd.f32 %v5889, %v5941
      %v5966 = vadd.f32 %v5890, %v5942
      %v5967 = vadd.f32 %v5891, %v5943
      %v5968 = vadd.f32 %v5892, %v5944
      %v5969 = vadd.f32 %v5893, %v5945
      %v5970 = vadd.f32 %v5894, %v5946
      %v5971 = vadd.f32 %v5895, %v5947
      %v5972 = vadd.f32 %v5896, %v5948
      %v5973 = vadd.f32 %v5897, %v5949
      %v5974 = vadd.f32 %v5898, %v5950
      %v5975 = vadd.f32 %v5899, %v5951
      %v5976 = vadd.f32 %v5900, %v5952
      %v5977 = vadd.f32 %v5901, %v5953
      %v5978 = vadd.f32 %v5902, %v5954
      %v5979 = vadd.f32 %v5903, %v5955
      %v5980 = vadd.f32 %v5904, %v5956
      %s5981 = sadd.s32 %s2834, 672
      %s5982 = sld [smem:[#allocation8 + %s5981]]
      %v5983 = vld [vmem:[%s5527 + $0x1] sm:$0xff]
      %v5984 = vld [vmem:[%s5527 + $0x9] sm:$0xf]
      %v5985 = vld [vmem:[%s5527 + $0x11] sm:$0xff]
      %v5986 = vld [vmem:[%s5527 + $0x19] sm:$0xf]
      %v5987 = vld [vmem:[%s5527 + $0x21] sm:$0xff]
      %v5988 = vld [vmem:[%s5527 + $0x29] sm:$0xf]
      %v5989 = vld [vmem:[%s5527 + $0x31] sm:$0xff]
      %v5990 = vld [vmem:[%s5527 + $0x39] sm:$0xf]
      %v5991 = vld [vmem:[%s5527 + $0x41] sm:$0xff]
      %v5992 = vld [vmem:[%s5527 + $0x49] sm:$0xf]
      %v5993 = vld [vmem:[%s5527 + $0x51] sm:$0xff]
      %v5994 = vld [vmem:[%s5527 + $0x59] sm:$0xf]
      %v5995 = vld [vmem:[%s5527 + $0x61] sm:$0xff]
      %v5996 = vld [vmem:[%s5527 + $0x69] sm:$0xf]
      %v5997 = vld [vmem:[%s5527 + $0x71] sm:$0xff]
      %v5998 = vld [vmem:[%s5527 + $0x79] sm:$0xf]
      %v5999 = vld [vmem:[%s5527 + $0x81] sm:$0xff]
      %v6000 = vld [vmem:[%s5527 + $0x89] sm:$0xf]
      %v6001 = vld [vmem:[%s5527 + $0x91] sm:$0xff]
      %v6002 = vld [vmem:[%s5527 + $0x99] sm:$0xf]
      %v6003 = vld [vmem:[%s5527 + $0xa1] sm:$0xff]
      %v6004 = vld [vmem:[%s5527 + $0xa9] sm:$0xf]
      %v6005 = vld [vmem:[%s5527 + $0xb1] sm:$0xff]
      %v6006 = vld [vmem:[%s5527 + $0xb9] sm:$0xf]
      %v6007 = vstv %s5982
      %v6008 = vmul.f32 %v5983, %v6007
      %v6009 = vmul.f32 %v5984, %v6007
      %v6010 = vmul.f32 %v5985, %v6007
      %v6011 = vmul.f32 %v5986, %v6007
      %v6012 = vmul.f32 %v5987, %v6007
      %v6013 = vmul.f32 %v5988, %v6007
      %v6014 = vmul.f32 %v5989, %v6007
      %v6015 = vmul.f32 %v5990, %v6007
      %v6016 = vmul.f32 %v5991, %v6007
      %v6017 = vmul.f32 %v5992, %v6007
      %v6018 = vmul.f32 %v5993, %v6007
      %v6019 = vmul.f32 %v5994, %v6007
      %v6020 = vmul.f32 %v5995, %v6007
      %v6021 = vmul.f32 %v5996, %v6007
      %v6022 = vmul.f32 %v5997, %v6007
      %v6023 = vmul.f32 %v5998, %v6007
      %v6024 = vmul.f32 %v5999, %v6007
      %v6025 = vmul.f32 %v6000, %v6007
      %v6026 = vmul.f32 %v6001, %v6007
      %v6027 = vmul.f32 %v6002, %v6007
      %v6028 = vmul.f32 %v6003, %v6007
      %v6029 = vmul.f32 %v6004, %v6007
      %v6030 = vmul.f32 %v6005, %v6007
      %v6031 = vmul.f32 %v6006, %v6007
      %v6032 = vadd.f32 %v5957, %v6008
      %v6033 = vadd.f32 %v5958, %v6009
      %v6034 = vadd.f32 %v5959, %v6010
      %v6035 = vadd.f32 %v5960, %v6011
      %v6036 = vadd.f32 %v5961, %v6012
      %v6037 = vadd.f32 %v5962, %v6013
      %v6038 = vadd.f32 %v5963, %v6014
      %v6039 = vadd.f32 %v5964, %v6015
      %v6040 = vadd.f32 %v5965, %v6016
      %v6041 = vadd.f32 %v5966, %v6017
      %v6042 = vadd.f32 %v5967, %v6018
      %v6043 = vadd.f32 %v5968, %v6019
      %v6044 = vadd.f32 %v5969, %v6020
      %v6045 = vadd.f32 %v5970, %v6021
      %v6046 = vadd.f32 %v5971, %v6022
      %v6047 = vadd.f32 %v5972, %v6023
      %v6048 = vadd.f32 %v5973, %v6024
      %v6049 = vadd.f32 %v5974, %v6025
      %v6050 = vadd.f32 %v5975, %v6026
      %v6051 = vadd.f32 %v5976, %v6027
      %v6052 = vadd.f32 %v5977, %v6028
      %v6053 = vadd.f32 %v5978, %v6029
      %v6054 = vadd.f32 %v5979, %v6030
      %v6055 = vadd.f32 %v5980, %v6031
      %s6056 = sadd.s32 %s2834, 688
      %s6057 = sld [smem:[#allocation8 + %s6056]]
      %v6058 = vld [vmem:[%s5603 + $0x1] sm:$0xff]
      %v6059 = vld [vmem:[%s5603 + $0x9] sm:$0xf]
      %v6060 = vld [vmem:[%s5603 + $0x11] sm:$0xff]
      %v6061 = vld [vmem:[%s5603 + $0x19] sm:$0xf]
      %v6062 = vld [vmem:[%s5603 + $0x21] sm:$0xff]
      %v6063 = vld [vmem:[%s5603 + $0x29] sm:$0xf]
      %v6064 = vld [vmem:[%s5603 + $0x31] sm:$0xff]
      %v6065 = vld [vmem:[%s5603 + $0x39] sm:$0xf]
      %v6066 = vld [vmem:[%s5603 + $0x41] sm:$0xff]
      %v6067 = vld [vmem:[%s5603 + $0x49] sm:$0xf]
      %v6068 = vld [vmem:[%s5603 + $0x51] sm:$0xff]
      %v6069 = vld [vmem:[%s5603 + $0x59] sm:$0xf]
      %v6070 = vld [vmem:[%s5603 + $0x61] sm:$0xff]
      %v6071 = vld [vmem:[%s5603 + $0x69] sm:$0xf]
      %v6072 = vld [vmem:[%s5603 + $0x71] sm:$0xff]
      %v6073 = vld [vmem:[%s5603 + $0x79] sm:$0xf]
      %v6074 = vld [vmem:[%s5603 + $0x81] sm:$0xff]
      %v6075 = vld [vmem:[%s5603 + $0x89] sm:$0xf]
      %v6076 = vld [vmem:[%s5603 + $0x91] sm:$0xff]
      %v6077 = vld [vmem:[%s5603 + $0x99] sm:$0xf]
      %v6078 = vld [vmem:[%s5603 + $0xa1] sm:$0xff]
      %v6079 = vld [vmem:[%s5603 + $0xa9] sm:$0xf]
      %v6080 = vld [vmem:[%s5603 + $0xb1] sm:$0xff]
      %v6081 = vld [vmem:[%s5603 + $0xb9] sm:$0xf]
      %v6082 = vstv %s6057
      %v6083 = vmul.f32 %v6058, %v6082
      %v6084 = vmul.f32 %v6059, %v6082
      %v6085 = vmul.f32 %v6060, %v6082
      %v6086 = vmul.f32 %v6061, %v6082
      %v6087 = vmul.f32 %v6062, %v6082
      %v6088 = vmul.f32 %v6063, %v6082
      %v6089 = vmul.f32 %v6064, %v6082
      %v6090 = vmul.f32 %v6065, %v6082
      %v6091 = vmul.f32 %v6066, %v6082
      %v6092 = vmul.f32 %v6067, %v6082
      %v6093 = vmul.f32 %v6068, %v6082
      %v6094 = vmul.f32 %v6069, %v6082
      %v6095 = vmul.f32 %v6070, %v6082
      %v6096 = vmul.f32 %v6071, %v6082
      %v6097 = vmul.f32 %v6072, %v6082
      %v6098 = vmul.f32 %v6073, %v6082
      %v6099 = vmul.f32 %v6074, %v6082
      %v6100 = vmul.f32 %v6075, %v6082
      %v6101 = vmul.f32 %v6076, %v6082
      %v6102 = vmul.f32 %v6077, %v6082
      %v6103 = vmul.f32 %v6078, %v6082
      %v6104 = vmul.f32 %v6079, %v6082
      %v6105 = vmul.f32 %v6080, %v6082
      %v6106 = vmul.f32 %v6081, %v6082
      %v6107 = vadd.f32 %v6032, %v6083
      %v6108 = vadd.f32 %v6033, %v6084
      %v6109 = vadd.f32 %v6034, %v6085
      %v6110 = vadd.f32 %v6035, %v6086
      %v6111 = vadd.f32 %v6036, %v6087
      %v6112 = vadd.f32 %v6037, %v6088
      %v6113 = vadd.f32 %v6038, %v6089
      %v6114 = vadd.f32 %v6039, %v6090
      %v6115 = vadd.f32 %v6040, %v6091
      %v6116 = vadd.f32 %v6041, %v6092
      %v6117 = vadd.f32 %v6042, %v6093
      %v6118 = vadd.f32 %v6043, %v6094
      %v6119 = vadd.f32 %v6044, %v6095
      %v6120 = vadd.f32 %v6045, %v6096
      %v6121 = vadd.f32 %v6046, %v6097
      %v6122 = vadd.f32 %v6047, %v6098
      %v6123 = vadd.f32 %v6048, %v6099
      %v6124 = vadd.f32 %v6049, %v6100
      %v6125 = vadd.f32 %v6050, %v6101
      %v6126 = vadd.f32 %v6051, %v6102
      %v6127 = vadd.f32 %v6052, %v6103
      %v6128 = vadd.f32 %v6053, %v6104
      %v6129 = vadd.f32 %v6054, %v6105
      %v6130 = vadd.f32 %v6055, %v6106
      %s6131 = sadd.s32 %s2834, 704
      %s6132 = sld [smem:[#allocation8 + %s6131]]
      %v6133 = vld [vmem:[%s5679 + $0x1] sm:$0xff]
      %v6134 = vld [vmem:[%s5679 + $0x9] sm:$0xf]
      %v6135 = vld [vmem:[%s5679 + $0x11] sm:$0xff]
      %v6136 = vld [vmem:[%s5679 + $0x19] sm:$0xf]
      %v6137 = vld [vmem:[%s5679 + $0x21] sm:$0xff]
      %v6138 = vld [vmem:[%s5679 + $0x29] sm:$0xf]
      %v6139 = vld [vmem:[%s5679 + $0x31] sm:$0xff]
      %v6140 = vld [vmem:[%s5679 + $0x39] sm:$0xf]
      %v6141 = vld [vmem:[%s5679 + $0x41] sm:$0xff]
      %v6142 = vld [vmem:[%s5679 + $0x49] sm:$0xf]
      %v6143 = vld [vmem:[%s5679 + $0x51] sm:$0xff]
      %v6144 = vld [vmem:[%s5679 + $0x59] sm:$0xf]
      %v6145 = vld [vmem:[%s5679 + $0x61] sm:$0xff]
      %v6146 = vld [vmem:[%s5679 + $0x69] sm:$0xf]
      %v6147 = vld [vmem:[%s5679 + $0x71] sm:$0xff]
      %v6148 = vld [vmem:[%s5679 + $0x79] sm:$0xf]
      %v6149 = vld [vmem:[%s5679 + $0x81] sm:$0xff]
      %v6150 = vld [vmem:[%s5679 + $0x89] sm:$0xf]
      %v6151 = vld [vmem:[%s5679 + $0x91] sm:$0xff]
      %v6152 = vld [vmem:[%s5679 + $0x99] sm:$0xf]
      %v6153 = vld [vmem:[%s5679 + $0xa1] sm:$0xff]
      %v6154 = vld [vmem:[%s5679 + $0xa9] sm:$0xf]
      %v6155 = vld [vmem:[%s5679 + $0xb1] sm:$0xff]
      %v6156 = vld [vmem:[%s5679 + $0xb9] sm:$0xf]
      %v6157 = vstv %s6132
      %v6158 = vmul.f32 %v6133, %v6157
      %v6159 = vmul.f32 %v6134, %v6157
      %v6160 = vmul.f32 %v6135, %v6157
      %v6161 = vmul.f32 %v6136, %v6157
      %v6162 = vmul.f32 %v6137, %v6157
      %v6163 = vmul.f32 %v6138, %v6157
      %v6164 = vmul.f32 %v6139, %v6157
      %v6165 = vmul.f32 %v6140, %v6157
      %v6166 = vmul.f32 %v6141, %v6157
      %v6167 = vmul.f32 %v6142, %v6157
      %v6168 = vmul.f32 %v6143, %v6157
      %v6169 = vmul.f32 %v6144, %v6157
      %v6170 = vmul.f32 %v6145, %v6157
      %v6171 = vmul.f32 %v6146, %v6157
      %v6172 = vmul.f32 %v6147, %v6157
      %v6173 = vmul.f32 %v6148, %v6157
      %v6174 = vmul.f32 %v6149, %v6157
      %v6175 = vmul.f32 %v6150, %v6157
      %v6176 = vmul.f32 %v6151, %v6157
      %v6177 = vmul.f32 %v6152, %v6157
      %v6178 = vmul.f32 %v6153, %v6157
      %v6179 = vmul.f32 %v6154, %v6157
      %v6180 = vmul.f32 %v6155, %v6157
      %v6181 = vmul.f32 %v6156, %v6157
      %v6182 = vadd.f32 %v6107, %v6158
      %v6183 = vadd.f32 %v6108, %v6159
      %v6184 = vadd.f32 %v6109, %v6160
      %v6185 = vadd.f32 %v6110, %v6161
      %v6186 = vadd.f32 %v6111, %v6162
      %v6187 = vadd.f32 %v6112, %v6163
      %v6188 = vadd.f32 %v6113, %v6164
      %v6189 = vadd.f32 %v6114, %v6165
      %v6190 = vadd.f32 %v6115, %v6166
      %v6191 = vadd.f32 %v6116, %v6167
      %v6192 = vadd.f32 %v6117, %v6168
      %v6193 = vadd.f32 %v6118, %v6169
      %v6194 = vadd.f32 %v6119, %v6170
      %v6195 = vadd.f32 %v6120, %v6171
      %v6196 = vadd.f32 %v6121, %v6172
      %v6197 = vadd.f32 %v6122, %v6173
      %v6198 = vadd.f32 %v6123, %v6174
      %v6199 = vadd.f32 %v6124, %v6175
      %v6200 = vadd.f32 %v6125, %v6176
      %v6201 = vadd.f32 %v6126, %v6177
      %v6202 = vadd.f32 %v6127, %v6178
      %v6203 = vadd.f32 %v6128, %v6179
      %v6204 = vadd.f32 %v6129, %v6180
      %v6205 = vadd.f32 %v6130, %v6181
      %s6206 = sadd.s32 %s2834, 720
      %s6207 = sld [smem:[#allocation8 + %s6206]]
      %v6208 = vld [vmem:[%s5755 + $0x1] sm:$0xff]
      %v6209 = vld [vmem:[%s5755 + $0x9] sm:$0xf]
      %v6210 = vld [vmem:[%s5755 + $0x11] sm:$0xff]
      %v6211 = vld [vmem:[%s5755 + $0x19] sm:$0xf]
      %v6212 = vld [vmem:[%s5755 + $0x21] sm:$0xff]
      %v6213 = vld [vmem:[%s5755 + $0x29] sm:$0xf]
      %v6214 = vld [vmem:[%s5755 + $0x31] sm:$0xff]
      %v6215 = vld [vmem:[%s5755 + $0x39] sm:$0xf]
      %v6216 = vld [vmem:[%s5755 + $0x41] sm:$0xff]
      %v6217 = vld [vmem:[%s5755 + $0x49] sm:$0xf]
      %v6218 = vld [vmem:[%s5755 + $0x51] sm:$0xff]
      %v6219 = vld [vmem:[%s5755 + $0x59] sm:$0xf]
      %v6220 = vld [vmem:[%s5755 + $0x61] sm:$0xff]
      %v6221 = vld [vmem:[%s5755 + $0x69] sm:$0xf]
      %v6222 = vld [vmem:[%s5755 + $0x71] sm:$0xff]
      %v6223 = vld [vmem:[%s5755 + $0x79] sm:$0xf]
      %v6224 = vld [vmem:[%s5755 + $0x81] sm:$0xff]
      %v6225 = vld [vmem:[%s5755 + $0x89] sm:$0xf]
      %v6226 = vld [vmem:[%s5755 + $0x91] sm:$0xff]
      %v6227 = vld [vmem:[%s5755 + $0x99] sm:$0xf]
      %v6228 = vld [vmem:[%s5755 + $0xa1] sm:$0xff]
      %v6229 = vld [vmem:[%s5755 + $0xa9] sm:$0xf]
      %v6230 = vld [vmem:[%s5755 + $0xb1] sm:$0xff]
      %v6231 = vld [vmem:[%s5755 + $0xb9] sm:$0xf]
      %v6232 = vstv %s6207
      %v6233 = vmul.f32 %v6208, %v6232
      %v6234 = vmul.f32 %v6209, %v6232
      %v6235 = vmul.f32 %v6210, %v6232
      %v6236 = vmul.f32 %v6211, %v6232
      %v6237 = vmul.f32 %v6212, %v6232
      %v6238 = vmul.f32 %v6213, %v6232
      %v6239 = vmul.f32 %v6214, %v6232
      %v6240 = vmul.f32 %v6215, %v6232
      %v6241 = vmul.f32 %v6216, %v6232
      %v6242 = vmul.f32 %v6217, %v6232
      %v6243 = vmul.f32 %v6218, %v6232
      %v6244 = vmul.f32 %v6219, %v6232
      %v6245 = vmul.f32 %v6220, %v6232
      %v6246 = vmul.f32 %v6221, %v6232
      %v6247 = vmul.f32 %v6222, %v6232
      %v6248 = vmul.f32 %v6223, %v6232
      %v6249 = vmul.f32 %v6224, %v6232
      %v6250 = vmul.f32 %v6225, %v6232
      %v6251 = vmul.f32 %v6226, %v6232
      %v6252 = vmul.f32 %v6227, %v6232
      %v6253 = vmul.f32 %v6228, %v6232
      %v6254 = vmul.f32 %v6229, %v6232
      %v6255 = vmul.f32 %v6230, %v6232
      %v6256 = vmul.f32 %v6231, %v6232
      %v6257 = vadd.f32 %v6182, %v6233
      %v6258 = vadd.f32 %v6183, %v6234
      %v6259 = vadd.f32 %v6184, %v6235
      %v6260 = vadd.f32 %v6185, %v6236
      %v6261 = vadd.f32 %v6186, %v6237
      %v6262 = vadd.f32 %v6187, %v6238
      %v6263 = vadd.f32 %v6188, %v6239
      %v6264 = vadd.f32 %v6189, %v6240
      %v6265 = vadd.f32 %v6190, %v6241
      %v6266 = vadd.f32 %v6191, %v6242
      %v6267 = vadd.f32 %v6192, %v6243
      %v6268 = vadd.f32 %v6193, %v6244
      %v6269 = vadd.f32 %v6194, %v6245
      %v6270 = vadd.f32 %v6195, %v6246
      %v6271 = vadd.f32 %v6196, %v6247
      %v6272 = vadd.f32 %v6197, %v6248
      %v6273 = vadd.f32 %v6198, %v6249
      %v6274 = vadd.f32 %v6199, %v6250
      %v6275 = vadd.f32 %v6200, %v6251
      %v6276 = vadd.f32 %v6201, %v6252
      %v6277 = vadd.f32 %v6202, %v6253
      %v6278 = vadd.f32 %v6203, %v6254
      %v6279 = vadd.f32 %v6204, %v6255
      %v6280 = vadd.f32 %v6205, %v6256
      %s6281 = sadd.s32 %s2834, 736
      %s6282 = sld [smem:[#allocation8 + %s6281]]
      %v6283 = vld [vmem:[%s5831 + $0x1] sm:$0xff]
      %v6284 = vld [vmem:[%s5831 + $0x9] sm:$0xf]
      %v6285 = vld [vmem:[%s5831 + $0x11] sm:$0xff]
      %v6286 = vld [vmem:[%s5831 + $0x19] sm:$0xf]
      %v6287 = vld [vmem:[%s5831 + $0x21] sm:$0xff]
      %v6288 = vld [vmem:[%s5831 + $0x29] sm:$0xf]
      %v6289 = vld [vmem:[%s5831 + $0x31] sm:$0xff]
      %v6290 = vld [vmem:[%s5831 + $0x39] sm:$0xf]
      %v6291 = vld [vmem:[%s5831 + $0x41] sm:$0xff]
      %v6292 = vld [vmem:[%s5831 + $0x49] sm:$0xf]
      %v6293 = vld [vmem:[%s5831 + $0x51] sm:$0xff]
      %v6294 = vld [vmem:[%s5831 + $0x59] sm:$0xf]
      %v6295 = vld [vmem:[%s5831 + $0x61] sm:$0xff]
      %v6296 = vld [vmem:[%s5831 + $0x69] sm:$0xf]
      %v6297 = vld [vmem:[%s5831 + $0x71] sm:$0xff]
      %v6298 = vld [vmem:[%s5831 + $0x79] sm:$0xf]
      %v6299 = vld [vmem:[%s5831 + $0x81] sm:$0xff]
      %v6300 = vld [vmem:[%s5831 + $0x89] sm:$0xf]
      %v6301 = vld [vmem:[%s5831 + $0x91] sm:$0xff]
      %v6302 = vld [vmem:[%s5831 + $0x99] sm:$0xf]
      %v6303 = vld [vmem:[%s5831 + $0xa1] sm:$0xff]
      %v6304 = vld [vmem:[%s5831 + $0xa9] sm:$0xf]
      %v6305 = vld [vmem:[%s5831 + $0xb1] sm:$0xff]
      %v6306 = vld [vmem:[%s5831 + $0xb9] sm:$0xf]
      %v6307 = vstv %s6282
      %v6308 = vmul.f32 %v6283, %v6307
      %v6309 = vmul.f32 %v6284, %v6307
      %v6310 = vmul.f32 %v6285, %v6307
      %v6311 = vmul.f32 %v6286, %v6307
      %v6312 = vmul.f32 %v6287, %v6307
      %v6313 = vmul.f32 %v6288, %v6307
      %v6314 = vmul.f32 %v6289, %v6307
      %v6315 = vmul.f32 %v6290, %v6307
      %v6316 = vmul.f32 %v6291, %v6307
      %v6317 = vmul.f32 %v6292, %v6307
      %v6318 = vmul.f32 %v6293, %v6307
      %v6319 = vmul.f32 %v6294, %v6307
      %v6320 = vmul.f32 %v6295, %v6307
      %v6321 = vmul.f32 %v6296, %v6307
      %v6322 = vmul.f32 %v6297, %v6307
      %v6323 = vmul.f32 %v6298, %v6307
      %v6324 = vmul.f32 %v6299, %v6307
      %v6325 = vmul.f32 %v6300, %v6307
      %v6326 = vmul.f32 %v6301, %v6307
      %v6327 = vmul.f32 %v6302, %v6307
      %v6328 = vmul.f32 %v6303, %v6307
      %v6329 = vmul.f32 %v6304, %v6307
      %v6330 = vmul.f32 %v6305, %v6307
      %v6331 = vmul.f32 %v6306, %v6307
      %v6332 = vadd.f32 %v6257, %v6308
      %v6333 = vadd.f32 %v6258, %v6309
      %v6334 = vadd.f32 %v6259, %v6310
      %v6335 = vadd.f32 %v6260, %v6311
      %v6336 = vadd.f32 %v6261, %v6312
      %v6337 = vadd.f32 %v6262, %v6313
      %v6338 = vadd.f32 %v6263, %v6314
      %v6339 = vadd.f32 %v6264, %v6315
      %v6340 = vadd.f32 %v6265, %v6316
      %v6341 = vadd.f32 %v6266, %v6317
      %v6342 = vadd.f32 %v6267, %v6318
      %v6343 = vadd.f32 %v6268, %v6319
      %v6344 = vadd.f32 %v6269, %v6320
      %v6345 = vadd.f32 %v6270, %v6321
      %v6346 = vadd.f32 %v6271, %v6322
      %v6347 = vadd.f32 %v6272, %v6323
      %v6348 = vadd.f32 %v6273, %v6324
      %v6349 = vadd.f32 %v6274, %v6325
      %v6350 = vadd.f32 %v6275, %v6326
      %v6351 = vadd.f32 %v6276, %v6327
      %v6352 = vadd.f32 %v6277, %v6328
      %v6353 = vadd.f32 %v6278, %v6329
      %v6354 = vadd.f32 %v6279, %v6330
      %v6355 = vadd.f32 %v6280, %v6331
      %s6356 = sadd.s32 %s2834, 752
      %s6357 = sld [smem:[#allocation8 + %s6356]]
      %v6358 = vld [vmem:[%s5907 + $0x1] sm:$0xff]
      %v6359 = vld [vmem:[%s5907 + $0x9] sm:$0xf]
      %v6360 = vld [vmem:[%s5907 + $0x11] sm:$0xff]
      %v6361 = vld [vmem:[%s5907 + $0x19] sm:$0xf]
      %v6362 = vld [vmem:[%s5907 + $0x21] sm:$0xff]
      %v6363 = vld [vmem:[%s5907 + $0x29] sm:$0xf]
      %v6364 = vld [vmem:[%s5907 + $0x31] sm:$0xff]
      %v6365 = vld [vmem:[%s5907 + $0x39] sm:$0xf]
      %v6366 = vld [vmem:[%s5907 + $0x41] sm:$0xff]
      %v6367 = vld [vmem:[%s5907 + $0x49] sm:$0xf]
      %v6368 = vld [vmem:[%s5907 + $0x51] sm:$0xff]
      %v6369 = vld [vmem:[%s5907 + $0x59] sm:$0xf]
      %v6370 = vld [vmem:[%s5907 + $0x61] sm:$0xff]
      %v6371 = vld [vmem:[%s5907 + $0x69] sm:$0xf]
      %v6372 = vld [vmem:[%s5907 + $0x71] sm:$0xff]
      %v6373 = vld [vmem:[%s5907 + $0x79] sm:$0xf]
      %v6374 = vld [vmem:[%s5907 + $0x81] sm:$0xff]
      %v6375 = vld [vmem:[%s5907 + $0x89] sm:$0xf]
      %v6376 = vld [vmem:[%s5907 + $0x91] sm:$0xff]
      %v6377 = vld [vmem:[%s5907 + $0x99] sm:$0xf]
      %v6378 = vld [vmem:[%s5907 + $0xa1] sm:$0xff]
      %v6379 = vld [vmem:[%s5907 + $0xa9] sm:$0xf]
      %v6380 = vld [vmem:[%s5907 + $0xb1] sm:$0xff]
      %v6381 = vld [vmem:[%s5907 + $0xb9] sm:$0xf]
      %v6382 = vstv %s6357
      %v6383 = vmul.f32 %v6358, %v6382
      %v6384 = vmul.f32 %v6359, %v6382
      %v6385 = vmul.f32 %v6360, %v6382
      %v6386 = vmul.f32 %v6361, %v6382
      %v6387 = vmul.f32 %v6362, %v6382
      %v6388 = vmul.f32 %v6363, %v6382
      %v6389 = vmul.f32 %v6364, %v6382
      %v6390 = vmul.f32 %v6365, %v6382
      %v6391 = vmul.f32 %v6366, %v6382
      %v6392 = vmul.f32 %v6367, %v6382
      %v6393 = vmul.f32 %v6368, %v6382
      %v6394 = vmul.f32 %v6369, %v6382
      %v6395 = vmul.f32 %v6370, %v6382
      %v6396 = vmul.f32 %v6371, %v6382
      %v6397 = vmul.f32 %v6372, %v6382
      %v6398 = vmul.f32 %v6373, %v6382
      %v6399 = vmul.f32 %v6374, %v6382
      %v6400 = vmul.f32 %v6375, %v6382
      %v6401 = vmul.f32 %v6376, %v6382
      %v6402 = vmul.f32 %v6377, %v6382
      %v6403 = vmul.f32 %v6378, %v6382
      %v6404 = vmul.f32 %v6379, %v6382
      %v6405 = vmul.f32 %v6380, %v6382
      %v6406 = vmul.f32 %v6381, %v6382
      %v6407 = vadd.f32 %v6332, %v6383
      %v6408 = vadd.f32 %v6333, %v6384
      %v6409 = vadd.f32 %v6334, %v6385
      %v6410 = vadd.f32 %v6335, %v6386
      %v6411 = vadd.f32 %v6336, %v6387
      %v6412 = vadd.f32 %v6337, %v6388
      %v6413 = vadd.f32 %v6338, %v6389
      %v6414 = vadd.f32 %v6339, %v6390
      %v6415 = vadd.f32 %v6340, %v6391
      %v6416 = vadd.f32 %v6341, %v6392
      %v6417 = vadd.f32 %v6342, %v6393
      %v6418 = vadd.f32 %v6343, %v6394
      %v6419 = vadd.f32 %v6344, %v6395
      %v6420 = vadd.f32 %v6345, %v6396
      %v6421 = vadd.f32 %v6346, %v6397
      %v6422 = vadd.f32 %v6347, %v6398
      %v6423 = vadd.f32 %v6348, %v6399
      %v6424 = vadd.f32 %v6349, %v6400
      %v6425 = vadd.f32 %v6350, %v6401
      %v6426 = vadd.f32 %v6351, %v6402
      %v6427 = vadd.f32 %v6352, %v6403
      %v6428 = vadd.f32 %v6353, %v6404
      %v6429 = vadd.f32 %v6354, %v6405
      %v6430 = vadd.f32 %v6355, %v6406
      %s6431 = sadd.s32 %s2834, 768
      %s6432 = sld [smem:[#allocation8 + %s6431]]
      %v6433 = vld [vmem:[%s5527 + $0x2] sm:$0xff]
      %v6434 = vld [vmem:[%s5527 + $0xa] sm:$0xf]
      %v6435 = vld [vmem:[%s5527 + $0x12] sm:$0xff]
      %v6436 = vld [vmem:[%s5527 + $0x1a] sm:$0xf]
      %v6437 = vld [vmem:[%s5527 + $0x22] sm:$0xff]
      %v6438 = vld [vmem:[%s5527 + $0x2a] sm:$0xf]
      %v6439 = vld [vmem:[%s5527 + $0x32] sm:$0xff]
      %v6440 = vld [vmem:[%s5527 + $0x3a] sm:$0xf]
      %v6441 = vld [vmem:[%s5527 + $0x42] sm:$0xff]
      %v6442 = vld [vmem:[%s5527 + $0x4a] sm:$0xf]
      %v6443 = vld [vmem:[%s5527 + $0x52] sm:$0xff]
      %v6444 = vld [vmem:[%s5527 + $0x5a] sm:$0xf]
      %v6445 = vld [vmem:[%s5527 + $0x62] sm:$0xff]
      %v6446 = vld [vmem:[%s5527 + $0x6a] sm:$0xf]
      %v6447 = vld [vmem:[%s5527 + $0x72] sm:$0xff]
      %v6448 = vld [vmem:[%s5527 + $0x7a] sm:$0xf]
      %v6449 = vld [vmem:[%s5527 + $0x82] sm:$0xff]
      %v6450 = vld [vmem:[%s5527 + $0x8a] sm:$0xf]
      %v6451 = vld [vmem:[%s5527 + $0x92] sm:$0xff]
      %v6452 = vld [vmem:[%s5527 + $0x9a] sm:$0xf]
      %v6453 = vld [vmem:[%s5527 + $0xa2] sm:$0xff]
      %v6454 = vld [vmem:[%s5527 + $0xaa] sm:$0xf]
      %v6455 = vld [vmem:[%s5527 + $0xb2] sm:$0xff]
      %v6456 = vld [vmem:[%s5527 + $0xba] sm:$0xf]
      %v6457 = vstv %s6432
      %v6458 = vmul.f32 %v6433, %v6457
      %v6459 = vmul.f32 %v6434, %v6457
      %v6460 = vmul.f32 %v6435, %v6457
      %v6461 = vmul.f32 %v6436, %v6457
      %v6462 = vmul.f32 %v6437, %v6457
      %v6463 = vmul.f32 %v6438, %v6457
      %v6464 = vmul.f32 %v6439, %v6457
      %v6465 = vmul.f32 %v6440, %v6457
      %v6466 = vmul.f32 %v6441, %v6457
      %v6467 = vmul.f32 %v6442, %v6457
      %v6468 = vmul.f32 %v6443, %v6457
      %v6469 = vmul.f32 %v6444, %v6457
      %v6470 = vmul.f32 %v6445, %v6457
      %v6471 = vmul.f32 %v6446, %v6457
      %v6472 = vmul.f32 %v6447, %v6457
      %v6473 = vmul.f32 %v6448, %v6457
      %v6474 = vmul.f32 %v6449, %v6457
      %v6475 = vmul.f32 %v6450, %v6457
      %v6476 = vmul.f32 %v6451, %v6457
      %v6477 = vmul.f32 %v6452, %v6457
      %v6478 = vmul.f32 %v6453, %v6457
      %v6479 = vmul.f32 %v6454, %v6457
      %v6480 = vmul.f32 %v6455, %v6457
      %v6481 = vmul.f32 %v6456, %v6457
      %v6482 = vadd.f32 %v6407, %v6458
      %v6483 = vadd.f32 %v6408, %v6459
      %v6484 = vadd.f32 %v6409, %v6460
      %v6485 = vadd.f32 %v6410, %v6461
      %v6486 = vadd.f32 %v6411, %v6462
      %v6487 = vadd.f32 %v6412, %v6463
      %v6488 = vadd.f32 %v6413, %v6464
      %v6489 = vadd.f32 %v6414, %v6465
      %v6490 = vadd.f32 %v6415, %v6466
      %v6491 = vadd.f32 %v6416, %v6467
      %v6492 = vadd.f32 %v6417, %v6468
      %v6493 = vadd.f32 %v6418, %v6469
      %v6494 = vadd.f32 %v6419, %v6470
      %v6495 = vadd.f32 %v6420, %v6471
      %v6496 = vadd.f32 %v6421, %v6472
      %v6497 = vadd.f32 %v6422, %v6473
      %v6498 = vadd.f32 %v6423, %v6474
      %v6499 = vadd.f32 %v6424, %v6475
      %v6500 = vadd.f32 %v6425, %v6476
      %v6501 = vadd.f32 %v6426, %v6477
      %v6502 = vadd.f32 %v6427, %v6478
      %v6503 = vadd.f32 %v6428, %v6479
      %v6504 = vadd.f32 %v6429, %v6480
      %v6505 = vadd.f32 %v6430, %v6481
      %s6506 = sadd.s32 %s2834, 784
      %s6507 = sld [smem:[#allocation8 + %s6506]]
      %v6508 = vld [vmem:[%s5603 + $0x2] sm:$0xff]
      %v6509 = vld [vmem:[%s5603 + $0xa] sm:$0xf]
      %v6510 = vld [vmem:[%s5603 + $0x12] sm:$0xff]
      %v6511 = vld [vmem:[%s5603 + $0x1a] sm:$0xf]
      %v6512 = vld [vmem:[%s5603 + $0x22] sm:$0xff]
      %v6513 = vld [vmem:[%s5603 + $0x2a] sm:$0xf]
      %v6514 = vld [vmem:[%s5603 + $0x32] sm:$0xff]
      %v6515 = vld [vmem:[%s5603 + $0x3a] sm:$0xf]
      %v6516 = vld [vmem:[%s5603 + $0x42] sm:$0xff]
      %v6517 = vld [vmem:[%s5603 + $0x4a] sm:$0xf]
      %v6518 = vld [vmem:[%s5603 + $0x52] sm:$0xff]
      %v6519 = vld [vmem:[%s5603 + $0x5a] sm:$0xf]
      %v6520 = vld [vmem:[%s5603 + $0x62] sm:$0xff]
      %v6521 = vld [vmem:[%s5603 + $0x6a] sm:$0xf]
      %v6522 = vld [vmem:[%s5603 + $0x72] sm:$0xff]
      %v6523 = vld [vmem:[%s5603 + $0x7a] sm:$0xf]
      %v6524 = vld [vmem:[%s5603 + $0x82] sm:$0xff]
      %v6525 = vld [vmem:[%s5603 + $0x8a] sm:$0xf]
      %v6526 = vld [vmem:[%s5603 + $0x92] sm:$0xff]
      %v6527 = vld [vmem:[%s5603 + $0x9a] sm:$0xf]
      %v6528 = vld [vmem:[%s5603 + $0xa2] sm:$0xff]
      %v6529 = vld [vmem:[%s5603 + $0xaa] sm:$0xf]
      %v6530 = vld [vmem:[%s5603 + $0xb2] sm:$0xff]
      %v6531 = vld [vmem:[%s5603 + $0xba] sm:$0xf]
      %v6532 = vstv %s6507
      %v6533 = vmul.f32 %v6508, %v6532
      %v6534 = vmul.f32 %v6509, %v6532
      %v6535 = vmul.f32 %v6510, %v6532
      %v6536 = vmul.f32 %v6511, %v6532
      %v6537 = vmul.f32 %v6512, %v6532
      %v6538 = vmul.f32 %v6513, %v6532
      %v6539 = vmul.f32 %v6514, %v6532
      %v6540 = vmul.f32 %v6515, %v6532
      %v6541 = vmul.f32 %v6516, %v6532
      %v6542 = vmul.f32 %v6517, %v6532
      %v6543 = vmul.f32 %v6518, %v6532
      %v6544 = vmul.f32 %v6519, %v6532
      %v6545 = vmul.f32 %v6520, %v6532
      %v6546 = vmul.f32 %v6521, %v6532
      %v6547 = vmul.f32 %v6522, %v6532
      %v6548 = vmul.f32 %v6523, %v6532
      %v6549 = vmul.f32 %v6524, %v6532
      %v6550 = vmul.f32 %v6525, %v6532
      %v6551 = vmul.f32 %v6526, %v6532
      %v6552 = vmul.f32 %v6527, %v6532
      %v6553 = vmul.f32 %v6528, %v6532
      %v6554 = vmul.f32 %v6529, %v6532
      %v6555 = vmul.f32 %v6530, %v6532
      %v6556 = vmul.f32 %v6531, %v6532
      %v6557 = vadd.f32 %v6482, %v6533
      %v6558 = vadd.f32 %v6483, %v6534
      %v6559 = vadd.f32 %v6484, %v6535
      %v6560 = vadd.f32 %v6485, %v6536
      %v6561 = vadd.f32 %v6486, %v6537
      %v6562 = vadd.f32 %v6487, %v6538
      %v6563 = vadd.f32 %v6488, %v6539
      %v6564 = vadd.f32 %v6489, %v6540
      %v6565 = vadd.f32 %v6490, %v6541
      %v6566 = vadd.f32 %v6491, %v6542
      %v6567 = vadd.f32 %v6492, %v6543
      %v6568 = vadd.f32 %v6493, %v6544
      %v6569 = vadd.f32 %v6494, %v6545
      %v6570 = vadd.f32 %v6495, %v6546
      %v6571 = vadd.f32 %v6496, %v6547
      %v6572 = vadd.f32 %v6497, %v6548
      %v6573 = vadd.f32 %v6498, %v6549
      %v6574 = vadd.f32 %v6499, %v6550
      %v6575 = vadd.f32 %v6500, %v6551
      %v6576 = vadd.f32 %v6501, %v6552
      %v6577 = vadd.f32 %v6502, %v6553
      %v6578 = vadd.f32 %v6503, %v6554
      %v6579 = vadd.f32 %v6504, %v6555
      %v6580 = vadd.f32 %v6505, %v6556
      %s6581 = sadd.s32 %s2834, 800
      %s6582 = sld [smem:[#allocation8 + %s6581]]
      %v6583 = vld [vmem:[%s5679 + $0x2] sm:$0xff]
      %v6584 = vld [vmem:[%s5679 + $0xa] sm:$0xf]
      %v6585 = vld [vmem:[%s5679 + $0x12] sm:$0xff]
      %v6586 = vld [vmem:[%s5679 + $0x1a] sm:$0xf]
      %v6587 = vld [vmem:[%s5679 + $0x22] sm:$0xff]
      %v6588 = vld [vmem:[%s5679 + $0x2a] sm:$0xf]
      %v6589 = vld [vmem:[%s5679 + $0x32] sm:$0xff]
      %v6590 = vld [vmem:[%s5679 + $0x3a] sm:$0xf]
      %v6591 = vld [vmem:[%s5679 + $0x42] sm:$0xff]
      %v6592 = vld [vmem:[%s5679 + $0x4a] sm:$0xf]
      %v6593 = vld [vmem:[%s5679 + $0x52] sm:$0xff]
      %v6594 = vld [vmem:[%s5679 + $0x5a] sm:$0xf]
      %v6595 = vld [vmem:[%s5679 + $0x62] sm:$0xff]
      %v6596 = vld [vmem:[%s5679 + $0x6a] sm:$0xf]
      %v6597 = vld [vmem:[%s5679 + $0x72] sm:$0xff]
      %v6598 = vld [vmem:[%s5679 + $0x7a] sm:$0xf]
      %v6599 = vld [vmem:[%s5679 + $0x82] sm:$0xff]
      %v6600 = vld [vmem:[%s5679 + $0x8a] sm:$0xf]
      %v6601 = vld [vmem:[%s5679 + $0x92] sm:$0xff]
      %v6602 = vld [vmem:[%s5679 + $0x9a] sm:$0xf]
      %v6603 = vld [vmem:[%s5679 + $0xa2] sm:$0xff]
      %v6604 = vld [vmem:[%s5679 + $0xaa] sm:$0xf]
      %v6605 = vld [vmem:[%s5679 + $0xb2] sm:$0xff]
      %v6606 = vld [vmem:[%s5679 + $0xba] sm:$0xf]
      %v6607 = vstv %s6582
      %v6608 = vmul.f32 %v6583, %v6607
      %v6609 = vmul.f32 %v6584, %v6607
      %v6610 = vmul.f32 %v6585, %v6607
      %v6611 = vmul.f32 %v6586, %v6607
      %v6612 = vmul.f32 %v6587, %v6607
      %v6613 = vmul.f32 %v6588, %v6607
      %v6614 = vmul.f32 %v6589, %v6607
      %v6615 = vmul.f32 %v6590, %v6607
      %v6616 = vmul.f32 %v6591, %v6607
      %v6617 = vmul.f32 %v6592, %v6607
      %v6618 = vmul.f32 %v6593, %v6607
      %v6619 = vmul.f32 %v6594, %v6607
      %v6620 = vmul.f32 %v6595, %v6607
      %v6621 = vmul.f32 %v6596, %v6607
      %v6622 = vmul.f32 %v6597, %v6607
      %v6623 = vmul.f32 %v6598, %v6607
      %v6624 = vmul.f32 %v6599, %v6607
      %v6625 = vmul.f32 %v6600, %v6607
      %v6626 = vmul.f32 %v6601, %v6607
      %v6627 = vmul.f32 %v6602, %v6607
      %v6628 = vmul.f32 %v6603, %v6607
      %v6629 = vmul.f32 %v6604, %v6607
      %v6630 = vmul.f32 %v6605, %v6607
      %v6631 = vmul.f32 %v6606, %v6607
      %v6632 = vadd.f32 %v6557, %v6608
      %v6633 = vadd.f32 %v6558, %v6609
      %v6634 = vadd.f32 %v6559, %v6610
      %v6635 = vadd.f32 %v6560, %v6611
      %v6636 = vadd.f32 %v6561, %v6612
      %v6637 = vadd.f32 %v6562, %v6613
      %v6638 = vadd.f32 %v6563, %v6614
      %v6639 = vadd.f32 %v6564, %v6615
      %v6640 = vadd.f32 %v6565, %v6616
      %v6641 = vadd.f32 %v6566, %v6617
      %v6642 = vadd.f32 %v6567, %v6618
      %v6643 = vadd.f32 %v6568, %v6619
      %v6644 = vadd.f32 %v6569, %v6620
      %v6645 = vadd.f32 %v6570, %v6621
      %v6646 = vadd.f32 %v6571, %v6622
      %v6647 = vadd.f32 %v6572, %v6623
      %v6648 = vadd.f32 %v6573, %v6624
      %v6649 = vadd.f32 %v6574, %v6625
      %v6650 = vadd.f32 %v6575, %v6626
      %v6651 = vadd.f32 %v6576, %v6627
      %v6652 = vadd.f32 %v6577, %v6628
      %v6653 = vadd.f32 %v6578, %v6629
      %v6654 = vadd.f32 %v6579, %v6630
      %v6655 = vadd.f32 %v6580, %v6631
      %s6656 = sadd.s32 %s2834, 816
      %s6657 = sld [smem:[#allocation8 + %s6656]]
      %v6658 = vld [vmem:[%s5755 + $0x2] sm:$0xff]
      %v6659 = vld [vmem:[%s5755 + $0xa] sm:$0xf]
      %v6660 = vld [vmem:[%s5755 + $0x12] sm:$0xff]
      %v6661 = vld [vmem:[%s5755 + $0x1a] sm:$0xf]
      %v6662 = vld [vmem:[%s5755 + $0x22] sm:$0xff]
      %v6663 = vld [vmem:[%s5755 + $0x2a] sm:$0xf]
      %v6664 = vld [vmem:[%s5755 + $0x32] sm:$0xff]
      %v6665 = vld [vmem:[%s5755 + $0x3a] sm:$0xf]
      %v6666 = vld [vmem:[%s5755 + $0x42] sm:$0xff]
      %v6667 = vld [vmem:[%s5755 + $0x4a] sm:$0xf]
      %v6668 = vld [vmem:[%s5755 + $0x52] sm:$0xff]
      %v6669 = vld [vmem:[%s5755 + $0x5a] sm:$0xf]
      %v6670 = vld [vmem:[%s5755 + $0x62] sm:$0xff]
      %v6671 = vld [vmem:[%s5755 + $0x6a] sm:$0xf]
      %v6672 = vld [vmem:[%s5755 + $0x72] sm:$0xff]
      %v6673 = vld [vmem:[%s5755 + $0x7a] sm:$0xf]
      %v6674 = vld [vmem:[%s5755 + $0x82] sm:$0xff]
      %v6675 = vld [vmem:[%s5755 + $0x8a] sm:$0xf]
      %v6676 = vld [vmem:[%s5755 + $0x92] sm:$0xff]
      %v6677 = vld [vmem:[%s5755 + $0x9a] sm:$0xf]
      %v6678 = vld [vmem:[%s5755 + $0xa2] sm:$0xff]
      %v6679 = vld [vmem:[%s5755 + $0xaa] sm:$0xf]
      %v6680 = vld [vmem:[%s5755 + $0xb2] sm:$0xff]
      %v6681 = vld [vmem:[%s5755 + $0xba] sm:$0xf]
      %v6682 = vstv %s6657
      %v6683 = vmul.f32 %v6658, %v6682
      %v6684 = vmul.f32 %v6659, %v6682
      %v6685 = vmul.f32 %v6660, %v6682
      %v6686 = vmul.f32 %v6661, %v6682
      %v6687 = vmul.f32 %v6662, %v6682
      %v6688 = vmul.f32 %v6663, %v6682
      %v6689 = vmul.f32 %v6664, %v6682
      %v6690 = vmul.f32 %v6665, %v6682
      %v6691 = vmul.f32 %v6666, %v6682
      %v6692 = vmul.f32 %v6667, %v6682
      %v6693 = vmul.f32 %v6668, %v6682
      %v6694 = vmul.f32 %v6669, %v6682
      %v6695 = vmul.f32 %v6670, %v6682
      %v6696 = vmul.f32 %v6671, %v6682
      %v6697 = vmul.f32 %v6672, %v6682
      %v6698 = vmul.f32 %v6673, %v6682
      %v6699 = vmul.f32 %v6674, %v6682
      %v6700 = vmul.f32 %v6675, %v6682
      %v6701 = vmul.f32 %v6676, %v6682
      %v6702 = vmul.f32 %v6677, %v6682
      %v6703 = vmul.f32 %v6678, %v6682
      %v6704 = vmul.f32 %v6679, %v6682
      %v6705 = vmul.f32 %v6680, %v6682
      %v6706 = vmul.f32 %v6681, %v6682
      %v6707 = vadd.f32 %v6632, %v6683
      %v6708 = vadd.f32 %v6633, %v6684
      %v6709 = vadd.f32 %v6634, %v6685
      %v6710 = vadd.f32 %v6635, %v6686
      %v6711 = vadd.f32 %v6636, %v6687
      %v6712 = vadd.f32 %v6637, %v6688
      %v6713 = vadd.f32 %v6638, %v6689
      %v6714 = vadd.f32 %v6639, %v6690
      %v6715 = vadd.f32 %v6640, %v6691
      %v6716 = vadd.f32 %v6641, %v6692
      %v6717 = vadd.f32 %v6642, %v6693
      %v6718 = vadd.f32 %v6643, %v6694
      %v6719 = vadd.f32 %v6644, %v6695
      %v6720 = vadd.f32 %v6645, %v6696
      %v6721 = vadd.f32 %v6646, %v6697
      %v6722 = vadd.f32 %v6647, %v6698
      %v6723 = vadd.f32 %v6648, %v6699
      %v6724 = vadd.f32 %v6649, %v6700
      %v6725 = vadd.f32 %v6650, %v6701
      %v6726 = vadd.f32 %v6651, %v6702
      %v6727 = vadd.f32 %v6652, %v6703
      %v6728 = vadd.f32 %v6653, %v6704
      %v6729 = vadd.f32 %v6654, %v6705
      %v6730 = vadd.f32 %v6655, %v6706
      %s6731 = sadd.s32 %s2834, 832
      %s6732 = sld [smem:[#allocation8 + %s6731]]
      %v6733 = vld [vmem:[%s5831 + $0x2] sm:$0xff]
      %v6734 = vld [vmem:[%s5831 + $0xa] sm:$0xf]
      %v6735 = vld [vmem:[%s5831 + $0x12] sm:$0xff]
      %v6736 = vld [vmem:[%s5831 + $0x1a] sm:$0xf]
      %v6737 = vld [vmem:[%s5831 + $0x22] sm:$0xff]
      %v6738 = vld [vmem:[%s5831 + $0x2a] sm:$0xf]
      %v6739 = vld [vmem:[%s5831 + $0x32] sm:$0xff]
      %v6740 = vld [vmem:[%s5831 + $0x3a] sm:$0xf]
      %v6741 = vld [vmem:[%s5831 + $0x42] sm:$0xff]
      %v6742 = vld [vmem:[%s5831 + $0x4a] sm:$0xf]
      %v6743 = vld [vmem:[%s5831 + $0x52] sm:$0xff]
      %v6744 = vld [vmem:[%s5831 + $0x5a] sm:$0xf]
      %v6745 = vld [vmem:[%s5831 + $0x62] sm:$0xff]
      %v6746 = vld [vmem:[%s5831 + $0x6a] sm:$0xf]
      %v6747 = vld [vmem:[%s5831 + $0x72] sm:$0xff]
      %v6748 = vld [vmem:[%s5831 + $0x7a] sm:$0xf]
      %v6749 = vld [vmem:[%s5831 + $0x82] sm:$0xff]
      %v6750 = vld [vmem:[%s5831 + $0x8a] sm:$0xf]
      %v6751 = vld [vmem:[%s5831 + $0x92] sm:$0xff]
      %v6752 = vld [vmem:[%s5831 + $0x9a] sm:$0xf]
      %v6753 = vld [vmem:[%s5831 + $0xa2] sm:$0xff]
      %v6754 = vld [vmem:[%s5831 + $0xaa] sm:$0xf]
      %v6755 = vld [vmem:[%s5831 + $0xb2] sm:$0xff]
      %v6756 = vld [vmem:[%s5831 + $0xba] sm:$0xf]
      %v6757 = vstv %s6732
      %v6758 = vmul.f32 %v6733, %v6757
      %v6759 = vmul.f32 %v6734, %v6757
      %v6760 = vmul.f32 %v6735, %v6757
      %v6761 = vmul.f32 %v6736, %v6757
      %v6762 = vmul.f32 %v6737, %v6757
      %v6763 = vmul.f32 %v6738, %v6757
      %v6764 = vmul.f32 %v6739, %v6757
      %v6765 = vmul.f32 %v6740, %v6757
      %v6766 = vmul.f32 %v6741, %v6757
      %v6767 = vmul.f32 %v6742, %v6757
      %v6768 = vmul.f32 %v6743, %v6757
      %v6769 = vmul.f32 %v6744, %v6757
      %v6770 = vmul.f32 %v6745, %v6757
      %v6771 = vmul.f32 %v6746, %v6757
      %v6772 = vmul.f32 %v6747, %v6757
      %v6773 = vmul.f32 %v6748, %v6757
      %v6774 = vmul.f32 %v6749, %v6757
      %v6775 = vmul.f32 %v6750, %v6757
      %v6776 = vmul.f32 %v6751, %v6757
      %v6777 = vmul.f32 %v6752, %v6757
      %v6778 = vmul.f32 %v6753, %v6757
      %v6779 = vmul.f32 %v6754, %v6757
      %v6780 = vmul.f32 %v6755, %v6757
      %v6781 = vmul.f32 %v6756, %v6757
      %v6782 = vadd.f32 %v6707, %v6758
      %v6783 = vadd.f32 %v6708, %v6759
      %v6784 = vadd.f32 %v6709, %v6760
      %v6785 = vadd.f32 %v6710, %v6761
      %v6786 = vadd.f32 %v6711, %v6762
      %v6787 = vadd.f32 %v6712, %v6763
      %v6788 = vadd.f32 %v6713, %v6764
      %v6789 = vadd.f32 %v6714, %v6765
      %v6790 = vadd.f32 %v6715, %v6766
      %v6791 = vadd.f32 %v6716, %v6767
      %v6792 = vadd.f32 %v6717, %v6768
      %v6793 = vadd.f32 %v6718, %v6769
      %v6794 = vadd.f32 %v6719, %v6770
      %v6795 = vadd.f32 %v6720, %v6771
      %v6796 = vadd.f32 %v6721, %v6772
      %v6797 = vadd.f32 %v6722, %v6773
      %v6798 = vadd.f32 %v6723, %v6774
      %v6799 = vadd.f32 %v6724, %v6775
      %v6800 = vadd.f32 %v6725, %v6776
      %v6801 = vadd.f32 %v6726, %v6777
      %v6802 = vadd.f32 %v6727, %v6778
      %v6803 = vadd.f32 %v6728, %v6779
      %v6804 = vadd.f32 %v6729, %v6780
      %v6805 = vadd.f32 %v6730, %v6781
      %s6806 = sadd.s32 %s2834, 848
      %s6807 = sld [smem:[#allocation8 + %s6806]]
      %v6808 = vld [vmem:[%s5907 + $0x2] sm:$0xff]
      %v6809 = vld [vmem:[%s5907 + $0xa] sm:$0xf]
      %v6810 = vld [vmem:[%s5907 + $0x12] sm:$0xff]
      %v6811 = vld [vmem:[%s5907 + $0x1a] sm:$0xf]
      %v6812 = vld [vmem:[%s5907 + $0x22] sm:$0xff]
      %v6813 = vld [vmem:[%s5907 + $0x2a] sm:$0xf]
      %v6814 = vld [vmem:[%s5907 + $0x32] sm:$0xff]
      %v6815 = vld [vmem:[%s5907 + $0x3a] sm:$0xf]
      %v6816 = vld [vmem:[%s5907 + $0x42] sm:$0xff]
      %v6817 = vld [vmem:[%s5907 + $0x4a] sm:$0xf]
      %v6818 = vld [vmem:[%s5907 + $0x52] sm:$0xff]
      %v6819 = vld [vmem:[%s5907 + $0x5a] sm:$0xf]
      %v6820 = vld [vmem:[%s5907 + $0x62] sm:$0xff]
      %v6821 = vld [vmem:[%s5907 + $0x6a] sm:$0xf]
      %v6822 = vld [vmem:[%s5907 + $0x72] sm:$0xff]
      %v6823 = vld [vmem:[%s5907 + $0x7a] sm:$0xf]
      %v6824 = vld [vmem:[%s5907 + $0x82] sm:$0xff]
      %v6825 = vld [vmem:[%s5907 + $0x8a] sm:$0xf]
      %v6826 = vld [vmem:[%s5907 + $0x92] sm:$0xff]
      %v6827 = vld [vmem:[%s5907 + $0x9a] sm:$0xf]
      %v6828 = vld [vmem:[%s5907 + $0xa2] sm:$0xff]
      %v6829 = vld [vmem:[%s5907 + $0xaa] sm:$0xf]
      %v6830 = vld [vmem:[%s5907 + $0xb2] sm:$0xff]
      %v6831 = vld [vmem:[%s5907 + $0xba] sm:$0xf]
      %v6832 = vstv %s6807
      %v6833 = vmul.f32 %v6808, %v6832
      %v6834 = vmul.f32 %v6809, %v6832
      %v6835 = vmul.f32 %v6810, %v6832
      %v6836 = vmul.f32 %v6811, %v6832
      %v6837 = vmul.f32 %v6812, %v6832
      %v6838 = vmul.f32 %v6813, %v6832
      %v6839 = vmul.f32 %v6814, %v6832
      %v6840 = vmul.f32 %v6815, %v6832
      %v6841 = vmul.f32 %v6816, %v6832
      %v6842 = vmul.f32 %v6817, %v6832
      %v6843 = vmul.f32 %v6818, %v6832
      %v6844 = vmul.f32 %v6819, %v6832
      %v6845 = vmul.f32 %v6820, %v6832
      %v6846 = vmul.f32 %v6821, %v6832
      %v6847 = vmul.f32 %v6822, %v6832
      %v6848 = vmul.f32 %v6823, %v6832
      %v6849 = vmul.f32 %v6824, %v6832
      %v6850 = vmul.f32 %v6825, %v6832
      %v6851 = vmul.f32 %v6826, %v6832
      %v6852 = vmul.f32 %v6827, %v6832
      %v6853 = vmul.f32 %v6828, %v6832
      %v6854 = vmul.f32 %v6829, %v6832
      %v6855 = vmul.f32 %v6830, %v6832
      %v6856 = vmul.f32 %v6831, %v6832
      %v6857 = vadd.f32 %v6782, %v6833
      %v6858 = vadd.f32 %v6783, %v6834
      %v6859 = vadd.f32 %v6784, %v6835
      %v6860 = vadd.f32 %v6785, %v6836
      %v6861 = vadd.f32 %v6786, %v6837
      %v6862 = vadd.f32 %v6787, %v6838
      %v6863 = vadd.f32 %v6788, %v6839
      %v6864 = vadd.f32 %v6789, %v6840
      %v6865 = vadd.f32 %v6790, %v6841
      %v6866 = vadd.f32 %v6791, %v6842
      %v6867 = vadd.f32 %v6792, %v6843
      %v6868 = vadd.f32 %v6793, %v6844
      %v6869 = vadd.f32 %v6794, %v6845
      %v6870 = vadd.f32 %v6795, %v6846
      %v6871 = vadd.f32 %v6796, %v6847
      %v6872 = vadd.f32 %v6797, %v6848
      %v6873 = vadd.f32 %v6798, %v6849
      %v6874 = vadd.f32 %v6799, %v6850
      %v6875 = vadd.f32 %v6800, %v6851
      %v6876 = vadd.f32 %v6801, %v6852
      %v6877 = vadd.f32 %v6802, %v6853
      %v6878 = vadd.f32 %v6803, %v6854
      %v6879 = vadd.f32 %v6804, %v6855
      %v6880 = vadd.f32 %v6805, %v6856
      %s6881 = sld [smem:[#allocation9 + %s2834]]
      %v6882 = vstv %s6881
      %v6883 = vadd.f32 %v6857, %v6882
      %v6884 = vadd.f32 %v6858, %v6882
      %v6885 = vadd.f32 %v6859, %v6882
      %v6886 = vadd.f32 %v6860, %v6882
      %v6887 = vadd.f32 %v6861, %v6882
      %v6888 = vadd.f32 %v6862, %v6882
      %v6889 = vadd.f32 %v6863, %v6882
      %v6890 = vadd.f32 %v6864, %v6882
      %v6891 = vadd.f32 %v6865, %v6882
      %v6892 = vadd.f32 %v6866, %v6882
      %v6893 = vadd.f32 %v6867, %v6882
      %v6894 = vadd.f32 %v6868, %v6882
      %v6895 = vadd.f32 %v6869, %v6882
      %v6896 = vadd.f32 %v6870, %v6882
      %v6897 = vadd.f32 %v6871, %v6882
      %v6898 = vadd.f32 %v6872, %v6882
      %v6899 = vadd.f32 %v6873, %v6882
      %v6900 = vadd.f32 %v6874, %v6882
      %v6901 = vadd.f32 %v6875, %v6882
      %v6902 = vadd.f32 %v6876, %v6882
      %v6903 = vadd.f32 %v6877, %v6882
      %v6904 = vadd.f32 %v6878, %v6882
      %v6905 = vadd.f32 %v6879, %v6882
      %v6906 = vadd.f32 %v6880, %v6882
      %v6907 = vmax.f32 %v6883, 0.0
      %v6908 = vmax.f32 %v6884, 0.0
      %v6909 = vmax.f32 %v6885, 0.0
      %v6910 = vmax.f32 %v6886, 0.0
      %v6911 = vmax.f32 %v6887, 0.0
      %v6912 = vmax.f32 %v6888, 0.0
      %v6913 = vmax.f32 %v6889, 0.0
      %v6914 = vmax.f32 %v6890, 0.0
      %v6915 = vmax.f32 %v6891, 0.0
      %v6916 = vmax.f32 %v6892, 0.0
      %v6917 = vmax.f32 %v6893, 0.0
      %v6918 = vmax.f32 %v6894, 0.0
      %v6919 = vmax.f32 %v6895, 0.0
      %v6920 = vmax.f32 %v6896, 0.0
      %v6921 = vmax.f32 %v6897, 0.0
      %v6922 = vmax.f32 %v6898, 0.0
      %v6923 = vmax.f32 %v6899, 0.0
      %v6924 = vmax.f32 %v6900, 0.0
      %v6925 = vmax.f32 %v6901, 0.0
      %v6926 = vmax.f32 %v6902, 0.0
      %v6927 = vmax.f32 %v6903, 0.0
      %v6928 = vmax.f32 %v6904, 0.0
      %v6929 = vmax.f32 %v6905, 0.0
      %v6930 = vmax.f32 %v6906, 0.0
      %v6931 = vmax.f32 %v6907, %v6909
      %v6932 = vmax.f32 %v6908, %v6910
      %v6934 = vrot.slane %v6931, 1
      %v6936 = vmax.f32 %v6931, %v6934
      %v6938 = vrot.slane %v6932, 1
      %v6940 = vmax.f32 %v6932, %v6938
      %v6941 = vmax.f32 %v6911, %v6913
      %v6942 = vmax.f32 %v6912, %v6914
      %v6944 = vrot.slane %v6941, 1
      %v6946 = vmax.f32 %v6941, %v6944
      %v6948 = vrot.slane %v6942, 1
      %v6950 = vmax.f32 %v6942, %v6948
      %v6951 = vmax.f32 %v6915, %v6917
      %v6952 = vmax.f32 %v6916, %v6918
      %v6954 = vrot.slane %v6951, 1
      %v6956 = vmax.f32 %v6951, %v6954
      %v6958 = vrot.slane %v6952, 1
      %v6960 = vmax.f32 %v6952, %v6958
      %v6961 = vmax.f32 %v6919, %v6921
      %v6962 = vmax.f32 %v6920, %v6922
      %v6964 = vrot.slane %v6961, 1
      %v6966 = vmax.f32 %v6961, %v6964
      %v6968 = vrot.slane %v6962, 1
      %v6970 = vmax.f32 %v6962, %v6968
      %v6971 = vmax.f32 %v6923, %v6925
      %v6972 = vmax.f32 %v6924, %v6926
      %v6974 = vrot.slane %v6971, 1
      %v6976 = vmax.f32 %v6971, %v6974
      %v6978 = vrot.slane %v6972, 1
      %v6980 = vmax.f32 %v6972, %v6978
      %v6981 = vmax.f32 %v6927, %v6929
      %v6982 = vmax.f32 %v6928, %v6930
      %v6984 = vrot.slane %v6981, 1
      %v6986 = vmax.f32 %v6981, %v6984
      %v6988 = vrot.slane %v6982, 1
      %v6990 = vmax.f32 %v6982, %v6988
      %v6992 = vrot.slane %v6936, 1
      %v6994 = vrot.slane %v6936, 2
      %v6996 = vrot.slane %v6936, 3
      %v6999 = vrot.slane %v6940, 4
      %v7001 = vrot.slane %v6940, 5
      %v7004 = vrot.slane %v6946, 2
      %v7006 = vrot.slane %v6946, 3
      %v7008 = vrot.slane %v6946, 4
      %v7010 = vrot.slane %v6946, 5
      %v7013 = vrot.slane %v6950, 6
      %v7015 = vrot.slane %v6950, 7
      %v7018 = vrot.slane %v6956, 4
      %v7020 = vrot.slane %v6956, 5
      %v7022 = vrot.slane %v6956, 6
      %v7024 = vrot.slane %v6956, 7
      %vm7026 = vcmask 1040384
      %v7027 = vsel %vm7026, %v6936, %v6992
      %vm7028 = vcmask 1041408
      %v7029 = vsel %vm7028, %v7027, %v6994
      %vm7030 = vcmask 1042432
      %v7031 = vsel %vm7030, %v7029, %v6996
      %vm7032 = vcmask 1043456
      %v7033 = vsel %vm7032, %v7031, %v6999
      %vm7034 = vcmask 1044480
      %v7035 = vsel %vm7034, %v7033, %v7001
      %vm7036 = vcmask 1045504
      %v7037 = vsel %vm7036, %v7035, %v7004
      %vm7038 = vcmask 1046528
      %v7039 = vsel %vm7038, %v7037, %v7006
      %v7040 = vsel %vm7026, %v7008, %v7010
      %v7041 = vsel %vm7028, %v7040, %v7013
      %v7042 = vsel %vm7030, %v7041, %v7015
      %v7043 = vsel %vm7032, %v7042, %v7018
      %v7044 = vsel %vm7034, %v7043, %v7020
      %v7045 = vsel %vm7036, %v7044, %v7022
      %v7046 = vsel %vm7038, %v7045, %v7024
      %v7048 = vrot.slane %v6960, 1
      %v7051 = vrot.slane %v6966, 6
      %v7053 = vrot.slane %v6966, 7
      %v7055 = vrot.slane %v6966, 1
      %v7058 = vrot.slane %v6970, 2
      %v7060 = vrot.slane %v6970, 3
      %v7063 = vrot.slane %v6976, 1
      %v7065 = vrot.slane %v6976, 2
      %v7067 = vrot.slane %v6976, 3
      %v7070 = vrot.slane %v6980, 4
      %v7072 = vrot.slane %v6980, 5
      %v7075 = vrot.slane %v6986, 2
      %v7077 = vrot.slane %v6986, 3
      %v7079 = vsel %vm7026, %v6960, %v7048
      %v7080 = vsel %vm7028, %v7079, %v7051
      %v7081 = vsel %vm7030, %v7080, %v7053
      %v7082 = vsel %vm7032, %v7081, %v6966
      %v7083 = vsel %vm7034, %v7082, %v7055
      %v7084 = vsel %vm7036, %v7083, %v7058
      %v7085 = vsel %vm7038, %v7084, %v7060
      %v7086 = vsel %vm7026, %v6976, %v7063
      %v7087 = vsel %vm7028, %v7086, %v7065
      %v7088 = vsel %vm7030, %v7087, %v7067
      %v7089 = vsel %vm7032, %v7088, %v7070
      %v7090 = vsel %vm7034, %v7089, %v7072
      %v7091 = vsel %vm7036, %v7090, %v7075
      %v7092 = vsel %vm7038, %v7091, %v7077
      %v7093 = vrot.slane %v6986, 4
      %v7095 = vrot.slane %v6986, 5
      %v7098 = vrot.slane %v6990, 6
      %v7100 = vrot.slane %v6990, 7
      %v7102 = vsel %vm7026, %v7093, %v7095
      %v7103 = vsel %vm7028, %v7102, %v7098
      %v7104 = vsel %vm7030, %v7103, %v7100
      %s7105 = smul.u32 %s2834, 36
      %s7106 = scalar_lea.vmem [#allocation3], %s7105
      %vm7107 = vcmask 64512
      %7108 = vst.msk [vmem:[%s7106] sm:$0xff] %vm7107, %v7039
      %7109 = vst.msk [vmem:[%s7106 + $0x8] sm:$0xff] %vm7107, %v7046
      %7110 = vst.msk [vmem:[%s7106 + $0x10] sm:$0xff] %vm7107, %v7085
      %7111 = vst.msk [vmem:[%s7106 + $0x18] sm:$0xff] %vm7107, %v7092
      %vm7112 = vcmask 60416
      %7113 = vst.msk [vmem:[%s7106 + $0x20] sm:$0xf] %vm7112, %v7104
    $region73: #{net_forward.1} parent=1 // loop_footer
      %s2838 = sadd.s32 1, %s2834
    $region74: #{net_forward.1} parent=1 // loop_footer_branch
      %2833 = sbr.rel target = $region70
    $region75: #{net_forward.1} parent=1 // loop_exit
      _
    %v7114 = vld [vmem:[#allocation3] sm:$0xff]
    %v7115 = vld [vmem:[#allocation3 + $0x8] sm:$0xff]
    %v7116 = vld [vmem:[#allocation3 + $0x10] sm:$0xff]
    %v7117 = vld [vmem:[#allocation3 + $0x18] sm:$0xff]
    %v7118 = vld [vmem:[#allocation3 + $0x20] sm:$0xff]
    %v7119 = vld [vmem:[#allocation3 + $0x28] sm:$0xff]
    %v7120 = vld [vmem:[#allocation3 + $0x30] sm:$0xff]
    %v7121 = vld [vmem:[#allocation3 + $0x38] sm:$0xff]
    %v7122 = vld [vmem:[#allocation3 + $0x40] sm:$0xff]
    %v7123 = vld [vmem:[#allocation3 + $0x48] sm:$0xff]
    %v7124 = vld [vmem:[#allocation3 + $0x50] sm:$0xff]
    %v7125 = vld [vmem:[#allocation3 + $0x58] sm:$0xff]
    %v7126 = vld [vmem:[#allocation3 + $0x60] sm:$0xff]
    %v7127 = vld [vmem:[#allocation3 + $0x68] sm:$0xff]
    %v7128 = vld [vmem:[#allocation3 + $0x70] sm:$0xff]
    %v7129 = vld [vmem:[#allocation3 + $0x78] sm:$0xff]
    %v7130 = vld [vmem:[#allocation3 + $0x80] sm:$0xff]
    %v7131 = vld [vmem:[#allocation3 + $0x88] sm:$0xff]
    %v7132 = vld [vmem:[#allocation3 + $0x90] sm:$0xff]
    %v7133 = vld [vmem:[#allocation3 + $0x98] sm:$0xff]
    %v7134 = vld [vmem:[#allocation3 + $0xa0] sm:$0xff]
    %v7135 = vld [vmem:[#allocation3 + $0xa8] sm:$0xff]
    %v7136 = vld [vmem:[#allocation3 + $0xb0] sm:$0xff]
    %v7137 = vld [vmem:[#allocation3 + $0xb8] sm:$0xff]
    %v7138 = vld [vmem:[#allocation3 + $0xc0] sm:$0xff]
    %v7139 = vld [vmem:[#allocation3 + $0xc8] sm:$0xff]
    %v7140 = vld [vmem:[#allocation3 + $0xd0] sm:$0xff]
    %v7141 = vld [vmem:[#allocation3 + $0xd8] sm:$0xff]
    %v7142 = vld [vmem:[#allocation3 + $0xe0] sm:$0xff]
    %v7143 = vld [vmem:[#allocation3 + $0xe8] sm:$0xff]
    %v7144 = vld [vmem:[#allocation3 + $0xf0] sm:$0xff]
    %v7145 = vld [vmem:[#allocation3 + $0xf8] sm:$0xff]
    %v7146 = vld [vmem:[#allocation3 + $0x100] sm:$0xff]
    %v7147 = vld [vmem:[#allocation3 + $0x108] sm:$0xff]
    %v7148 = vld [vmem:[#allocation3 + $0x110] sm:$0xff]
    %v7149 = vld [vmem:[#allocation3 + $0x118] sm:$0xff]
    %v7150 = vld [vmem:[#allocation3 + $0x120] sm:$0xff]
    %v7151 = vld [vmem:[#allocation3 + $0x128] sm:$0xff]
    %v7152 = vld [vmem:[#allocation3 + $0x130] sm:$0xff]
    %v7153 = vld [vmem:[#allocation3 + $0x138] sm:$0xff]
    %v7154 = vld [vmem:[#allocation3 + $0x140] sm:$0xff]
    %v7155 = vld [vmem:[#allocation3 + $0x148] sm:$0xff]
    %v7156 = vld [vmem:[#allocation3 + $0x150] sm:$0xff]
    %v7157 = vld [vmem:[#allocation3 + $0x158] sm:$0xff]
    %v7158 = vld [vmem:[#allocation3 + $0x160] sm:$0xff]
    %v7159 = vld [vmem:[#allocation3 + $0x168] sm:$0xff]
    %v7160 = vld [vmem:[#allocation3 + $0x170] sm:$0xff]
    %v7161 = vld [vmem:[#allocation3 + $0x178] sm:$0xff]
    %v7162 = vld [vmem:[#allocation3 + $0x180] sm:$0xff]
    %v7163 = vld [vmem:[#allocation3 + $0x188] sm:$0xff]
    %v7164 = vld [vmem:[#allocation3 + $0x190] sm:$0xff]
    %v7165 = vld [vmem:[#allocation3 + $0x198] sm:$0xff]
    %v7166 = vld [vmem:[#allocation3 + $0x1a0] sm:$0xff]
    %v7167 = vld [vmem:[#allocation3 + $0x1a8] sm:$0xff]
    %v7168 = vld [vmem:[#allocation3 + $0x1b0] sm:$0xff]
    %v7169 = vld [vmem:[#allocation3 + $0x1b8] sm:$0xff]
    %v7170 = vld [vmem:[#allocation3 + $0x1c0] sm:$0xff]
    %v7171 = vld [vmem:[#allocation3 + $0x1c8] sm:$0xff]
    %v7172 = vld [vmem:[#allocation3 + $0x1d0] sm:$0xff]
    %v7173 = vld [vmem:[#allocation3 + $0x1d8] sm:$0xff]
    %v7174 = vld [vmem:[#allocation3 + $0x1e0] sm:$0xff]
    %v7175 = vld [vmem:[#allocation3 + $0x1e8] sm:$0xff]
    %v7176 = vld [vmem:[#allocation3 + $0x1f0] sm:$0xff]
    %v7177 = vld [vmem:[#allocation3 + $0x1f8] sm:$0xff]
    %v7178 = vld [vmem:[#allocation3 + $0x200] sm:$0xff]
    %v7179 = vld [vmem:[#allocation3 + $0x208] sm:$0xff]
    %v7180 = vld [vmem:[#allocation3 + $0x210] sm:$0xff]
    %v7181 = vld [vmem:[#allocation3 + $0x218] sm:$0xff]
    %v7182 = vld [vmem:[#allocation3 + $0x220] sm:$0xff]
    %v7183 = vld [vmem:[#allocation3 + $0x228] sm:$0xff]
    %v7184 = vld [vmem:[#allocation3 + $0x230] sm:$0xff]
    %v7185 = vld [vmem:[#allocation3 + $0x238] sm:$0xff]
    %v7186 = vpack.c.bf16 %v7115, %v7114
    %v7187 = vpack.c.bf16 %v7117, %v7116
    %v7188 = vpack.c.bf16 %v7119, %v7118
    %v7189 = vpack.c.bf16 %v7121, %v7120
    %v7190 = vpack.c.bf16 %v7123, %v7122
    %v7191 = vpack.c.bf16 %v7125, %v7124
    %v7192 = vpack.c.bf16 %v7127, %v7126
    %v7193 = vpack.c.bf16 %v7129, %v7128
    %v7194 = vpack.c.bf16 %v7131, %v7130
    %v7195 = vpack.c.bf16 %v7133, %v7132
    %v7196 = vpack.c.bf16 %v7135, %v7134
    %v7197 = vpack.c.bf16 %v7137, %v7136
    %v7198 = vpack.c.bf16 %v7139, %v7138
    %v7199 = vpack.c.bf16 %v7141, %v7140
    %v7200 = vpack.c.bf16 %v7143, %v7142
    %v7201 = vpack.c.bf16 %v7145, %v7144
    %v7202 = vpack.c.bf16 %v7147, %v7146
    %v7203 = vpack.c.bf16 %v7149, %v7148
    %v7204 = vpack.c.bf16 %v7151, %v7150
    %v7205 = vpack.c.bf16 %v7153, %v7152
    %v7206 = vpack.c.bf16 %v7155, %v7154
    %v7207 = vpack.c.bf16 %v7157, %v7156
    %v7208 = vpack.c.bf16 %v7159, %v7158
    %v7209 = vpack.c.bf16 %v7161, %v7160
    %v7210 = vpack.c.bf16 %v7163, %v7162
    %v7211 = vpack.c.bf16 %v7165, %v7164
    %v7212 = vpack.c.bf16 %v7167, %v7166
    %v7213 = vpack.c.bf16 %v7169, %v7168
    %v7214 = vpack.c.bf16 %v7171, %v7170
    %v7215 = vpack.c.bf16 %v7173, %v7172
    %v7216 = vpack.c.bf16 %v7175, %v7174
    %v7217 = vpack.c.bf16 %v7177, %v7176
    %v7218 = vpack.c.bf16 %v7179, %v7178
    %v7219 = vpack.c.bf16 %v7181, %v7180
    %v7220 = vpack.c.bf16 %v7183, %v7182
    %v7221 = vpack.c.bf16 %v7185, %v7184
    %v7222 = vld [vmem:[%s5] sm:$0xff]
    %v7223 = vld [vmem:[%s5 + $0x8] sm:$0xff]
    %v7224 = vld [vmem:[%s5 + $0x10] sm:$0xf]
    %v7225 = vld [vmem:[%s5 + $0x14] sm:$0xff]
    %v7226 = vld [vmem:[%s5 + $0x1c] sm:$0xff]
    %v7227 = vld [vmem:[%s5 + $0x24] sm:$0xf]
    %v7228 = vld [vmem:[%s5 + $0x28] sm:$0xff]
    %v7229 = vld [vmem:[%s5 + $0x30] sm:$0xff]
    %v7230 = vld [vmem:[%s5 + $0x38] sm:$0xf]
    %v7231 = vld [vmem:[%s5 + $0x3c] sm:$0xff]
    %v7232 = vld [vmem:[%s5 + $0x44] sm:$0xff]
    %v7233 = vld [vmem:[%s5 + $0x4c] sm:$0xf]
    %v7234 = vld [vmem:[%s5 + $0x50] sm:$0xff]
    %v7235 = vld [vmem:[%s5 + $0x58] sm:$0xff]
    %v7236 = vld [vmem:[%s5 + $0x60] sm:$0xf]
    %v7237 = vld [vmem:[%s5 + $0x64] sm:$0xff]
    %v7238 = vld [vmem:[%s5 + $0x6c] sm:$0xff]
    %v7239 = vld [vmem:[%s5 + $0x74] sm:$0xf]
    %v7240 = vld [vmem:[%s5 + $0x78] sm:$0xff]
    %v7241 = vld [vmem:[%s5 + $0x80] sm:$0xff]
    %v7242 = vld [vmem:[%s5 + $0x88] sm:$0xf]
    %v7243 = vld [vmem:[%s5 + $0x8c] sm:$0xff]
    %v7244 = vld [vmem:[%s5 + $0x94] sm:$0xff]
    %v7245 = vld [vmem:[%s5 + $0x9c] sm:$0xf]
    %v7246 = vld [vmem:[%s5 + $0xa0] sm:$0xff]
    %v7247 = vld [vmem:[%s5 + $0xa8] sm:$0xff]
    %v7248 = vld [vmem:[%s5 + $0xb0] sm:$0xf]
    %v7249 = vld [vmem:[%s5 + $0xb4] sm:$0xff]
    %v7250 = vld [vmem:[%s5 + $0xbc] sm:$0xff]
    %v7251 = vld [vmem:[%s5 + $0xc4] sm:$0xf]
    %v7252 = vld [vmem:[%s5 + $0xc8] sm:$0xff]
    %v7253 = vld [vmem:[%s5 + $0xd0] sm:$0xff]
    %v7254 = vld [vmem:[%s5 + $0xd8] sm:$0xf]
    %v7255 = vld [vmem:[%s5 + $0xdc] sm:$0xff]
    %v7256 = vld [vmem:[%s5 + $0xe4] sm:$0xff]
    %v7257 = vld [vmem:[%s5 + $0xec] sm:$0xf]
    %v7258 = vld [vmem:[%s5 + $0xf0] sm:$0xff]
    %v7259 = vld [vmem:[%s5 + $0xf8] sm:$0xff]
    %v7260 = vld [vmem:[%s5 + $0x100] sm:$0xf]
    %v7261 = vld [vmem:[%s5 + $0x104] sm:$0xff]
    %v7262 = vld [vmem:[%s5 + $0x10c] sm:$0xff]
    %v7263 = vld [vmem:[%s5 + $0x114] sm:$0xf]
    %v7264 = vld [vmem:[%s5 + $0x118] sm:$0xff]
    %v7265 = vld [vmem:[%s5 + $0x120] sm:$0xff]
    %v7266 = vld [vmem:[%s5 + $0x128] sm:$0xf]
    %v7267 = vld [vmem:[%s6] sm:$0xff]
    %v7268 = vld [vmem:[%s6 + $0x8] sm:$0xff]
    %v7269 = vld [vmem:[%s6 + $0x10] sm:$0xff]
    %v7270 = vld [vmem:[%s6 + $0x18] sm:$0xff]
    %v7271 = vld [vmem:[%s6 + $0x20] sm:$0xff]
    %v7272 = vld [vmem:[%s6 + $0x28] sm:$0xff]
    %v7273 = vld [vmem:[%s6 + $0x30] sm:$0xff]
    %v7274 = vld [vmem:[%s6 + $0x38] sm:$0xff]
    %v7275 = vld [vmem:[%s6 + $0x40] sm:$0xff]
    %v7276 = vld [vmem:[%s6 + $0x48] sm:$0xff]
    %v7277 = vld [vmem:[%s6 + $0x50] sm:$0xff]
    %v7278 = vld [vmem:[%s6 + $0x58] sm:$0xff]
    %v7279 = vld [vmem:[%s6 + $0x60] sm:$0xff]
    %v7280 = vld [vmem:[%s6 + $0x68] sm:$0xff]
    %v7281 = vld [vmem:[%s6 + $0x70] sm:$0xff]
    %7283 = vset.pattern.permute.xlu0 0
    %7284 = vperm.xlu0 %7283, %v7267
    %v7285 = vpop.permute.xlu0 %7284
    %7288 = vset.pattern.permute.xlu0 0
    %7289 = vperm.xlu0 %7288, %v7268
    %v7290 = vpop.permute.xlu0 %7289
    %7293 = vset.pattern.permute.xlu0 0
    %7294 = vperm.xlu0 %7293, %v7269
    %v7295 = vpop.permute.xlu0 %7294
    %7298 = vset.pattern.permute.xlu0 0
    %7299 = vperm.xlu0 %7298, %v7270
    %v7300 = vpop.permute.xlu0 %7299
    %7303 = vset.pattern.permute.xlu0 0
    %7304 = vperm.xlu0 %7303, %v7271
    %v7305 = vpop.permute.xlu0 %7304
    %7308 = vset.pattern.permute.xlu0 0
    %7309 = vperm.xlu0 %7308, %v7272
    %v7310 = vpop.permute.xlu0 %7309
    %7313 = vset.pattern.permute.xlu0 0
    %7314 = vperm.xlu0 %7313, %v7273
    %v7315 = vpop.permute.xlu0 %7314
    %7318 = vset.pattern.permute.xlu0 0
    %7319 = vperm.xlu0 %7318, %v7274
    %v7320 = vpop.permute.xlu0 %7319
    %7323 = vset.pattern.permute.xlu0 0
    %7324 = vperm.xlu0 %7323, %v7275
    %v7325 = vpop.permute.xlu0 %7324
    %7328 = vset.pattern.permute.xlu0 0
    %7329 = vperm.xlu0 %7328, %v7276
    %v7330 = vpop.permute.xlu0 %7329
    %7333 = vset.pattern.permute.xlu0 0
    %7334 = vperm.xlu0 %7333, %v7277
    %v7335 = vpop.permute.xlu0 %7334
    %7338 = vset.pattern.permute.xlu0 0
    %7339 = vperm.xlu0 %7338, %v7278
    %v7340 = vpop.permute.xlu0 %7339
    %7343 = vset.pattern.permute.xlu0 0
    %7344 = vperm.xlu0 %7343, %v7279
    %v7345 = vpop.permute.xlu0 %7344
    %7348 = vset.pattern.permute.xlu0 0
    %7349 = vperm.xlu0 %7348, %v7280
    %v7350 = vpop.permute.xlu0 %7349
    %7353 = vset.pattern.permute.xlu0 0
    %7354 = vperm.xlu0 %7353, %v7281
    %v7355 = vpop.permute.xlu0 %7354
    %v7402 = vunpack.c.l.b16 %v7222
    %v7403 = vunpack.c.h.b16 %v7222
    %v7404 = vunpack.c.l.b16 %v7223
    %v7405 = vunpack.c.h.b16 %v7223
    %v7406 = vunpack.c.l.b16 %v7224
    %v7407 = vunpack.c.l.b16 %v7225
    %v7408 = vunpack.c.h.b16 %v7225
    %v7409 = vunpack.c.l.b16 %v7226
    %v7410 = vunpack.c.h.b16 %v7226
    %v7411 = vunpack.c.l.b16 %v7227
    %v7412 = vunpack.c.l.b16 %v7228
    %v7413 = vunpack.c.h.b16 %v7228
    %v7414 = vunpack.c.l.b16 %v7229
    %v7415 = vunpack.c.h.b16 %v7229
    %v7416 = vunpack.c.l.b16 %v7230
    %v7417 = vunpack.c.l.b16 %v7231
    %v7418 = vunpack.c.h.b16 %v7231
    %v7419 = vunpack.c.l.b16 %v7232
    %v7420 = vunpack.c.h.b16 %v7232
    %v7421 = vunpack.c.l.b16 %v7233
    %v7422 = vunpack.c.l.b16 %v7234
    %v7423 = vunpack.c.h.b16 %v7234
    %v7424 = vunpack.c.l.b16 %v7235
    %v7425 = vunpack.c.h.b16 %v7235
    %v7426 = vunpack.c.l.b16 %v7236
    %v7427 = vunpack.c.l.b16 %v7237
    %v7428 = vunpack.c.h.b16 %v7237
    %v7429 = vunpack.c.l.b16 %v7238
    %v7430 = vunpack.c.h.b16 %v7238
    %v7431 = vunpack.c.l.b16 %v7239
    %v7432 = vunpack.c.l.b16 %v7240
    %v7433 = vunpack.c.h.b16 %v7240
    %v7434 = vunpack.c.l.b16 %v7241
    %v7435 = vunpack.c.h.b16 %v7241
    %v7436 = vunpack.c.l.b16 %v7242
    %v7437 = vunpack.c.l.b16 %v7243
    %v7438 = vunpack.c.h.b16 %v7243
    %v7439 = vunpack.c.l.b16 %v7244
    %v7440 = vunpack.c.h.b16 %v7244
    %v7441 = vunpack.c.l.b16 %v7245
    %v7442 = vunpack.c.l.b16 %v7246
    %v7443 = vunpack.c.h.b16 %v7246
    %v7444 = vunpack.c.l.b16 %v7247
    %v7445 = vunpack.c.h.b16 %v7247
    %v7446 = vunpack.c.l.b16 %v7248
    %v7447 = vunpack.c.l.b16 %v7249
    %v7448 = vunpack.c.h.b16 %v7249
    %v7449 = vunpack.c.l.b16 %v7250
    %v7450 = vunpack.c.h.b16 %v7250
    %v7451 = vunpack.c.l.b16 %v7251
    %v7452 = vunpack.c.l.b16 %v7252
    %v7453 = vunpack.c.h.b16 %v7252
    %v7454 = vunpack.c.l.b16 %v7253
    %v7455 = vunpack.c.h.b16 %v7253
    %v7456 = vunpack.c.l.b16 %v7254
    %v7457 = vunpack.c.l.b16 %v7255
    %v7458 = vunpack.c.h.b16 %v7255
    %v7459 = vunpack.c.l.b16 %v7256
    %v7460 = vunpack.c.h.b16 %v7256
    %v7461 = vunpack.c.l.b16 %v7257
    %v7462 = vunpack.c.l.b16 %v7258
    %v7463 = vunpack.c.h.b16 %v7258
    %v7464 = vunpack.c.l.b16 %v7259
    %v7465 = vunpack.c.h.b16 %v7259
    %v7466 = vunpack.c.l.b16 %v7260
    %v7467 = vunpack.c.l.b16 %v7261
    %v7468 = vunpack.c.h.b16 %v7261
    %v7469 = vunpack.c.l.b16 %v7262
    %v7470 = vunpack.c.h.b16 %v7262
    %v7471 = vunpack.c.l.b16 %v7263
    %v7472 = vunpack.c.l.b16 %v7264
    %v7473 = vunpack.c.h.b16 %v7264
    %v7474 = vunpack.c.l.b16 %v7265
    %v7475 = vunpack.c.h.b16 %v7265
    %v7476 = vunpack.c.l.b16 %v7266
    %v7477 = vpack.c.b16 %v7407, %v7402
    %v7478 = vpack.c.b16 %v7408, %v7403
    %v7479 = vpack.c.b16 %v7409, %v7404
    %v7480 = vpack.c.b16 %v7410, %v7405
    %v7481 = vpack.c.b16 %v7411, %v7406
    %v7482 = vpack.c.b16 %v7417, %v7412
    %v7483 = vpack.c.b16 %v7418, %v7413
    %v7484 = vpack.c.b16 %v7419, %v7414
    %v7485 = vpack.c.b16 %v7420, %v7415
    %v7486 = vpack.c.b16 %v7421, %v7416
    %v7487 = vpack.c.b16 %v7427, %v7422
    %v7488 = vpack.c.b16 %v7428, %v7423
    %v7489 = vpack.c.b16 %v7429, %v7424
    %v7490 = vpack.c.b16 %v7430, %v7425
    %v7491 = vpack.c.b16 %v7431, %v7426
    %v7492 = vpack.c.b16 %v7437, %v7432
    %v7493 = vpack.c.b16 %v7438, %v7433
    %v7494 = vpack.c.b16 %v7439, %v7434
    %v7495 = vpack.c.b16 %v7440, %v7435
    %v7496 = vpack.c.b16 %v7441, %v7436
    %v7497 = vpack.c.b16 %v7447, %v7442
    %v7498 = vpack.c.b16 %v7448, %v7443
    %v7499 = vpack.c.b16 %v7449, %v7444
    %v7500 = vpack.c.b16 %v7450, %v7445
    %v7501 = vpack.c.b16 %v7451, %v7446
    %v7502 = vpack.c.b16 %v7457, %v7452
    %v7503 = vpack.c.b16 %v7458, %v7453
    %v7504 = vpack.c.b16 %v7459, %v7454
    %v7505 = vpack.c.b16 %v7460, %v7455
    %v7506 = vpack.c.b16 %v7461, %v7456
    %v7507 = vpack.c.b16 %v7467, %v7462
    %v7508 = vpack.c.b16 %v7468, %v7463
    %v7509 = vpack.c.b16 %v7469, %v7464
    %v7510 = vpack.c.b16 %v7470, %v7465
    %v7511 = vpack.c.b16 %v7471, %v7466
    %v7512 = vpack.c.b16 %v7472, %v7472
    %v7513 = vpack.c.b16 %v7473, %v7473
    %v7514 = vpack.c.b16 %v7474, %v7474
    %v7515 = vpack.c.b16 %v7475, %v7475
    %v7516 = vpack.c.b16 %v7476, %v7476
    %vm7549 = vcmask 523264
    %v7551 = vsel %vm7549, %v7481, 0
    %v7554 = vsel %vm7549, %v7486, 0
    %v7557 = vsel %vm7549, %v7491, 0
    %v7560 = vsel %vm7549, %v7496, 0
    %v7563 = vsel %vm7549, %v7501, 0
    %v7566 = vsel %vm7549, %v7506, 0
    %v7569 = vsel %vm7549, %v7511, 0
    %v7572 = vsel %vm7549, %v7516, 0
    %7574 = vmatpush.bf16.msra.mxu0 %v7193
    %7575 = vmatpush.bf16.msra.mxu0 %v7192
    %7576 = vmatpush.bf16.msra.mxu0 %v7191
    %7577 = vmatpush.bf16.msra.mxu0 %v7190
    %7578 = vmatpush.bf16.msra.mxu0 %v7189
    %7579 = vmatpush.bf16.msra.mxu0 %v7188
    %7580 = vmatpush.bf16.msra.mxu0 %v7187
    %7581 = vmatpush.bf16.msra.mxu0 %v7186
    %7582 = vmatmul.bf16.gmra.mxu0 %v7477
    %v7583 = vpop.f32.mrf.mxu0
    %v7584 = vadd.f32 %v7285, %v7583
    %v7585 = vpop.f32.mrf.mxu0
    %v7586 = vadd.f32 %v7290, %v7585
    %7587 = vmatmul.bf16.gmra.mxu0 %v7482
    %v7588 = vpop.f32.mrf.mxu0
    %v7589 = vadd.f32 %v7295, %v7588
    %v7590 = vpop.f32.mrf.mxu0
    %v7591 = vadd.f32 %v7300, %v7590
    %7592 = vmatmul.bf16.gmra.mxu0 %v7487
    %v7593 = vpop.f32.mrf.mxu0
    %v7594 = vadd.f32 %v7305, %v7593
    %v7595 = vpop.f32.mrf.mxu0
    %v7596 = vadd.f32 %v7310, %v7595
    %7597 = vmatmul.bf16.gmra.mxu0 %v7492
    %v7598 = vpop.f32.mrf.mxu0
    %v7599 = vadd.f32 %v7315, %v7598
    %v7600 = vpop.f32.mrf.mxu0
    %v7601 = vadd.f32 %v7320, %v7600
    %7602 = vmatmul.bf16.gmra.mxu0 %v7497
    %v7603 = vpop.f32.mrf.mxu0
    %v7604 = vadd.f32 %v7325, %v7603
    %v7605 = vpop.f32.mrf.mxu0
    %v7606 = vadd.f32 %v7330, %v7605
    %7607 = vmatmul.bf16.gmra.mxu0 %v7502
    %v7608 = vpop.f32.mrf.mxu0
    %v7609 = vadd.f32 %v7335, %v7608
    %v7610 = vpop.f32.mrf.mxu0
    %v7611 = vadd.f32 %v7340, %v7610
    %7612 = vmatmul.bf16.gmra.mxu0 %v7507
    %v7613 = vpop.f32.mrf.mxu0
    %v7614 = vadd.f32 %v7345, %v7613
    %v7615 = vpop.f32.mrf.mxu0
    %v7616 = vadd.f32 %v7350, %v7615
    %7617 = vmatmul.bf16.gmra.mxu0 %v7512
    %v7618 = vpop.f32.mrf.mxu0
    %v7619 = vadd.f32 %v7355, %v7618
    %v7620 = vpop.f32.mrf.mxu0
    %7621 = vdwg.mxu0
    %7622 = vmatpush.bf16.msra.mxu0 %v7201
    %7623 = vmatpush.bf16.msra.mxu0 %v7200
    %7624 = vmatpush.bf16.msra.mxu0 %v7199
    %7625 = vmatpush.bf16.msra.mxu0 %v7198
    %7626 = vmatpush.bf16.msra.mxu0 %v7197
    %7627 = vmatpush.bf16.msra.mxu0 %v7196
    %7628 = vmatpush.bf16.msra.mxu0 %v7195
    %7629 = vmatpush.bf16.msra.mxu0 %v7194
    %7630 = vmatmul.bf16.gmra.mxu0 %v7478
    %v7631 = vpop.f32.mrf.mxu0
    %v7632 = vadd.f32 %v7584, %v7631
    %v7633 = vpop.f32.mrf.mxu0
    %v7634 = vadd.f32 %v7586, %v7633
    %7635 = vmatmul.bf16.gmra.mxu0 %v7483
    %v7636 = vpop.f32.mrf.mxu0
    %v7637 = vadd.f32 %v7589, %v7636
    %v7638 = vpop.f32.mrf.mxu0
    %v7639 = vadd.f32 %v7591, %v7638
    %7640 = vmatmul.bf16.gmra.mxu0 %v7488
    %v7641 = vpop.f32.mrf.mxu0
    %v7642 = vadd.f32 %v7594, %v7641
    %v7643 = vpop.f32.mrf.mxu0
    %v7644 = vadd.f32 %v7596, %v7643
    %7645 = vmatmul.bf16.gmra.mxu0 %v7493
    %v7646 = vpop.f32.mrf.mxu0
    %v7647 = vadd.f32 %v7599, %v7646
    %v7648 = vpop.f32.mrf.mxu0
    %v7649 = vadd.f32 %v7601, %v7648
    %7650 = vmatmul.bf16.gmra.mxu0 %v7498
    %v7651 = vpop.f32.mrf.mxu0
    %v7652 = vadd.f32 %v7604, %v7651
    %v7653 = vpop.f32.mrf.mxu0
    %v7654 = vadd.f32 %v7606, %v7653
    %7655 = vmatmul.bf16.gmra.mxu0 %v7503
    %v7656 = vpop.f32.mrf.mxu0
    %v7657 = vadd.f32 %v7609, %v7656
    %v7658 = vpop.f32.mrf.mxu0
    %v7659 = vadd.f32 %v7611, %v7658
    %7660 = vmatmul.bf16.gmra.mxu0 %v7508
    %v7661 = vpop.f32.mrf.mxu0
    %v7662 = vadd.f32 %v7614, %v7661
    %v7663 = vpop.f32.mrf.mxu0
    %v7664 = vadd.f32 %v7616, %v7663
    %7665 = vmatmul.bf16.gmra.mxu0 %v7513
    %v7666 = vpop.f32.mrf.mxu0
    %v7667 = vadd.f32 %v7619, %v7666
    %v7668 = vpop.f32.mrf.mxu0
    %7669 = vdwg.mxu0
    %7670 = vmatpush.bf16.msra.mxu0 %v7209
    %7671 = vmatpush.bf16.msra.mxu0 %v7208
    %7672 = vmatpush.bf16.msra.mxu0 %v7207
    %7673 = vmatpush.bf16.msra.mxu0 %v7206
    %7674 = vmatpush.bf16.msra.mxu0 %v7205
    %7675 = vmatpush.bf16.msra.mxu0 %v7204
    %7676 = vmatpush.bf16.msra.mxu0 %v7203
    %7677 = vmatpush.bf16.msra.mxu0 %v7202
    %7678 = vmatmul.bf16.gmra.mxu0 %v7479
    %v7679 = vpop.f32.mrf.mxu0
    %v7680 = vadd.f32 %v7632, %v7679
    %v7681 = vpop.f32.mrf.mxu0
    %v7682 = vadd.f32 %v7634, %v7681
    %7683 = vmatmul.bf16.gmra.mxu0 %v7484
    %v7684 = vpop.f32.mrf.mxu0
    %v7685 = vadd.f32 %v7637, %v7684
    %v7686 = vpop.f32.mrf.mxu0
    %v7687 = vadd.f32 %v7639, %v7686
    %7688 = vmatmul.bf16.gmra.mxu0 %v7489
    %v7689 = vpop.f32.mrf.mxu0
    %v7690 = vadd.f32 %v7642, %v7689
    %v7691 = vpop.f32.mrf.mxu0
    %v7692 = vadd.f32 %v7644, %v7691
    %7693 = vmatmul.bf16.gmra.mxu0 %v7494
    %v7694 = vpop.f32.mrf.mxu0
    %v7695 = vadd.f32 %v7647, %v7694
    %v7696 = vpop.f32.mrf.mxu0
    %v7697 = vadd.f32 %v7649, %v7696
    %7698 = vmatmul.bf16.gmra.mxu0 %v7499
    %v7699 = vpop.f32.mrf.mxu0
    %v7700 = vadd.f32 %v7652, %v7699
    %v7701 = vpop.f32.mrf.mxu0
    %v7702 = vadd.f32 %v7654, %v7701
    %7703 = vmatmul.bf16.gmra.mxu0 %v7504
    %v7704 = vpop.f32.mrf.mxu0
    %v7705 = vadd.f32 %v7657, %v7704
    %v7706 = vpop.f32.mrf.mxu0
    %v7707 = vadd.f32 %v7659, %v7706
    %7708 = vmatmul.bf16.gmra.mxu0 %v7509
    %v7709 = vpop.f32.mrf.mxu0
    %v7710 = vadd.f32 %v7662, %v7709
    %v7711 = vpop.f32.mrf.mxu0
    %v7712 = vadd.f32 %v7664, %v7711
    %7713 = vmatmul.bf16.gmra.mxu0 %v7514
    %v7714 = vpop.f32.mrf.mxu0
    %v7715 = vadd.f32 %v7667, %v7714
    %v7716 = vpop.f32.mrf.mxu0
    %7717 = vdwg.mxu0
    %7718 = vmatpush.bf16.msra.mxu0 %v7217
    %7719 = vmatpush.bf16.msra.mxu0 %v7216
    %7720 = vmatpush.bf16.msra.mxu0 %v7215
    %7721 = vmatpush.bf16.msra.mxu0 %v7214
    %7722 = vmatpush.bf16.msra.mxu0 %v7213
    %7723 = vmatpush.bf16.msra.mxu0 %v7212
    %7724 = vmatpush.bf16.msra.mxu0 %v7211
    %7725 = vmatpush.bf16.msra.mxu0 %v7210
    %7726 = vmatmul.bf16.gmra.mxu0 %v7480
    %v7727 = vpop.f32.mrf.mxu0
    %v7728 = vadd.f32 %v7680, %v7727
    %v7729 = vpop.f32.mrf.mxu0
    %v7730 = vadd.f32 %v7682, %v7729
    %7731 = vmatmul.bf16.gmra.mxu0 %v7485
    %v7732 = vpop.f32.mrf.mxu0
    %v7733 = vadd.f32 %v7685, %v7732
    %v7734 = vpop.f32.mrf.mxu0
    %v7735 = vadd.f32 %v7687, %v7734
    %7736 = vmatmul.bf16.gmra.mxu0 %v7490
    %v7737 = vpop.f32.mrf.mxu0
    %v7738 = vadd.f32 %v7690, %v7737
    %v7739 = vpop.f32.mrf.mxu0
    %v7740 = vadd.f32 %v7692, %v7739
    %7741 = vmatmul.bf16.gmra.mxu0 %v7495
    %v7742 = vpop.f32.mrf.mxu0
    %v7743 = vadd.f32 %v7695, %v7742
    %v7744 = vpop.f32.mrf.mxu0
    %v7745 = vadd.f32 %v7697, %v7744
    %7746 = vmatmul.bf16.gmra.mxu0 %v7500
    %v7747 = vpop.f32.mrf.mxu0
    %v7748 = vadd.f32 %v7700, %v7747
    %v7749 = vpop.f32.mrf.mxu0
    %v7750 = vadd.f32 %v7702, %v7749
    %7751 = vmatmul.bf16.gmra.mxu0 %v7505
    %v7752 = vpop.f32.mrf.mxu0
    %v7753 = vadd.f32 %v7705, %v7752
    %v7754 = vpop.f32.mrf.mxu0
    %v7755 = vadd.f32 %v7707, %v7754
    %7756 = vmatmul.bf16.gmra.mxu0 %v7510
    %v7757 = vpop.f32.mrf.mxu0
    %v7758 = vadd.f32 %v7710, %v7757
    %v7759 = vpop.f32.mrf.mxu0
    %v7760 = vadd.f32 %v7712, %v7759
    %7761 = vmatmul.bf16.gmra.mxu0 %v7515
    %v7762 = vpop.f32.mrf.mxu0
    %v7763 = vadd.f32 %v7715, %v7762
    %v7764 = vpop.f32.mrf.mxu0
    %7765 = vdwg.mxu0
    %7766 = vmatpush.bf16.msra.mxu0 0
    %7767 = vmatpush.bf16.msra.mxu0 0
    %7768 = vmatpush.bf16.msra.mxu0 0
    %7769 = vmatpush.bf16.msra.mxu0 0
    %7770 = vmatpush.bf16.msra.mxu0 %v7221
    %7771 = vmatpush.bf16.msra.mxu0 %v7220
    %7772 = vmatpush.bf16.msra.mxu0 %v7219
    %7773 = vmatpush.bf16.msra.mxu0 %v7218
    %7774 = vmatmul.bf16.gmra.mxu0 %v7551
    %v7775 = vpop.f32.mrf.mxu0
    %v7776 = vadd.f32 %v7728, %v7775
    %v7777 = vpop.f32.mrf.mxu0
    %v7778 = vadd.f32 %v7730, %v7777
    %7779 = vmatmul.bf16.gmra.mxu0 %v7554
    %v7780 = vpop.f32.mrf.mxu0
    %v7781 = vadd.f32 %v7733, %v7780
    %v7782 = vpop.f32.mrf.mxu0
    %v7783 = vadd.f32 %v7735, %v7782
    %7784 = vmatmul.bf16.gmra.mxu0 %v7557
    %v7785 = vpop.f32.mrf.mxu0
    %v7786 = vadd.f32 %v7738, %v7785
    %v7787 = vpop.f32.mrf.mxu0
    %v7788 = vadd.f32 %v7740, %v7787
    %7789 = vmatmul.bf16.gmra.mxu0 %v7560
    %v7790 = vpop.f32.mrf.mxu0
    %v7791 = vadd.f32 %v7743, %v7790
    %v7792 = vpop.f32.mrf.mxu0
    %v7793 = vadd.f32 %v7745, %v7792
    %7794 = vmatmul.bf16.gmra.mxu0 %v7563
    %v7795 = vpop.f32.mrf.mxu0
    %v7796 = vadd.f32 %v7748, %v7795
    %v7797 = vpop.f32.mrf.mxu0
    %v7798 = vadd.f32 %v7750, %v7797
    %7799 = vmatmul.bf16.gmra.mxu0 %v7566
    %v7800 = vpop.f32.mrf.mxu0
    %v7801 = vadd.f32 %v7753, %v7800
    %v7802 = vpop.f32.mrf.mxu0
    %v7803 = vadd.f32 %v7755, %v7802
    %7804 = vmatmul.bf16.gmra.mxu0 %v7569
    %v7805 = vpop.f32.mrf.mxu0
    %v7806 = vadd.f32 %v7758, %v7805
    %v7807 = vpop.f32.mrf.mxu0
    %v7808 = vadd.f32 %v7760, %v7807
    %7809 = vmatmul.bf16.gmra.mxu0 %v7572
    %v7810 = vpop.f32.mrf.mxu0
    %v7811 = vadd.f32 %v7763, %v7810
    %v7812 = vpop.f32.mrf.mxu0
    %7813 = vdwg.mxu0
    %v7814 = vmax.f32 %v7776, 0.0
    %v7815 = vmax.f32 %v7778, 0.0
    %v7816 = vmax.f32 %v7781, 0.0
    %v7817 = vmax.f32 %v7783, 0.0
    %v7818 = vmax.f32 %v7786, 0.0
    %v7819 = vmax.f32 %v7788, 0.0
    %v7820 = vmax.f32 %v7791, 0.0
    %v7821 = vmax.f32 %v7793, 0.0
    %v7822 = vmax.f32 %v7796, 0.0
    %v7823 = vmax.f32 %v7798, 0.0
    %v7824 = vmax.f32 %v7801, 0.0
    %v7825 = vmax.f32 %v7803, 0.0
    %v7826 = vmax.f32 %v7806, 0.0
    %v7827 = vmax.f32 %v7808, 0.0
    %v7828 = vmax.f32 %v7811, 0.0
    %v7829 = vpack.c.bf16 %v7815, %v7814
    %v7830 = vpack.c.bf16 %v7817, %v7816
    %v7831 = vpack.c.bf16 %v7819, %v7818
    %v7832 = vpack.c.bf16 %v7821, %v7820
    %v7833 = vpack.c.bf16 %v7823, %v7822
    %v7834 = vpack.c.bf16 %v7825, %v7824
    %v7835 = vpack.c.bf16 %v7827, %v7826
    %v7836 = vpack.c.bf16 %v7828, %v7828
    %v7837 = vld [vmem:[%s7] sm:$0xf]
    %v7838 = vld [vmem:[%s7 + $0x4] sm:$0xf]
    %v7839 = vld [vmem:[%s7 + $0x8] sm:$0xf]
    %v7840 = vld [vmem:[%s7 + $0xc] sm:$0xf]
    %v7841 = vld [vmem:[%s7 + $0x10] sm:$0xf]
    %v7842 = vld [vmem:[%s7 + $0x14] sm:$0xf]
    %v7843 = vld [vmem:[%s7 + $0x18] sm:$0xf]
    %v7844 = vld [vmem:[%s7 + $0x1c] sm:$0xf]
    %v7845 = vld [vmem:[%s7 + $0x20] sm:$0xf]
    %v7846 = vld [vmem:[%s7 + $0x24] sm:$0xf]
    %v7847 = vld [vmem:[%s7 + $0x28] sm:$0x3]
    %v7848 = vld [vmem:[%s8] sm:$0xff]
    %v7849 = vld [vmem:[%s8 + $0x8] sm:$0xff]
    %v7850 = vld [vmem:[%s8 + $0x10] sm:$0xff]
    %v7851 = vld [vmem:[%s8 + $0x18] sm:$0xff]
    %v7852 = vld [vmem:[%s8 + $0x20] sm:$0xff]
    %v7853 = vld [vmem:[%s8 + $0x28] sm:$0xff]
    %v7854 = vld [vmem:[%s8 + $0x30] sm:$0xff]
    %v7855 = vld [vmem:[%s8 + $0x38] sm:$0xff]
    %v7856 = vld [vmem:[%s8 + $0x40] sm:$0xff]
    %v7857 = vld [vmem:[%s8 + $0x48] sm:$0xff]
    %v7858 = vld [vmem:[%s8 + $0x50] sm:$0xf]
    %7860 = vset.pattern.permute.xlu0 0
    %7861 = vperm.xlu0 %7860, %v7848
    %v7862 = vpop.permute.xlu0 %7861
    %7865 = vset.pattern.permute.xlu0 0
    %7866 = vperm.xlu0 %7865, %v7849
    %v7867 = vpop.permute.xlu0 %7866
    %7870 = vset.pattern.permute.xlu0 0
    %7871 = vperm.xlu0 %7870, %v7850
    %v7872 = vpop.permute.xlu0 %7871
    %7875 = vset.pattern.permute.xlu0 0
    %7876 = vperm.xlu0 %7875, %v7851
    %v7877 = vpop.permute.xlu0 %7876
    %7880 = vset.pattern.permute.xlu0 0
    %7881 = vperm.xlu0 %7880, %v7852
    %v7882 = vpop.permute.xlu0 %7881
    %7885 = vset.pattern.permute.xlu0 0
    %7886 = vperm.xlu0 %7885, %v7853
    %v7887 = vpop.permute.xlu0 %7886
    %7890 = vset.pattern.permute.xlu0 0
    %7891 = vperm.xlu0 %7890, %v7854
    %v7892 = vpop.permute.xlu0 %7891
    %7895 = vset.pattern.permute.xlu0 0
    %7896 = vperm.xlu0 %7895, %v7855
    %v7897 = vpop.permute.xlu0 %7896
    %7900 = vset.pattern.permute.xlu0 0
    %7901 = vperm.xlu0 %7900, %v7856
    %v7902 = vpop.permute.xlu0 %7901
    %7905 = vset.pattern.permute.xlu0 0
    %7906 = vperm.xlu0 %7905, %v7857
    %v7907 = vpop.permute.xlu0 %7906
    %7910 = vset.pattern.permute.xlu0 0
    %7911 = vperm.xlu0 %7910, %v7858
    %v7912 = vpop.permute.xlu0 %7911
    %v7925 = vunpack.c.l.b16 %v7837
    %v7926 = vunpack.c.l.b16 %v7838
    %v7927 = vunpack.c.l.b16 %v7839
    %v7928 = vunpack.c.l.b16 %v7840
    %v7929 = vunpack.c.l.b16 %v7841
    %v7930 = vunpack.c.l.b16 %v7842
    %v7931 = vunpack.c.l.b16 %v7843
    %v7932 = vunpack.c.l.b16 %v7844
    %v7933 = vunpack.c.l.b16 %v7845
    %v7934 = vunpack.c.l.b16 %v7846
    %v7935 = vunpack.c.l.b16 %v7847
    %v7936 = vpack.c.b16 %v7926, %v7925
    %v7937 = vpack.c.b16 %v7928, %v7927
    %v7938 = vpack.c.b16 %v7930, %v7929
    %v7939 = vpack.c.b16 %v7932, %v7931
    %v7940 = vpack.c.b16 %v7934, %v7933
    %v7941 = vpack.c.b16 %v7935, %v7935
    %vm7942 = vcmask 982016
    %v7944 = vsel %vm7942, %v7936, 0
    %v7947 = vsel %vm7942, %v7937, 0
    %v7950 = vsel %vm7942, %v7938, 0
    %v7953 = vsel %vm7942, %v7939, 0
    %v7956 = vsel %vm7942, %v7940, 0
    %v7959 = vsel %vm7942, %v7941, 0
    %vm7961 = vcmask 1043456
    %v7963 = vsel %vm7961, %v7836, 0
    %7965 = vmatpush.bf16.msra.mxu0 %v7963
    %7966 = vmatpush.bf16.msra.mxu0 %v7835
    %7967 = vmatpush.bf16.msra.mxu0 %v7834
    %7968 = vmatpush.bf16.msra.mxu0 %v7833
    %7969 = vmatpush.bf16.msra.mxu0 %v7832
    %7970 = vmatpush.bf16.msra.mxu0 %v7831
    %7971 = vmatpush.bf16.msra.mxu0 %v7830
    %7972 = vmatpush.bf16.msra.mxu0 %v7829
    %7973 = vmatmul.bf16.gmra.mxu0 %v7944
    %v7974 = vpop.f32.mrf.mxu0
    %v7975 = vadd.f32 %v7862, %v7974
    %v7976 = vpop.f32.mrf.mxu0
    %v7977 = vadd.f32 %v7867, %v7976
    %7978 = vmatmul.bf16.gmra.mxu0 %v7947
    %v7979 = vpop.f32.mrf.mxu0
    %v7980 = vadd.f32 %v7872, %v7979
    %v7981 = vpop.f32.mrf.mxu0
    %v7982 = vadd.f32 %v7877, %v7981
    %7983 = vmatmul.bf16.gmra.mxu0 %v7950
    %v7984 = vpop.f32.mrf.mxu0
    %v7985 = vadd.f32 %v7882, %v7984
    %v7986 = vpop.f32.mrf.mxu0
    %v7987 = vadd.f32 %v7887, %v7986
    %7988 = vmatmul.bf16.gmra.mxu0 %v7953
    %v7989 = vpop.f32.mrf.mxu0
    %v7990 = vadd.f32 %v7892, %v7989
    %v7991 = vpop.f32.mrf.mxu0
    %v7992 = vadd.f32 %v7897, %v7991
    %7993 = vmatmul.bf16.gmra.mxu0 %v7956
    %v7994 = vpop.f32.mrf.mxu0
    %v7995 = vadd.f32 %v7902, %v7994
    %v7996 = vpop.f32.mrf.mxu0
    %v7997 = vadd.f32 %v7907, %v7996
    %7998 = vmatmul.bf16.gmra.mxu0 %v7959
    %v7999 = vpop.f32.mrf.mxu0
    %v8000 = vadd.f32 %v7912, %v7999
    %v8001 = vpop.f32.mrf.mxu0
    %8002 = vdwg.mxu0
    %v8003 = vmax.f32 %v7975, 0.0
    %v8004 = vmax.f32 %v7977, 0.0
    %v8005 = vmax.f32 %v7980, 0.0
    %v8006 = vmax.f32 %v7982, 0.0
    %v8007 = vmax.f32 %v7985, 0.0
    %v8008 = vmax.f32 %v7987, 0.0
    %v8009 = vmax.f32 %v7990, 0.0
    %v8010 = vmax.f32 %v7992, 0.0
    %v8011 = vmax.f32 %v7995, 0.0
    %v8012 = vmax.f32 %v7997, 0.0
    %v8013 = vmax.f32 %v8000, 0.0
    %v8014 = vpack.c.bf16 %v8004, %v8003
    %v8015 = vpack.c.bf16 %v8006, %v8005
    %v8016 = vpack.c.bf16 %v8008, %v8007
    %v8017 = vpack.c.bf16 %v8010, %v8009
    %v8018 = vpack.c.bf16 %v8012, %v8011
    %v8019 = vpack.c.bf16 %v8013, %v8013
    %v8020 = vld [vmem:[%s9] sm:$0xf]
    %v8021 = vld [vmem:[%s9 + $0x4] sm:$0x1]
    %v8022 = vld [vmem:[%s10] sm:$0xff]
    %v8023 = vld [vmem:[%s10 + $0x8] sm:$0x3]
    %8025 = vset.pattern.permute.xlu0 0
    %8026 = vperm.xlu0 %8025, %v8022
    %v8027 = vpop.permute.xlu0 %8026
    %8030 = vset.pattern.permute.xlu0 0
    %8031 = vperm.xlu0 %8030, %v8023
    %v8032 = vpop.permute.xlu0 %8031
    %v8036 = vunpack.c.l.b16 %v8020
    %v8037 = vunpack.c.l.b16 %v8021
    %v8038 = vpack.c.b16 %v8037, %v8036
    %vm8039 = vcmask 687104
    %v8041 = vsel %vm8039, %v8038, 0
    %vm8043 = vcmask 1041408
    %v8045 = vsel %vm8043, %v8019, 0
    %8047 = vmatpush.bf16.msra.mxu0 0
    %8048 = vmatpush.bf16.msra.mxu0 0
    %8049 = vmatpush.bf16.msra.mxu0 %v8045
    %8050 = vmatpush.bf16.msra.mxu0 %v8018
    %8051 = vmatpush.bf16.msra.mxu0 %v8017
    %8052 = vmatpush.bf16.msra.mxu0 %v8016
    %8053 = vmatpush.bf16.msra.mxu0 %v8015
    %8054 = vmatpush.bf16.msra.mxu0 %v8014
    %8055 = vmatmul.bf16.gmra.mxu0 %v8041
    %v8056 = vpop.f32.mrf.mxu0
    %v8057 = vadd.f32 %v8027, %v8056
    %v8058 = vpop.f32.mrf.mxu0
    %v8059 = vadd.f32 %v8032, %v8058
    %8060 = vdwg.mxu0
    %vm8061 = vcmask 64512
    %8062 = vst.msk [vmem:[%s11] sm:$0xff] %vm8061, %v8057
    %vm8063 = vcmask 58368
    %8064 = vst.msk [vmem:[%s11 + $0x8] sm:$0x3] %vm8063, %v8059
    // Predicated region
    $region76: #{net_forward.1} parent=1 // pred_check
      _
    $region77: #{net_forward.1} parent=1 // pred_check_branch
      %8066 = sbr.rel (0) target = $region79
    $region78: #{net_forward.1} parent=1 // pred_region
      _
    $region79: #{net_forward.1} parent=1 // pred_fallthru
      _
    // Predicated region
    $region80: #{net_forward.1} parent=1 // pred_check
      _
    $region81: #{net_forward.1} parent=1 // pred_check_branch
      %8068 = sbr.rel (0) target = $region83
    $region82: #{net_forward.1} parent=1 // pred_region
      _
    $region83: #{net_forward.1} parent=1 // pred_fallthru
      _
    %8069 = vsyncpa [#allocation5], 1
    %8070 = vsyncpa [#allocation7], 1
    %8071 = vsyncpa [#allocation10], 1

</llo_original>
